<compile_context>
chip_gen: v6e
topology: v6e:2x2x1
jax: 0.10.0
libtpu: 0.0.40
codegen_flags: <defaults>
</compile_context>

<pallas_src>
import functools
import math

import jax
import jax.numpy as jnp
from jax.experimental import pallas as pl
from jax.experimental.pallas import tpu as pltpu

# ----- scaled-down ViT hyperparameters (structure matches vit_base_..._TransReID) -----
PATCH       = 16            # hard-coded in the module's forward (Shape // 16)
EMBED_DIM   = 256           # 768 in vit_base, scaled down
DEPTH       = 2             # 12 in vit_base, scaled down
NUM_HEADS   = 4             # 12 in vit_base
HEAD_DIM    = EMBED_DIM // NUM_HEADS
MLP_DIM     = 4 * EMBED_DIM
NUM_CLASSES = 16
CLS_PAD     = 128           # classifier output padded to a full lane tile
LN_EPS      = 1e-6          # timm ViT LayerNorm eps
BN_EPS      = 1e-5          # nn.BatchNorm2d default
ATTN_SCALE  = HEAD_DIM ** -0.5


# ---------------------------------------------------------------------------
# in-kernel helpers
# ---------------------------------------------------------------------------
def _layernorm(x, g, b):
    mu = jnp.mean(x, axis=-1, keepdims=True)
    xc = x - mu
    var = jnp.mean(xc * xc, axis=-1, keepdims=True)
    return xc * jax.lax.rsqrt(var + LN_EPS) * g + b


def _gelu(x):
    # TODO(synk): torch nn.GELU() is the exact erf GELU; tanh approximation is
    # used here for portable Mosaic lowering (small numeric difference).
    c = math.sqrt(2.0 / math.pi)
    return 0.5 * x * (1.0 + jnp.tanh(c * (x + 0.044715 * x * x * x)))


# ---------------------------------------------------------------------------
# kernel 1: patch-embedding projection (conv k16 s16 as a matmul), M-tiled
# ---------------------------------------------------------------------------
def _dense_kernel(x_ref, w_ref, b_ref, o_ref):
    o_ref[...] = (jnp.dot(x_ref[...], w_ref[...],
                          preferred_element_type=jnp.float32) + b_ref[...])


def patch_embed(patches_bf16, w_bf16, b_f32):
    M0, K = patches_bf16.shape
    N = w_bf16.shape[1]
    tm = 256 if M0 >= 256 else max(8, ((M0 + 7) // 8) * 8)
    Mp = ((M0 + tm - 1) // tm) * tm
    if Mp != M0:
        patches_bf16 = jnp.pad(patches_bf16, ((0, Mp - M0), (0, 0)))
    out = pl.pallas_call(
        _dense_kernel,
        out_shape=jax.ShapeDtypeStruct((Mp, N), jnp.float32),
        grid=(Mp // tm,),
        in_specs=[pl.BlockSpec((tm, K), lambda i: (i, 0)),
                  pl.BlockSpec((K, N), lambda i: (0, 0)),
                  pl.BlockSpec((1, N), lambda i: (0, 0))],
        out_specs=pl.BlockSpec((tm, N), lambda i: (i, 0)),
        compiler_params=pltpu.CompilerParams(dimension_semantics=("parallel",)),
    )(patches_bf16, w_bf16, b_f32)
    return out[:M0]


# ---------------------------------------------------------------------------
# kernel 2: fused transformer stack + final LN + BN bottleneck + classifier
# grid = (batch_tiles, DEPTH); activation lives in VMEM scratch across layers.
# ---------------------------------------------------------------------------
def _stack_kernel(x_ref, ln1g_ref, ln1b_ref, wqkv_ref, bqkv_ref, wph_ref,
                  bproj_ref, ln2g_ref, ln2b_ref, wfc1_ref, bfc1_ref,
                  wfc2_ref, bfc2_ref, normg_ref, normb_ref, bng_ref, bnb_ref,
                  bnrm_ref, bnrv_ref, wcls_ref,
                  tok_ref, gf_ref, bnf_ref, cls_ref, act_ref, *, t_real):
    layer = pl.program_id(1)
    tb, tp, d = act_ref.shape
    m = tb * tp
    n_heads = wph_ref.shape[1]
    hdim = wph_ref.shape[2]

    @pl.when(layer == 0)
    def _():
        act_ref[...] = x_ref[...]

    x2 = act_ref[...].reshape(m, d)                       # (M, D) f32, flattened

    # --- multi-head self attention (pre-LN) ---
    h = _layernorm(x2, ln1g_ref[0], ln1b_ref[0])
    qkv = jnp.dot(h.astype(jnp.bfloat16), wqkv_ref[0],
                  preferred_element_type=jnp.float32) + bqkv_ref[0]   # (M, 3D)
    qkv3 = qkv.reshape(tb, tp, 3 * d)

    # mask padded key tokens out of the softmax
    key_idx = jax.lax.broadcasted_iota(jnp.int32, (1, 1, tp), 2)
    key_bias = jnp.where(key_idx < t_real, 0.0, -1e30)

    attn = None
    for hi in range(n_heads):
        q = qkv3[:, :, hi * hdim:(hi + 1) * hdim].astype(jnp.bfloat16)
        k = qkv3[:, :, d + hi * hdim:d + (hi + 1) * hdim].astype(jnp.bfloat16)
        v = qkv3[:, :, 2 * d + hi * hdim:2 * d + (hi + 1) * hdim].astype(jnp.bfloat16)
        s = jnp.einsum('bqd,bkd->bqk', q, k,
                       preferred_element_type=jnp.float32) * ATTN_SCALE
        s = s + key_bias
        s = s - jnp.max(s, axis=-1, keepdims=True)
        e = jnp.exp(s)
        p = e * pl.reciprocal(jnp.sum(e, axis=-1, keepdims=True), approx=True)
        o = jnp.einsum('bqk,bkd->bqd', p.astype(jnp.bfloat16), v,
                       preferred_element_type=jnp.float32)            # (tb, tp, hd)
        # accumulate directly through this head's slice of the projection
        contrib = jnp.dot(o.reshape(m, hdim).astype(jnp.bfloat16), wph_ref[0, hi],
                          preferred_element_type=jnp.float32)         # (M, D)
        attn = contrib if attn is None else attn + contrib
    attn = attn + bproj_ref[0]
    x2 = x2 + attn                                        # residual (drop_path = id)

    # --- MLP ---
    h2 = _layernorm(x2, ln2g_ref[0], ln2b_ref[0])
    h2 = jnp.dot(h2.astype(jnp.bfloat16), wfc1_ref[0],
                 preferred_element_type=jnp.float32) + bfc1_ref[0]
    h2 = _gelu(h2)
    h2 = jnp.dot(h2.astype(jnp.bfloat16), wfc2_ref[0],
                 preferred_element_type=jnp.float32) + bfc2_ref[0]
    x2 = x2 + h2                                          # residual
    act_ref[...] = x2.reshape(tb, tp, d)

    # --- last layer: final LayerNorm + BN bottleneck + classifier ---
    @pl.when(layer == pl.num_programs(1) - 1)
    def _():
        y = _layernorm(act_ref[...].reshape(m, d), normg_ref[...], normb_ref[...])
        y3 = y.reshape(tb, tp, d)
        tok_ref[...] = y3
        g = y3[:, 0, :]                                   # (tb, D) cls token
        gf_ref[0] = g
        inv = jax.lax.rsqrt(bnrv_ref[...] + BN_EPS)
        bnv = (g - bnrm_ref[...]) * inv * bng_ref[...] + bnb_ref[...]
        bnf_ref[0] = bnv
        cls_ref[0] = jnp.dot(bnv.astype(jnp.bfloat16), wcls_ref[...],
                             preferred_element_type=jnp.float32)


def _pick_batch_tile(B, Tp):
    # Flatten as much batch as possible into the matmul M dimension; once
    # B*Tp gets large, split into tiles so the leading grid axis can shard
    # across TensorCores (v7x megacore).
    if B * Tp <= 256:
        return B
    tb = max(1, 256 // Tp)
    while tb > 1 and B % tb:
        tb -= 1
    return tb


def transformer_stack(tok, params, t_real):
    B, Tp, D = tok.shape
    TB = _pick_batch_tile(B, Tp)
    NB = B // TB
    L = params["ln1_g"].shape[0]
    H = params["w_proj_h"].shape[1]
    HD = params["w_proj_h"].shape[2]
    MLP = params["w_fc1"].shape[2]
    CP = params["w_cls"].shape[1]

    kernel = functools.partial(_stack_kernel, t_real=t_real)

    in_specs = [
        pl.BlockSpec((TB, Tp, D), lambda b, l: (b, 0, 0)),          # tokens
        pl.BlockSpec((1, 1, D), lambda b, l: (l, 0, 0)),            # ln1 gamma
        pl.BlockSpec((1, 1, D), lambda b, l: (l, 0, 0)),            # ln1 beta
        pl.BlockSpec((1, D, 3 * D), lambda b, l: (l, 0, 0)),        # qkv weight
        pl.BlockSpec((1, 1, 3 * D), lambda b, l: (l, 0, 0)),        # qkv bias
        pl.BlockSpec((1, H, HD, D), lambda b, l: (l, 0, 0, 0)),     # proj weight (per head)
        pl.BlockSpec((1, 1, D), lambda b, l: (l, 0, 0)),            # proj bias
        pl.BlockSpec((1, 1, D), lambda b, l: (l, 0, 0)),            # ln2 gamma
        pl.BlockSpec((1, 1, D), lambda b, l: (l, 0, 0)),            # ln2 beta
        pl.BlockSpec((1, D, MLP), lambda b, l: (l, 0, 0)),          # fc1 weight
        pl.BlockSpec((1, 1, MLP), lambda b, l: (l, 0, 0)),          # fc1 bias
        pl.BlockSpec((1, MLP, D), lambda b, l: (l, 0, 0)),          # fc2 weight
        pl.BlockSpec((1, 1, D), lambda b, l: (l, 0, 0)),            # fc2 bias
        pl.BlockSpec((1, D), lambda b, l: (0, 0)),                  # final LN gamma
        pl.BlockSpec((1, D), lambda b, l: (0, 0)),                  # final LN beta
        pl.BlockSpec((1, D), lambda b, l: (0, 0)),                  # bn gamma
        pl.BlockSpec((1, D), lambda b, l: (0, 0)),                  # bn beta
        pl.BlockSpec((1, D), lambda b, l: (0, 0)),                  # bn running mean
        pl.BlockSpec((1, D), lambda b, l: (0, 0)),                  # bn running var
        pl.BlockSpec((D, CP), lambda b, l: (0, 0)),                 # classifier weight (padded)
    ]
    out_specs = (
        pl.BlockSpec((TB, Tp, D), lambda b, l: (b, 0, 0)),          # normalized tokens
        pl.BlockSpec((1, TB, D), lambda b, l: (b, 0, 0)),           # global feat
        pl.BlockSpec((1, TB, D), lambda b, l: (b, 0, 0)),           # bn feat
        pl.BlockSpec((1, TB, CP), lambda b, l: (b, 0, 0)),          # class logits (padded)
    )
    out_shape = (
        jax.ShapeDtypeStruct((B, Tp, D), jnp.float32),
        jax.ShapeDtypeStruct((NB, TB, D), jnp.float32),
        jax.ShapeDtypeStruct((NB, TB, D), jnp.float32),
        jax.ShapeDtypeStruct((NB, TB, CP), jnp.float32),
    )

    return pl.pallas_call(
        kernel,
        out_shape=out_shape,
        grid=(NB, L),
        in_specs=in_specs,
        out_specs=out_specs,
        scratch_shapes=[pltpu.VMEM((TB, Tp, D), jnp.float32)],
        compiler_params=pltpu.CompilerParams(
            dimension_semantics=("parallel", "arbitrary")),
    )(tok,
      params["ln1_g"], params["ln1_b"], params["w_qkv"], params["b_qkv"],
      params["w_proj_h"], params["b_proj"], params["ln2_g"], params["ln2_b"],
      params["w_fc1"], params["b_fc1"], params["w_fc2"], params["b_fc2"],
      params["norm_g"], params["norm_b"], params["bn_gamma"], params["bn_beta"],
      params["bn_rm"], params["bn_rv"], params["w_cls"])


# ---------------------------------------------------------------------------
# parameter init (deterministic, mirrors the module's __init__ shapes)
# layer params stacked along a leading DEPTH axis; matmul weights in bf16.
# ---------------------------------------------------------------------------
def init_params(key, num_patches):
    P = 3 * PATCH * PATCH
    keys = jax.random.split(key, 4 + 4 * DEPTH)

    def nrm(k, shape, std, dtype=jnp.float32):
        return (jax.random.normal(k, shape, jnp.float32) * std).astype(dtype)

    w_cls = nrm(keys[3], (EMBED_DIM, NUM_CLASSES), 0.001)
    w_cls_pad = jnp.zeros((EMBED_DIM, CLS_PAD), jnp.float32)
    w_cls_pad = w_cls_pad.at[:, :NUM_CLASSES].set(w_cls).astype(jnp.bfloat16)

    params = {
        # patch embedding (conv k16 s16 as a matmul), kaiming-style std
        "w_pe": nrm(keys[0], (P, EMBED_DIM),
                    math.sqrt(2.0 / (PATCH * PATCH * EMBED_DIM)), jnp.bfloat16),
        "b_pe": jnp.zeros((1, EMBED_DIM), jnp.float32),
        "cls_token": nrm(keys[1], (1, 1, EMBED_DIM), 0.02),
        "pos_embed": nrm(keys[2], (1, num_patches + 1, EMBED_DIM), 0.02),
        # final backbone LayerNorm
        "norm_g": jnp.ones((1, EMBED_DIM), jnp.float32),
        "norm_b": jnp.zeros((1, EMBED_DIM), jnp.float32),
        # bottleneck BatchNorm2d: weight=1, bias=0, running stats (0, 1)
        "bn_gamma": jnp.ones((1, EMBED_DIM), jnp.float32),
        "bn_beta": jnp.zeros((1, EMBED_DIM), jnp.float32),
        "bn_rm": jnp.zeros((1, EMBED_DIM), jnp.float32),
        "bn_rv": jnp.ones((1, EMBED_DIM), jnp.float32),
        # classifier: Linear(EMBED_DIM, num_classes, bias=False), std=0.001,
        # zero-padded to 128 output lanes
        "w_cls": w_cls_pad,
    }

    wqkv, wproj, wfc1, wfc2 = [], [], [], []
    for l in range(DEPTH):
        kq, kp, k1, k2 = keys[4 + 4 * l: 8 + 4 * l]
        wqkv.append(nrm(kq, (EMBED_DIM, 3 * EMBED_DIM), 0.02, jnp.bfloat16))
        # proj weight stored per head: rows hd*HEAD_DIM:(hd+1)*HEAD_DIM of the
        # (in, out) projection belong to head hd
        wproj.append(nrm(kp, (EMBED_DIM, EMBED_DIM), 0.02, jnp.bfloat16)
                     .reshape(NUM_HEADS, HEAD_DIM, EMBED_DIM))
        wfc1.append(nrm(k1, (EMBED_DIM, MLP_DIM), 0.02, jnp.bfloat16))
        wfc2.append(nrm(k2, (MLP_DIM, EMBED_DIM), 0.02, jnp.bfloat16))

    params.update({
        "ln1_g": jnp.ones((DEPTH, 1, EMBED_DIM), jnp.float32),
        "ln1_b": jnp.zeros((DEPTH, 1, EMBED_DIM), jnp.float32),
        "w_qkv": jnp.stack(wqkv),                                  # (L, D, 3D) bf16
        "b_qkv": jnp.zeros((DEPTH, 1, 3 * EMBED_DIM), jnp.float32),
        "w_proj_h": jnp.stack(wproj),                              # (L, H, HD, D) bf16
        "b_proj": jnp.zeros((DEPTH, 1, EMBED_DIM), jnp.float32),
        "ln2_g": jnp.ones((DEPTH, 1, EMBED_DIM), jnp.float32),
        "ln2_b": jnp.zeros((DEPTH, 1, EMBED_DIM), jnp.float32),
        "w_fc1": jnp.stack(wfc1),                                  # (L, D, MLP) bf16
        "b_fc1": jnp.zeros((DEPTH, 1, MLP_DIM), jnp.float32),
        "w_fc2": jnp.stack(wfc2),                                  # (L, MLP, D) bf16
        "b_fc2": jnp.zeros((DEPTH, 1, EMBED_DIM), jnp.float32),
    })
    return params


# ---------------------------------------------------------------------------
# forward wrapper (glue in plain JAX; hot path in the Pallas kernels above)
# ---------------------------------------------------------------------------
def vision_transformer_forward(x, params):
    B, C, H, W = x.shape
    Hp, Wp = H // PATCH, W // PATCH
    N = Hp * Wp
    T = N + 1
    Tp = ((T + 7) // 8) * 8                               # pad tokens to sublane-8

    # patch extraction, channel-major (c, kh, kw) per patch like Conv2d k16 s16
    patches = (x.reshape(B, C, Hp, PATCH, Wp, PATCH)
                 .transpose(0, 2, 4, 1, 3, 5)
                 .reshape(B * N, C * PATCH * PATCH))
    tok = patch_embed(patches.astype(jnp.bfloat16), params["w_pe"], params["b_pe"])
    tok = tok.reshape(B, N, EMBED_DIM)

    # cls token + positional embedding (cam = view = 0 -> no SIE term)
    cls = jnp.broadcast_to(params["cls_token"], (B, 1, EMBED_DIM))
    tok = jnp.concatenate([cls, tok], axis=1) + params["pos_embed"]   # (B, T, D)
    tok = jnp.pad(tok, ((0, 0), (0, Tp - T), (0, 0)))                 # (B, Tp, D)

    tok_out, gf, bnf, cls_pad = transformer_stack(tok, params, T)

    global_feat = gf.reshape(B, EMBED_DIM)
    bn_feat = bnf.reshape(B, EMBED_DIM)
    cls_outputs = cls_pad.reshape(B, CLS_PAD)[:, :NUM_CLASSES]
    x_map = jnp.transpose(tok_out[:, 1:T], (0, 2, 1)).reshape(B, EMBED_DIM, Hp, Wp)

    # matches the module's (global_feat[...,0,0], bn_feat, cls_outputs, x) tuple
    return global_feat, bn_feat, cls_outputs, x_map


if __name__ == "__main__":
    root = jax.random.PRNGKey(0)
    k_param, k_x = jax.random.split(root)

    B, C, H, W = 2, 3, 32, 32                            # small image, 2x2 = 4 patches
    num_patches = (H // PATCH) * (W // PATCH)

    params = init_params(k_param, num_patches)
    x = jax.random.normal(k_x, (B, C, H, W), jnp.float32)

    fwd = jax.jit(vision_transformer_forward)
    out = fwd(x, params)
    jax.block_until_ready(out)

    global_feat, bn_feat, cls_outputs, x_map = out
    assert global_feat.shape == (B, EMBED_DIM)
    assert bn_feat.shape == (B, EMBED_DIM)
    assert cls_outputs.shape == (B, NUM_CLASSES)
    assert x_map.shape == (B, EMBED_DIM, H // PATCH, W // PATCH)
    assert bool(jnp.all(jnp.isfinite(global_feat)))
    print("KERNEL_OK")
</pallas_src>

<mosaic_0001>
module attributes {stable_mosaic.version = 11 : i64} {
  func.func @_dense_kernel(%arg0: i32, %arg1: memref<8x768xbf16, #tpu.memory_space<vmem>>, %arg2: memref<768x256xbf16, #tpu.memory_space<vmem>>, %arg3: memref<1x256xf32, #tpu.memory_space<vmem>>, %arg4: memref<8x256xf32, #tpu.memory_space<vmem>>) attributes {dimension_semantics = [#tpu.dimension_semantics<parallel>], iteration_bounds = array<i64: 1>, scalar_prefetch = 0 : i64, scratch_operands = 0 : i64, tpu.core_type = #tpu.core_type<tc>, window_params = [{transform_indices = @transform_0, window_bounds = array<i64: 8, 768>}, {pipeline_mode = #tpu.pipeline_mode<synchronous>, transform_indices = @transform_1, window_bounds = array<i64: 768, 256>}, {pipeline_mode = #tpu.pipeline_mode<synchronous>, transform_indices = @transform_2, window_bounds = array<i64: 1, 256>}, {transform_indices = @transform_3, window_bounds = array<i64: 8, 256>}]} {
    %c0 = arith.constant 0 : index
    %c0_0 = arith.constant 0 : index
    %0 = vector.load %arg1[%c0, %c0_0] : memref<8x768xbf16, #tpu.memory_space<vmem>>, vector<8x768xbf16>
    %c0_1 = arith.constant 0 : index
    %c0_2 = arith.constant 0 : index
    %1 = vector.load %arg2[%c0_1, %c0_2] : memref<768x256xbf16, #tpu.memory_space<vmem>>, vector<768x256xbf16>
    %cst = arith.constant dense<0.000000e+00> : vector<8x256xf32>
    %2 = tpu.matmul %0, %1, %cst {dimension_numbers = #tpu.dot_dimension_numbers<[1], [0], [0], [1], [0, 0, 1, 1], [], []>} : vector<8x768xbf16>, vector<768x256xbf16>, vector<8x256xf32> -> vector<8x256xf32>
    %c0_3 = arith.constant 0 : index
    %c0_4 = arith.constant 0 : index
    %3 = vector.load %arg3[%c0_3, %c0_4] : memref<1x256xf32, #tpu.memory_space<vmem>>, vector<1x256xf32>
    %4 = vector.broadcast %3 : vector<1x256xf32> to vector<8x256xf32>
    %5 = arith.addf %2, %4 : vector<8x256xf32>
    %c0_5 = arith.constant 0 : index
    %c0_6 = arith.constant 0 : index
    %6 = vector.load %arg4[%c0_5, %c0_6] : memref<8x256xf32, #tpu.memory_space<vmem>>, vector<8x256xf32>
    tpu.vector_store %arg4[%c0_5, %c0_6], %5 {strides = array<i32>} : memref<8x256xf32, #tpu.memory_space<vmem>>, vector<8x256xf32>,
    return
  }
  func.func @transform_0(%arg0: i32) -> (i32, i32) {
    %c0_i32 = arith.constant 0 : i32
    %c0_i32_0 = arith.constant 0 : i32
    return %arg0, %c0_i32 : i32, i32
  }
  func.func @transform_1(%arg0: i32) -> (i32, i32) {
    %c0_i32 = arith.constant 0 : i32
    %c0_i32_0 = arith.constant 0 : i32
    %c0_i32_1 = arith.constant 0 : i32
    return %c0_i32, %c0_i32_0 : i32, i32
  }
  func.func @transform_2(%arg0: i32) -> (i32, i32) {
    %c0_i32 = arith.constant 0 : i32
    %c0_i32_0 = arith.constant 0 : i32
    %c0_i32_1 = arith.constant 0 : i32
    return %c0_i32, %c0_i32_0 : i32, i32
  }
  func.func @transform_3(%arg0: i32) -> (i32, i32) {
    %c0_i32 = arith.constant 0 : i32
    %c0_i32_0 = arith.constant 0 : i32
    return %arg0, %c0_i32 : i32, i32
  }
}

module attributes {stable_mosaic.version = 11 : i64} {
  func.func @_stack_kernel(%arg0: i32, %arg1: i32, %arg2: memref<2x8x256xf32, #tpu.memory_space<vmem>>, %arg3: memref<1x1x256xf32, #tpu.memory_space<vmem>>, %arg4: memref<1x1x256xf32, #tpu.memory_space<vmem>>, %arg5: memref<1x256x768xbf16, #tpu.memory_space<vmem>>, %arg6: memref<1x1x768xf32, #tpu.memory_space<vmem>>, %arg7: memref<1x4x64x256xbf16, #tpu.memory_space<vmem>>, %arg8: memref<1x1x256xf32, #tpu.memory_space<vmem>>, %arg9: memref<1x1x256xf32, #tpu.memory_space<vmem>>, %arg10: memref<1x1x256xf32, #tpu.memory_space<vmem>>, %arg11: memref<1x256x1024xbf16, #tpu.memory_space<vmem>>, %arg12: memref<1x1x1024xf32, #tpu.memory_space<vmem>>, %arg13: memref<1x1024x256xbf16, #tpu.memory_space<vmem>>, %arg14: memref<1x1x256xf32, #tpu.memory_space<vmem>>, %arg15: memref<1x256xf32, #tpu.memory_space<vmem>>, %arg16: memref<1x256xf32, #tpu.memory_space<vmem>>, %arg17: memref<1x256xf32, #tpu.memory_space<vmem>>, %arg18: memref<1x256xf32, #tpu.memory_space<vmem>>, %arg19: memref<1x256xf32, #tpu.memory_space<vmem>>, %arg20: memref<1x256xf32, #tpu.memory_space<vmem>>, %arg21: memref<256x128xbf16, #tpu.memory_space<vmem>>, %arg22: memref<2x8x256xf32, #tpu.memory_space<vmem>>, %arg23: memref<1x2x256xf32, #tpu.memory_space<vmem>>, %arg24: memref<1x2x256xf32, #tpu.memory_space<vmem>>, %arg25: memref<1x2x128xf32, #tpu.memory_space<vmem>>, %arg26: memref<2x8x256xf32, #tpu.memory_space<vmem>>) attributes {dimension_semantics = [#tpu.dimension_semantics<parallel>, #tpu.dimension_semantics<arbitrary>], iteration_bounds = array<i64: 1, 2>, scalar_prefetch = 0 : i64, scratch_operands = 1 : i64, tpu.core_type = #tpu.core_type<tc>, window_params = [{transform_indices = @transform_0, window_bounds = array<i64: 2, 8, 256>}, {transform_indices = @transform_1, window_bounds = array<i64: 1, 1, 256>}, {transform_indices = @transform_2, window_bounds = array<i64: 1, 1, 256>}, {transform_indices = @transform_3, window_bounds = array<i64: 1, 256, 768>}, {transform_indices = @transform_4, window_bounds = array<i64: 1, 1, 768>}, {transform_indices = @transform_5, window_bounds = array<i64: 1, 4, 64, 256>}, {transform_indices = @transform_6, window_bounds = array<i64: 1, 1, 256>}, {transform_indices = @transform_7, window_bounds = array<i64: 1, 1, 256>}, {transform_indices = @transform_8, window_bounds = array<i64: 1, 1, 256>}, {transform_indices = @transform_9, window_bounds = array<i64: 1, 256, 1024>}, {transform_indices = @transform_10, window_bounds = array<i64: 1, 1, 1024>}, {transform_indices = @transform_11, window_bounds = array<i64: 1, 1024, 256>}, {transform_indices = @transform_12, window_bounds = array<i64: 1, 1, 256>}, {pipeline_mode = #tpu.pipeline_mode<synchronous>, transform_indices = @transform_13, window_bounds = array<i64: 1, 256>}, {pipeline_mode = #tpu.pipeline_mode<synchronous>, transform_indices = @transform_14, window_bounds = array<i64: 1, 256>}, {pipeline_mode = #tpu.pipeline_mode<synchronous>, transform_indices = @transform_15, window_bounds = array<i64: 1, 256>}, {pipeline_mode = #tpu.pipeline_mode<synchronous>, transform_indices = @transform_16, window_bounds = array<i64: 1, 256>}, {pipeline_mode = #tpu.pipeline_mode<synchronous>, transform_indices = @transform_17, window_bounds = array<i64: 1, 256>}, {pipeline_mode = #tpu.pipeline_mode<synchronous>, transform_indices = @transform_18, window_bounds = array<i64: 1, 256>}, {pipeline_mode = #tpu.pipeline_mode<synchronous>, transform_indices = @transform_19, window_bounds = array<i64: 256, 128>}, {transform_indices = @transform_20, window_bounds = array<i64: 2, 8, 256>}, {transform_indices = @transform_21, window_bounds = array<i64: 1, 2, 256>}, {transform_indices = @transform_22, window_bounds = array<i64: 1, 2, 256>}, {transform_indices = @transform_23, window_bounds = array<i64: 1, 2, 128>}]} {
    %c0_i32 = arith.constant 0 : i32
    %0 = arith.cmpi eq, %arg1, %c0_i32 : i32
    %1 = arith.extui %0 : i1 to i32
    %c0_i32_0 = arith.constant 0 : i32
    %2 = arith.cmpi ne, %1, %c0_i32_0 : i32
    scf.if %2 {
      %c0_95 = arith.constant 0 : index
      %c0_96 = arith.constant 0 : index
      %c0_97 = arith.constant 0 : index
      %223 = vector.load %arg2[%c0_95, %c0_96, %c0_97] : memref<2x8x256xf32, #tpu.memory_space<vmem>>, vector<2x8x256xf32>
      %c0_98 = arith.constant 0 : index
      %c0_99 = arith.constant 0 : index
      %c0_100 = arith.constant 0 : index
      %224 = vector.load %arg26[%c0_98, %c0_99, %c0_100] : memref<2x8x256xf32, #tpu.memory_space<vmem>>, vector<2x8x256xf32>
      tpu.vector_store %arg26[%c0_98, %c0_99, %c0_100], %223 {strides = array<i32>} : memref<2x8x256xf32, #tpu.memory_space<vmem>>, vector<2x8x256xf32>,
    } else {
    }
    %c0 = arith.constant 0 : index
    %c0_1 = arith.constant 0 : index
    %c0_2 = arith.constant 0 : index
    %3 = vector.load %arg26[%c0, %c0_1, %c0_2] : memref<2x8x256xf32, #tpu.memory_space<vmem>>, vector<2x8x256xf32>
    %4 = vector.shape_cast %3 : vector<2x8x256xf32> to vector<16x256xf32>
    %c0_3 = arith.constant 0 : index
    %c0_4 = arith.constant 0 : index
    %c0_5 = arith.constant 0 : index
    %5 = vector.load %arg3[%c0_3, %c0_4, %c0_5] : memref<1x1x256xf32, #tpu.memory_space<vmem>>, vector<1x1x256xf32>
    %6 = vector.shape_cast %5 : vector<1x1x256xf32> to vector<1x256xf32>
    %c0_6 = arith.constant 0 : index
    %c0_7 = arith.constant 0 : index
    %c0_8 = arith.constant 0 : index
    %7 = vector.load %arg4[%c0_6, %c0_7, %c0_8] : memref<1x1x256xf32, #tpu.memory_space<vmem>>, vector<1x1x256xf32>
    %8 = vector.shape_cast %7 : vector<1x1x256xf32> to vector<1x256xf32>
    %cst = arith.constant dense<0.000000e+00> : vector<16xf32>
    %9 = vector.multi_reduction <add>, %4, %cst [1] : vector<16x256xf32> to vector<16xf32>
    %10 = vector.shape_cast %9 : vector<16xf32> to vector<16x1xf32>
    %cst_9 = arith.constant 2.560000e+02 : f32
    %11 = vector.broadcast %cst_9 : f32 to vector<16x1xf32>
    %12 = arith.divf %10, %11 : vector<16x1xf32>
    %13 = vector.broadcast %12 : vector<16x1xf32> to vector<16x256xf32>
    %14 = arith.subf %4, %13 : vector<16x256xf32>
    %15 = arith.mulf %14, %14 : vector<16x256xf32>
    %cst_10 = arith.constant dense<0.000000e+00> : vector<16xf32>
    %16 = vector.multi_reduction <add>, %15, %cst_10 [1] : vector<16x256xf32> to vector<16xf32>
    %17 = vector.shape_cast %16 : vector<16xf32> to vector<16x1xf32>
    %cst_11 = arith.constant 2.560000e+02 : f32
    %18 = vector.broadcast %cst_11 : f32 to vector<16x1xf32>
    %19 = arith.divf %17, %18 : vector<16x1xf32>
    %cst_12 = arith.constant 9.99999997E-7 : f32
    %20 = vector.broadcast %cst_12 : f32 to vector<16x1xf32>
    %21 = arith.addf %19, %20 : vector<16x1xf32>
    %22 = math.rsqrt %21 : vector<16x1xf32>
    %23 = vector.broadcast %22 : vector<16x1xf32> to vector<16x256xf32>
    %24 = arith.mulf %14, %23 : vector<16x256xf32>
    %25 = vector.broadcast %6 : vector<1x256xf32> to vector<16x256xf32>
    %26 = arith.mulf %24, %25 : vector<16x256xf32>
    %27 = vector.broadcast %8 : vector<1x256xf32> to vector<16x256xf32>
    %28 = arith.addf %26, %27 : vector<16x256xf32>
    %29 = arith.truncf %28 : vector<16x256xf32> to vector<16x256xbf16>
    %c0_13 = arith.constant 0 : index
    %c0_14 = arith.constant 0 : index
    %c0_15 = arith.constant 0 : index
    %30 = vector.load %arg5[%c0_13, %c0_14, %c0_15] : memref<1x256x768xbf16, #tpu.memory_space<vmem>>, vector<1x256x768xbf16>
    %31 = vector.shape_cast %30 : vector<1x256x768xbf16> to vector<256x768xbf16>
    %cst_16 = arith.constant dense<0.000000e+00> : vector<16x768xf32>
    %32 = tpu.matmul %29, %31, %cst_16 {dimension_numbers = #tpu.dot_dimension_numbers<[1], [0], [0], [1], [0, 0, 1, 1], [], []>} : vector<16x256xbf16>, vector<256x768xbf16>, vector<16x768xf32> -> vector<16x768xf32>
    %c0_17 = arith.constant 0 : index
    %c0_18 = arith.constant 0 : index
    %c0_19 = arith.constant 0 : index
    %33 = vector.load %arg6[%c0_17, %c0_18, %c0_19] : memref<1x1x768xf32, #tpu.memory_space<vmem>>, vector<1x1x768xf32>
    %34 = vector.shape_cast %33 : vector<1x1x768xf32> to vector<1x768xf32>
    %35 = vector.broadcast %34 : vector<1x768xf32> to vector<16x768xf32>
    %36 = arith.addf %32, %35 : vector<16x768xf32>
    %37 = vector.shape_cast %36 : vector<16x768xf32> to vector<2x8x768xf32>
    %38 = tpu.iota {dimensions = array<i32: 2>} : vector<1x1x8xi32>
    %c5_i32 = arith.constant 5 : i32
    %39 = vector.broadcast %c5_i32 : i32 to vector<1x1x8xi32>
    %40 = arith.cmpi slt, %38, %39 : vector<1x1x8xi32>
    %cst_20 = arith.constant 0.000000e+00 : f32
    %cst_21 = arith.constant -1.000000e+30 : f32
    %41 = vector.broadcast %cst_20 : f32 to vector<1x1x8xf32>
    %42 = vector.broadcast %cst_21 : f32 to vector<1x1x8xf32>
    %43 = arith.select %40, %41, %42 : vector<1x1x8xi1>, vector<1x1x8xf32>
    %44 = vector.extract_strided_slice %37 {offsets = [0, 0, 0], sizes = [2, 8, 64], strides = [1, 1, 1]} : vector<2x8x768xf32> to vector<2x8x64xf32>
    %45 = arith.truncf %44 : vector<2x8x64xf32> to vector<2x8x64xbf16>
    %46 = vector.extract_strided_slice %37 {offsets = [0, 0, 256], sizes = [2, 8, 64], strides = [1, 1, 1]} : vector<2x8x768xf32> to vector<2x8x64xf32>
    %47 = arith.truncf %46 : vector<2x8x64xf32> to vector<2x8x64xbf16>
    %48 = vector.extract_strided_slice %37 {offsets = [0, 0, 512], sizes = [2, 8, 64], strides = [1, 1, 1]} : vector<2x8x768xf32> to vector<2x8x64xf32>
    %49 = arith.truncf %48 : vector<2x8x64xf32> to vector<2x8x64xbf16>
    "tpu.trace_start"() <{level = 10 : i32, message = "bqd,bkd->bqk"}> : () -> ()
    %cst_22 = arith.constant dense<0.000000e+00> : vector<2x8x8xf32>
    %50 = tpu.matmul %45, %47, %cst_22 {dimension_numbers = #tpu.dot_dimension_numbers<[2], [2], [1], [1], [0, 0, 0, 1, 1, 1], [0], [0]>} : vector<2x8x64xbf16>, vector<2x8x64xbf16>, vector<2x8x8xf32> -> vector<2x8x8xf32>
    "tpu.trace_stop"() : () -> ()
    %cst_23 = arith.constant 1.250000e-01 : f32
    %51 = vector.broadcast %cst_23 : f32 to vector<2x8x8xf32>
    %52 = arith.mulf %50, %51 : vector<2x8x8xf32>
    %53 = vector.broadcast %43 : vector<1x1x8xf32> to vector<2x8x8xf32>
    %54 = arith.addf %52, %53 : vector<2x8x8xf32>
    %cst_24 = arith.constant dense<0xFF800000> : vector<2x8xf32>
    %55 = vector.multi_reduction <maximumf>, %54, %cst_24 [2] : vector<2x8x8xf32> to vector<2x8xf32>
    %56 = vector.shape_cast %55 : vector<2x8xf32> to vector<2x8x1xf32>
    %57 = vector.broadcast %56 : vector<2x8x1xf32> to vector<2x8x8xf32>
    %58 = arith.subf %54, %57 : vector<2x8x8xf32>
    %59 = math.exp %58 : vector<2x8x8xf32>
    %cst_25 = arith.constant dense<0.000000e+00> : vector<2x8xf32>
    %60 = vector.multi_reduction <add>, %59, %cst_25 [2] : vector<2x8x8xf32> to vector<2x8xf32>
    %61 = vector.shape_cast %60 : vector<2x8xf32> to vector<2x8x1xf32>
    %62 = tpu.reciprocal %61 {approx = true} : vector<2x8x1xf32> -> vector<2x8x1xf32>
    %63 = vector.broadcast %62 : vector<2x8x1xf32> to vector<2x8x8xf32>
    %64 = arith.mulf %59, %63 : vector<2x8x8xf32>
    %65 = arith.truncf %64 : vector<2x8x8xf32> to vector<2x8x8xbf16>
    "tpu.trace_start"() <{level = 10 : i32, message = "bqk,bkd->bqd"}> : () -> ()
    %cst_26 = arith.constant dense<0.000000e+00> : vector<2x8x64xf32>
    %66 = tpu.matmul %65, %49, %cst_26 {dimension_numbers = #tpu.dot_dimension_numbers<[2], [1], [1], [2], [0, 0, 0, 1, 1, 2], [0], [0]>} : vector<2x8x8xbf16>, vector<2x8x64xbf16>, vector<2x8x64xf32> -> vector<2x8x64xf32>
    "tpu.trace_stop"() : () -> ()
    %67 = vector.shape_cast %66 : vector<2x8x64xf32> to vector<16x64xf32>
    %68 = arith.truncf %67 : vector<16x64xf32> to vector<16x64xbf16>
    %c0_27 = arith.constant 0 : index
    %c0_28 = arith.constant 0 : index
    %c0_29 = arith.constant 0 : index
    %c0_30 = arith.constant 0 : index
    %69 = vector.load %arg7[%c0_27, %c0_28, %c0_29, %c0_30] : memref<1x4x64x256xbf16, #tpu.memory_space<vmem>>, vector<1x1x64x256xbf16>
    %70 = vector.shape_cast %69 : vector<1x1x64x256xbf16> to vector<64x256xbf16>
    %cst_31 = arith.constant dense<0.000000e+00> : vector<16x256xf32>
    %71 = tpu.matmul %68, %70, %cst_31 {dimension_numbers = #tpu.dot_dimension_numbers<[1], [0], [0], [1], [0, 0, 1, 1], [], []>} : vector<16x64xbf16>, vector<64x256xbf16>, vector<16x256xf32> -> vector<16x256xf32>
    %72 = vector.extract_strided_slice %37 {offsets = [0, 0, 64], sizes = [2, 8, 64], strides = [1, 1, 1]} : vector<2x8x768xf32> to vector<2x8x64xf32>
    %73 = arith.truncf %72 : vector<2x8x64xf32> to vector<2x8x64xbf16>
    %74 = vector.extract_strided_slice %37 {offsets = [0, 0, 320], sizes = [2, 8, 64], strides = [1, 1, 1]} : vector<2x8x768xf32> to vector<2x8x64xf32>
    %75 = arith.truncf %74 : vector<2x8x64xf32> to vector<2x8x64xbf16>
    %76 = vector.extract_strided_slice %37 {offsets = [0, 0, 576], sizes = [2, 8, 64], strides = [1, 1, 1]} : vector<2x8x768xf32> to vector<2x8x64xf32>
    %77 = arith.truncf %76 : vector<2x8x64xf32> to vector<2x8x64xbf16>
    "tpu.trace_start"() <{level = 10 : i32, message = "bqd,bkd->bqk"}> : () -> ()
    %cst_32 = arith.constant dense<0.000000e+00> : vector<2x8x8xf32>
    %78 = tpu.matmul %73, %75, %cst_32 {dimension_numbers = #tpu.dot_dimension_numbers<[2], [2], [1], [1], [0, 0, 0, 1, 1, 1], [0], [0]>} : vector<2x8x64xbf16>, vector<2x8x64xbf16>, vector<2x8x8xf32> -> vector<2x8x8xf32>
    "tpu.trace_stop"() : () -> ()
    %cst_33 = arith.constant 1.250000e-01 : f32
    %79 = vector.broadcast %cst_33 : f32 to vector<2x8x8xf32>
    %80 = arith.mulf %78, %79 : vector<2x8x8xf32>
    %81 = vector.broadcast %43 : vector<1x1x8xf32> to vector<2x8x8xf32>
    %82 = arith.addf %80, %81 : vector<2x8x8xf32>
    %cst_34 = arith.constant dense<0xFF800000> : vector<2x8xf32>
    %83 = vector.multi_reduction <maximumf>, %82, %cst_34 [2] : vector<2x8x8xf32> to vector<2x8xf32>
    %84 = vector.shape_cast %83 : vector<2x8xf32> to vector<2x8x1xf32>
    %85 = vector.broadcast %84 : vector<2x8x1xf32> to vector<2x8x8xf32>
    %86 = arith.subf %82, %85 : vector<2x8x8xf32>
    %87 = math.exp %86 : vector<2x8x8xf32>
    %cst_35 = arith.constant dense<0.000000e+00> : vector<2x8xf32>
    %88 = vector.multi_reduction <add>, %87, %cst_35 [2] : vector<2x8x8xf32> to vector<2x8xf32>
    %89 = vector.shape_cast %88 : vector<2x8xf32> to vector<2x8x1xf32>
    %90 = tpu.reciprocal %89 {approx = true} : vector<2x8x1xf32> -> vector<2x8x1xf32>
    %91 = vector.broadcast %90 : vector<2x8x1xf32> to vector<2x8x8xf32>
    %92 = arith.mulf %87, %91 : vector<2x8x8xf32>
    %93 = arith.truncf %92 : vector<2x8x8xf32> to vector<2x8x8xbf16>
    "tpu.trace_start"() <{level = 10 : i32, message = "bqk,bkd->bqd"}> : () -> ()
    %cst_36 = arith.constant dense<0.000000e+00> : vector<2x8x64xf32>
    %94 = tpu.matmul %93, %77, %cst_36 {dimension_numbers = #tpu.dot_dimension_numbers<[2], [1], [1], [2], [0, 0, 0, 1, 1, 2], [0], [0]>} : vector<2x8x8xbf16>, vector<2x8x64xbf16>, vector<2x8x64xf32> -> vector<2x8x64xf32>
    "tpu.trace_stop"() : () -> ()
    %95 = vector.shape_cast %94 : vector<2x8x64xf32> to vector<16x64xf32>
    %96 = arith.truncf %95 : vector<16x64xf32> to vector<16x64xbf16>
    %c0_37 = arith.constant 0 : index
    %c1 = arith.constant 1 : index
    %c0_38 = arith.constant 0 : index
    %c0_39 = arith.constant 0 : index
    %97 = vector.load %arg7[%c0_37, %c1, %c0_38, %c0_39] : memref<1x4x64x256xbf16, #tpu.memory_space<vmem>>, vector<1x1x64x256xbf16>
    %98 = vector.shape_cast %97 : vector<1x1x64x256xbf16> to vector<64x256xbf16>
    %cst_40 = arith.constant dense<0.000000e+00> : vector<16x256xf32>
    %99 = tpu.matmul %96, %98, %cst_40 {dimension_numbers = #tpu.dot_dimension_numbers<[1], [0], [0], [1], [0, 0, 1, 1], [], []>} : vector<16x64xbf16>, vector<64x256xbf16>, vector<16x256xf32> -> vector<16x256xf32>
    %100 = arith.addf %71, %99 : vector<16x256xf32>
    %101 = vector.extract_strided_slice %37 {offsets = [0, 0, 128], sizes = [2, 8, 64], strides = [1, 1, 1]} : vector<2x8x768xf32> to vector<2x8x64xf32>
    %102 = arith.truncf %101 : vector<2x8x64xf32> to vector<2x8x64xbf16>
    %103 = vector.extract_strided_slice %37 {offsets = [0, 0, 384], sizes = [2, 8, 64], strides = [1, 1, 1]} : vector<2x8x768xf32> to vector<2x8x64xf32>
    %104 = arith.truncf %103 : vector<2x8x64xf32> to vector<2x8x64xbf16>
    %105 = vector.extract_strided_slice %37 {offsets = [0, 0, 640], sizes = [2, 8, 64], strides = [1, 1, 1]} : vector<2x8x768xf32> to vector<2x8x64xf32>
    %106 = arith.truncf %105 : vector<2x8x64xf32> to vector<2x8x64xbf16>
    "tpu.trace_start"() <{level = 10 : i32, message = "bqd,bkd->bqk"}> : () -> ()
    %cst_41 = arith.constant dense<0.000000e+00> : vector<2x8x8xf32>
    %107 = tpu.matmul %102, %104, %cst_41 {dimension_numbers = #tpu.dot_dimension_numbers<[2], [2], [1], [1], [0, 0, 0, 1, 1, 1], [0], [0]>} : vector<2x8x64xbf16>, vector<2x8x64xbf16>, vector<2x8x8xf32> -> vector<2x8x8xf32>
    "tpu.trace_stop"() : () -> ()
    %cst_42 = arith.constant 1.250000e-01 : f32
    %108 = vector.broadcast %cst_42 : f32 to vector<2x8x8xf32>
    %109 = arith.mulf %107, %108 : vector<2x8x8xf32>
    %110 = vector.broadcast %43 : vector<1x1x8xf32> to vector<2x8x8xf32>
    %111 = arith.addf %109, %110 : vector<2x8x8xf32>
    %cst_43 = arith.constant dense<0xFF800000> : vector<2x8xf32>
    %112 = vector.multi_reduction <maximumf>, %111, %cst_43 [2] : vector<2x8x8xf32> to vector<2x8xf32>
    %113 = vector.shape_cast %112 : vector<2x8xf32> to vector<2x8x1xf32>
    %114 = vector.broadcast %113 : vector<2x8x1xf32> to vector<2x8x8xf32>
    %115 = arith.subf %111, %114 : vector<2x8x8xf32>
    %116 = math.exp %115 : vector<2x8x8xf32>
    %cst_44 = arith.constant dense<0.000000e+00> : vector<2x8xf32>
    %117 = vector.multi_reduction <add>, %116, %cst_44 [2] : vector<2x8x8xf32> to vector<2x8xf32>
    %118 = vector.shape_cast %117 : vector<2x8xf32> to vector<2x8x1xf32>
    %119 = tpu.reciprocal %118 {approx = true} : vector<2x8x1xf32> -> vector<2x8x1xf32>
    %120 = vector.broadcast %119 : vector<2x8x1xf32> to vector<2x8x8xf32>
    %121 = arith.mulf %116, %120 : vector<2x8x8xf32>
    %122 = arith.truncf %121 : vector<2x8x8xf32> to vector<2x8x8xbf16>
    "tpu.trace_start"() <{level = 10 : i32, message = "bqk,bkd->bqd"}> : () -> ()
    %cst_45 = arith.constant dense<0.000000e+00> : vector<2x8x64xf32>
    %123 = tpu.matmul %122, %106, %cst_45 {dimension_numbers = #tpu.dot_dimension_numbers<[2], [1], [1], [2], [0, 0, 0, 1, 1, 2], [0], [0]>} : vector<2x8x8xbf16>, vector<2x8x64xbf16>, vector<2x8x64xf32> -> vector<2x8x64xf32>
    "tpu.trace_stop"() : () -> ()
    %124 = vector.shape_cast %123 : vector<2x8x64xf32> to vector<16x64xf32>
    %125 = arith.truncf %124 : vector<16x64xf32> to vector<16x64xbf16>
    %c0_46 = arith.constant 0 : index
    %c2 = arith.constant 2 : index
    %c0_47 = arith.constant 0 : index
    %c0_48 = arith.constant 0 : index
    %126 = vector.load %arg7[%c0_46, %c2, %c0_47, %c0_48] : memref<1x4x64x256xbf16, #tpu.memory_space<vmem>>, vector<1x1x64x256xbf16>
    %127 = vector.shape_cast %126 : vector<1x1x64x256xbf16> to vector<64x256xbf16>
    %cst_49 = arith.constant dense<0.000000e+00> : vector<16x256xf32>
    %128 = tpu.matmul %125, %127, %cst_49 {dimension_numbers = #tpu.dot_dimension_numbers<[1], [0], [0], [1], [0, 0, 1, 1], [], []>} : vector<16x64xbf16>, vector<64x256xbf16>, vector<16x256xf32> -> vector<16x256xf32>
    %129 = arith.addf %100, %128 : vector<16x256xf32>
    %130 = vector.extract_strided_slice %37 {offsets = [0, 0, 192], sizes = [2, 8, 64], strides = [1, 1, 1]} : vector<2x8x768xf32> to vector<2x8x64xf32>
    %131 = arith.truncf %130 : vector<2x8x64xf32> to vector<2x8x64xbf16>
    %132 = vector.extract_strided_slice %37 {offsets = [0, 0, 448], sizes = [2, 8, 64], strides = [1, 1, 1]} : vector<2x8x768xf32> to vector<2x8x64xf32>
    %133 = arith.truncf %132 : vector<2x8x64xf32> to vector<2x8x64xbf16>
    %134 = vector.extract_strided_slice %37 {offsets = [0, 0, 704], sizes = [2, 8, 64], strides = [1, 1, 1]} : vector<2x8x768xf32> to vector<2x8x64xf32>
    %135 = arith.truncf %134 : vector<2x8x64xf32> to vector<2x8x64xbf16>
    "tpu.trace_start"() <{level = 10 : i32, message = "bqd,bkd->bqk"}> : () -> ()
    %cst_50 = arith.constant dense<0.000000e+00> : vector<2x8x8xf32>
    %136 = tpu.matmul %131, %133, %cst_50 {dimension_numbers = #tpu.dot_dimension_numbers<[2], [2], [1], [1], [0, 0, 0, 1, 1, 1], [0], [0]>} : vector<2x8x64xbf16>, vector<2x8x64xbf16>, vector<2x8x8xf32> -> vector<2x8x8xf32>
    "tpu.trace_stop"() : () -> ()
    %cst_51 = arith.constant 1.250000e-01 : f32
    %137 = vector.broadcast %cst_51 : f32 to vector<2x8x8xf32>
    %138 = arith.mulf %136, %137 : vector<2x8x8xf32>
    %139 = vector.broadcast %43 : vector<1x1x8xf32> to vector<2x8x8xf32>
    %140 = arith.addf %138, %139 : vector<2x8x8xf32>
    %cst_52 = arith.constant dense<0xFF800000> : vector<2x8xf32>
    %141 = vector.multi_reduction <maximumf>, %140, %cst_52 [2] : vector<2x8x8xf32> to vector<2x8xf32>
    %142 = vector.shape_cast %141 : vector<2x8xf32> to vector<2x8x1xf32>
    %143 = vector.broadcast %142 : vector<2x8x1xf32> to vector<2x8x8xf32>
    %144 = arith.subf %140, %143 : vector<2x8x8xf32>
    %145 = math.exp %144 : vector<2x8x8xf32>
    %cst_53 = arith.constant dense<0.000000e+00> : vector<2x8xf32>
    %146 = vector.multi_reduction <add>, %145, %cst_53 [2] : vector<2x8x8xf32> to vector<2x8xf32>
    %147 = vector.shape_cast %146 : vector<2x8xf32> to vector<2x8x1xf32>
    %148 = tpu.reciprocal %147 {approx = true} : vector<2x8x1xf32> -> vector<2x8x1xf32>
    %149 = vector.broadcast %148 : vector<2x8x1xf32> to vector<2x8x8xf32>
    %150 = arith.mulf %145, %149 : vector<2x8x8xf32>
    %151 = arith.truncf %150 : vector<2x8x8xf32> to vector<2x8x8xbf16>
    "tpu.trace_start"() <{level = 10 : i32, message = "bqk,bkd->bqd"}> : () -> ()
    %cst_54 = arith.constant dense<0.000000e+00> : vector<2x8x64xf32>
    %152 = tpu.matmul %151, %135, %cst_54 {dimension_numbers = #tpu.dot_dimension_numbers<[2], [1], [1], [2], [0, 0, 0, 1, 1, 2], [0], [0]>} : vector<2x8x8xbf16>, vector<2x8x64xbf16>, vector<2x8x64xf32> -> vector<2x8x64xf32>
    "tpu.trace_stop"() : () -> ()
    %153 = vector.shape_cast %152 : vector<2x8x64xf32> to vector<16x64xf32>
    %154 = arith.truncf %153 : vector<16x64xf32> to vector<16x64xbf16>
    %c0_55 = arith.constant 0 : index
    %c3 = arith.constant 3 : index
    %c0_56 = arith.constant 0 : index
    %c0_57 = arith.constant 0 : index
    %155 = vector.load %arg7[%c0_55, %c3, %c0_56, %c0_57] : memref<1x4x64x256xbf16, #tpu.memory_space<vmem>>, vector<1x1x64x256xbf16>
    %156 = vector.shape_cast %155 : vector<1x1x64x256xbf16> to vector<64x256xbf16>
    %cst_58 = arith.constant dense<0.000000e+00> : vector<16x256xf32>
    %157 = tpu.matmul %154, %156, %cst_58 {dimension_numbers = #tpu.dot_dimension_numbers<[1], [0], [0], [1], [0, 0, 1, 1], [], []>} : vector<16x64xbf16>, vector<64x256xbf16>, vector<16x256xf32> -> vector<16x256xf32>
    %158 = arith.addf %129, %157 : vector<16x256xf32>
    %c0_59 = arith.constant 0 : index
    %c0_60 = arith.constant 0 : index
    %c0_61 = arith.constant 0 : index
    %159 = vector.load %arg8[%c0_59, %c0_60, %c0_61] : memref<1x1x256xf32, #tpu.memory_space<vmem>>, vector<1x1x256xf32>
    %160 = vector.shape_cast %159 : vector<1x1x256xf32> to vector<1x256xf32>
    %161 = vector.broadcast %160 : vector<1x256xf32> to vector<16x256xf32>
    %162 = arith.addf %158, %161 : vector<16x256xf32>
    %163 = arith.addf %4, %162 : vector<16x256xf32>
    %c0_62 = arith.constant 0 : index
    %c0_63 = arith.constant 0 : index
    %c0_64 = arith.constant 0 : index
    %164 = vector.load %arg9[%c0_62, %c0_63, %c0_64] : memref<1x1x256xf32, #tpu.memory_space<vmem>>, vector<1x1x256xf32>
    %165 = vector.shape_cast %164 : vector<1x1x256xf32> to vector<1x256xf32>
    %c0_65 = arith.constant 0 : index
    %c0_66 = arith.constant 0 : index
    %c0_67 = arith.constant 0 : index
    %166 = vector.load %arg10[%c0_65, %c0_66, %c0_67] : memref<1x1x256xf32, #tpu.memory_space<vmem>>, vector<1x1x256xf32>
    %167 = vector.shape_cast %166 : vector<1x1x256xf32> to vector<1x256xf32>
    %cst_68 = arith.constant dense<0.000000e+00> : vector<16xf32>
    %168 = vector.multi_reduction <add>, %163, %cst_68 [1] : vector<16x256xf32> to vector<16xf32>
    %169 = vector.shape_cast %168 : vector<16xf32> to vector<16x1xf32>
    %cst_69 = arith.constant 2.560000e+02 : f32
    %170 = vector.broadcast %cst_69 : f32 to vector<16x1xf32>
    %171 = arith.divf %169, %170 : vector<16x1xf32>
    %172 = vector.broadcast %171 : vector<16x1xf32> to vector<16x256xf32>
    %173 = arith.subf %163, %172 : vector<16x256xf32>
    %174 = arith.mulf %173, %173 : vector<16x256xf32>
    %cst_70 = arith.constant dense<0.000000e+00> : vector<16xf32>
    %175 = vector.multi_reduction <add>, %174, %cst_70 [1] : vector<16x256xf32> to vector<16xf32>
    %176 = vector.shape_cast %175 : vector<16xf32> to vector<16x1xf32>
    %cst_71 = arith.constant 2.560000e+02 : f32
    %177 = vector.broadcast %cst_71 : f32 to vector<16x1xf32>
    %178 = arith.divf %176, %177 : vector<16x1xf32>
    %cst_72 = arith.constant 9.99999997E-7 : f32
    %179 = vector.broadcast %cst_72 : f32 to vector<16x1xf32>
    %180 = arith.addf %178, %179 : vector<16x1xf32>
    %181 = math.rsqrt %180 : vector<16x1xf32>
    %182 = vector.broadcast %181 : vector<16x1xf32> to vector<16x256xf32>
    %183 = arith.mulf %173, %182 : vector<16x256xf32>
    %184 = vector.broadcast %165 : vector<1x256xf32> to vector<16x256xf32>
    %185 = arith.mulf %183, %184 : vector<16x256xf32>
    %186 = vector.broadcast %167 : vector<1x256xf32> to vector<16x256xf32>
    %187 = arith.addf %185, %186 : vector<16x256xf32>
    %188 = arith.truncf %187 : vector<16x256xf32> to vector<16x256xbf16>
    %c0_73 = arith.constant 0 : index
    %c0_74 = arith.constant 0 : index
    %c0_75 = arith.constant 0 : index
    %189 = vector.load %arg11[%c0_73, %c0_74, %c0_75] : memref<1x256x1024xbf16, #tpu.memory_space<vmem>>, vector<1x256x1024xbf16>
    %190 = vector.shape_cast %189 : vector<1x256x1024xbf16> to vector<256x1024xbf16>
    %cst_76 = arith.constant dense<0.000000e+00> : vector<16x1024xf32>
    %191 = tpu.matmul %188, %190, %cst_76 {dimension_numbers = #tpu.dot_dimension_numbers<[1], [0], [0], [1], [0, 0, 1, 1], [], []>} : vector<16x256xbf16>, vector<256x1024xbf16>, vector<16x1024xf32> -> vector<16x1024xf32>
    %c0_77 = arith.constant 0 : index
    %c0_78 = arith.constant 0 : index
    %c0_79 = arith.constant 0 : index
    %192 = vector.load %arg12[%c0_77, %c0_78, %c0_79] : memref<1x1x1024xf32, #tpu.memory_space<vmem>>, vector<1x1x1024xf32>
    %193 = vector.shape_cast %192 : vector<1x1x1024xf32> to vector<1x1024xf32>
    %194 = vector.broadcast %193 : vector<1x1024xf32> to vector<16x1024xf32>
    %195 = arith.addf %191, %194 : vector<16x1024xf32>
    %cst_80 = arith.constant 5.000000e-01 : f32
    %196 = vector.broadcast %cst_80 : f32 to vector<16x1024xf32>
    %197 = arith.mulf %196, %195 : vector<16x1024xf32>
    %cst_81 = arith.constant 4.471500e-02 : f32
    %198 = vector.broadcast %cst_81 : f32 to vector<16x1024xf32>
    %199 = arith.mulf %198, %195 : vector<16x1024xf32>
    %200 = arith.mulf %199, %195 : vector<16x1024xf32>
    %201 = arith.mulf %200, %195 : vector<16x1024xf32>
    %202 = arith.addf %195, %201 : vector<16x1024xf32>
    %cst_82 = arith.constant 0.797884583 : f32
    %203 = vector.broadcast %cst_82 : f32 to vector<16x1024xf32>
    %204 = arith.mulf %203, %202 : vector<16x1024xf32>
    %205 = math.tanh %204 : vector<16x1024xf32>
    %cst_83 = arith.constant 1.000000e+00 : f32
    %206 = vector.broadcast %cst_83 : f32 to vector<16x1024xf32>
    %207 = arith.addf %206, %205 : vector<16x1024xf32>
    %208 = arith.mulf %197, %207 : vector<16x1024xf32>
    %209 = arith.truncf %208 : vector<16x1024xf32> to vector<16x1024xbf16>
    %c0_84 = arith.constant 0 : index
    %c0_85 = arith.constant 0 : index
    %c0_86 = arith.constant 0 : index
    %210 = vector.load %arg13[%c0_84, %c0_85, %c0_86] : memref<1x1024x256xbf16, #tpu.memory_space<vmem>>, vector<1x1024x256xbf16>
    %211 = vector.shape_cast %210 : vector<1x1024x256xbf16> to vector<1024x256xbf16>
    %cst_87 = arith.constant dense<0.000000e+00> : vector<16x256xf32>
    %212 = tpu.matmul %209, %211, %cst_87 {dimension_numbers = #tpu.dot_dimension_numbers<[1], [0], [0], [1], [0, 0, 1, 1], [], []>} : vector<16x1024xbf16>, vector<1024x256xbf16>, vector<16x256xf32> -> vector<16x256xf32>
    %c0_88 = arith.constant 0 : index
    %c0_89 = arith.constant 0 : index
    %c0_90 = arith.constant 0 : index
    %213 = vector.load %arg14[%c0_88, %c0_89, %c0_90] : memref<1x1x256xf32, #tpu.memory_space<vmem>>, vector<1x1x256xf32>
    %214 = vector.shape_cast %213 : vector<1x1x256xf32> to vector<1x256xf32>
    %215 = vector.broadcast %214 : vector<1x256xf32> to vector<16x256xf32>
    %216 = arith.addf %212, %215 : vector<16x256xf32>
    %217 = arith.addf %163, %216 : vector<16x256xf32>
    %218 = vector.shape_cast %217 : vector<16x256xf32> to vector<2x8x256xf32>
    %c0_91 = arith.constant 0 : index
    %c0_92 = arith.constant 0 : index
    %c0_93 = arith.constant 0 : index
    %219 = vector.load %arg26[%c0_91, %c0_92, %c0_93] : memref<2x8x256xf32, #tpu.memory_space<vmem>>, vector<2x8x256xf32>
    tpu.vector_store %arg26[%c0_91, %c0_92, %c0_93], %218 {strides = array<i32>} : memref<2x8x256xf32, #tpu.memory_space<vmem>>, vector<2x8x256xf32>,
    %c1_i32 = arith.constant 1 : i32
    %220 = arith.cmpi eq, %arg1, %c1_i32 : i32
    %221 = arith.extui %220 : i1 to i32
    %c0_i32_94 = arith.constant 0 : i32
    %222 = arith.cmpi ne, %221, %c0_i32_94 : i32
    scf.if %222 {
      %c0_95 = arith.constant 0 : index
      %c0_96 = arith.constant 0 : index
      %c0_97 = arith.constant 0 : index
      %223 = vector.load %arg26[%c0_95, %c0_96, %c0_97] : memref<2x8x256xf32, #tpu.memory_space<vmem>>, vector<2x8x256xf32>
      %224 = vector.shape_cast %223 : vector<2x8x256xf32> to vector<16x256xf32>
      %c0_98 = arith.constant 0 : index
      %c0_99 = arith.constant 0 : index
      %225 = vector.load %arg15[%c0_98, %c0_99] : memref<1x256xf32, #tpu.memory_space<vmem>>, vector<1x256xf32>
      %c0_100 = arith.constant 0 : index
      %c0_101 = arith.constant 0 : index
      %226 = vector.load %arg16[%c0_100, %c0_101] : memref<1x256xf32, #tpu.memory_space<vmem>>, vector<1x256xf32>
      %cst_102 = arith.constant dense<0.000000e+00> : vector<16xf32>
      %227 = vector.multi_reduction <add>, %224, %cst_102 [1] : vector<16x256xf32> to vector<16xf32>
      %228 = vector.shape_cast %227 : vector<16xf32> to vector<16x1xf32>
      %cst_103 = arith.constant 2.560000e+02 : f32
      %229 = vector.broadcast %cst_103 : f32 to vector<16x1xf32>
      %230 = arith.divf %228, %229 : vector<16x1xf32>
      %231 = vector.broadcast %230 : vector<16x1xf32> to vector<16x256xf32>
      %232 = arith.subf %224, %231 : vector<16x256xf32>
      %233 = arith.mulf %232, %232 : vector<16x256xf32>
      %cst_104 = arith.constant dense<0.000000e+00> : vector<16xf32>
      %234 = vector.multi_reduction <add>, %233, %cst_104 [1] : vector<16x256xf32> to vector<16xf32>
      %235 = vector.shape_cast %234 : vector<16xf32> to vector<16x1xf32>
      %cst_105 = arith.constant 2.560000e+02 : f32
      %236 = vector.broadcast %cst_105 : f32 to vector<16x1xf32>
      %237 = arith.divf %235, %236 : vector<16x1xf32>
      %cst_106 = arith.constant 9.99999997E-7 : f32
      %238 = vector.broadcast %cst_106 : f32 to vector<16x1xf32>
      %239 = arith.addf %237, %238 : vector<16x1xf32>
      %240 = math.rsqrt %239 : vector<16x1xf32>
      %241 = vector.broadcast %240 : vector<16x1xf32> to vector<16x256xf32>
      %242 = arith.mulf %232, %241 : vector<16x256xf32>
      %243 = vector.broadcast %225 : vector<1x256xf32> to vector<16x256xf32>
      %244 = arith.mulf %242, %243 : vector<16x256xf32>
      %245 = vector.broadcast %226 : vector<1x256xf32> to vector<16x256xf32>
      %246 = arith.addf %244, %245 : vector<16x256xf32>
      %247 = vector.shape_cast %246 : vector<16x256xf32> to vector<2x8x256xf32>
      %c0_107 = arith.constant 0 : index
      %c0_108 = arith.constant 0 : index
      %c0_109 = arith.constant 0 : index
      %248 = vector.load %arg22[%c0_107, %c0_108, %c0_109] : memref<2x8x256xf32, #tpu.memory_space<vmem>>, vector<2x8x256xf32>
      tpu.vector_store %arg22[%c0_107, %c0_108, %c0_109], %247 {strides = array<i32>} : memref<2x8x256xf32, #tpu.memory_space<vmem>>, vector<2x8x256xf32>,
      %249 = vector.extract_strided_slice %247 {offsets = [0, 0, 0], sizes = [2, 1, 256], strides = [1, 1, 1]} : vector<2x8x256xf32> to vector<2x1x256xf32>
      %250 = vector.shape_cast %249 : vector<2x1x256xf32> to vector<2x256xf32>
      %c0_110 = arith.constant 0 : index
      %c0_111 = arith.constant 0 : index
      %c0_112 = arith.constant 0 : index
      %251 = vector.load %arg23[%c0_110, %c0_111, %c0_112] : memref<1x2x256xf32, #tpu.memory_space<vmem>>, vector<1x2x256xf32>
      %252 = vector.shape_cast %251 : vector<1x2x256xf32> to vector<2x256xf32>
      %253 = vector.shape_cast %250 : vector<2x256xf32> to vector<1x2x256xf32>
      tpu.vector_store %arg23[%c0_110, %c0_111, %c0_112], %253 {strides = array<i32>} : memref<1x2x256xf32, #tpu.memory_space<vmem>>, vector<1x2x256xf32>,
      %c0_113 = arith.constant 0 : index
      %c0_114 = arith.constant 0 : index
      %254 = vector.load %arg20[%c0_113, %c0_114] : memref<1x256xf32, #tpu.memory_space<vmem>>, vector<1x256xf32>
      %cst_115 = arith.constant 9.99999974E-6 : f32
      %255 = vector.broadcast %cst_115 : f32 to vector<1x256xf32>
      %256 = arith.addf %254, %255 : vector<1x256xf32>
      %257 = math.rsqrt %256 : vector<1x256xf32>
      %c0_116 = arith.constant 0 : index
      %c0_117 = arith.constant 0 : index
      %258 = vector.load %arg19[%c0_116, %c0_117] : memref<1x256xf32, #tpu.memory_space<vmem>>, vector<1x256xf32>
      %259 = vector.broadcast %258 : vector<1x256xf32> to vector<2x256xf32>
      %260 = arith.subf %250, %259 : vector<2x256xf32>
      %261 = vector.broadcast %257 : vector<1x256xf32> to vector<2x256xf32>
      %262 = arith.mulf %260, %261 : vector<2x256xf32>
      %c0_118 = arith.constant 0 : index
      %c0_119 = arith.constant 0 : index
      %263 = vector.load %arg17[%c0_118, %c0_119] : memref<1x256xf32, #tpu.memory_space<vmem>>, vector<1x256xf32>
      %264 = vector.broadcast %263 : vector<1x256xf32> to vector<2x256xf32>
      %265 = arith.mulf %262, %264 : vector<2x256xf32>
      %c0_120 = arith.constant 0 : index
      %c0_121 = arith.constant 0 : index
      %266 = vector.load %arg18[%c0_120, %c0_121] : memref<1x256xf32, #tpu.memory_space<vmem>>, vector<1x256xf32>
      %267 = vector.broadcast %266 : vector<1x256xf32> to vector<2x256xf32>
      %268 = arith.addf %265, %267 : vector<2x256xf32>
      %c0_122 = arith.constant 0 : index
      %c0_123 = arith.constant 0 : index
      %c0_124 = arith.constant 0 : index
      %269 = vector.load %arg24[%c0_122, %c0_123, %c0_124] : memref<1x2x256xf32, #tpu.memory_space<vmem>>, vector<1x2x256xf32>
      %270 = vector.shape_cast %269 : vector<1x2x256xf32> to vector<2x256xf32>
      %271 = vector.shape_cast %268 : vector<2x256xf32> to vector<1x2x256xf32>
      tpu.vector_store %arg24[%c0_122, %c0_123, %c0_124], %271 {strides = array<i32>} : memref<1x2x256xf32, #tpu.memory_space<vmem>>, vector<1x2x256xf32>,
      %272 = arith.truncf %268 : vector<2x256xf32> to vector<2x256xbf16>
      %c0_125 = arith.constant 0 : index
      %c0_126 = arith.constant 0 : index
      %273 = vector.load %arg21[%c0_125, %c0_126] : memref<256x128xbf16, #tpu.memory_space<vmem>>, vector<256x128xbf16>
      %cst_127 = arith.constant dense<0.000000e+00> : vector<2x128xf32>
      %274 = tpu.matmul %272, %273, %cst_127 {dimension_numbers = #tpu.dot_dimension_numbers<[1], [0], [0], [1], [0, 0, 1, 1], [], []>} : vector<2x256xbf16>, vector<256x128xbf16>, vector<2x128xf32> -> vector<2x128xf32>
      %c0_128 = arith.constant 0 : index
      %c0_129 = arith.constant 0 : index
      %c0_130 = arith.constant 0 : index
      %275 = vector.load %arg25[%c0_128, %c0_129, %c0_130] : memref<1x2x128xf32, #tpu.memory_space<vmem>>, vector<1x2x128xf32>
      %276 = vector.shape_cast %275 : vector<1x2x128xf32> to vector<2x128xf32>
      %277 = vector.shape_cast %274 : vector<2x128xf32> to vector<1x2x128xf32>
      tpu.vector_store %arg25[%c0_128, %c0_129, %c0_130], %277 {strides = array<i32>} : memref<1x2x128xf32, #tpu.memory_space<vmem>>, vector<1x2x128xf32>,
    } else {
    }
    return
  }
  func.func @transform_0(%arg0: i32, %arg1: i32) -> (i32, i32, i32) {
    %c0_i32 = arith.constant 0 : i32
    %c0_i32_0 = arith.constant 0 : i32
    %c0_i32_1 = arith.constant 0 : i32
    return %arg0, %c0_i32, %c0_i32_0 : i32, i32, i32
  }
  func.func @transform_1(%arg0: i32, %arg1: i32) -> (i32, i32, i32) {
    %c0_i32 = arith.constant 0 : i32
    %c0_i32_0 = arith.constant 0 : i32
    %c0_i32_1 = arith.constant 0 : i32
    return %arg1, %c0_i32, %c0_i32_0 : i32, i32, i32
  }
  func.func @transform_2(%arg0: i32, %arg1: i32) -> (i32, i32, i32) {
    %c0_i32 = arith.constant 0 : i32
    %c0_i32_0 = arith.constant 0 : i32
    %c0_i32_1 = arith.constant 0 : i32
    return %arg1, %c0_i32, %c0_i32_0 : i32, i32, i32
  }
  func.func @transform_3(%arg0: i32, %arg1: i32) -> (i32, i32, i32) {
    %c0_i32 = arith.constant 0 : i32
    %c0_i32_0 = arith.constant 0 : i32
    %c0_i32_1 = arith.constant 0 : i32
    return %arg1, %c0_i32, %c0_i32_0 : i32, i32, i32
  }
  func.func @transform_4(%arg0: i32, %arg1: i32) -> (i32, i32, i32) {
    %c0_i32 = arith.constant 0 : i32
    %c0_i32_0 = arith.constant 0 : i32
    %c0_i32_1 = arith.constant 0 : i32
    return %arg1, %c0_i32, %c0_i32_0 : i32, i32, i32
  }
  func.func @transform_5(%arg0: i32, %arg1: i32) -> (i32, i32, i32, i32) {
    %c0_i32 = arith.constant 0 : i32
    %c0_i32_0 = arith.constant 0 : i32
    %c0_i32_1 = arith.constant 0 : i32
    %c0_i32_2 = arith.constant 0 : i32
    return %arg1, %c0_i32, %c0_i32_0, %c0_i32_1 : i32, i32, i32, i32
  }
  func.func @transform_6(%arg0: i32, %arg1: i32) -> (i32, i32, i32) {
    %c0_i32 = arith.constant 0 : i32
    %c0_i32_0 = arith.constant 0 : i32
    %c0_i32_1 = arith.constant 0 : i32
    return %arg1, %c0_i32, %c0_i32_0 : i32, i32, i32
  }
  func.func @transform_7(%arg0: i32, %arg1: i32) -> (i32, i32, i32) {
    %c0_i32 = arith.constant 0 : i32
    %c0_i32_0 = arith.constant 0 : i32
    %c0_i32_1 = arith.constant 0 : i32
    return %arg1, %c0_i32, %c0_i32_0 : i32, i32, i32
  }
  func.func @transform_8(%arg0: i32, %arg1: i32) -> (i32, i32, i32) {
    %c0_i32 = arith.constant 0 : i32
    %c0_i32_0 = arith.constant 0 : i32
    %c0_i32_1 = arith.constant 0 : i32
    return %arg1, %c0_i32, %c0_i32_0 : i32, i32, i32
  }
  func.func @transform_9(%arg0: i32, %arg1: i32) -> (i32, i32, i32) {
    %c0_i32 = arith.constant 0 : i32
    %c0_i32_0 = arith.constant 0 : i32
    %c0_i32_1 = arith.constant 0 : i32
    return %arg1, %c0_i32, %c0_i32_0 : i32, i32, i32
  }
  func.func @transform_10(%arg0: i32, %arg1: i32) -> (i32, i32, i32) {
    %c0_i32 = arith.constant 0 : i32
    %c0_i32_0 = arith.constant 0 : i32
    %c0_i32_1 = arith.constant 0 : i32
    return %arg1, %c0_i32, %c0_i32_0 : i32, i32, i32
  }
  func.func @transform_11(%arg0: i32, %arg1: i32) -> (i32, i32, i32) {
    %c0_i32 = arith.constant 0 : i32
    %c0_i32_0 = arith.constant 0 : i32
    %c0_i32_1 = arith.constant 0 : i32
    return %arg1, %c0_i32, %c0_i32_0 : i32, i32, i32
  }
  func.func @transform_12(%arg0: i32, %arg1: i32) -> (i32, i32, i32) {
    %c0_i32 = arith.constant 0 : i32
    %c0_i32_0 = arith.constant 0 : i32
    %c0_i32_1 = arith.constant 0 : i32
    return %arg1, %c0_i32, %c0_i32_0 : i32, i32, i32
  }
  func.func @transform_13(%arg0: i32, %arg1: i32) -> (i32, i32) {
    %c0_i32 = arith.constant 0 : i32
    %c0_i32_0 = arith.constant 0 : i32
    %c0_i32_1 = arith.constant 0 : i32
    return %c0_i32, %c0_i32_0 : i32, i32
  }
  func.func @transform_14(%arg0: i32, %arg1: i32) -> (i32, i32) {
    %c0_i32 = arith.constant 0 : i32
    %c0_i32_0 = arith.constant 0 : i32
    %c0_i32_1 = arith.constant 0 : i32
    return %c0_i32, %c0_i32_0 : i32, i32
  }
  func.func @transform_15(%arg0: i32, %arg1: i32) -> (i32, i32) {
    %c0_i32 = arith.constant 0 : i32
    %c0_i32_0 = arith.constant 0 : i32
    %c0_i32_1 = arith.constant 0 : i32
    return %c0_i32, %c0_i32_0 : i32, i32
  }
  func.func @transform_16(%arg0: i32, %arg1: i32) -> (i32, i32) {
    %c0_i32 = arith.constant 0 : i32
    %c0_i32_0 = arith.constant 0 : i32
    %c0_i32_1 = arith.constant 0 : i32
    return %c0_i32, %c0_i32_0 : i32, i32
  }
  func.func @transform_17(%arg0: i32, %arg1: i32) -> (i32, i32) {
    %c0_i32 = arith.constant 0 : i32
    %c0_i32_0 = arith.constant 0 : i32
    %c0_i32_1 = arith.constant 0 : i32
    return %c0_i32, %c0_i32_0 : i32, i32
  }
  func.func @transform_18(%arg0: i32, %arg1: i32) -> (i32, i32) {
    %c0_i32 = arith.constant 0 : i32
    %c0_i32_0 = arith.constant 0 : i32
    %c0_i32_1 = arith.constant 0 : i32
    return %c0_i32, %c0_i32_0 : i32, i32
  }
  func.func @transform_19(%arg0: i32, %arg1: i32) -> (i32, i32) {
    %c0_i32 = arith.constant 0 : i32
    %c0_i32_0 = arith.constant 0 : i32
    %c0_i32_1 = arith.constant 0 : i32
    return %c0_i32, %c0_i32_0 : i32, i32
  }
  func.func @transform_20(%arg0: i32, %arg1: i32) -> (i32, i32, i32) {
    %c0_i32 = arith.constant 0 : i32
    %c0_i32_0 = arith.constant 0 : i32
    %c0_i32_1 = arith.constant 0 : i32
    return %arg0, %c0_i32, %c0_i32_0 : i32, i32, i32
  }
  func.func @transform_21(%arg0: i32, %arg1: i32) -> (i32, i32, i32) {
    %c0_i32 = arith.constant 0 : i32
    %c0_i32_0 = arith.constant 0 : i32
    %c0_i32_1 = arith.constant 0 : i32
    return %arg0, %c0_i32, %c0_i32_0 : i32, i32, i32
  }
  func.func @transform_22(%arg0: i32, %arg1: i32) -> (i32, i32, i32) {
    %c0_i32 = arith.constant 0 : i32
    %c0_i32_0 = arith.constant 0 : i32
    %c0_i32_1 = arith.constant 0 : i32
    return %arg0, %c0_i32, %c0_i32_0 : i32, i32, i32
  }
  func.func @transform_23(%arg0: i32, %arg1: i32) -> (i32, i32, i32) {
    %c0_i32 = arith.constant 0 : i32
    %c0_i32_0 = arith.constant 0 : i32
    %c0_i32_1 = arith.constant 0 : i32
    return %arg0, %c0_i32, %c0_i32_0 : i32, i32, i32
  }
}

</mosaic_0001>

<llo_original>
// kernel: vision_transformer_forward.2
$region0: #{vision_transformer_forward.2}
  #allocation0 [shape = 'u32[]', space=smem, size = 0x4, offset = 0x4, fixed_abs, tag = 'smem constant byte address 0x4 - core index']
  #allocation1 [shape = 'u32[144,128]{1,0:T(1,128)}', space=vmem, size = 0x12000, scoped, tag = 'internal scratch']
  %s0 = inlined_call_operand.vmem [shape: bf16[8,768], index: 0, kind: input, shape index: {}]
  %s1 = inlined_call_operand.hbm [shape: bf16[768,256], index: 1, kind: input, shape index: {}]
  %s2 = inlined_call_operand.vmem [shape: f32[1,256], index: 2, kind: input, shape index: {}]
  %s3 = inlined_call_operand.vmem [shape: f32[8,256], index: 3, kind: output, shape index: {}]
  %s4 = sld [smem:[#allocation0]]
  $region26: #{vision_transformer_forward.2} parent=0
    _
  %s6 = ssub.s32 1, %s4
  %s7 = scalar_select 0, %s6, %s4
  $region1: #{vision_transformer_forward.2} parent=0
    #allocation2 [shape = 'u8[393216]{0}', space=vmem, size = 0x60000, scoped, tag = 'input window, operand 1, single buffered']
    #allocation3 [shape = 's32[1]{0}', space=sflag, size = 0x4, scoped, tag = 'scoped memory for vision_transformer_forward.2']
    %8 = vsyncpa [#allocation3], 0
    // Predicated region
    $region2: #{vision_transformer_forward.2} parent=1 // pred_check
      _
    $region3: #{vision_transformer_forward.2} parent=1 // pred_check_branch
      %10 = sbr.rel (0) target = $region5
    $region4: #{vision_transformer_forward.2} parent=1 // pred_region
      _
    $region5: #{vision_transformer_forward.2} parent=1 // pred_fallthru
      _
    // Predicated region
    $region6: #{vision_transformer_forward.2} parent=1 // pred_check
      _
    $region7: #{vision_transformer_forward.2} parent=1 // pred_check_branch
      %12 = sbr.rel (0) target = $region9
    $region8: #{vision_transformer_forward.2} parent=1 // pred_region
      %s14 = ssub.s32 12288, 12288
      %15 = vsyncadd [#allocation3], %s14
      %s16 = sshll.u32 [#allocation2], 4
      %s17 = int_to_ptr.vmem [resolvable:$true] %s16
      %22 = dma.hbm_to_vmem [thread:$0]  %s1, 12288, %s17, [#allocation3], 128, 128, 8
    $region9: #{vision_transformer_forward.2} parent=1 // pred_fallthru
      _
    // Predicated region
    $region10: #{vision_transformer_forward.2} parent=1 // pred_check
      _
    $region11: #{vision_transformer_forward.2} parent=1 // pred_check_branch
      %24 = sbr.rel (0) target = $region13
    $region12: #{vision_transformer_forward.2} parent=1 // pred_region
      _
    $region13: #{vision_transformer_forward.2} parent=1 // pred_fallthru
      _
    // Predicated region
    $region14: #{vision_transformer_forward.2} parent=1 // pred_check
      _
    $region15: #{vision_transformer_forward.2} parent=1 // pred_check_branch
      %26 = sbr.rel (0) target = $region17
    $region16: #{vision_transformer_forward.2} parent=1 // pred_region
      %27 = dma.done [#allocation3], 12288
    $region17: #{vision_transformer_forward.2} parent=1 // pred_fallthru
      _
    %v28 = vld [vmem:[%s0] sm:$0xff]
    %v29 = vld [vmem:[%s0 + $0x8] sm:$0xff]
    %v30 = vld [vmem:[%s0 + $0x10] sm:$0xff]
    %v31 = vld [vmem:[#allocation2] sm:$0xff]
    %v32 = vld [vmem:[#allocation2 + $0x8] sm:$0xff]
    %v33 = vld [vmem:[#allocation2 + $0x10] sm:$0xff]
    %v34 = vld [vmem:[#allocation2 + $0x18] sm:$0xff]
    %v35 = vld [vmem:[#allocation2 + $0x20] sm:$0xff]
    %v36 = vld [vmem:[#allocation2 + $0x28] sm:$0xff]
    %v37 = vld [vmem:[#allocation2 + $0x30] sm:$0xff]
    %v38 = vld [vmem:[#allocation2 + $0x38] sm:$0xff]
    %v39 = vld [vmem:[#allocation2 + $0x40] sm:$0xff]
    %v40 = vld [vmem:[#allocation2 + $0x48] sm:$0xff]
    %v41 = vld [vmem:[#allocation2 + $0x50] sm:$0xff]
    %v42 = vld [vmem:[#allocation2 + $0x58] sm:$0xff]
    %v43 = vld [vmem:[#allocation2 + $0x60] sm:$0xff]
    %v44 = vld [vmem:[#allocation2 + $0x68] sm:$0xff]
    %v45 = vld [vmem:[#allocation2 + $0x70] sm:$0xff]
    %v46 = vld [vmem:[#allocation2 + $0x78] sm:$0xff]
    %v47 = vld [vmem:[#allocation2 + $0x80] sm:$0xff]
    %v48 = vld [vmem:[#allocation2 + $0x88] sm:$0xff]
    %v49 = vld [vmem:[#allocation2 + $0x90] sm:$0xff]
    %v50 = vld [vmem:[#allocation2 + $0x98] sm:$0xff]
    %v51 = vld [vmem:[#allocation2 + $0xa0] sm:$0xff]
    %v52 = vld [vmem:[#allocation2 + $0xa8] sm:$0xff]
    %v53 = vld [vmem:[#allocation2 + $0xb0] sm:$0xff]
    %v54 = vld [vmem:[#allocation2 + $0xb8] sm:$0xff]
    %v55 = vld [vmem:[#allocation2 + $0xc0] sm:$0xff]
    %v56 = vld [vmem:[#allocation2 + $0xc8] sm:$0xff]
    %v57 = vld [vmem:[#allocation2 + $0xd0] sm:$0xff]
    %v58 = vld [vmem:[#allocation2 + $0xd8] sm:$0xff]
    %v59 = vld [vmem:[#allocation2 + $0xe0] sm:$0xff]
    %v60 = vld [vmem:[#allocation2 + $0xe8] sm:$0xff]
    %v61 = vld [vmem:[#allocation2 + $0xf0] sm:$0xff]
    %v62 = vld [vmem:[#allocation2 + $0xf8] sm:$0xff]
    %v63 = vld [vmem:[#allocation2 + $0x100] sm:$0xff]
    %v64 = vld [vmem:[#allocation2 + $0x108] sm:$0xff]
    %v65 = vld [vmem:[#allocation2 + $0x110] sm:$0xff]
    %v66 = vld [vmem:[#allocation2 + $0x118] sm:$0xff]
    %v67 = vld [vmem:[#allocation2 + $0x120] sm:$0xff]
    %v68 = vld [vmem:[#allocation2 + $0x128] sm:$0xff]
    %v69 = vld [vmem:[#allocation2 + $0x130] sm:$0xff]
    %v70 = vld [vmem:[#allocation2 + $0x138] sm:$0xff]
    %v71 = vld [vmem:[#allocation2 + $0x140] sm:$0xff]
    %v72 = vld [vmem:[#allocation2 + $0x148] sm:$0xff]
    %v73 = vld [vmem:[#allocation2 + $0x150] sm:$0xff]
    %v74 = vld [vmem:[#allocation2 + $0x158] sm:$0xff]
    %v75 = vld [vmem:[#allocation2 + $0x160] sm:$0xff]
    %v76 = vld [vmem:[#allocation2 + $0x168] sm:$0xff]
    %v77 = vld [vmem:[#allocation2 + $0x170] sm:$0xff]
    %v78 = vld [vmem:[#allocation2 + $0x178] sm:$0xff]
    %v79 = vld [vmem:[#allocation2 + $0x180] sm:$0xff]
    %v80 = vld [vmem:[#allocation2 + $0x188] sm:$0xff]
    %v81 = vld [vmem:[#allocation2 + $0x190] sm:$0xff]
    %v82 = vld [vmem:[#allocation2 + $0x198] sm:$0xff]
    %v83 = vld [vmem:[#allocation2 + $0x1a0] sm:$0xff]
    %v84 = vld [vmem:[#allocation2 + $0x1a8] sm:$0xff]
    %v85 = vld [vmem:[#allocation2 + $0x1b0] sm:$0xff]
    %v86 = vld [vmem:[#allocation2 + $0x1b8] sm:$0xff]
    %v87 = vld [vmem:[#allocation2 + $0x1c0] sm:$0xff]
    %v88 = vld [vmem:[#allocation2 + $0x1c8] sm:$0xff]
    %v89 = vld [vmem:[#allocation2 + $0x1d0] sm:$0xff]
    %v90 = vld [vmem:[#allocation2 + $0x1d8] sm:$0xff]
    %v91 = vld [vmem:[#allocation2 + $0x1e0] sm:$0xff]
    %v92 = vld [vmem:[#allocation2 + $0x1e8] sm:$0xff]
    %v93 = vld [vmem:[#allocation2 + $0x1f0] sm:$0xff]
    %v94 = vld [vmem:[#allocation2 + $0x1f8] sm:$0xff]
    %v95 = vld [vmem:[#allocation2 + $0x200] sm:$0xff]
    %v96 = vld [vmem:[#allocation2 + $0x208] sm:$0xff]
    %v97 = vld [vmem:[#allocation2 + $0x210] sm:$0xff]
    %v98 = vld [vmem:[#allocation2 + $0x218] sm:$0xff]
    %v99 = vld [vmem:[#allocation2 + $0x220] sm:$0xff]
    %v100 = vld [vmem:[#allocation2 + $0x228] sm:$0xff]
    %v101 = vld [vmem:[#allocation2 + $0x230] sm:$0xff]
    %v102 = vld [vmem:[#allocation2 + $0x238] sm:$0xff]
    %v103 = vld [vmem:[#allocation2 + $0x240] sm:$0xff]
    %v104 = vld [vmem:[#allocation2 + $0x248] sm:$0xff]
    %v105 = vld [vmem:[#allocation2 + $0x250] sm:$0xff]
    %v106 = vld [vmem:[#allocation2 + $0x258] sm:$0xff]
    %v107 = vld [vmem:[#allocation2 + $0x260] sm:$0xff]
    %v108 = vld [vmem:[#allocation2 + $0x268] sm:$0xff]
    %v109 = vld [vmem:[#allocation2 + $0x270] sm:$0xff]
    %v110 = vld [vmem:[#allocation2 + $0x278] sm:$0xff]
    %v111 = vld [vmem:[#allocation2 + $0x280] sm:$0xff]
    %v112 = vld [vmem:[#allocation2 + $0x288] sm:$0xff]
    %v113 = vld [vmem:[#allocation2 + $0x290] sm:$0xff]
    %v114 = vld [vmem:[#allocation2 + $0x298] sm:$0xff]
    %v115 = vld [vmem:[#allocation2 + $0x2a0] sm:$0xff]
    %v116 = vld [vmem:[#allocation2 + $0x2a8] sm:$0xff]
    %v117 = vld [vmem:[#allocation2 + $0x2b0] sm:$0xff]
    %v118 = vld [vmem:[#allocation2 + $0x2b8] sm:$0xff]
    %v119 = vld [vmem:[#allocation2 + $0x2c0] sm:$0xff]
    %v120 = vld [vmem:[#allocation2 + $0x2c8] sm:$0xff]
    %v121 = vld [vmem:[#allocation2 + $0x2d0] sm:$0xff]
    %v122 = vld [vmem:[#allocation2 + $0x2d8] sm:$0xff]
    %v123 = vld [vmem:[#allocation2 + $0x2e0] sm:$0xff]
    %v124 = vld [vmem:[#allocation2 + $0x2e8] sm:$0xff]
    %v125 = vld [vmem:[#allocation2 + $0x2f0] sm:$0xff]
    %v126 = vld [vmem:[#allocation2 + $0x2f8] sm:$0xff]
    %v127 = vld [vmem:[%s2] sm:$0x3]
    %v129 = vlaneseq
    %v130 = vshrl.u32 %v129, 7
    %v131 = vsub.s32 0, %v130
    %v132 = vrot.slane %v127, %v131
    %v133 = vlaneseq
    %v134 = vshrl.u32 %v133, 7
    %v135 = vsub.s32 1, %v134
    %v136 = vrot.slane %v127, %v135
    %v142 = vunpack.c.l.b16 %v28
    %v143 = vunpack.c.h.b16 %v28
    %v144 = vunpack.c.l.b16 %v29
    %v145 = vunpack.c.h.b16 %v29
    %v146 = vunpack.c.l.b16 %v30
    %v147 = vunpack.c.h.b16 %v30
    %v148 = vpack.c.b16 %v142, %v142
    %v149 = vpack.c.b16 %v143, %v143
    %v150 = vpack.c.b16 %v144, %v144
    %v151 = vpack.c.b16 %v145, %v145
    %v152 = vpack.c.b16 %v146, %v146
    %v153 = vpack.c.b16 %v147, %v147
    %v256 = vunpack.c.l.b16 %v31
    %v257 = vunpack.c.h.b16 %v31
    %v258 = vunpack.c.l.b16 %v32
    %v259 = vunpack.c.h.b16 %v32
    %v260 = vunpack.c.l.b16 %v33
    %v261 = vunpack.c.h.b16 %v33
    %v262 = vunpack.c.l.b16 %v34
    %v263 = vunpack.c.h.b16 %v34
    %v264 = vunpack.c.l.b16 %v35
    %v265 = vunpack.c.h.b16 %v35
    %v266 = vunpack.c.l.b16 %v36
    %v267 = vunpack.c.h.b16 %v36
    %v268 = vunpack.c.l.b16 %v37
    %v269 = vunpack.c.h.b16 %v37
    %v270 = vunpack.c.l.b16 %v38
    %v271 = vunpack.c.h.b16 %v38
    %v272 = vunpack.c.l.b16 %v39
    %v273 = vunpack.c.h.b16 %v39
    %v274 = vunpack.c.l.b16 %v40
    %v275 = vunpack.c.h.b16 %v40
    %v276 = vunpack.c.l.b16 %v41
    %v277 = vunpack.c.h.b16 %v41
    %v278 = vunpack.c.l.b16 %v42
    %v279 = vunpack.c.h.b16 %v42
    %v280 = vunpack.c.l.b16 %v43
    %v281 = vunpack.c.h.b16 %v43
    %v282 = vunpack.c.l.b16 %v44
    %v283 = vunpack.c.h.b16 %v44
    %v284 = vunpack.c.l.b16 %v45
    %v285 = vunpack.c.h.b16 %v45
    %v286 = vunpack.c.l.b16 %v46
    %v287 = vunpack.c.h.b16 %v46
    %v288 = vunpack.c.l.b16 %v47
    %v289 = vunpack.c.h.b16 %v47
    %v290 = vunpack.c.l.b16 %v48
    %v291 = vunpack.c.h.b16 %v48
    %v292 = vunpack.c.l.b16 %v49
    %v293 = vunpack.c.h.b16 %v49
    %v294 = vunpack.c.l.b16 %v50
    %v295 = vunpack.c.h.b16 %v50
    %v296 = vunpack.c.l.b16 %v51
    %v297 = vunpack.c.h.b16 %v51
    %v298 = vunpack.c.l.b16 %v52
    %v299 = vunpack.c.h.b16 %v52
    %v300 = vunpack.c.l.b16 %v53
    %v301 = vunpack.c.h.b16 %v53
    %v302 = vunpack.c.l.b16 %v54
    %v303 = vunpack.c.h.b16 %v54
    %v304 = vunpack.c.l.b16 %v55
    %v305 = vunpack.c.h.b16 %v55
    %v306 = vunpack.c.l.b16 %v56
    %v307 = vunpack.c.h.b16 %v56
    %v308 = vunpack.c.l.b16 %v57
    %v309 = vunpack.c.h.b16 %v57
    %v310 = vunpack.c.l.b16 %v58
    %v311 = vunpack.c.h.b16 %v58
    %v312 = vunpack.c.l.b16 %v59
    %v313 = vunpack.c.h.b16 %v59
    %v314 = vunpack.c.l.b16 %v60
    %v315 = vunpack.c.h.b16 %v60
    %v316 = vunpack.c.l.b16 %v61
    %v317 = vunpack.c.h.b16 %v61
    %v318 = vunpack.c.l.b16 %v62
    %v319 = vunpack.c.h.b16 %v62
    %v320 = vunpack.c.l.b16 %v63
    %v321 = vunpack.c.h.b16 %v63
    %v322 = vunpack.c.l.b16 %v64
    %v323 = vunpack.c.h.b16 %v64
    %v324 = vunpack.c.l.b16 %v65
    %v325 = vunpack.c.h.b16 %v65
    %v326 = vunpack.c.l.b16 %v66
    %v327 = vunpack.c.h.b16 %v66
    %v328 = vunpack.c.l.b16 %v67
    %v329 = vunpack.c.h.b16 %v67
    %v330 = vunpack.c.l.b16 %v68
    %v331 = vunpack.c.h.b16 %v68
    %v332 = vunpack.c.l.b16 %v69
    %v333 = vunpack.c.h.b16 %v69
    %v334 = vunpack.c.l.b16 %v70
    %v335 = vunpack.c.h.b16 %v70
    %v336 = vunpack.c.l.b16 %v71
    %v337 = vunpack.c.h.b16 %v71
    %v338 = vunpack.c.l.b16 %v72
    %v339 = vunpack.c.h.b16 %v72
    %v340 = vunpack.c.l.b16 %v73
    %v341 = vunpack.c.h.b16 %v73
    %v342 = vunpack.c.l.b16 %v74
    %v343 = vunpack.c.h.b16 %v74
    %v344 = vunpack.c.l.b16 %v75
    %v345 = vunpack.c.h.b16 %v75
    %v346 = vunpack.c.l.b16 %v76
    %v347 = vunpack.c.h.b16 %v76
    %v348 = vunpack.c.l.b16 %v77
    %v349 = vunpack.c.h.b16 %v77
    %v350 = vunpack.c.l.b16 %v78
    %v351 = vunpack.c.h.b16 %v78
    %v352 = vunpack.c.l.b16 %v79
    %v353 = vunpack.c.h.b16 %v79
    %v354 = vunpack.c.l.b16 %v80
    %v355 = vunpack.c.h.b16 %v80
    %v356 = vunpack.c.l.b16 %v81
    %v357 = vunpack.c.h.b16 %v81
    %v358 = vunpack.c.l.b16 %v82
    %v359 = vunpack.c.h.b16 %v82
    %v360 = vunpack.c.l.b16 %v83
    %v361 = vunpack.c.h.b16 %v83
    %v362 = vunpack.c.l.b16 %v84
    %v363 = vunpack.c.h.b16 %v84
    %v364 = vunpack.c.l.b16 %v85
    %v365 = vunpack.c.h.b16 %v85
    %v366 = vunpack.c.l.b16 %v86
    %v367 = vunpack.c.h.b16 %v86
    %v368 = vunpack.c.l.b16 %v87
    %v369 = vunpack.c.h.b16 %v87
    %v370 = vunpack.c.l.b16 %v88
    %v371 = vunpack.c.h.b16 %v88
    %v372 = vunpack.c.l.b16 %v89
    %v373 = vunpack.c.h.b16 %v89
    %v374 = vunpack.c.l.b16 %v90
    %v375 = vunpack.c.h.b16 %v90
    %v376 = vunpack.c.l.b16 %v91
    %v377 = vunpack.c.h.b16 %v91
    %v378 = vunpack.c.l.b16 %v92
    %v379 = vunpack.c.h.b16 %v92
    %v380 = vunpack.c.l.b16 %v93
    %v381 = vunpack.c.h.b16 %v93
    %v382 = vunpack.c.l.b16 %v94
    %v383 = vunpack.c.h.b16 %v94
    %v384 = vunpack.c.l.b16 %v95
    %v385 = vunpack.c.h.b16 %v95
    %v386 = vunpack.c.l.b16 %v96
    %v387 = vunpack.c.h.b16 %v96
    %v388 = vunpack.c.l.b16 %v97
    %v389 = vunpack.c.h.b16 %v97
    %v390 = vunpack.c.l.b16 %v98
    %v391 = vunpack.c.h.b16 %v98
    %v392 = vunpack.c.l.b16 %v99
    %v393 = vunpack.c.h.b16 %v99
    %v394 = vunpack.c.l.b16 %v100
    %v395 = vunpack.c.h.b16 %v100
    %v396 = vunpack.c.l.b16 %v101
    %v397 = vunpack.c.h.b16 %v101
    %v398 = vunpack.c.l.b16 %v102
    %v399 = vunpack.c.h.b16 %v102
    %v400 = vunpack.c.l.b16 %v103
    %v401 = vunpack.c.h.b16 %v103
    %v402 = vunpack.c.l.b16 %v104
    %v403 = vunpack.c.h.b16 %v104
    %v404 = vunpack.c.l.b16 %v105
    %v405 = vunpack.c.h.b16 %v105
    %v406 = vunpack.c.l.b16 %v106
    %v407 = vunpack.c.h.b16 %v106
    %v408 = vunpack.c.l.b16 %v107
    %v409 = vunpack.c.h.b16 %v107
    %v410 = vunpack.c.l.b16 %v108
    %v411 = vunpack.c.h.b16 %v108
    %v412 = vunpack.c.l.b16 %v109
    %v413 = vunpack.c.h.b16 %v109
    %v414 = vunpack.c.l.b16 %v110
    %v415 = vunpack.c.h.b16 %v110
    %v416 = vunpack.c.l.b16 %v111
    %v417 = vunpack.c.h.b16 %v111
    %v418 = vunpack.c.l.b16 %v112
    %v419 = vunpack.c.h.b16 %v112
    %v420 = vunpack.c.l.b16 %v113
    %v421 = vunpack.c.h.b16 %v113
    %v422 = vunpack.c.l.b16 %v114
    %v423 = vunpack.c.h.b16 %v114
    %v424 = vunpack.c.l.b16 %v115
    %v425 = vunpack.c.h.b16 %v115
    %v426 = vunpack.c.l.b16 %v116
    %v427 = vunpack.c.h.b16 %v116
    %v428 = vunpack.c.l.b16 %v117
    %v429 = vunpack.c.h.b16 %v117
    %v430 = vunpack.c.l.b16 %v118
    %v431 = vunpack.c.h.b16 %v118
    %v432 = vunpack.c.l.b16 %v119
    %v433 = vunpack.c.h.b16 %v119
    %v434 = vunpack.c.l.b16 %v120
    %v435 = vunpack.c.h.b16 %v120
    %v436 = vunpack.c.l.b16 %v121
    %v437 = vunpack.c.h.b16 %v121
    %v438 = vunpack.c.l.b16 %v122
    %v439 = vunpack.c.h.b16 %v122
    %v440 = vunpack.c.l.b16 %v123
    %v441 = vunpack.c.h.b16 %v123
    %v442 = vunpack.c.l.b16 %v124
    %v443 = vunpack.c.h.b16 %v124
    %v444 = vunpack.c.l.b16 %v125
    %v445 = vunpack.c.h.b16 %v125
    %v446 = vunpack.c.l.b16 %v126
    %v447 = vunpack.c.h.b16 %v126
    %v448 = vpack.c.b16 %v258, %v256
    %v449 = vpack.c.b16 %v259, %v257
    %v450 = vpack.c.b16 %v262, %v260
    %v451 = vpack.c.b16 %v263, %v261
    %v452 = vpack.c.b16 %v266, %v264
    %v453 = vpack.c.b16 %v267, %v265
    %v454 = vpack.c.b16 %v270, %v268
    %v455 = vpack.c.b16 %v271, %v269
    %v456 = vpack.c.b16 %v274, %v272
    %v457 = vpack.c.b16 %v275, %v273
    %v458 = vpack.c.b16 %v278, %v276
    %v459 = vpack.c.b16 %v279, %v277
    %v460 = vpack.c.b16 %v282, %v280
    %v461 = vpack.c.b16 %v283, %v281
    %v462 = vpack.c.b16 %v286, %v284
    %v463 = vpack.c.b16 %v287, %v285
    %v464 = vpack.c.b16 %v290, %v288
    %v465 = vpack.c.b16 %v291, %v289
    %v466 = vpack.c.b16 %v294, %v292
    %v467 = vpack.c.b16 %v295, %v293
    %v468 = vpack.c.b16 %v298, %v296
    %v469 = vpack.c.b16 %v299, %v297
    %v470 = vpack.c.b16 %v302, %v300
    %v471 = vpack.c.b16 %v303, %v301
    %v472 = vpack.c.b16 %v306, %v304
    %v473 = vpack.c.b16 %v307, %v305
    %v474 = vpack.c.b16 %v310, %v308
    %v475 = vpack.c.b16 %v311, %v309
    %v476 = vpack.c.b16 %v314, %v312
    %v477 = vpack.c.b16 %v315, %v313
    %v478 = vpack.c.b16 %v318, %v316
    %v479 = vpack.c.b16 %v319, %v317
    %v480 = vpack.c.b16 %v322, %v320
    %v481 = vpack.c.b16 %v323, %v321
    %v482 = vpack.c.b16 %v326, %v324
    %v483 = vpack.c.b16 %v327, %v325
    %v484 = vpack.c.b16 %v330, %v328
    %v485 = vpack.c.b16 %v331, %v329
    %v486 = vpack.c.b16 %v334, %v332
    %v487 = vpack.c.b16 %v335, %v333
    %v488 = vpack.c.b16 %v338, %v336
    %v489 = vpack.c.b16 %v339, %v337
    %v490 = vpack.c.b16 %v342, %v340
    %v491 = vpack.c.b16 %v343, %v341
    %v492 = vpack.c.b16 %v346, %v344
    %v493 = vpack.c.b16 %v347, %v345
    %v494 = vpack.c.b16 %v350, %v348
    %v495 = vpack.c.b16 %v351, %v349
    %v496 = vpack.c.b16 %v354, %v352
    %v497 = vpack.c.b16 %v355, %v353
    %v498 = vpack.c.b16 %v358, %v356
    %v499 = vpack.c.b16 %v359, %v357
    %v500 = vpack.c.b16 %v362, %v360
    %v501 = vpack.c.b16 %v363, %v361
    %v502 = vpack.c.b16 %v366, %v364
    %v503 = vpack.c.b16 %v367, %v365
    %v504 = vpack.c.b16 %v370, %v368
    %v505 = vpack.c.b16 %v371, %v369
    %v506 = vpack.c.b16 %v374, %v372
    %v507 = vpack.c.b16 %v375, %v373
    %v508 = vpack.c.b16 %v378, %v376
    %v509 = vpack.c.b16 %v379, %v377
    %v510 = vpack.c.b16 %v382, %v380
    %v511 = vpack.c.b16 %v383, %v381
    %v512 = vpack.c.b16 %v386, %v384
    %v513 = vpack.c.b16 %v387, %v385
    %v514 = vpack.c.b16 %v390, %v388
    %v515 = vpack.c.b16 %v391, %v389
    %v516 = vpack.c.b16 %v394, %v392
    %v517 = vpack.c.b16 %v395, %v393
    %v518 = vpack.c.b16 %v398, %v396
    %v519 = vpack.c.b16 %v399, %v397
    %v520 = vpack.c.b16 %v402, %v400
    %v521 = vpack.c.b16 %v403, %v401
    %v522 = vpack.c.b16 %v406, %v404
    %v523 = vpack.c.b16 %v407, %v405
    %v524 = vpack.c.b16 %v410, %v408
    %v525 = vpack.c.b16 %v411, %v409
    %v526 = vpack.c.b16 %v414, %v412
    %v527 = vpack.c.b16 %v415, %v413
    %v528 = vpack.c.b16 %v418, %v416
    %v529 = vpack.c.b16 %v419, %v417
    %v530 = vpack.c.b16 %v422, %v420
    %v531 = vpack.c.b16 %v423, %v421
    %v532 = vpack.c.b16 %v426, %v424
    %v533 = vpack.c.b16 %v427, %v425
    %v534 = vpack.c.b16 %v430, %v428
    %v535 = vpack.c.b16 %v431, %v429
    %v536 = vpack.c.b16 %v434, %v432
    %v537 = vpack.c.b16 %v435, %v433
    %v538 = vpack.c.b16 %v438, %v436
    %v539 = vpack.c.b16 %v439, %v437
    %v540 = vpack.c.b16 %v442, %v440
    %v541 = vpack.c.b16 %v443, %v441
    %v542 = vpack.c.b16 %v446, %v444
    %v543 = vpack.c.b16 %v447, %v445
    %640 = vmatprep.subr.bf16.mxu0 %v463
    %641 = vmatpush1.bf16.msra.mxu0 %v462
    %642 = vmatprep.subr.bf16.mxu0 %v461
    %643 = vmatpush1.bf16.msra.mxu0 %v460
    %644 = vmatprep.subr.bf16.mxu0 %v459
    %645 = vmatpush1.bf16.msra.mxu0 %v458
    %646 = vmatprep.subr.bf16.mxu0 %v457
    %647 = vmatpush1.bf16.msra.mxu0 %v456
    %648 = vmatprep.subr.bf16.mxu0 %v455
    %649 = vmatpush1.bf16.msra.mxu0 %v454
    %650 = vmatprep.subr.bf16.mxu0 %v453
    %651 = vmatpush1.bf16.msra.mxu0 %v452
    %652 = vmatprep.subr.bf16.mxu0 %v451
    %653 = vmatpush1.bf16.msra.mxu0 %v450
    %654 = vmatprep.subr.bf16.mxu0 %v449
    %655 = vmatpush1.bf16.msra.mxu0 %v448
    %656 = vmatprep.subr.bf16.mxu0 %v479
    %657 = vmatpush2.bf16.msra.mxu0 %v478
    %658 = vmatprep.subr.bf16.mxu0 %v477
    %659 = vmatpush2.bf16.msra.mxu0 %v476
    %660 = vmatprep.subr.bf16.mxu0 %v475
    %661 = vmatpush2.bf16.msra.mxu0 %v474
    %662 = vmatprep.subr.bf16.mxu0 %v473
    %663 = vmatpush2.bf16.msra.mxu0 %v472
    %664 = vmatprep.subr.bf16.mxu0 %v471
    %665 = vmatpush2.bf16.msra.mxu0 %v470
    %666 = vmatprep.subr.bf16.mxu0 %v469
    %667 = vmatpush2.bf16.msra.mxu0 %v468
    %668 = vmatprep.subr.bf16.mxu0 %v467
    %669 = vmatpush2.bf16.msra.mxu0 %v466
    %670 = vmatprep.subr.bf16.mxu0 %v465
    %671 = vmatpush2.bf16.msra.mxu0 %v464
    %672 = vmatprep.mubr.bf16.mxu0 %v149
    %673 = vmatmul.mubr.bf16.gmra.mxu0 %v148
    %v674 = vpop.f32.mrf.mxu0
    %v675 = vadd.f32 %v132, %v674
    %v676 = vpop.f32.mrf.mxu0
    %v677 = vadd.f32 %v136, %v676
    %v678 = vpop.f32.mrf.mxu0
    %v679 = vpop.f32.mrf.mxu0
    %680 = vdwg.mxu0
    %681 = vmatprep.subr.bf16.mxu0 %v495
    %682 = vmatpush1.bf16.msra.mxu0 %v494
    %683 = vmatprep.subr.bf16.mxu0 %v493
    %684 = vmatpush1.bf16.msra.mxu0 %v492
    %685 = vmatprep.subr.bf16.mxu0 %v491
    %686 = vmatpush1.bf16.msra.mxu0 %v490
    %687 = vmatprep.subr.bf16.mxu0 %v489
    %688 = vmatpush1.bf16.msra.mxu0 %v488
    %689 = vmatprep.subr.bf16.mxu0 %v487
    %690 = vmatpush1.bf16.msra.mxu0 %v486
    %691 = vmatprep.subr.bf16.mxu0 %v485
    %692 = vmatpush1.bf16.msra.mxu0 %v484
    %693 = vmatprep.subr.bf16.mxu0 %v483
    %694 = vmatpush1.bf16.msra.mxu0 %v482
    %695 = vmatprep.subr.bf16.mxu0 %v481
    %696 = vmatpush1.bf16.msra.mxu0 %v480
    %697 = vmatprep.subr.bf16.mxu0 %v511
    %698 = vmatpush2.bf16.msra.mxu0 %v510
    %699 = vmatprep.subr.bf16.mxu0 %v509
    %700 = vmatpush2.bf16.msra.mxu0 %v508
    %701 = vmatprep.subr.bf16.mxu0 %v507
    %702 = vmatpush2.bf16.msra.mxu0 %v506
    %703 = vmatprep.subr.bf16.mxu0 %v505
    %704 = vmatpush2.bf16.msra.mxu0 %v504
    %705 = vmatprep.subr.bf16.mxu0 %v503
    %706 = vmatpush2.bf16.msra.mxu0 %v502
    %707 = vmatprep.subr.bf16.mxu0 %v501
    %708 = vmatpush2.bf16.msra.mxu0 %v500
    %709 = vmatprep.subr.bf16.mxu0 %v499
    %710 = vmatpush2.bf16.msra.mxu0 %v498
    %711 = vmatprep.subr.bf16.mxu0 %v497
    %712 = vmatpush2.bf16.msra.mxu0 %v496
    %713 = vmatprep.mubr.bf16.mxu0 %v151
    %714 = vmatmul.mubr.bf16.gmra.mxu0 %v150
    %v715 = vpop.f32.mrf.mxu0
    %v716 = vadd.f32 %v675, %v715
    %v717 = vpop.f32.mrf.mxu0
    %v718 = vadd.f32 %v677, %v717
    %v719 = vpop.f32.mrf.mxu0
    %v720 = vpop.f32.mrf.mxu0
    %721 = vdwg.mxu0
    %722 = vmatprep.subr.bf16.mxu0 %v527
    %723 = vmatpush1.bf16.msra.mxu0 %v526
    %724 = vmatprep.subr.bf16.mxu0 %v525
    %725 = vmatpush1.bf16.msra.mxu0 %v524
    %726 = vmatprep.subr.bf16.mxu0 %v523
    %727 = vmatpush1.bf16.msra.mxu0 %v522
    %728 = vmatprep.subr.bf16.mxu0 %v521
    %729 = vmatpush1.bf16.msra.mxu0 %v520
    %730 = vmatprep.subr.bf16.mxu0 %v519
    %731 = vmatpush1.bf16.msra.mxu0 %v518
    %732 = vmatprep.subr.bf16.mxu0 %v517
    %733 = vmatpush1.bf16.msra.mxu0 %v516
    %734 = vmatprep.subr.bf16.mxu0 %v515
    %735 = vmatpush1.bf16.msra.mxu0 %v514
    %736 = vmatprep.subr.bf16.mxu0 %v513
    %737 = vmatpush1.bf16.msra.mxu0 %v512
    %738 = vmatprep.subr.bf16.mxu0 %v543
    %739 = vmatpush2.bf16.msra.mxu0 %v542
    %740 = vmatprep.subr.bf16.mxu0 %v541
    %741 = vmatpush2.bf16.msra.mxu0 %v540
    %742 = vmatprep.subr.bf16.mxu0 %v539
    %743 = vmatpush2.bf16.msra.mxu0 %v538
    %744 = vmatprep.subr.bf16.mxu0 %v537
    %745 = vmatpush2.bf16.msra.mxu0 %v536
    %746 = vmatprep.subr.bf16.mxu0 %v535
    %747 = vmatpush2.bf16.msra.mxu0 %v534
    %748 = vmatprep.subr.bf16.mxu0 %v533
    %749 = vmatpush2.bf16.msra.mxu0 %v532
    %750 = vmatprep.subr.bf16.mxu0 %v531
    %751 = vmatpush2.bf16.msra.mxu0 %v530
    %752 = vmatprep.subr.bf16.mxu0 %v529
    %753 = vmatpush2.bf16.msra.mxu0 %v528
    %754 = vmatprep.mubr.bf16.mxu0 %v153
    %755 = vmatmul.mubr.bf16.gmra.mxu0 %v152
    %v756 = vpop.f32.mrf.mxu0
    %v757 = vadd.f32 %v716, %v756
    %v758 = vpop.f32.mrf.mxu0
    %v759 = vadd.f32 %v718, %v758
    %v760 = vpop.f32.mrf.mxu0
    %v761 = vpop.f32.mrf.mxu0
    %762 = vdwg.mxu0
    %763 = vst [vmem:[%s3] sm:$0xff] %v757
    %764 = vst [vmem:[%s3 + $0x8] sm:$0xff] %v759
    // Predicated region
    $region18: #{vision_transformer_forward.2} parent=1 // pred_check
      _
    $region19: #{vision_transformer_forward.2} parent=1 // pred_check_branch
      %766 = sbr.rel (0) target = $region21
    $region20: #{vision_transformer_forward.2} parent=1 // pred_region
      _
    $region21: #{vision_transformer_forward.2} parent=1 // pred_fallthru
      _
    // Predicated region
    $region22: #{vision_transformer_forward.2} parent=1 // pred_check
      _
    $region23: #{vision_transformer_forward.2} parent=1 // pred_check_branch
      %768 = sbr.rel (0) target = $region25
    $region24: #{vision_transformer_forward.2} parent=1 // pred_region
      _
    $region25: #{vision_transformer_forward.2} parent=1 // pred_fallthru
      _
    %769 = vsyncpa [#allocation3], 1

// kernel: vision_transformer_forward.3
$region0: #{vision_transformer_forward.3}
  #allocation0 [shape = 'u32[]', space=smem, size = 0x4, offset = 0x4, fixed_abs, tag = 'smem constant byte address 0x4 - core index']
  #allocation1 [shape = 'u32[144,128]{1,0:T(1,128)}', space=vmem, size = 0x12000, scoped, tag = 'internal scratch']
  #allocation2 [shape = 'f32[2,8,256]{2,1,0:T(8,128)}', space=vmem, size = 0x4000, scoped, tag = 'scratch operand']
  %s0 = inlined_call_operand.vmem [shape: f32[2,8,256], index: 0, kind: input, shape index: {}]
  %s1 = inlined_call_operand.hbm [shape: f32[2,1,256], index: 1, kind: input, shape index: {}]
  %s2 = inlined_call_operand.hbm [shape: f32[2,1,256], index: 2, kind: input, shape index: {}]
  %s3 = inlined_call_operand.hbm [shape: bf16[2,256,768], index: 3, kind: input, shape index: {}]
  %s4 = inlined_call_operand.vmem [shape: f32[2,1,768], index: 4, kind: input, shape index: {}]
  %s5 = inlined_call_operand.hbm [shape: bf16[2,4,64,256], index: 5, kind: input, shape index: {}]
  %s6 = inlined_call_operand.vmem [shape: f32[2,1,256], index: 6, kind: input, shape index: {}]
  %s7 = inlined_call_operand.hbm [shape: f32[2,1,256], index: 7, kind: input, shape index: {}]
  %s8 = inlined_call_operand.hbm [shape: f32[2,1,256], index: 8, kind: input, shape index: {}]
  %s9 = inlined_call_operand.vmem [shape: bf16[2,256,1024], index: 9, kind: input, shape index: {}]
  %s10 = inlined_call_operand.vmem [shape: f32[2,1,1024], index: 10, kind: input, shape index: {}]
  %s11 = inlined_call_operand.hbm [shape: bf16[2,1024,256], index: 11, kind: input, shape index: {}]
  %s12 = inlined_call_operand.hbm [shape: f32[2,1,256], index: 12, kind: input, shape index: {}]
  %s13 = inlined_call_operand.hbm [shape: f32[1,256], index: 13, kind: input, shape index: {}]
  %s14 = inlined_call_operand.hbm [shape: f32[1,256], index: 14, kind: input, shape index: {}]
  %s15 = inlined_call_operand.hbm [shape: f32[1,256], index: 15, kind: input, shape index: {}]
  %s16 = inlined_call_operand.hbm [shape: f32[1,256], index: 16, kind: input, shape index: {}]
  %s17 = inlined_call_operand.hbm [shape: f32[1,256], index: 17, kind: input, shape index: {}]
  %s18 = inlined_call_operand.hbm [shape: f32[1,256], index: 18, kind: input, shape index: {}]
  %s19 = inlined_call_operand.vmem [shape: bf16[256,128], index: 19, kind: input, shape index: {}]
  %s20 = inlined_call_operand.vmem [shape: f32[2,8,256], index: 20, kind: output, shape index: {0}]
  %s21 = inlined_call_operand.hbm [shape: f32[1,2,256], index: 21, kind: output, shape index: {1}]
  %s22 = inlined_call_operand.hbm [shape: f32[1,2,256], index: 22, kind: output, shape index: {2}]
  %s23 = inlined_call_operand.hbm [shape: f32[1,2,128], index: 23, kind: output, shape index: {3}]
  %24 = xla_tuple %s20, %s21, %s22, %s23
  %s25 = sld [smem:[#allocation0]]
  $region201: #{vision_transformer_forward.3} parent=0
    _
  %s27 = ssub.s32 1, %s25
  %s28 = scalar_select 0, %s27, %s25
  $region1: #{vision_transformer_forward.3} parent=0
    #allocation3 [shape = 'u8[2048]{0}', space=vmem, size = 0x800, scoped, tag = 'input window, operand 1']
    #allocation4 [shape = 's32[2]{0}', space=sflag, size = 0x8, scoped, tag = 'scoped memory for vision_transformer_forward.3']
    #allocation5 [shape = 's32[2]{0}', space=sflag, size = 0x8, scoped, tag = 'scoped memory for vision_transformer_forward.3']
    #allocation6 [shape = 'u8[2048]{0}', space=vmem, size = 0x800, scoped, tag = 'input window, operand 2']
    #allocation7 [shape = 's32[2]{0}', space=sflag, size = 0x8, scoped, tag = 'scoped memory for vision_transformer_forward.3']
    #allocation8 [shape = 'u8[786432]{0}', space=vmem, size = 0xc0000, scoped, tag = 'input window, operand 3']
    #allocation9 [shape = 'u8[262144]{0}', space=vmem, size = 0x40000, scoped, tag = 'input window, operand 5']
    #allocation10 [shape = 's32[2]{0}', space=sflag, size = 0x8, scoped, tag = 'scoped memory for vision_transformer_forward.3']
    #allocation11 [shape = 'u8[2048]{0}', space=vmem, size = 0x800, scoped, tag = 'input window, operand 7']
    #allocation12 [shape = 'u8[2048]{0}', space=vmem, size = 0x800, scoped, tag = 'input window, operand 8']
    #allocation13 [shape = 's32[2]{0}', space=sflag, size = 0x8, scoped, tag = 'scoped memory for vision_transformer_forward.3']
    #allocation14 [shape = 'u8[1048576]{0}', space=vmem, size = 0x100000, scoped, tag = 'input window, operand 11']
    #allocation15 [shape = 'u8[2048]{0}', space=vmem, size = 0x800, scoped, tag = 'input window, operand 12']
    #allocation16 [shape = 's32[2]{0}', space=sflag, size = 0x8, scoped, tag = 'scoped memory for vision_transformer_forward.3']
    #allocation17 [shape = 'u8[1024]{0}', space=vmem, size = 0x400, scoped, tag = 'input window, operand 13, single buffered']
    #allocation18 [shape = 'u8[1024]{0}', space=vmem, size = 0x400, scoped, tag = 'input window, operand 14, single buffered']
    #allocation19 [shape = 's32[1]{0}', space=sflag, size = 0x4, scoped, tag = 'scoped memory for vision_transformer_forward.3']
    #allocation20 [shape = 'u8[1024]{0}', space=vmem, size = 0x400, scoped, tag = 'input window, operand 15, single buffered']
    #allocation21 [shape = 'u8[1024]{0}', space=vmem, size = 0x400, scoped, tag = 'input window, operand 16, single buffered']
    #allocation22 [shape = 's32[1]{0}', space=sflag, size = 0x4, scoped, tag = 'scoped memory for vision_transformer_forward.3']
    #allocation23 [shape = 'u8[1024]{0}', space=vmem, size = 0x400, scoped, tag = 'input window, operand 17, single buffered']
    #allocation24 [shape = 'u8[1024]{0}', space=vmem, size = 0x400, scoped, tag = 'input window, operand 18, single buffered']
    #allocation25 [shape = 's32[1]{0}', space=sflag, size = 0x4, scoped, tag = 'scoped memory for vision_transformer_forward.3']
    #allocation26 [shape = 'u8[2048]{0}', space=vmem, size = 0x800, scoped, tag = 'output window, operand 1, single buffered']
    #allocation27 [shape = 'u8[2048]{0}', space=vmem, size = 0x800, scoped, tag = 'output window, operand 2, single buffered']
    #allocation28 [shape = 's32[1]{0}', space=sflag, size = 0x4, scoped, tag = 'scoped memory for vision_transformer_forward.3']
    #allocation29 [shape = 'u8[1024]{0}', space=vmem, size = 0x400, scoped, tag = 'output window, operand 3, single buffered']
    %29 = vsyncpa [#allocation4], 0
    %s30 = scalar_lea.sflag [#allocation4], 1
    %31 = vsyncpa %s30, 0
    %32 = vsyncpa [#allocation7], 0
    %s33 = scalar_lea.sflag [#allocation7], 1
    %34 = vsyncpa %s33, 0
    %35 = vsyncpa [#allocation10], 0
    %s36 = scalar_lea.sflag [#allocation10], 1
    %37 = vsyncpa %s36, 0
    %38 = vsyncpa [#allocation13], 0
    %s39 = scalar_lea.sflag [#allocation13], 1
    %40 = vsyncpa %s39, 0
    %41 = vsyncpa [#allocation16], 0
    %s42 = scalar_lea.sflag [#allocation16], 1
    %43 = vsyncpa %s42, 0
    %44 = vsyncpa [#allocation19], 0
    %45 = vsyncpa [#allocation22], 0
    %46 = vsyncpa [#allocation25], 0
    %47 = vsyncpa [#allocation5], 0
    %48 = vsyncpa [#allocation28], 0
    loop: start=0, step=1, limit=4
    $region2: #{vision_transformer_forward.3} parent=1 // loop_pre_header
      _
    $region3: #{vision_transformer_forward.3} parent=1 // loop_header
      %s50 = sphi 0, %s54
      %p51 = scmp.ge.s32.totalorder %s50, 4
      %s57 = sphi 0, %s69
      %s58 = sphi 0, %s65
      %s59 = sphi 0, %s57
      %s60 = sphi 0, %s58
      %s61 = sphi 0, %s59
      %s62 = sphi 0, %s60
      %s72 = sphi 0, %s74
      %s75 = sphi 0, %s72
      %s76 = sphi 0, %s75
      %s92 = sphi 0, %s76
      %s98 = sphi 0, %s100
      %s101 = sphi 0, %s98
      %s102 = sphi 0, %s101
      %s118 = sphi 0, %s102
      %s124 = sphi 0, %s126
      %s127 = sphi 0, %s124
      %s128 = sphi 0, %s127
      %s144 = sphi 0, %s128
      %s150 = sphi 0, %s152
      %s153 = sphi 0, %s150
      %s154 = sphi 0, %s153
      %s170 = sphi 0, %s154
      %s176 = sphi 0, %s178
      %s179 = sphi 0, %s176
      %s180 = sphi 0, %s179
      %s196 = sphi 0, %s180
      %s202 = sphi 0, %s204
      %s205 = sphi 0, %s202
      %s206 = sphi 0, %s205
      %s222 = sphi 0, %s206
      %s228 = sphi 0, %s230
      %s231 = sphi 0, %s228
      %s232 = sphi 0, %s231
      %s248 = sphi 0, %s232
      %s254 = sphi 0, %s256
      %s257 = sphi 0, %s254
      %s258 = sphi 0, %s257
      %s274 = sphi 0, %s258
      %s280 = sphi 0, %s282
      %s283 = sphi 0, %s280
      %s284 = sphi 0, %s283
      %s300 = sphi 0, %s284
      %s306 = sphi 0, %s308
      %s309 = sphi 0, %s306
      %s310 = sphi 0, %s309
      %s326 = sphi 0, %s310
      %s332 = sphi 0, %s334
      %s335 = sphi 0, %s332
      %s336 = sphi 0, %s335
      %s352 = sphi 0, %s336
      %s358 = sphi 0, %s360
      %s361 = sphi 0, %s358
      %s362 = sphi 0, %s361
      %s378 = sphi 0, %s362
      %s384 = sphi 0, %s386
      %s387 = sphi 0, %s384
      %s388 = sphi 0, %s387
      %s404 = sphi 0, %s388
      %s408 = sphi 0, %s408
      %s410 = sphi 0, %s408
      %s411 = sphi 0, %s410
      %s425 = sphi 0, %s411
      %s429 = sphi 0, %s429
      %s431 = sphi 0, %s429
      %s432 = sphi 0, %s431
      %s446 = sphi 0, %s432
      %s450 = sphi 0, %s450
      %s452 = sphi 0, %s450
      %s453 = sphi 0, %s452
      %s467 = sphi 0, %s453
      %s471 = sphi 0, %s471
      %s473 = sphi 0, %s471
      %s474 = sphi 0, %s473
      %s488 = sphi 0, %s474
      %s492 = sphi 0, %s492
      %s494 = sphi 0, %s492
      %s495 = sphi 0, %s494
      %s509 = sphi 0, %s495
      %s513 = sphi 0, %s513
      %s515 = sphi 0, %s513
      %s516 = sphi 0, %s515
      %s530 = sphi 0, %s516
      %s534 = sphi 0, %s534
      %s536 = sphi 0, %s534
      %s537 = sphi 0, %s536
      %s551 = sphi 0, %s537
      %s557 = sphi 0, %s559
      %s560 = sphi 0, %s557
      %s561 = sphi 0, %s560
      %s577 = sphi 0, %s561
      %s583 = sphi 0, %s585
      %s586 = sphi 0, %s583
      %s587 = sphi 0, %s586
      %s603 = sphi 0, %s587
      %s609 = sphi 0, %s611
      %s612 = sphi 0, %s609
      %s613 = sphi 0, %s612
      %s629 = sphi 0, %s613
      %s635 = sphi 0, %s637
      %s638 = sphi 0, %s635
      %s639 = sphi 0, %s638
      %s655 = sphi 0, %s639
    $region4: #{vision_transformer_forward.3} parent=1 // loop_header_branch
      %53 = sbr.rel (%p51) target = $region8
    $region5: #{vision_transformer_forward.3} parent=1 // loop_body
      %s55 = ssub.s32 %s50, 1
      %s56 = ssub.s32 %s50, 2
      %s63 = sadd.s32 1, %s58
      %p64 = scmp.ge.s32.totalorder %s63, 2
      %s65 = scalar_select %p64, 0, %s63
      %s66 = sadd.s32 1, %s57
      %s67 = scalar_select %p64, %s66, %s57
      %p68 = scmp.ge.s32.totalorder %s67, 1
      %s69 = scalar_select %p68, 0, %s67
      %s70 = ssub.s32 %s57, %s69
      %p71 = scmp.eq.s32.totalorder %s70, 0
      %s73 = sadd.s32 %s72, 1
      %s74 = scalar_select %p71, %s72, %s73
      %p77 = pneg %p71
      %p78 = scmp.eq.s32.totalorder %s50, 1
      %p79 = por %p77, %p78
      %p80 = scmp.ne.s32.totalorder %s72, %s75
      %p81 = scmp.eq.s32.totalorder %s50, 0
      %p82 = por %p80, %p81
      %p83 = scmp.ne.s32.totalorder %s72, %s75
      %p84 = scmp.eq.s32.totalorder %s55, 1
      %p85 = por %p83, %p84
      %p86 = scmp.ne.s32.totalorder %s75, %s76
      %p87 = scmp.eq.s32.totalorder %s55, 0
      %p88 = por %p86, %p87
      %p89 = scmp.ne.s32.totalorder %s75, %s76
      %p90 = scmp.eq.s32.totalorder %s56, 1
      %p91 = por %p89, %p90
      %p93 = scmp.ne.s32.totalorder %s76, %s92
      %p94 = scmp.eq.s32.totalorder %s56, 0
      %p95 = por %p93, %p94
      %s96 = ssub.s32 %s58, %s65
      %p97 = scmp.eq.s32.totalorder %s96, 0
      %s99 = sadd.s32 %s98, 1
      %s100 = scalar_select %p97, %s98, %s99
      %p103 = pneg %p97
      %p104 = scmp.eq.s32.totalorder %s50, 1
      %p105 = por %p103, %p104
      %p106 = scmp.ne.s32.totalorder %s98, %s101
      %p107 = scmp.eq.s32.totalorder %s50, 0
      %p108 = por %p106, %p107
      %p109 = scmp.ne.s32.totalorder %s98, %s101
      %p110 = scmp.eq.s32.totalorder %s55, 1
      %p111 = por %p109, %p110
      %p112 = scmp.ne.s32.totalorder %s101, %s102
      %p113 = scmp.eq.s32.totalorder %s55, 0
      %p114 = por %p112, %p113
      %p115 = scmp.ne.s32.totalorder %s101, %s102
      %p116 = scmp.eq.s32.totalorder %s56, 1
      %p117 = por %p115, %p116
      %p119 = scmp.ne.s32.totalorder %s102, %s118
      %p120 = scmp.eq.s32.totalorder %s56, 0
      %p121 = por %p119, %p120
      %s122 = ssub.s32 %s58, %s65
      %p123 = scmp.eq.s32.totalorder %s122, 0
      %s125 = sadd.s32 %s124, 1
      %s126 = scalar_select %p123, %s124, %s125
      %p129 = pneg %p123
      %p130 = scmp.eq.s32.totalorder %s50, 1
      %p131 = por %p129, %p130
      %p132 = scmp.ne.s32.totalorder %s124, %s127
      %p133 = scmp.eq.s32.totalorder %s50, 0
      %p134 = por %p132, %p133
      %p135 = scmp.ne.s32.totalorder %s124, %s127
      %p136 = scmp.eq.s32.totalorder %s55, 1
      %p137 = por %p135, %p136
      %p138 = scmp.ne.s32.totalorder %s127, %s128
      %p139 = scmp.eq.s32.totalorder %s55, 0
      %p140 = por %p138, %p139
      %p141 = scmp.ne.s32.totalorder %s127, %s128
      %p142 = scmp.eq.s32.totalorder %s56, 1
      %p143 = por %p141, %p142
      %p145 = scmp.ne.s32.totalorder %s128, %s144
      %p146 = scmp.eq.s32.totalorder %s56, 0
      %p147 = por %p145, %p146
      %s148 = ssub.s32 %s58, %s65
      %p149 = scmp.eq.s32.totalorder %s148, 0
      %s151 = sadd.s32 %s150, 1
      %s152 = scalar_select %p149, %s150, %s151
      %p155 = pneg %p149
      %p156 = scmp.eq.s32.totalorder %s50, 1
      %p157 = por %p155, %p156
      %p158 = scmp.ne.s32.totalorder %s150, %s153
      %p159 = scmp.eq.s32.totalorder %s50, 0
      %p160 = por %p158, %p159
      %p161 = scmp.ne.s32.totalorder %s150, %s153
      %p162 = scmp.eq.s32.totalorder %s55, 1
      %p163 = por %p161, %p162
      %p164 = scmp.ne.s32.totalorder %s153, %s154
      %p165 = scmp.eq.s32.totalorder %s55, 0
      %p166 = por %p164, %p165
      %p167 = scmp.ne.s32.totalorder %s153, %s154
      %p168 = scmp.eq.s32.totalorder %s56, 1
      %p169 = por %p167, %p168
      %p171 = scmp.ne.s32.totalorder %s154, %s170
      %p172 = scmp.eq.s32.totalorder %s56, 0
      %p173 = por %p171, %p172
      %s174 = ssub.s32 %s58, %s65
      %p175 = scmp.eq.s32.totalorder %s174, 0
      %s177 = sadd.s32 %s176, 1
      %s178 = scalar_select %p175, %s176, %s177
      %p181 = pneg %p175
      %p182 = scmp.eq.s32.totalorder %s50, 1
      %p183 = por %p181, %p182
      %p184 = scmp.ne.s32.totalorder %s176, %s179
      %p185 = scmp.eq.s32.totalorder %s50, 0
      %p186 = por %p184, %p185
      %p187 = scmp.ne.s32.totalorder %s176, %s179
      %p188 = scmp.eq.s32.totalorder %s55, 1
      %p189 = por %p187, %p188
      %p190 = scmp.ne.s32.totalorder %s179, %s180
      %p191 = scmp.eq.s32.totalorder %s55, 0
      %p192 = por %p190, %p191
      %p193 = scmp.ne.s32.totalorder %s179, %s180
      %p194 = scmp.eq.s32.totalorder %s56, 1
      %p195 = por %p193, %p194
      %p197 = scmp.ne.s32.totalorder %s180, %s196
      %p198 = scmp.eq.s32.totalorder %s56, 0
      %p199 = por %p197, %p198
      %s200 = ssub.s32 %s58, %s65
      %p201 = scmp.eq.s32.totalorder %s200, 0
      %s203 = sadd.s32 %s202, 1
      %s204 = scalar_select %p201, %s202, %s203
      %p207 = pneg %p201
      %p208 = scmp.eq.s32.totalorder %s50, 1
      %p209 = por %p207, %p208
      %p210 = scmp.ne.s32.totalorder %s202, %s205
      %p211 = scmp.eq.s32.totalorder %s50, 0
      %p212 = por %p210, %p211
      %p213 = scmp.ne.s32.totalorder %s202, %s205
      %p214 = scmp.eq.s32.totalorder %s55, 1
      %p215 = por %p213, %p214
      %p216 = scmp.ne.s32.totalorder %s205, %s206
      %p217 = scmp.eq.s32.totalorder %s55, 0
      %p218 = por %p216, %p217
      %p219 = scmp.ne.s32.totalorder %s205, %s206
      %p220 = scmp.eq.s32.totalorder %s56, 1
      %p221 = por %p219, %p220
      %p223 = scmp.ne.s32.totalorder %s206, %s222
      %p224 = scmp.eq.s32.totalorder %s56, 0
      %p225 = por %p223, %p224
      %s226 = ssub.s32 %s58, %s65
      %p227 = scmp.eq.s32.totalorder %s226, 0
      %s229 = sadd.s32 %s228, 1
      %s230 = scalar_select %p227, %s228, %s229
      %p233 = pneg %p227
      %p234 = scmp.eq.s32.totalorder %s50, 1
      %p235 = por %p233, %p234
      %p236 = scmp.ne.s32.totalorder %s228, %s231
      %p237 = scmp.eq.s32.totalorder %s50, 0
      %p238 = por %p236, %p237
      %p239 = scmp.ne.s32.totalorder %s228, %s231
      %p240 = scmp.eq.s32.totalorder %s55, 1
      %p241 = por %p239, %p240
      %p242 = scmp.ne.s32.totalorder %s231, %s232
      %p243 = scmp.eq.s32.totalorder %s55, 0
      %p244 = por %p242, %p243
      %p245 = scmp.ne.s32.totalorder %s231, %s232
      %p246 = scmp.eq.s32.totalorder %s56, 1
      %p247 = por %p245, %p246
      %p249 = scmp.ne.s32.totalorder %s232, %s248
      %p250 = scmp.eq.s32.totalorder %s56, 0
      %p251 = por %p249, %p250
      %s252 = ssub.s32 %s58, %s65
      %p253 = scmp.eq.s32.totalorder %s252, 0
      %s255 = sadd.s32 %s254, 1
      %s256 = scalar_select %p253, %s254, %s255
      %p259 = pneg %p253
      %p260 = scmp.eq.s32.totalorder %s50, 1
      %p261 = por %p259, %p260
      %p262 = scmp.ne.s32.totalorder %s254, %s257
      %p263 = scmp.eq.s32.totalorder %s50, 0
      %p264 = por %p262, %p263
      %p265 = scmp.ne.s32.totalorder %s254, %s257
      %p266 = scmp.eq.s32.totalorder %s55, 1
      %p267 = por %p265, %p266
      %p268 = scmp.ne.s32.totalorder %s257, %s258
      %p269 = scmp.eq.s32.totalorder %s55, 0
      %p270 = por %p268, %p269
      %p271 = scmp.ne.s32.totalorder %s257, %s258
      %p272 = scmp.eq.s32.totalorder %s56, 1
      %p273 = por %p271, %p272
      %p275 = scmp.ne.s32.totalorder %s258, %s274
      %p276 = scmp.eq.s32.totalorder %s56, 0
      %p277 = por %p275, %p276
      %s278 = ssub.s32 %s58, %s65
      %p279 = scmp.eq.s32.totalorder %s278, 0
      %s281 = sadd.s32 %s280, 1
      %s282 = scalar_select %p279, %s280, %s281
      %p285 = pneg %p279
      %p286 = scmp.eq.s32.totalorder %s50, 1
      %p287 = por %p285, %p286
      %p288 = scmp.ne.s32.totalorder %s280, %s283
      %p289 = scmp.eq.s32.totalorder %s50, 0
      %p290 = por %p288, %p289
      %p291 = scmp.ne.s32.totalorder %s280, %s283
      %p292 = scmp.eq.s32.totalorder %s55, 1
      %p293 = por %p291, %p292
      %p294 = scmp.ne.s32.totalorder %s283, %s284
      %p295 = scmp.eq.s32.totalorder %s55, 0
      %p296 = por %p294, %p295
      %p297 = scmp.ne.s32.totalorder %s283, %s284
      %p298 = scmp.eq.s32.totalorder %s56, 1
      %p299 = por %p297, %p298
      %p301 = scmp.ne.s32.totalorder %s284, %s300
      %p302 = scmp.eq.s32.totalorder %s56, 0
      %p303 = por %p301, %p302
      %s304 = ssub.s32 %s58, %s65
      %p305 = scmp.eq.s32.totalorder %s304, 0
      %s307 = sadd.s32 %s306, 1
      %s308 = scalar_select %p305, %s306, %s307
      %p311 = pneg %p305
      %p312 = scmp.eq.s32.totalorder %s50, 1
      %p313 = por %p311, %p312
      %p314 = scmp.ne.s32.totalorder %s306, %s309
      %p315 = scmp.eq.s32.totalorder %s50, 0
      %p316 = por %p314, %p315
      %p317 = scmp.ne.s32.totalorder %s306, %s309
      %p318 = scmp.eq.s32.totalorder %s55, 1
      %p319 = por %p317, %p318
      %p320 = scmp.ne.s32.totalorder %s309, %s310
      %p321 = scmp.eq.s32.totalorder %s55, 0
      %p322 = por %p320, %p321
      %p323 = scmp.ne.s32.totalorder %s309, %s310
      %p324 = scmp.eq.s32.totalorder %s56, 1
      %p325 = por %p323, %p324
      %p327 = scmp.ne.s32.totalorder %s310, %s326
      %p328 = scmp.eq.s32.totalorder %s56, 0
      %p329 = por %p327, %p328
      %s330 = ssub.s32 %s58, %s65
      %p331 = scmp.eq.s32.totalorder %s330, 0
      %s333 = sadd.s32 %s332, 1
      %s334 = scalar_select %p331, %s332, %s333
      %p337 = pneg %p331
      %p338 = scmp.eq.s32.totalorder %s50, 1
      %p339 = por %p337, %p338
      %p340 = scmp.ne.s32.totalorder %s332, %s335
      %p341 = scmp.eq.s32.totalorder %s50, 0
      %p342 = por %p340, %p341
      %p343 = scmp.ne.s32.totalorder %s332, %s335
      %p344 = scmp.eq.s32.totalorder %s55, 1
      %p345 = por %p343, %p344
      %p346 = scmp.ne.s32.totalorder %s335, %s336
      %p347 = scmp.eq.s32.totalorder %s55, 0
      %p348 = por %p346, %p347
      %p349 = scmp.ne.s32.totalorder %s335, %s336
      %p350 = scmp.eq.s32.totalorder %s56, 1
      %p351 = por %p349, %p350
      %p353 = scmp.ne.s32.totalorder %s336, %s352
      %p354 = scmp.eq.s32.totalorder %s56, 0
      %p355 = por %p353, %p354
      %s356 = ssub.s32 %s58, %s65
      %p357 = scmp.eq.s32.totalorder %s356, 0
      %s359 = sadd.s32 %s358, 1
      %s360 = scalar_select %p357, %s358, %s359
      %p363 = pneg %p357
      %p364 = scmp.eq.s32.totalorder %s50, 1
      %p365 = por %p363, %p364
      %p366 = scmp.ne.s32.totalorder %s358, %s361
      %p367 = scmp.eq.s32.totalorder %s50, 0
      %p368 = por %p366, %p367
      %p369 = scmp.ne.s32.totalorder %s358, %s361
      %p370 = scmp.eq.s32.totalorder %s55, 1
      %p371 = por %p369, %p370
      %p372 = scmp.ne.s32.totalorder %s361, %s362
      %p373 = scmp.eq.s32.totalorder %s55, 0
      %p374 = por %p372, %p373
      %p375 = scmp.ne.s32.totalorder %s361, %s362
      %p376 = scmp.eq.s32.totalorder %s56, 1
      %p377 = por %p375, %p376
      %p379 = scmp.ne.s32.totalorder %s362, %s378
      %p380 = scmp.eq.s32.totalorder %s56, 0
      %p381 = por %p379, %p380
      %s382 = ssub.s32 %s58, %s65
      %p383 = scmp.eq.s32.totalorder %s382, 0
      %s385 = sadd.s32 %s384, 1
      %s386 = scalar_select %p383, %s384, %s385
      %p389 = pneg %p383
      %p390 = scmp.eq.s32.totalorder %s50, 1
      %p391 = por %p389, %p390
      %p392 = scmp.ne.s32.totalorder %s384, %s387
      %p393 = scmp.eq.s32.totalorder %s50, 0
      %p394 = por %p392, %p393
      %p395 = scmp.ne.s32.totalorder %s384, %s387
      %p396 = scmp.eq.s32.totalorder %s55, 1
      %p397 = por %p395, %p396
      %p398 = scmp.ne.s32.totalorder %s387, %s388
      %p399 = scmp.eq.s32.totalorder %s55, 0
      %p400 = por %p398, %p399
      %p401 = scmp.ne.s32.totalorder %s387, %s388
      %p402 = scmp.eq.s32.totalorder %s56, 1
      %p403 = por %p401, %p402
      %p405 = scmp.ne.s32.totalorder %s388, %s404
      %p406 = scmp.eq.s32.totalorder %s56, 0
      %p407 = por %p405, %p406
      %s409 = sadd.s32 %s408, 1
      %p412 = scmp.eq.s32.totalorder %s50, 1
      %p413 = scmp.ne.s32.totalorder %s408, %s410
      %p414 = scmp.eq.s32.totalorder %s50, 0
      %p415 = por %p413, %p414
      %p416 = scmp.ne.s32.totalorder %s408, %s410
      %p417 = scmp.eq.s32.totalorder %s55, 1
      %p418 = por %p416, %p417
      %p419 = scmp.ne.s32.totalorder %s410, %s411
      %p420 = scmp.eq.s32.totalorder %s55, 0
      %p421 = por %p419, %p420
      %p422 = scmp.ne.s32.totalorder %s410, %s411
      %p423 = scmp.eq.s32.totalorder %s56, 1
      %p424 = por %p422, %p423
      %p426 = scmp.ne.s32.totalorder %s411, %s425
      %p427 = scmp.eq.s32.totalorder %s56, 0
      %p428 = por %p426, %p427
      %s430 = sadd.s32 %s429, 1
      %p433 = scmp.eq.s32.totalorder %s50, 1
      %p434 = scmp.ne.s32.totalorder %s429, %s431
      %p435 = scmp.eq.s32.totalorder %s50, 0
      %p436 = por %p434, %p435
      %p437 = scmp.ne.s32.totalorder %s429, %s431
      %p438 = scmp.eq.s32.totalorder %s55, 1
      %p439 = por %p437, %p438
      %p440 = scmp.ne.s32.totalorder %s431, %s432
      %p441 = scmp.eq.s32.totalorder %s55, 0
      %p442 = por %p440, %p441
      %p443 = scmp.ne.s32.totalorder %s431, %s432
      %p444 = scmp.eq.s32.totalorder %s56, 1
      %p445 = por %p443, %p444
      %p447 = scmp.ne.s32.totalorder %s432, %s446
      %p448 = scmp.eq.s32.totalorder %s56, 0
      %p449 = por %p447, %p448
      %s451 = sadd.s32 %s450, 1
      %p454 = scmp.eq.s32.totalorder %s50, 1
      %p455 = scmp.ne.s32.totalorder %s450, %s452
      %p456 = scmp.eq.s32.totalorder %s50, 0
      %p457 = por %p455, %p456
      %p458 = scmp.ne.s32.totalorder %s450, %s452
      %p459 = scmp.eq.s32.totalorder %s55, 1
      %p460 = por %p458, %p459
      %p461 = scmp.ne.s32.totalorder %s452, %s453
      %p462 = scmp.eq.s32.totalorder %s55, 0
      %p463 = por %p461, %p462
      %p464 = scmp.ne.s32.totalorder %s452, %s453
      %p465 = scmp.eq.s32.totalorder %s56, 1
      %p466 = por %p464, %p465
      %p468 = scmp.ne.s32.totalorder %s453, %s467
      %p469 = scmp.eq.s32.totalorder %s56, 0
      %p470 = por %p468, %p469
      %s472 = sadd.s32 %s471, 1
      %p475 = scmp.eq.s32.totalorder %s50, 1
      %p476 = scmp.ne.s32.totalorder %s471, %s473
      %p477 = scmp.eq.s32.totalorder %s50, 0
      %p478 = por %p476, %p477
      %p479 = scmp.ne.s32.totalorder %s471, %s473
      %p480 = scmp.eq.s32.totalorder %s55, 1
      %p481 = por %p479, %p480
      %p482 = scmp.ne.s32.totalorder %s473, %s474
      %p483 = scmp.eq.s32.totalorder %s55, 0
      %p484 = por %p482, %p483
      %p485 = scmp.ne.s32.totalorder %s473, %s474
      %p486 = scmp.eq.s32.totalorder %s56, 1
      %p487 = por %p485, %p486
      %p489 = scmp.ne.s32.totalorder %s474, %s488
      %p490 = scmp.eq.s32.totalorder %s56, 0
      %p491 = por %p489, %p490
      %s493 = sadd.s32 %s492, 1
      %p496 = scmp.eq.s32.totalorder %s50, 1
      %p497 = scmp.ne.s32.totalorder %s492, %s494
      %p498 = scmp.eq.s32.totalorder %s50, 0
      %p499 = por %p497, %p498
      %p500 = scmp.ne.s32.totalorder %s492, %s494
      %p501 = scmp.eq.s32.totalorder %s55, 1
      %p502 = por %p500, %p501
      %p503 = scmp.ne.s32.totalorder %s494, %s495
      %p504 = scmp.eq.s32.totalorder %s55, 0
      %p505 = por %p503, %p504
      %p506 = scmp.ne.s32.totalorder %s494, %s495
      %p507 = scmp.eq.s32.totalorder %s56, 1
      %p508 = por %p506, %p507
      %p510 = scmp.ne.s32.totalorder %s495, %s509
      %p511 = scmp.eq.s32.totalorder %s56, 0
      %p512 = por %p510, %p511
      %s514 = sadd.s32 %s513, 1
      %p517 = scmp.eq.s32.totalorder %s50, 1
      %p518 = scmp.ne.s32.totalorder %s513, %s515
      %p519 = scmp.eq.s32.totalorder %s50, 0
      %p520 = por %p518, %p519
      %p521 = scmp.ne.s32.totalorder %s513, %s515
      %p522 = scmp.eq.s32.totalorder %s55, 1
      %p523 = por %p521, %p522
      %p524 = scmp.ne.s32.totalorder %s515, %s516
      %p525 = scmp.eq.s32.totalorder %s55, 0
      %p526 = por %p524, %p525
      %p527 = scmp.ne.s32.totalorder %s515, %s516
      %p528 = scmp.eq.s32.totalorder %s56, 1
      %p529 = por %p527, %p528
      %p531 = scmp.ne.s32.totalorder %s516, %s530
      %p532 = scmp.eq.s32.totalorder %s56, 0
      %p533 = por %p531, %p532
      %s535 = sadd.s32 %s534, 1
      %p538 = scmp.eq.s32.totalorder %s50, 1
      %p539 = scmp.ne.s32.totalorder %s534, %s536
      %p540 = scmp.eq.s32.totalorder %s50, 0
      %p541 = por %p539, %p540
      %p542 = scmp.ne.s32.totalorder %s534, %s536
      %p543 = scmp.eq.s32.totalorder %s55, 1
      %p544 = por %p542, %p543
      %p545 = scmp.ne.s32.totalorder %s536, %s537
      %p546 = scmp.eq.s32.totalorder %s55, 0
      %p547 = por %p545, %p546
      %p548 = scmp.ne.s32.totalorder %s536, %s537
      %p549 = scmp.eq.s32.totalorder %s56, 1
      %p550 = por %p548, %p549
      %p552 = scmp.ne.s32.totalorder %s537, %s551
      %p553 = scmp.eq.s32.totalorder %s56, 0
      %p554 = por %p552, %p553
      %s555 = ssub.s32 %s57, %s69
      %p556 = scmp.eq.s32.totalorder %s555, 0
      %s558 = sadd.s32 %s557, 1
      %s559 = scalar_select %p556, %s557, %s558
      %p562 = pneg %p556
      %p563 = scmp.eq.s32.totalorder %s50, 1
      %p564 = por %p562, %p563
      %p565 = scmp.ne.s32.totalorder %s557, %s560
      %p566 = scmp.eq.s32.totalorder %s50, 0
      %p567 = por %p565, %p566
      %p568 = scmp.ne.s32.totalorder %s557, %s560
      %p569 = scmp.eq.s32.totalorder %s55, 1
      %p570 = por %p568, %p569
      %p571 = scmp.ne.s32.totalorder %s560, %s561
      %p572 = scmp.eq.s32.totalorder %s55, 0
      %p573 = por %p571, %p572
      %p574 = scmp.ne.s32.totalorder %s560, %s561
      %p575 = scmp.eq.s32.totalorder %s56, 1
      %p576 = por %p574, %p575
      %p578 = scmp.ne.s32.totalorder %s561, %s577
      %p579 = scmp.eq.s32.totalorder %s56, 0
      %p580 = por %p578, %p579
      %s581 = ssub.s32 %s57, %s69
      %p582 = scmp.eq.s32.totalorder %s581, 0
      %s584 = sadd.s32 %s583, 1
      %s585 = scalar_select %p582, %s583, %s584
      %p588 = pneg %p582
      %p589 = scmp.eq.s32.totalorder %s50, 1
      %p590 = por %p588, %p589
      %p591 = scmp.ne.s32.totalorder %s583, %s586
      %p592 = scmp.eq.s32.totalorder %s50, 0
      %p593 = por %p591, %p592
      %p594 = scmp.ne.s32.totalorder %s583, %s586
      %p595 = scmp.eq.s32.totalorder %s55, 1
      %p596 = por %p594, %p595
      %p597 = scmp.ne.s32.totalorder %s586, %s587
      %p598 = scmp.eq.s32.totalorder %s55, 0
      %p599 = por %p597, %p598
      %p600 = scmp.ne.s32.totalorder %s586, %s587
      %p601 = scmp.eq.s32.totalorder %s56, 1
      %p602 = por %p600, %p601
      %p604 = scmp.ne.s32.totalorder %s587, %s603
      %p605 = scmp.eq.s32.totalorder %s56, 0
      %p606 = por %p604, %p605
      %s607 = ssub.s32 %s57, %s69
      %p608 = scmp.eq.s32.totalorder %s607, 0
      %s610 = sadd.s32 %s609, 1
      %s611 = scalar_select %p608, %s609, %s610
      %p614 = pneg %p608
      %p615 = scmp.eq.s32.totalorder %s50, 1
      %p616 = por %p614, %p615
      %p617 = scmp.ne.s32.totalorder %s609, %s612
      %p618 = scmp.eq.s32.totalorder %s50, 0
      %p619 = por %p617, %p618
      %p620 = scmp.ne.s32.totalorder %s609, %s612
      %p621 = scmp.eq.s32.totalorder %s55, 1
      %p622 = por %p620, %p621
      %p623 = scmp.ne.s32.totalorder %s612, %s613
      %p624 = scmp.eq.s32.totalorder %s55, 0
      %p625 = por %p623, %p624
      %p626 = scmp.ne.s32.totalorder %s612, %s613
      %p627 = scmp.eq.s32.totalorder %s56, 1
      %p628 = por %p626, %p627
      %p630 = scmp.ne.s32.totalorder %s613, %s629
      %p631 = scmp.eq.s32.totalorder %s56, 0
      %p632 = por %p630, %p631
      %s633 = ssub.s32 %s57, %s69
      %p634 = scmp.eq.s32.totalorder %s633, 0
      %s636 = sadd.s32 %s635, 1
      %s637 = scalar_select %p634, %s635, %s636
      %p640 = pneg %p634
      %p641 = scmp.eq.s32.totalorder %s50, 1
      %p642 = por %p640, %p641
      %p643 = scmp.ne.s32.totalorder %s635, %s638
      %p644 = scmp.eq.s32.totalorder %s50, 0
      %p645 = por %p643, %p644
      %p646 = scmp.ne.s32.totalorder %s635, %s638
      %p647 = scmp.eq.s32.totalorder %s55, 1
      %p648 = por %p646, %p647
      %p649 = scmp.ne.s32.totalorder %s638, %s639
      %p650 = scmp.eq.s32.totalorder %s55, 0
      %p651 = por %p649, %p650
      %p652 = scmp.ne.s32.totalorder %s638, %s639
      %p653 = scmp.eq.s32.totalorder %s56, 1
      %p654 = por %p652, %p653
      %p656 = scmp.ne.s32.totalorder %s639, %s655
      %p657 = scmp.eq.s32.totalorder %s56, 0
      %p658 = por %p656, %p657
      %p659 = scmp.le.s32.totalorder 1, %s50
      %p660 = scmp.lt.s32.totalorder %s50, 3
      %p661 = pnand %p659, %p660
      %p662 = pneg %p661
      // Predicated region
      $region9: #{vision_transformer_forward.3} parent=5 // pred_check
        _
      $region10: #{vision_transformer_forward.3} parent=5 // pred_check_branch
        %664 = sbr.rel (%p661) target = $region12
      $region11: #{vision_transformer_forward.3} parent=5 // pred_region
        %s665 = ssub.s32 %s50, 1
        // Predicated region
        $region13: #{vision_transformer_forward.3} parent=11 // pred_check
          %p666 = pneg %p88
        $region14: #{vision_transformer_forward.3} parent=11 // pred_check_branch
          %668 = sbr.rel (%p666) target = $region16
        $region15: #{vision_transformer_forward.3} parent=11 // pred_region
          %s669 = smul.u32 2, %s59
          %p670 = scmp.lt.s32.totalorder %s669, 1
          %s671 = scalar_select %p670, %s669, 1
          %s672 = smul.addr %s671, 2
          %s673 = smul.addr %s672, 8
          %s674 = scalar_lea.vmem %s0, %s673
          %s675 = smul.u32 2, %s59
        $region16: #{vision_transformer_forward.3} parent=11 // pred_fallthru
          _
        // Predicated region
        $region17: #{vision_transformer_forward.3} parent=11 // pred_check
          %p676 = pneg %p421
        $region18: #{vision_transformer_forward.3} parent=11 // pred_check_branch
          %678 = sbr.rel (%p676) target = $region20
        $region19: #{vision_transformer_forward.3} parent=11 // pred_region
          %s680 = ssub.s32 32, 32
          %681 = vsyncadd [#allocation16], %s680
          %s683 = sshll.u32 [#allocation17], 4
          %s684 = int_to_ptr.vmem [resolvable:$true] %s683
          %686 = dma.hbm_to_vmem [thread:$0]  %s13, 32, %s684, [#allocation16]
        $region20: #{vision_transformer_forward.3} parent=11 // pred_fallthru
          _
        // Predicated region
        $region21: #{vision_transformer_forward.3} parent=11 // pred_check
          %p687 = pneg %p442
        $region22: #{vision_transformer_forward.3} parent=11 // pred_check_branch
          %689 = sbr.rel (%p687) target = $region24
        $region23: #{vision_transformer_forward.3} parent=11 // pred_region
          %s691 = ssub.s32 32, 32
          %692 = vsyncadd [#allocation19], %s691
          %s694 = sshll.u32 [#allocation18], 4
          %s695 = int_to_ptr.vmem [resolvable:$true] %s694
          %697 = dma.hbm_to_vmem [thread:$0]  %s14, 32, %s695, [#allocation19]
        $region24: #{vision_transformer_forward.3} parent=11 // pred_fallthru
          _
        // Predicated region
        $region25: #{vision_transformer_forward.3} parent=11 // pred_check
          %p698 = pneg %p463
        $region26: #{vision_transformer_forward.3} parent=11 // pred_check_branch
          %700 = sbr.rel (%p698) target = $region28
        $region27: #{vision_transformer_forward.3} parent=11 // pred_region
          %s702 = ssub.s32 32, 32
          %703 = vsyncadd [#allocation19], %s702
          %s705 = sshll.u32 [#allocation20], 4
          %s706 = int_to_ptr.vmem [resolvable:$true] %s705
          %708 = dma.hbm_to_vmem [thread:$0]  %s15, 32, %s706, [#allocation19]
        $region28: #{vision_transformer_forward.3} parent=11 // pred_fallthru
          _
        // Predicated region
        $region29: #{vision_transformer_forward.3} parent=11 // pred_check
          %p709 = pneg %p484
        $region30: #{vision_transformer_forward.3} parent=11 // pred_check_branch
          %711 = sbr.rel (%p709) target = $region32
        $region31: #{vision_transformer_forward.3} parent=11 // pred_region
          %s713 = ssub.s32 32, 32
          %714 = vsyncadd [#allocation22], %s713
          %s716 = sshll.u32 [#allocation21], 4
          %s717 = int_to_ptr.vmem [resolvable:$true] %s716
          %719 = dma.hbm_to_vmem [thread:$0]  %s16, 32, %s717, [#allocation22]
        $region32: #{vision_transformer_forward.3} parent=11 // pred_fallthru
          _
        // Predicated region
        $region33: #{vision_transformer_forward.3} parent=11 // pred_check
          %p720 = pneg %p505
        $region34: #{vision_transformer_forward.3} parent=11 // pred_check_branch
          %722 = sbr.rel (%p720) target = $region36
        $region35: #{vision_transformer_forward.3} parent=11 // pred_region
          %s724 = ssub.s32 32, 32
          %725 = vsyncadd [#allocation22], %s724
          %s727 = sshll.u32 [#allocation23], 4
          %s728 = int_to_ptr.vmem [resolvable:$true] %s727
          %730 = dma.hbm_to_vmem [thread:$0]  %s17, 32, %s728, [#allocation22]
        $region36: #{vision_transformer_forward.3} parent=11 // pred_fallthru
          _
        // Predicated region
        $region37: #{vision_transformer_forward.3} parent=11 // pred_check
          %p731 = pneg %p526
        $region38: #{vision_transformer_forward.3} parent=11 // pred_check_branch
          %733 = sbr.rel (%p731) target = $region40
        $region39: #{vision_transformer_forward.3} parent=11 // pred_region
          %s735 = ssub.s32 32, 32
          %736 = vsyncadd [#allocation25], %s735
          %s738 = sshll.u32 [#allocation24], 4
          %s739 = int_to_ptr.vmem [resolvable:$true] %s738
          %741 = dma.hbm_to_vmem [thread:$0]  %s18, 32, %s739, [#allocation25]
        $region40: #{vision_transformer_forward.3} parent=11 // pred_fallthru
          _
        // Predicated region
        $region41: #{vision_transformer_forward.3} parent=11 // pred_check
          %p742 = pneg %p547
        $region42: #{vision_transformer_forward.3} parent=11 // pred_check_branch
          %744 = sbr.rel (%p742) target = $region44
        $region43: #{vision_transformer_forward.3} parent=11 // pred_region
          _
        $region44: #{vision_transformer_forward.3} parent=11 // pred_fallthru
          _
      $region12: #{vision_transformer_forward.3} parent=5 // pred_fallthru
        _
      %p745 = scmp.lt.s32.totalorder %s50, 2
      // Predicated region
      $region45: #{vision_transformer_forward.3} parent=5 // pred_check
        %p746 = pneg %p745
      $region46: #{vision_transformer_forward.3} parent=5 // pred_check_branch
        %748 = sbr.rel (%p746) target = $region48
      $region47: #{vision_transformer_forward.3} parent=5 // pred_region
        // Predicated region
        $region49: #{vision_transformer_forward.3} parent=47 // pred_check
          %p749 = pneg %p108
        $region50: #{vision_transformer_forward.3} parent=47 // pred_check_branch
          %751 = sbr.rel (%p749) target = $region52
        $region51: #{vision_transformer_forward.3} parent=47 // pred_region
          %s752 = sand.u32 %s98, 1
          %s753 = scalar_lea.sflag [#allocation4], %s752
          %s754 = sand.u32 %s98, 1
          %s755 = smul.addr %s754, 2
          %s756 = scalar_lea.vmem [#allocation3], %s755
          %s758 = ssub.s32 32, 32
          %759 = vsyncadd %s753, %s758
          %s760 = smul.addr %s58, 2
          %s761 = smul.addr %s760, 16
          %s762 = scalar_lea.hbm %s1, %s761
          %s764 = sshll.u32 %s756, 4
          %s765 = int_to_ptr.vmem [resolvable:$true] %s764
          %767 = dma.hbm_to_vmem [thread:$0]  %s762, 32, %s765, %s753
        $region52: #{vision_transformer_forward.3} parent=47 // pred_fallthru
          _
        // Predicated region
        $region53: #{vision_transformer_forward.3} parent=47 // pred_check
          %p768 = pneg %p134
        $region54: #{vision_transformer_forward.3} parent=47 // pred_check_branch
          %770 = sbr.rel (%p768) target = $region56
        $region55: #{vision_transformer_forward.3} parent=47 // pred_region
          %s771 = sand.u32 %s50, 1
          %s772 = scalar_lea.sflag [#allocation7], %s771
          %s773 = sand.u32 %s124, 1
          %s774 = smul.addr %s773, 2
          %s775 = scalar_lea.vmem [#allocation6], %s774
          %s777 = ssub.s32 32, 32
          %778 = vsyncadd %s772, %s777
          %s779 = smul.addr %s58, 2
          %s780 = smul.addr %s779, 16
          %s781 = scalar_lea.hbm %s2, %s780
          %s783 = sshll.u32 %s775, 4
          %s784 = int_to_ptr.vmem [resolvable:$true] %s783
          %786 = dma.hbm_to_vmem [thread:$0]  %s781, 32, %s784, %s772
        $region56: #{vision_transformer_forward.3} parent=47 // pred_fallthru
          _
        // Predicated region
        $region57: #{vision_transformer_forward.3} parent=47 // pred_check
          %p787 = pneg %p160
        $region58: #{vision_transformer_forward.3} parent=47 // pred_check_branch
          %789 = sbr.rel (%p787) target = $region60
        $region59: #{vision_transformer_forward.3} parent=47 // pred_region
          %s790 = sand.u32 %s50, 1
          %s791 = scalar_lea.sflag [#allocation7], %s790
          %s792 = sand.u32 %s150, 1
          %s793 = smul.addr %s792, 768
          %s794 = scalar_lea.vmem [#allocation8], %s793
          %s796 = ssub.s32 12288, 12288
          %797 = vsyncadd %s791, %s796
          %s798 = smul.addr %s58, 192
          %s799 = smul.addr %s798, 64
          %s800 = scalar_lea.hbm %s3, %s799
          %s801 = sshll.u32 %s794, 4
          %s802 = int_to_ptr.vmem [resolvable:$true] %s801
          %807 = dma.hbm_to_vmem [thread:$0]  %s800, 12288, %s802, %s791, 384, 384, 24
        $region60: #{vision_transformer_forward.3} parent=47 // pred_fallthru
          _
        // Predicated region
        $region61: #{vision_transformer_forward.3} parent=47 // pred_check
          %p808 = pneg %p186
        $region62: #{vision_transformer_forward.3} parent=47 // pred_check_branch
          %810 = sbr.rel (%p808) target = $region64
        $region63: #{vision_transformer_forward.3} parent=47 // pred_region
          %p811 = scmp.lt.s32.totalorder %s58, 1
          %s812 = scalar_select %p811, %s58, 1
          %s813 = smul.addr %s812, 6
          %s814 = scalar_lea.vmem %s4, %s813
        $region64: #{vision_transformer_forward.3} parent=47 // pred_fallthru
          _
        // Predicated region
        $region65: #{vision_transformer_forward.3} parent=47 // pred_check
          %p815 = pneg %p212
        $region66: #{vision_transformer_forward.3} parent=47 // pred_check_branch
          %817 = sbr.rel (%p815) target = $region68
        $region67: #{vision_transformer_forward.3} parent=47 // pred_region
          %s818 = sand.u32 %s50, 1
          %s819 = scalar_lea.sflag [#allocation10], %s818
          %s820 = sand.u32 %s202, 1
          %s821 = smul.addr %s820, 256
          %s822 = scalar_lea.vmem [#allocation9], %s821
          %s824 = ssub.s32 4096, 4096
          %825 = vsyncadd %s819, %s824
          %s826 = smul.addr %s58, 64
          %s827 = smul.addr %s826, 64
          %s828 = scalar_lea.hbm %s5, %s827
          %s829 = sshll.u32 %s822, 4
          %s830 = int_to_ptr.vmem [resolvable:$true] %s829
          %835 = dma.hbm_to_vmem [thread:$0]  %s828, 4096, %s830, %s819, 128, 128, 8
        $region68: #{vision_transformer_forward.3} parent=47 // pred_fallthru
          _
        // Predicated region
        $region69: #{vision_transformer_forward.3} parent=47 // pred_check
          %p836 = pneg %p238
        $region70: #{vision_transformer_forward.3} parent=47 // pred_check_branch
          %838 = sbr.rel (%p836) target = $region72
        $region71: #{vision_transformer_forward.3} parent=47 // pred_region
          %p839 = scmp.lt.s32.totalorder %s58, 1
          %s840 = scalar_select %p839, %s58, 1
          %s841 = smul.addr %s840, 2
          %s842 = scalar_lea.vmem %s6, %s841
        $region72: #{vision_transformer_forward.3} parent=47 // pred_fallthru
          _
        // Predicated region
        $region73: #{vision_transformer_forward.3} parent=47 // pred_check
          %p843 = pneg %p264
        $region74: #{vision_transformer_forward.3} parent=47 // pred_check_branch
          %845 = sbr.rel (%p843) target = $region76
        $region75: #{vision_transformer_forward.3} parent=47 // pred_region
          %s846 = sand.u32 %s50, 1
          %s847 = scalar_lea.sflag [#allocation10], %s846
          %s848 = sand.u32 %s254, 1
          %s849 = smul.addr %s848, 2
          %s850 = scalar_lea.vmem [#allocation11], %s849
          %s852 = ssub.s32 32, 32
          %853 = vsyncadd %s847, %s852
          %s854 = smul.addr %s58, 2
          %s855 = smul.addr %s854, 16
          %s856 = scalar_lea.hbm %s7, %s855
          %s858 = sshll.u32 %s850, 4
          %s859 = int_to_ptr.vmem [resolvable:$true] %s858
          %861 = dma.hbm_to_vmem [thread:$0]  %s856, 32, %s859, %s847
        $region76: #{vision_transformer_forward.3} parent=47 // pred_fallthru
          _
        // Predicated region
        $region77: #{vision_transformer_forward.3} parent=47 // pred_check
          %p862 = pneg %p290
        $region78: #{vision_transformer_forward.3} parent=47 // pred_check_branch
          %864 = sbr.rel (%p862) target = $region80
        $region79: #{vision_transformer_forward.3} parent=47 // pred_region
          %s865 = sand.u32 %s50, 1
          %s866 = scalar_lea.sflag [#allocation13], %s865
          %s867 = sand.u32 %s280, 1
          %s868 = smul.addr %s867, 2
          %s869 = scalar_lea.vmem [#allocation12], %s868
          %s871 = ssub.s32 32, 32
          %872 = vsyncadd %s866, %s871
          %s873 = smul.addr %s58, 2
          %s874 = smul.addr %s873, 16
          %s875 = scalar_lea.hbm %s8, %s874
          %s877 = sshll.u32 %s869, 4
          %s878 = int_to_ptr.vmem [resolvable:$true] %s877
          %880 = dma.hbm_to_vmem [thread:$0]  %s875, 32, %s878, %s866
        $region80: #{vision_transformer_forward.3} parent=47 // pred_fallthru
          _
        // Predicated region
        $region81: #{vision_transformer_forward.3} parent=47 // pred_check
          %p881 = pneg %p316
        $region82: #{vision_transformer_forward.3} parent=47 // pred_check_branch
          %883 = sbr.rel (%p881) target = $region84
        $region83: #{vision_transformer_forward.3} parent=47 // pred_region
          %p884 = scmp.lt.s32.totalorder %s58, 1
          %s885 = scalar_select %p884, %s58, 1
          %s886 = smul.addr %s885, 256
          %s887 = smul.addr %s886, 4
          %s888 = scalar_lea.vmem %s9, %s887
        $region84: #{vision_transformer_forward.3} parent=47 // pred_fallthru
          _
        // Predicated region
        $region85: #{vision_transformer_forward.3} parent=47 // pred_check
          %p889 = pneg %p342
        $region86: #{vision_transformer_forward.3} parent=47 // pred_check_branch
          %891 = sbr.rel (%p889) target = $region88
        $region87: #{vision_transformer_forward.3} parent=47 // pred_region
          %p892 = scmp.lt.s32.totalorder %s58, 1
          %s893 = scalar_select %p892, %s58, 1
          %s894 = smul.addr %s893, 8
          %s895 = scalar_lea.vmem %s10, %s894
        $region88: #{vision_transformer_forward.3} parent=47 // pred_fallthru
          _
        // Predicated region
        $region89: #{vision_transformer_forward.3} parent=47 // pred_check
          %p896 = pneg %p368
        $region90: #{vision_transformer_forward.3} parent=47 // pred_check_branch
          %898 = sbr.rel (%p896) target = $region92
        $region91: #{vision_transformer_forward.3} parent=47 // pred_region
          %s899 = sand.u32 %s50, 1
          %s900 = scalar_lea.sflag [#allocation13], %s899
          %s901 = sand.u32 %s358, 1
          %s902 = smul.addr %s901, 1024
          %s903 = scalar_lea.vmem [#allocation14], %s902
          %s905 = ssub.s32 16384, 16384
          %906 = vsyncadd %s900, %s905
          %s907 = smul.addr %s58, 256
          %s908 = smul.addr %s907, 64
          %s909 = scalar_lea.hbm %s11, %s908
          %s910 = sshll.u32 %s903, 4
          %s911 = int_to_ptr.vmem [resolvable:$true] %s910
          %916 = dma.hbm_to_vmem [thread:$0]  %s909, 16384, %s911, %s900, 128, 128, 8
        $region92: #{vision_transformer_forward.3} parent=47 // pred_fallthru
          _
        // Predicated region
        $region93: #{vision_transformer_forward.3} parent=47 // pred_check
          %p917 = pneg %p394
        $region94: #{vision_transformer_forward.3} parent=47 // pred_check_branch
          %919 = sbr.rel (%p917) target = $region96
        $region95: #{vision_transformer_forward.3} parent=47 // pred_region
          %s920 = sand.u32 %s50, 1
          %s921 = scalar_lea.sflag [#allocation16], %s920
          %s922 = sand.u32 %s384, 1
          %s923 = smul.addr %s922, 2
          %s924 = scalar_lea.vmem [#allocation15], %s923
          %s926 = ssub.s32 32, 32
          %927 = vsyncadd %s921, %s926
          %s928 = smul.addr %s58, 2
          %s929 = smul.addr %s928, 16
          %s930 = scalar_lea.hbm %s12, %s929
          %s932 = sshll.u32 %s924, 4
          %s933 = int_to_ptr.vmem [resolvable:$true] %s932
          %935 = dma.hbm_to_vmem [thread:$0]  %s930, 32, %s933, %s921
        $region96: #{vision_transformer_forward.3} parent=47 // pred_fallthru
          _
      $region48: #{vision_transformer_forward.3} parent=5 // pred_fallthru
        _
      %p936 = scmp.le.s32.totalorder 1, %s50
      %p937 = scmp.lt.s32.totalorder %s50, 3
      %p938 = pnand %p936, %p937
      %p939 = pneg %p938
      // Predicated region
      $region97: #{vision_transformer_forward.3} parent=5 // pred_check
        _
      $region98: #{vision_transformer_forward.3} parent=5 // pred_check_branch
        %941 = sbr.rel (%p938) target = $region100
      $region99: #{vision_transformer_forward.3} parent=5 // pred_region
        %s942 = ssub.s32 %s50, 1
        %s943 = sand.u32 %s101, 1
        %s944 = scalar_lea.sflag [#allocation4], %s943
        %s945 = sand.u32 %s101, 1
        %s946 = smul.addr %s945, 2
        %s947 = scalar_lea.vmem [#allocation3], %s946
        // Predicated region
        $region101: #{vision_transformer_forward.3} parent=99 // pred_check
          %p948 = pneg %p114
        $region102: #{vision_transformer_forward.3} parent=99 // pred_check_branch
          %950 = sbr.rel (%p948) target = $region104
        $region103: #{vision_transformer_forward.3} parent=99 // pred_region
          %951 = dma.done %s944, 32
        $region104: #{vision_transformer_forward.3} parent=99 // pred_fallthru
          _
        %s952 = sand.u32 %s55, 1
        %s953 = scalar_lea.sflag [#allocation7], %s952
        %s954 = sand.u32 %s127, 1
        %s955 = smul.addr %s954, 2
        %s956 = scalar_lea.vmem [#allocation6], %s955
        // Predicated region
        $region105: #{vision_transformer_forward.3} parent=99 // pred_check
          %p957 = pneg %p140
        $region106: #{vision_transformer_forward.3} parent=99 // pred_check_branch
          %959 = sbr.rel (%p957) target = $region108
        $region107: #{vision_transformer_forward.3} parent=99 // pred_region
          %960 = dma.done %s953, 32
        $region108: #{vision_transformer_forward.3} parent=99 // pred_fallthru
          _
        %s961 = sand.u32 %s55, 1
        %s962 = scalar_lea.sflag [#allocation7], %s961
        %s963 = sand.u32 %s153, 1
        %s964 = smul.addr %s963, 768
        %s965 = scalar_lea.vmem [#allocation8], %s964
        // Predicated region
        $region109: #{vision_transformer_forward.3} parent=99 // pred_check
          %p966 = pneg %p166
        $region110: #{vision_transformer_forward.3} parent=99 // pred_check_branch
          %968 = sbr.rel (%p966) target = $region112
        $region111: #{vision_transformer_forward.3} parent=99 // pred_region
          %969 = dma.done %s962, 12288
        $region112: #{vision_transformer_forward.3} parent=99 // pred_fallthru
          _
        %s970 = sand.u32 %s55, 1
        %s971 = scalar_lea.sflag [#allocation10], %s970
        %s972 = sand.u32 %s205, 1
        %s973 = smul.addr %s972, 256
        %s974 = scalar_lea.vmem [#allocation9], %s973
        // Predicated region
        $region113: #{vision_transformer_forward.3} parent=99 // pred_check
          %p975 = pneg %p218
        $region114: #{vision_transformer_forward.3} parent=99 // pred_check_branch
          %977 = sbr.rel (%p975) target = $region116
        $region115: #{vision_transformer_forward.3} parent=99 // pred_region
          %978 = dma.done %s971, 4096
        $region116: #{vision_transformer_forward.3} parent=99 // pred_fallthru
          _
        %s979 = sand.u32 %s55, 1
        %s980 = scalar_lea.sflag [#allocation10], %s979
        %s981 = sand.u32 %s257, 1
        %s982 = smul.addr %s981, 2
        %s983 = scalar_lea.vmem [#allocation11], %s982
        // Predicated region
        $region117: #{vision_transformer_forward.3} parent=99 // pred_check
          %p984 = pneg %p270
        $region118: #{vision_transformer_forward.3} parent=99 // pred_check_branch
          %986 = sbr.rel (%p984) target = $region120
        $region119: #{vision_transformer_forward.3} parent=99 // pred_region
          %987 = dma.done %s980, 32
        $region120: #{vision_transformer_forward.3} parent=99 // pred_fallthru
          _
        %s988 = sand.u32 %s55, 1
        %s989 = scalar_lea.sflag [#allocation13], %s988
        %s990 = sand.u32 %s283, 1
        %s991 = smul.addr %s990, 2
        %s992 = scalar_lea.vmem [#allocation12], %s991
        // Predicated region
        $region121: #{vision_transformer_forward.3} parent=99 // pred_check
          %p993 = pneg %p296
        $region122: #{vision_transformer_forward.3} parent=99 // pred_check_branch
          %995 = sbr.rel (%p993) target = $region124
        $region123: #{vision_transformer_forward.3} parent=99 // pred_region
          %996 = dma.done %s989, 32
        $region124: #{vision_transformer_forward.3} parent=99 // pred_fallthru
          _
        %s997 = sand.u32 %s55, 1
        %s998 = scalar_lea.sflag [#allocation13], %s997
        %s999 = sand.u32 %s361, 1
        %s1000 = smul.addr %s999, 1024
        %s1001 = scalar_lea.vmem [#allocation14], %s1000
        // Predicated region
        $region125: #{vision_transformer_forward.3} parent=99 // pred_check
          %p1002 = pneg %p374
        $region126: #{vision_transformer_forward.3} parent=99 // pred_check_branch
          %1004 = sbr.rel (%p1002) target = $region128
        $region127: #{vision_transformer_forward.3} parent=99 // pred_region
          %1005 = dma.done %s998, 16384
        $region128: #{vision_transformer_forward.3} parent=99 // pred_fallthru
          _
        %s1006 = sand.u32 %s55, 1
        %s1007 = scalar_lea.sflag [#allocation16], %s1006
        %s1008 = sand.u32 %s387, 1
        %s1009 = smul.addr %s1008, 2
        %s1010 = scalar_lea.vmem [#allocation15], %s1009
        // Predicated region
        $region129: #{vision_transformer_forward.3} parent=99 // pred_check
          %p1011 = pneg %p400
        $region130: #{vision_transformer_forward.3} parent=99 // pred_check_branch
          %1013 = sbr.rel (%p1011) target = $region132
        $region131: #{vision_transformer_forward.3} parent=99 // pred_region
          %1014 = dma.done %s1007, 32
        $region132: #{vision_transformer_forward.3} parent=99 // pred_fallthru
          _
        // Predicated region
        $region133: #{vision_transformer_forward.3} parent=99 // pred_check
          %p1015 = pneg %p421
        $region134: #{vision_transformer_forward.3} parent=99 // pred_check_branch
          %1017 = sbr.rel (%p1015) target = $region136
        $region135: #{vision_transformer_forward.3} parent=99 // pred_region
          %1018 = dma.done [#allocation16], 32
        $region136: #{vision_transformer_forward.3} parent=99 // pred_fallthru
          _
        // Predicated region
        $region137: #{vision_transformer_forward.3} parent=99 // pred_check
          %p1019 = pneg %p442
        $region138: #{vision_transformer_forward.3} parent=99 // pred_check_branch
          %1021 = sbr.rel (%p1019) target = $region140
        $region139: #{vision_transformer_forward.3} parent=99 // pred_region
          %1022 = dma.done [#allocation19], 32
        $region140: #{vision_transformer_forward.3} parent=99 // pred_fallthru
          _
        // Predicated region
        $region141: #{vision_transformer_forward.3} parent=99 // pred_check
          %p1023 = pneg %p463
        $region142: #{vision_transformer_forward.3} parent=99 // pred_check_branch
          %1025 = sbr.rel (%p1023) target = $region144
        $region143: #{vision_transformer_forward.3} parent=99 // pred_region
          %1026 = dma.done [#allocation19], 32
        $region144: #{vision_transformer_forward.3} parent=99 // pred_fallthru
          _
        // Predicated region
        $region145: #{vision_transformer_forward.3} parent=99 // pred_check
          %p1027 = pneg %p484
        $region146: #{vision_transformer_forward.3} parent=99 // pred_check_branch
          %1029 = sbr.rel (%p1027) target = $region148
        $region147: #{vision_transformer_forward.3} parent=99 // pred_region
          %1030 = dma.done [#allocation22], 32
        $region148: #{vision_transformer_forward.3} parent=99 // pred_fallthru
          _
        // Predicated region
        $region149: #{vision_transformer_forward.3} parent=99 // pred_check
          %p1031 = pneg %p505
        $region150: #{vision_transformer_forward.3} parent=99 // pred_check_branch
          %1033 = sbr.rel (%p1031) target = $region152
        $region151: #{vision_transformer_forward.3} parent=99 // pred_region
          %1034 = dma.done [#allocation22], 32
        $region152: #{vision_transformer_forward.3} parent=99 // pred_fallthru
          _
        // Predicated region
        $region153: #{vision_transformer_forward.3} parent=99 // pred_check
          %p1035 = pneg %p526
        $region154: #{vision_transformer_forward.3} parent=99 // pred_check_branch
          %1037 = sbr.rel (%p1035) target = $region156
        $region155: #{vision_transformer_forward.3} parent=99 // pred_region
          %1038 = dma.done [#allocation25], 32
        $region156: #{vision_transformer_forward.3} parent=99 // pred_fallthru
          _
        %s1039 = smul.u32 2, %s59
        %p1040 = scmp.lt.s32.totalorder %s1039, 1
        %s1041 = scalar_select %p1040, %s1039, 1
        %s1042 = smul.addr %s1041, 2
        %s1043 = smul.addr %s1042, 8
        %s1044 = scalar_lea.vmem %s0, %s1043
        %p1045 = pneg %p88
        %p1046 = pneg %p85
        %s1047 = sand.u32 %s101, 1
        %s1048 = scalar_lea.sflag [#allocation4], %s1047
        %s1049 = sand.u32 %s101, 1
        %s1050 = smul.addr %s1049, 2
        %s1051 = scalar_lea.vmem [#allocation3], %s1050
        %p1052 = pneg %p114
        %p1053 = pneg %p111
        %s1054 = sand.u32 %s55, 1
        %s1055 = scalar_lea.sflag [#allocation7], %s1054
        %s1056 = sand.u32 %s127, 1
        %s1057 = smul.addr %s1056, 2
        %s1058 = scalar_lea.vmem [#allocation6], %s1057
        %p1059 = pneg %p140
        %p1060 = pneg %p137
        %s1061 = sand.u32 %s55, 1
        %s1062 = scalar_lea.sflag [#allocation7], %s1061
        %s1063 = sand.u32 %s153, 1
        %s1064 = smul.addr %s1063, 768
        %s1065 = scalar_lea.vmem [#allocation8], %s1064
        %p1066 = pneg %p166
        %p1067 = pneg %p163
        %p1068 = scmp.lt.s32.totalorder %s60, 1
        %s1069 = scalar_select %p1068, %s60, 1
        %s1070 = smul.addr %s1069, 6
        %s1071 = scalar_lea.vmem %s4, %s1070
        %p1072 = pneg %p192
        %p1073 = pneg %p189
        %s1074 = sand.u32 %s55, 1
        %s1075 = scalar_lea.sflag [#allocation10], %s1074
        %s1076 = sand.u32 %s205, 1
        %s1077 = smul.addr %s1076, 256
        %s1078 = scalar_lea.vmem [#allocation9], %s1077
        %p1079 = pneg %p218
        %p1080 = pneg %p215
        %p1081 = scmp.lt.s32.totalorder %s60, 1
        %s1082 = scalar_select %p1081, %s60, 1
        %s1083 = smul.addr %s1082, 2
        %s1084 = scalar_lea.vmem %s6, %s1083
        %p1085 = pneg %p244
        %p1086 = pneg %p241
        %s1087 = sand.u32 %s55, 1
        %s1088 = scalar_lea.sflag [#allocation10], %s1087
        %s1089 = sand.u32 %s257, 1
        %s1090 = smul.addr %s1089, 2
        %s1091 = scalar_lea.vmem [#allocation11], %s1090
        %p1092 = pneg %p270
        %p1093 = pneg %p267
        %s1094 = sand.u32 %s55, 1
        %s1095 = scalar_lea.sflag [#allocation13], %s1094
        %s1096 = sand.u32 %s283, 1
        %s1097 = smul.addr %s1096, 2
        %s1098 = scalar_lea.vmem [#allocation12], %s1097
        %p1099 = pneg %p296
        %p1100 = pneg %p293
        %p1101 = scmp.lt.s32.totalorder %s60, 1
        %s1102 = scalar_select %p1101, %s60, 1
        %s1103 = smul.addr %s1102, 256
        %s1104 = smul.addr %s1103, 4
        %s1105 = scalar_lea.vmem %s9, %s1104
        %p1106 = pneg %p322
        %p1107 = pneg %p319
        %p1108 = scmp.lt.s32.totalorder %s60, 1
        %s1109 = scalar_select %p1108, %s60, 1
        %s1110 = smul.addr %s1109, 8
        %s1111 = scalar_lea.vmem %s10, %s1110
        %p1112 = pneg %p348
        %p1113 = pneg %p345
        %s1114 = sand.u32 %s55, 1
        %s1115 = scalar_lea.sflag [#allocation13], %s1114
        %s1116 = sand.u32 %s361, 1
        %s1117 = smul.addr %s1116, 1024
        %s1118 = scalar_lea.vmem [#allocation14], %s1117
        %p1119 = pneg %p374
        %p1120 = pneg %p371
        %s1121 = sand.u32 %s55, 1
        %s1122 = scalar_lea.sflag [#allocation16], %s1121
        %s1123 = sand.u32 %s387, 1
        %s1124 = smul.addr %s1123, 2
        %s1125 = scalar_lea.vmem [#allocation15], %s1124
        %p1126 = pneg %p400
        %p1127 = pneg %p397
        %p1128 = pneg %p421
        %p1129 = pneg %p418
        %p1130 = pneg %p442
        %p1131 = pneg %p439
        %p1132 = pneg %p463
        %p1133 = pneg %p460
        %p1134 = pneg %p484
        %p1135 = pneg %p481
        %p1136 = pneg %p505
        %p1137 = pneg %p502
        %p1138 = pneg %p526
        %p1139 = pneg %p523
        %p1140 = pneg %p547
        %p1141 = pneg %p544
        %p1142 = pneg %p573
        %p1143 = pneg %p570
        %s1144 = smul.u32 2, %s59
        %p1145 = scmp.lt.s32.totalorder %s1144, 1
        %s1146 = scalar_select %p1145, %s1144, 1
        %s1147 = smul.addr %s1146, 2
        %s1148 = smul.addr %s1147, 8
        %s1149 = scalar_lea.vmem %s20, %s1148
        %p1150 = pneg %p599
        %p1151 = pneg %p596
        %p1152 = pneg %p625
        %p1153 = pneg %p622
        %p1154 = pneg %p651
        %p1155 = pneg %p648
        %s1156 = smul.u32 2, %s59
        %p1157 = scmp.lt.s32.totalorder %s1156, 1
        %s1158 = scalar_select %p1157, %s1156, 1
        %s1159 = smul.addr %s1158, 2
        %s1160 = smul.addr %s1159, 8
        %s1161 = scalar_lea.vmem %s0, %s1160
        %s1162 = smul.u32 2, %s59
        %p1163 = scmp.lt.s32.totalorder %s60, 1
        %s1164 = scalar_select %p1163, %s60, 1
        %s1165 = smul.addr %s1164, 6
        %s1166 = scalar_lea.vmem %s4, %s1165
        %p1167 = scmp.lt.s32.totalorder %s60, 1
        %s1168 = scalar_select %p1167, %s60, 1
        %s1169 = smul.addr %s1168, 2
        %s1170 = scalar_lea.vmem %s6, %s1169
        %p1171 = scmp.lt.s32.totalorder %s60, 1
        %s1172 = scalar_select %p1171, %s60, 1
        %s1173 = smul.addr %s1172, 256
        %s1174 = smul.addr %s1173, 4
        %s1175 = scalar_lea.vmem %s9, %s1174
        %p1176 = scmp.lt.s32.totalorder %s60, 1
        %s1177 = scalar_select %p1176, %s60, 1
        %s1178 = smul.addr %s1177, 8
        %s1179 = scalar_lea.vmem %s10, %s1178
        %s1180 = smul.u32 2, %s59
        %p1181 = scmp.lt.s32.totalorder %s1180, 1
        %s1182 = scalar_select %p1181, %s1180, 1
        %s1183 = smul.addr %s1182, 2
        %s1184 = smul.addr %s1183, 8
        %s1185 = scalar_lea.vmem %s20, %s1184
        %s1186 = smul.u32 2, %s59
        %p1188 = scmp.eq.s32.totalorder %s60, 0
        // Predicated region
        $region157: #{vision_transformer_forward.3} parent=99 // pred_check
          %p1189 = pneg %p1188
        $region158: #{vision_transformer_forward.3} parent=99 // pred_check_branch
          %1191 = sbr.rel (%p1189) target = $region160
        $region159: #{vision_transformer_forward.3} parent=99 // pred_region
          %v1192 = vld [vmem:[%s1161] sm:$0xff]
          %v1193 = vld [vmem:[%s1161 + $0x8] sm:$0xff]
          %v1194 = vld [vmem:[%s1161 + $0x10] sm:$0xff]
          %v1195 = vld [vmem:[%s1161 + $0x18] sm:$0xff]
          %1196 = vst [vmem:[#allocation2] sm:$0xff] %v1192
          %1197 = vst [vmem:[#allocation2 + $0x8] sm:$0xff] %v1193
          %1198 = vst [vmem:[#allocation2 + $0x10] sm:$0xff] %v1194
          %1199 = vst [vmem:[#allocation2 + $0x18] sm:$0xff] %v1195
        $region160: #{vision_transformer_forward.3} parent=99 // pred_fallthru
          _
        %v1200 = vld [vmem:[#allocation2] sm:$0xff]
        %v1201 = vld [vmem:[#allocation2 + $0x8] sm:$0xff]
        %v1202 = vld [vmem:[#allocation2 + $0x10] sm:$0xff]
        %v1203 = vld [vmem:[#allocation2 + $0x18] sm:$0xff]
        %v1204 = vld [vmem:[%s947] sm:$0x3]
        %v1205 = vld [vmem:[%s956] sm:$0x3]
        %v1206 = vadd.f32 %v1200, %v1201
        %1207 = vadd.xlane.f32.xlu0 %v1206
        %v1208 = vpop.xlane.xlu0 %1207
        %v1209 = vadd.f32 %v1202, %v1203
        %1210 = vadd.xlane.f32.xlu0 %v1209
        %v1211 = vpop.xlane.xlu0 %1210
        %v1212 = vrcp.pop 256.0
        %v1213 = vmul.f32 %v1208, %v1212
        %v1214 = vmul.f32 %v1211, %v1212
        %v1215 = vsub.f32 %v1200, %v1213
        %v1216 = vsub.f32 %v1201, %v1213
        %v1217 = vsub.f32 %v1202, %v1214
        %v1218 = vsub.f32 %v1203, %v1214
        %v1219 = vmul.f32 %v1215, %v1215
        %v1220 = vmul.f32 %v1216, %v1216
        %v1221 = vmul.f32 %v1217, %v1217
        %v1222 = vmul.f32 %v1218, %v1218
        %v1223 = vadd.f32 %v1219, %v1220
        %1224 = vadd.xlane.f32.xlu0 %v1223
        %v1225 = vpop.xlane.xlu0 %1224
        %v1226 = vadd.f32 %v1221, %v1222
        %1227 = vadd.xlane.f32.xlu0 %v1226
        %v1228 = vpop.xlane.xlu0 %1227
        %v1229 = vmul.f32 %v1225, %v1212
        %v1230 = vmul.f32 %v1228, %v1212
        %v1231 = vadd.f32 %v1229, 1e-06
        %v1232 = vadd.f32 %v1230, 1e-06
        %v1233 = vrsqrt.pop %v1231
        %v1234 = vrsqrt.pop %v1232
        %v1235 = vmul.f32 %v1215, %v1233
        %v1236 = vmul.f32 %v1216, %v1233
        %v1237 = vmul.f32 %v1217, %v1234
        %v1238 = vmul.f32 %v1218, %v1234
        %v1240 = vlaneseq
        %v1241 = vshrl.u32 %v1240, 7
        %v1242 = vsub.s32 0, %v1241
        %v1243 = vrot.slane %v1204, %v1242
        %v1244 = vlaneseq
        %v1245 = vshrl.u32 %v1244, 7
        %v1246 = vsub.s32 1, %v1245
        %v1247 = vrot.slane %v1204, %v1246
        %v1250 = vmul.f32 %v1235, %v1243
        %v1251 = vmul.f32 %v1236, %v1247
        %v1252 = vmul.f32 %v1237, %v1243
        %v1253 = vmul.f32 %v1238, %v1247
        %v1255 = vlaneseq
        %v1256 = vshrl.u32 %v1255, 7
        %v1257 = vsub.s32 0, %v1256
        %v1258 = vrot.slane %v1205, %v1257
        %v1259 = vlaneseq
        %v1260 = vshrl.u32 %v1259, 7
        %v1261 = vsub.s32 1, %v1260
        %v1262 = vrot.slane %v1205, %v1261
        %v1265 = vadd.f32 %v1250, %v1258
        %v1266 = vadd.f32 %v1251, %v1262
        %v1267 = vadd.f32 %v1252, %v1258
        %v1268 = vadd.f32 %v1253, %v1262
        %v1269 = vpack.c.bf16 %v1267, %v1265
        %v1270 = vpack.c.bf16 %v1268, %v1266
        %v1271 = vld [vmem:[%s965] sm:$0xff]
        %v1272 = vld [vmem:[%s965 + $0x8] sm:$0xff]
        %v1273 = vld [vmem:[%s965 + $0x10] sm:$0xff]
        %v1274 = vld [vmem:[%s965 + $0x18] sm:$0xff]
        %v1275 = vld [vmem:[%s965 + $0x20] sm:$0xff]
        %v1276 = vld [vmem:[%s965 + $0x28] sm:$0xff]
        %v1277 = vld [vmem:[%s965 + $0x30] sm:$0xff]
        %v1278 = vld [vmem:[%s965 + $0x38] sm:$0xff]
        %v1279 = vld [vmem:[%s965 + $0x40] sm:$0xff]
        %v1280 = vld [vmem:[%s965 + $0x48] sm:$0xff]
        %v1281 = vld [vmem:[%s965 + $0x50] sm:$0xff]
        %v1282 = vld [vmem:[%s965 + $0x58] sm:$0xff]
        %v1283 = vld [vmem:[%s965 + $0x60] sm:$0xff]
        %v1284 = vld [vmem:[%s965 + $0x68] sm:$0xff]
        %v1285 = vld [vmem:[%s965 + $0x70] sm:$0xff]
        %v1286 = vld [vmem:[%s965 + $0x78] sm:$0xff]
        %v1287 = vld [vmem:[%s965 + $0x80] sm:$0xff]
        %v1288 = vld [vmem:[%s965 + $0x88] sm:$0xff]
        %v1289 = vld [vmem:[%s965 + $0x90] sm:$0xff]
        %v1290 = vld [vmem:[%s965 + $0x98] sm:$0xff]
        %v1291 = vld [vmem:[%s965 + $0xa0] sm:$0xff]
        %v1292 = vld [vmem:[%s965 + $0xa8] sm:$0xff]
        %v1293 = vld [vmem:[%s965 + $0xb0] sm:$0xff]
        %v1294 = vld [vmem:[%s965 + $0xb8] sm:$0xff]
        %v1295 = vld [vmem:[%s965 + $0xc0] sm:$0xff]
        %v1296 = vld [vmem:[%s965 + $0xc8] sm:$0xff]
        %v1297 = vld [vmem:[%s965 + $0xd0] sm:$0xff]
        %v1298 = vld [vmem:[%s965 + $0xd8] sm:$0xff]
        %v1299 = vld [vmem:[%s965 + $0xe0] sm:$0xff]
        %v1300 = vld [vmem:[%s965 + $0xe8] sm:$0xff]
        %v1301 = vld [vmem:[%s965 + $0xf0] sm:$0xff]
        %v1302 = vld [vmem:[%s965 + $0xf8] sm:$0xff]
        %v1303 = vld [vmem:[%s965 + $0x100] sm:$0xff]
        %v1304 = vld [vmem:[%s965 + $0x108] sm:$0xff]
        %v1305 = vld [vmem:[%s965 + $0x110] sm:$0xff]
        %v1306 = vld [vmem:[%s965 + $0x118] sm:$0xff]
        %v1307 = vld [vmem:[%s965 + $0x120] sm:$0xff]
        %v1308 = vld [vmem:[%s965 + $0x128] sm:$0xff]
        %v1309 = vld [vmem:[%s965 + $0x130] sm:$0xff]
        %v1310 = vld [vmem:[%s965 + $0x138] sm:$0xff]
        %v1311 = vld [vmem:[%s965 + $0x140] sm:$0xff]
        %v1312 = vld [vmem:[%s965 + $0x148] sm:$0xff]
        %v1313 = vld [vmem:[%s965 + $0x150] sm:$0xff]
        %v1314 = vld [vmem:[%s965 + $0x158] sm:$0xff]
        %v1315 = vld [vmem:[%s965 + $0x160] sm:$0xff]
        %v1316 = vld [vmem:[%s965 + $0x168] sm:$0xff]
        %v1317 = vld [vmem:[%s965 + $0x170] sm:$0xff]
        %v1318 = vld [vmem:[%s965 + $0x178] sm:$0xff]
        %v1319 = vld [vmem:[%s965 + $0x180] sm:$0xff]
        %v1320 = vld [vmem:[%s965 + $0x188] sm:$0xff]
        %v1321 = vld [vmem:[%s965 + $0x190] sm:$0xff]
        %v1322 = vld [vmem:[%s965 + $0x198] sm:$0xff]
        %v1323 = vld [vmem:[%s965 + $0x1a0] sm:$0xff]
        %v1324 = vld [vmem:[%s965 + $0x1a8] sm:$0xff]
        %v1325 = vld [vmem:[%s965 + $0x1b0] sm:$0xff]
        %v1326 = vld [vmem:[%s965 + $0x1b8] sm:$0xff]
        %v1327 = vld [vmem:[%s965 + $0x1c0] sm:$0xff]
        %v1328 = vld [vmem:[%s965 + $0x1c8] sm:$0xff]
        %v1329 = vld [vmem:[%s965 + $0x1d0] sm:$0xff]
        %v1330 = vld [vmem:[%s965 + $0x1d8] sm:$0xff]
        %v1331 = vld [vmem:[%s965 + $0x1e0] sm:$0xff]
        %v1332 = vld [vmem:[%s965 + $0x1e8] sm:$0xff]
        %v1333 = vld [vmem:[%s965 + $0x1f0] sm:$0xff]
        %v1334 = vld [vmem:[%s965 + $0x1f8] sm:$0xff]
        %v1335 = vld [vmem:[%s965 + $0x200] sm:$0xff]
        %v1336 = vld [vmem:[%s965 + $0x208] sm:$0xff]
        %v1337 = vld [vmem:[%s965 + $0x210] sm:$0xff]
        %v1338 = vld [vmem:[%s965 + $0x218] sm:$0xff]
        %v1339 = vld [vmem:[%s965 + $0x220] sm:$0xff]
        %v1340 = vld [vmem:[%s965 + $0x228] sm:$0xff]
        %v1341 = vld [vmem:[%s965 + $0x230] sm:$0xff]
        %v1342 = vld [vmem:[%s965 + $0x238] sm:$0xff]
        %v1343 = vld [vmem:[%s965 + $0x240] sm:$0xff]
        %v1344 = vld [vmem:[%s965 + $0x248] sm:$0xff]
        %v1345 = vld [vmem:[%s965 + $0x250] sm:$0xff]
        %v1346 = vld [vmem:[%s965 + $0x258] sm:$0xff]
        %v1347 = vld [vmem:[%s965 + $0x260] sm:$0xff]
        %v1348 = vld [vmem:[%s965 + $0x268] sm:$0xff]
        %v1349 = vld [vmem:[%s965 + $0x270] sm:$0xff]
        %v1350 = vld [vmem:[%s965 + $0x278] sm:$0xff]
        %v1351 = vld [vmem:[%s965 + $0x280] sm:$0xff]
        %v1352 = vld [vmem:[%s965 + $0x288] sm:$0xff]
        %v1353 = vld [vmem:[%s965 + $0x290] sm:$0xff]
        %v1354 = vld [vmem:[%s965 + $0x298] sm:$0xff]
        %v1355 = vld [vmem:[%s965 + $0x2a0] sm:$0xff]
        %v1356 = vld [vmem:[%s965 + $0x2a8] sm:$0xff]
        %v1357 = vld [vmem:[%s965 + $0x2b0] sm:$0xff]
        %v1358 = vld [vmem:[%s965 + $0x2b8] sm:$0xff]
        %v1359 = vld [vmem:[%s965 + $0x2c0] sm:$0xff]
        %v1360 = vld [vmem:[%s965 + $0x2c8] sm:$0xff]
        %v1361 = vld [vmem:[%s965 + $0x2d0] sm:$0xff]
        %v1362 = vld [vmem:[%s965 + $0x2d8] sm:$0xff]
        %v1363 = vld [vmem:[%s965 + $0x2e0] sm:$0xff]
        %v1364 = vld [vmem:[%s965 + $0x2e8] sm:$0xff]
        %v1365 = vld [vmem:[%s965 + $0x2f0] sm:$0xff]
        %v1366 = vld [vmem:[%s965 + $0x2f8] sm:$0xff]
        %v1367 = vld [vmem:[%s1166] sm:$0x3f]
        %v1369 = vlaneseq
        %v1370 = vshrl.u32 %v1369, 7
        %v1371 = vsub.s32 0, %v1370
        %v1372 = vrot.slane %v1367, %v1371
        %v1373 = vlaneseq
        %v1374 = vshrl.u32 %v1373, 7
        %v1375 = vsub.s32 1, %v1374
        %v1376 = vrot.slane %v1367, %v1375
        %v1377 = vlaneseq
        %v1378 = vshrl.u32 %v1377, 7
        %v1379 = vsub.s32 2, %v1378
        %v1380 = vrot.slane %v1367, %v1379
        %v1381 = vlaneseq
        %v1382 = vshrl.u32 %v1381, 7
        %v1383 = vsub.s32 3, %v1382
        %v1384 = vrot.slane %v1367, %v1383
        %v1385 = vlaneseq
        %v1386 = vshrl.u32 %v1385, 7
        %v1387 = vsub.s32 4, %v1386
        %v1388 = vrot.slane %v1367, %v1387
        %v1389 = vlaneseq
        %v1390 = vshrl.u32 %v1389, 7
        %v1391 = vsub.s32 5, %v1390
        %v1392 = vrot.slane %v1367, %v1391
        %v1495 = vunpack.c.l.b16 %v1271
        %v1496 = vunpack.c.h.b16 %v1271
        %v1497 = vunpack.c.l.b16 %v1272
        %v1498 = vunpack.c.h.b16 %v1272
        %v1499 = vunpack.c.l.b16 %v1273
        %v1500 = vunpack.c.h.b16 %v1273
        %v1501 = vunpack.c.l.b16 %v1274
        %v1502 = vunpack.c.h.b16 %v1274
        %v1503 = vunpack.c.l.b16 %v1275
        %v1504 = vunpack.c.h.b16 %v1275
        %v1505 = vunpack.c.l.b16 %v1276
        %v1506 = vunpack.c.h.b16 %v1276
        %v1507 = vunpack.c.l.b16 %v1277
        %v1508 = vunpack.c.h.b16 %v1277
        %v1509 = vunpack.c.l.b16 %v1278
        %v1510 = vunpack.c.h.b16 %v1278
        %v1511 = vunpack.c.l.b16 %v1279
        %v1512 = vunpack.c.h.b16 %v1279
        %v1513 = vunpack.c.l.b16 %v1280
        %v1514 = vunpack.c.h.b16 %v1280
        %v1515 = vunpack.c.l.b16 %v1281
        %v1516 = vunpack.c.h.b16 %v1281
        %v1517 = vunpack.c.l.b16 %v1282
        %v1518 = vunpack.c.h.b16 %v1282
        %v1519 = vunpack.c.l.b16 %v1283
        %v1520 = vunpack.c.h.b16 %v1283
        %v1521 = vunpack.c.l.b16 %v1284
        %v1522 = vunpack.c.h.b16 %v1284
        %v1523 = vunpack.c.l.b16 %v1285
        %v1524 = vunpack.c.h.b16 %v1285
        %v1525 = vunpack.c.l.b16 %v1286
        %v1526 = vunpack.c.h.b16 %v1286
        %v1527 = vunpack.c.l.b16 %v1287
        %v1528 = vunpack.c.h.b16 %v1287
        %v1529 = vunpack.c.l.b16 %v1288
        %v1530 = vunpack.c.h.b16 %v1288
        %v1531 = vunpack.c.l.b16 %v1289
        %v1532 = vunpack.c.h.b16 %v1289
        %v1533 = vunpack.c.l.b16 %v1290
        %v1534 = vunpack.c.h.b16 %v1290
        %v1535 = vunpack.c.l.b16 %v1291
        %v1536 = vunpack.c.h.b16 %v1291
        %v1537 = vunpack.c.l.b16 %v1292
        %v1538 = vunpack.c.h.b16 %v1292
        %v1539 = vunpack.c.l.b16 %v1293
        %v1540 = vunpack.c.h.b16 %v1293
        %v1541 = vunpack.c.l.b16 %v1294
        %v1542 = vunpack.c.h.b16 %v1294
        %v1543 = vunpack.c.l.b16 %v1295
        %v1544 = vunpack.c.h.b16 %v1295
        %v1545 = vunpack.c.l.b16 %v1296
        %v1546 = vunpack.c.h.b16 %v1296
        %v1547 = vunpack.c.l.b16 %v1297
        %v1548 = vunpack.c.h.b16 %v1297
        %v1549 = vunpack.c.l.b16 %v1298
        %v1550 = vunpack.c.h.b16 %v1298
        %v1551 = vunpack.c.l.b16 %v1299
        %v1552 = vunpack.c.h.b16 %v1299
        %v1553 = vunpack.c.l.b16 %v1300
        %v1554 = vunpack.c.h.b16 %v1300
        %v1555 = vunpack.c.l.b16 %v1301
        %v1556 = vunpack.c.h.b16 %v1301
        %v1557 = vunpack.c.l.b16 %v1302
        %v1558 = vunpack.c.h.b16 %v1302
        %v1559 = vunpack.c.l.b16 %v1303
        %v1560 = vunpack.c.h.b16 %v1303
        %v1561 = vunpack.c.l.b16 %v1304
        %v1562 = vunpack.c.h.b16 %v1304
        %v1563 = vunpack.c.l.b16 %v1305
        %v1564 = vunpack.c.h.b16 %v1305
        %v1565 = vunpack.c.l.b16 %v1306
        %v1566 = vunpack.c.h.b16 %v1306
        %v1567 = vunpack.c.l.b16 %v1307
        %v1568 = vunpack.c.h.b16 %v1307
        %v1569 = vunpack.c.l.b16 %v1308
        %v1570 = vunpack.c.h.b16 %v1308
        %v1571 = vunpack.c.l.b16 %v1309
        %v1572 = vunpack.c.h.b16 %v1309
        %v1573 = vunpack.c.l.b16 %v1310
        %v1574 = vunpack.c.h.b16 %v1310
        %v1575 = vunpack.c.l.b16 %v1311
        %v1576 = vunpack.c.h.b16 %v1311
        %v1577 = vunpack.c.l.b16 %v1312
        %v1578 = vunpack.c.h.b16 %v1312
        %v1579 = vunpack.c.l.b16 %v1313
        %v1580 = vunpack.c.h.b16 %v1313
        %v1581 = vunpack.c.l.b16 %v1314
        %v1582 = vunpack.c.h.b16 %v1314
        %v1583 = vunpack.c.l.b16 %v1315
        %v1584 = vunpack.c.h.b16 %v1315
        %v1585 = vunpack.c.l.b16 %v1316
        %v1586 = vunpack.c.h.b16 %v1316
        %v1587 = vunpack.c.l.b16 %v1317
        %v1588 = vunpack.c.h.b16 %v1317
        %v1589 = vunpack.c.l.b16 %v1318
        %v1590 = vunpack.c.h.b16 %v1318
        %v1591 = vunpack.c.l.b16 %v1319
        %v1592 = vunpack.c.h.b16 %v1319
        %v1593 = vunpack.c.l.b16 %v1320
        %v1594 = vunpack.c.h.b16 %v1320
        %v1595 = vunpack.c.l.b16 %v1321
        %v1596 = vunpack.c.h.b16 %v1321
        %v1597 = vunpack.c.l.b16 %v1322
        %v1598 = vunpack.c.h.b16 %v1322
        %v1599 = vunpack.c.l.b16 %v1323
        %v1600 = vunpack.c.h.b16 %v1323
        %v1601 = vunpack.c.l.b16 %v1324
        %v1602 = vunpack.c.h.b16 %v1324
        %v1603 = vunpack.c.l.b16 %v1325
        %v1604 = vunpack.c.h.b16 %v1325
        %v1605 = vunpack.c.l.b16 %v1326
        %v1606 = vunpack.c.h.b16 %v1326
        %v1607 = vunpack.c.l.b16 %v1327
        %v1608 = vunpack.c.h.b16 %v1327
        %v1609 = vunpack.c.l.b16 %v1328
        %v1610 = vunpack.c.h.b16 %v1328
        %v1611 = vunpack.c.l.b16 %v1329
        %v1612 = vunpack.c.h.b16 %v1329
        %v1613 = vunpack.c.l.b16 %v1330
        %v1614 = vunpack.c.h.b16 %v1330
        %v1615 = vunpack.c.l.b16 %v1331
        %v1616 = vunpack.c.h.b16 %v1331
        %v1617 = vunpack.c.l.b16 %v1332
        %v1618 = vunpack.c.h.b16 %v1332
        %v1619 = vunpack.c.l.b16 %v1333
        %v1620 = vunpack.c.h.b16 %v1333
        %v1621 = vunpack.c.l.b16 %v1334
        %v1622 = vunpack.c.h.b16 %v1334
        %v1623 = vunpack.c.l.b16 %v1335
        %v1624 = vunpack.c.h.b16 %v1335
        %v1625 = vunpack.c.l.b16 %v1336
        %v1626 = vunpack.c.h.b16 %v1336
        %v1627 = vunpack.c.l.b16 %v1337
        %v1628 = vunpack.c.h.b16 %v1337
        %v1629 = vunpack.c.l.b16 %v1338
        %v1630 = vunpack.c.h.b16 %v1338
        %v1631 = vunpack.c.l.b16 %v1339
        %v1632 = vunpack.c.h.b16 %v1339
        %v1633 = vunpack.c.l.b16 %v1340
        %v1634 = vunpack.c.h.b16 %v1340
        %v1635 = vunpack.c.l.b16 %v1341
        %v1636 = vunpack.c.h.b16 %v1341
        %v1637 = vunpack.c.l.b16 %v1342
        %v1638 = vunpack.c.h.b16 %v1342
        %v1639 = vunpack.c.l.b16 %v1343
        %v1640 = vunpack.c.h.b16 %v1343
        %v1641 = vunpack.c.l.b16 %v1344
        %v1642 = vunpack.c.h.b16 %v1344
        %v1643 = vunpack.c.l.b16 %v1345
        %v1644 = vunpack.c.h.b16 %v1345
        %v1645 = vunpack.c.l.b16 %v1346
        %v1646 = vunpack.c.h.b16 %v1346
        %v1647 = vunpack.c.l.b16 %v1347
        %v1648 = vunpack.c.h.b16 %v1347
        %v1649 = vunpack.c.l.b16 %v1348
        %v1650 = vunpack.c.h.b16 %v1348
        %v1651 = vunpack.c.l.b16 %v1349
        %v1652 = vunpack.c.h.b16 %v1349
        %v1653 = vunpack.c.l.b16 %v1350
        %v1654 = vunpack.c.h.b16 %v1350
        %v1655 = vunpack.c.l.b16 %v1351
        %v1656 = vunpack.c.h.b16 %v1351
        %v1657 = vunpack.c.l.b16 %v1352
        %v1658 = vunpack.c.h.b16 %v1352
        %v1659 = vunpack.c.l.b16 %v1353
        %v1660 = vunpack.c.h.b16 %v1353
        %v1661 = vunpack.c.l.b16 %v1354
        %v1662 = vunpack.c.h.b16 %v1354
        %v1663 = vunpack.c.l.b16 %v1355
        %v1664 = vunpack.c.h.b16 %v1355
        %v1665 = vunpack.c.l.b16 %v1356
        %v1666 = vunpack.c.h.b16 %v1356
        %v1667 = vunpack.c.l.b16 %v1357
        %v1668 = vunpack.c.h.b16 %v1357
        %v1669 = vunpack.c.l.b16 %v1358
        %v1670 = vunpack.c.h.b16 %v1358
        %v1671 = vunpack.c.l.b16 %v1359
        %v1672 = vunpack.c.h.b16 %v1359
        %v1673 = vunpack.c.l.b16 %v1360
        %v1674 = vunpack.c.h.b16 %v1360
        %v1675 = vunpack.c.l.b16 %v1361
        %v1676 = vunpack.c.h.b16 %v1361
        %v1677 = vunpack.c.l.b16 %v1362
        %v1678 = vunpack.c.h.b16 %v1362
        %v1679 = vunpack.c.l.b16 %v1363
        %v1680 = vunpack.c.h.b16 %v1363
        %v1681 = vunpack.c.l.b16 %v1364
        %v1682 = vunpack.c.h.b16 %v1364
        %v1683 = vunpack.c.l.b16 %v1365
        %v1684 = vunpack.c.h.b16 %v1365
        %v1685 = vunpack.c.l.b16 %v1366
        %v1686 = vunpack.c.h.b16 %v1366
        %v1687 = vpack.c.b16 %v1501, %v1495
        %v1688 = vpack.c.b16 %v1502, %v1496
        %v1689 = vpack.c.b16 %v1503, %v1497
        %v1690 = vpack.c.b16 %v1504, %v1498
        %v1691 = vpack.c.b16 %v1505, %v1499
        %v1692 = vpack.c.b16 %v1506, %v1500
        %v1693 = vpack.c.b16 %v1513, %v1507
        %v1694 = vpack.c.b16 %v1514, %v1508
        %v1695 = vpack.c.b16 %v1515, %v1509
        %v1696 = vpack.c.b16 %v1516, %v1510
        %v1697 = vpack.c.b16 %v1517, %v1511
        %v1698 = vpack.c.b16 %v1518, %v1512
        %v1699 = vpack.c.b16 %v1525, %v1519
        %v1700 = vpack.c.b16 %v1526, %v1520
        %v1701 = vpack.c.b16 %v1527, %v1521
        %v1702 = vpack.c.b16 %v1528, %v1522
        %v1703 = vpack.c.b16 %v1529, %v1523
        %v1704 = vpack.c.b16 %v1530, %v1524
        %v1705 = vpack.c.b16 %v1537, %v1531
        %v1706 = vpack.c.b16 %v1538, %v1532
        %v1707 = vpack.c.b16 %v1539, %v1533
        %v1708 = vpack.c.b16 %v1540, %v1534
        %v1709 = vpack.c.b16 %v1541, %v1535
        %v1710 = vpack.c.b16 %v1542, %v1536
        %v1711 = vpack.c.b16 %v1549, %v1543
        %v1712 = vpack.c.b16 %v1550, %v1544
        %v1713 = vpack.c.b16 %v1551, %v1545
        %v1714 = vpack.c.b16 %v1552, %v1546
        %v1715 = vpack.c.b16 %v1553, %v1547
        %v1716 = vpack.c.b16 %v1554, %v1548
        %v1717 = vpack.c.b16 %v1561, %v1555
        %v1718 = vpack.c.b16 %v1562, %v1556
        %v1719 = vpack.c.b16 %v1563, %v1557
        %v1720 = vpack.c.b16 %v1564, %v1558
        %v1721 = vpack.c.b16 %v1565, %v1559
        %v1722 = vpack.c.b16 %v1566, %v1560
        %v1723 = vpack.c.b16 %v1573, %v1567
        %v1724 = vpack.c.b16 %v1574, %v1568
        %v1725 = vpack.c.b16 %v1575, %v1569
        %v1726 = vpack.c.b16 %v1576, %v1570
        %v1727 = vpack.c.b16 %v1577, %v1571
        %v1728 = vpack.c.b16 %v1578, %v1572
        %v1729 = vpack.c.b16 %v1585, %v1579
        %v1730 = vpack.c.b16 %v1586, %v1580
        %v1731 = vpack.c.b16 %v1587, %v1581
        %v1732 = vpack.c.b16 %v1588, %v1582
        %v1733 = vpack.c.b16 %v1589, %v1583
        %v1734 = vpack.c.b16 %v1590, %v1584
        %v1735 = vpack.c.b16 %v1597, %v1591
        %v1736 = vpack.c.b16 %v1598, %v1592
        %v1737 = vpack.c.b16 %v1599, %v1593
        %v1738 = vpack.c.b16 %v1600, %v1594
        %v1739 = vpack.c.b16 %v1601, %v1595
        %v1740 = vpack.c.b16 %v1602, %v1596
        %v1741 = vpack.c.b16 %v1609, %v1603
        %v1742 = vpack.c.b16 %v1610, %v1604
        %v1743 = vpack.c.b16 %v1611, %v1605
        %v1744 = vpack.c.b16 %v1612, %v1606
        %v1745 = vpack.c.b16 %v1613, %v1607
        %v1746 = vpack.c.b16 %v1614, %v1608
        %v1747 = vpack.c.b16 %v1621, %v1615
        %v1748 = vpack.c.b16 %v1622, %v1616
        %v1749 = vpack.c.b16 %v1623, %v1617
        %v1750 = vpack.c.b16 %v1624, %v1618
        %v1751 = vpack.c.b16 %v1625, %v1619
        %v1752 = vpack.c.b16 %v1626, %v1620
        %v1753 = vpack.c.b16 %v1633, %v1627
        %v1754 = vpack.c.b16 %v1634, %v1628
        %v1755 = vpack.c.b16 %v1635, %v1629
        %v1756 = vpack.c.b16 %v1636, %v1630
        %v1757 = vpack.c.b16 %v1637, %v1631
        %v1758 = vpack.c.b16 %v1638, %v1632
        %v1759 = vpack.c.b16 %v1645, %v1639
        %v1760 = vpack.c.b16 %v1646, %v1640
        %v1761 = vpack.c.b16 %v1647, %v1641
        %v1762 = vpack.c.b16 %v1648, %v1642
        %v1763 = vpack.c.b16 %v1649, %v1643
        %v1764 = vpack.c.b16 %v1650, %v1644
        %v1765 = vpack.c.b16 %v1657, %v1651
        %v1766 = vpack.c.b16 %v1658, %v1652
        %v1767 = vpack.c.b16 %v1659, %v1653
        %v1768 = vpack.c.b16 %v1660, %v1654
        %v1769 = vpack.c.b16 %v1661, %v1655
        %v1770 = vpack.c.b16 %v1662, %v1656
        %v1771 = vpack.c.b16 %v1669, %v1663
        %v1772 = vpack.c.b16 %v1670, %v1664
        %v1773 = vpack.c.b16 %v1671, %v1665
        %v1774 = vpack.c.b16 %v1672, %v1666
        %v1775 = vpack.c.b16 %v1673, %v1667
        %v1776 = vpack.c.b16 %v1674, %v1668
        %v1777 = vpack.c.b16 %v1681, %v1675
        %v1778 = vpack.c.b16 %v1682, %v1676
        %v1779 = vpack.c.b16 %v1683, %v1677
        %v1780 = vpack.c.b16 %v1684, %v1678
        %v1781 = vpack.c.b16 %v1685, %v1679
        %v1782 = vpack.c.b16 %v1686, %v1680
        %1879 = vmatprep.subr.bf16.mxu0 %v1730
        %1880 = vmatpush1.bf16.msra.mxu0 %v1729
        %1881 = vmatprep.subr.bf16.mxu0 %v1724
        %1882 = vmatpush1.bf16.msra.mxu0 %v1723
        %1883 = vmatprep.subr.bf16.mxu0 %v1718
        %1884 = vmatpush1.bf16.msra.mxu0 %v1717
        %1885 = vmatprep.subr.bf16.mxu0 %v1712
        %1886 = vmatpush1.bf16.msra.mxu0 %v1711
        %1887 = vmatprep.subr.bf16.mxu0 %v1706
        %1888 = vmatpush1.bf16.msra.mxu0 %v1705
        %1889 = vmatprep.subr.bf16.mxu0 %v1700
        %1890 = vmatpush1.bf16.msra.mxu0 %v1699
        %1891 = vmatprep.subr.bf16.mxu0 %v1694
        %1892 = vmatpush1.bf16.msra.mxu0 %v1693
        %1893 = vmatprep.subr.bf16.mxu0 %v1688
        %1894 = vmatpush1.bf16.msra.mxu0 %v1687
        %1895 = vmatprep.subr.bf16.mxu0 %v1778
        %1896 = vmatpush2.bf16.msra.mxu0 %v1777
        %1897 = vmatprep.subr.bf16.mxu0 %v1772
        %1898 = vmatpush2.bf16.msra.mxu0 %v1771
        %1899 = vmatprep.subr.bf16.mxu0 %v1766
        %1900 = vmatpush2.bf16.msra.mxu0 %v1765
        %1901 = vmatprep.subr.bf16.mxu0 %v1760
        %1902 = vmatpush2.bf16.msra.mxu0 %v1759
        %1903 = vmatprep.subr.bf16.mxu0 %v1754
        %1904 = vmatpush2.bf16.msra.mxu0 %v1753
        %1905 = vmatprep.subr.bf16.mxu0 %v1748
        %1906 = vmatpush2.bf16.msra.mxu0 %v1747
        %1907 = vmatprep.subr.bf16.mxu0 %v1742
        %1908 = vmatpush2.bf16.msra.mxu0 %v1741
        %1909 = vmatprep.subr.bf16.mxu0 %v1736
        %1910 = vmatpush2.bf16.msra.mxu0 %v1735
        %1911 = vmatprep.mubr.bf16.mxu0 %v1270
        %1912 = vmatmul.mubr.bf16.gmra.mxu0 %v1269
        %v1913 = vpop.f32.mrf.mxu0
        %v1914 = vadd.f32 %v1372, %v1913
        %v1915 = vpop.f32.mrf.mxu0
        %v1916 = vadd.f32 %v1376, %v1915
        %v1917 = vpop.f32.mrf.mxu0
        %v1918 = vadd.f32 %v1372, %v1917
        %v1919 = vpop.f32.mrf.mxu0
        %v1920 = vadd.f32 %v1376, %v1919
        %1921 = vdwg.mxu0
        %1922 = vmatprep.subr.bf16.mxu0 %v1732
        %1923 = vmatpush1.bf16.msra.mxu0 %v1731
        %1924 = vmatprep.subr.bf16.mxu0 %v1726
        %1925 = vmatpush1.bf16.msra.mxu0 %v1725
        %1926 = vmatprep.subr.bf16.mxu0 %v1720
        %1927 = vmatpush1.bf16.msra.mxu0 %v1719
        %1928 = vmatprep.subr.bf16.mxu0 %v1714
        %1929 = vmatpush1.bf16.msra.mxu0 %v1713
        %1930 = vmatprep.subr.bf16.mxu0 %v1708
        %1931 = vmatpush1.bf16.msra.mxu0 %v1707
        %1932 = vmatprep.subr.bf16.mxu0 %v1702
        %1933 = vmatpush1.bf16.msra.mxu0 %v1701
        %1934 = vmatprep.subr.bf16.mxu0 %v1696
        %1935 = vmatpush1.bf16.msra.mxu0 %v1695
        %1936 = vmatprep.subr.bf16.mxu0 %v1690
        %1937 = vmatpush1.bf16.msra.mxu0 %v1689
        %1938 = vmatprep.subr.bf16.mxu0 %v1780
        %1939 = vmatpush2.bf16.msra.mxu0 %v1779
        %1940 = vmatprep.subr.bf16.mxu0 %v1774
        %1941 = vmatpush2.bf16.msra.mxu0 %v1773
        %1942 = vmatprep.subr.bf16.mxu0 %v1768
        %1943 = vmatpush2.bf16.msra.mxu0 %v1767
        %1944 = vmatprep.subr.bf16.mxu0 %v1762
        %1945 = vmatpush2.bf16.msra.mxu0 %v1761
        %1946 = vmatprep.subr.bf16.mxu0 %v1756
        %1947 = vmatpush2.bf16.msra.mxu0 %v1755
        %1948 = vmatprep.subr.bf16.mxu0 %v1750
        %1949 = vmatpush2.bf16.msra.mxu0 %v1749
        %1950 = vmatprep.subr.bf16.mxu0 %v1744
        %1951 = vmatpush2.bf16.msra.mxu0 %v1743
        %1952 = vmatprep.subr.bf16.mxu0 %v1738
        %1953 = vmatpush2.bf16.msra.mxu0 %v1737
        %1954 = vmatprep.mubr.bf16.mxu0 %v1270
        %1955 = vmatmul.mubr.bf16.gmra.mxu0 %v1269
        %v1956 = vpop.f32.mrf.mxu0
        %v1957 = vadd.f32 %v1380, %v1956
        %v1958 = vpop.f32.mrf.mxu0
        %v1959 = vadd.f32 %v1384, %v1958
        %v1960 = vpop.f32.mrf.mxu0
        %v1961 = vadd.f32 %v1380, %v1960
        %v1962 = vpop.f32.mrf.mxu0
        %v1963 = vadd.f32 %v1384, %v1962
        %1964 = vdwg.mxu0
        %1965 = vmatprep.subr.bf16.mxu0 %v1734
        %1966 = vmatpush1.bf16.msra.mxu0 %v1733
        %1967 = vmatprep.subr.bf16.mxu0 %v1728
        %1968 = vmatpush1.bf16.msra.mxu0 %v1727
        %1969 = vmatprep.subr.bf16.mxu0 %v1722
        %1970 = vmatpush1.bf16.msra.mxu0 %v1721
        %1971 = vmatprep.subr.bf16.mxu0 %v1716
        %1972 = vmatpush1.bf16.msra.mxu0 %v1715
        %1973 = vmatprep.subr.bf16.mxu0 %v1710
        %1974 = vmatpush1.bf16.msra.mxu0 %v1709
        %1975 = vmatprep.subr.bf16.mxu0 %v1704
        %1976 = vmatpush1.bf16.msra.mxu0 %v1703
        %1977 = vmatprep.subr.bf16.mxu0 %v1698
        %1978 = vmatpush1.bf16.msra.mxu0 %v1697
        %1979 = vmatprep.subr.bf16.mxu0 %v1692
        %1980 = vmatpush1.bf16.msra.mxu0 %v1691
        %1981 = vmatprep.subr.bf16.mxu0 %v1782
        %1982 = vmatpush2.bf16.msra.mxu0 %v1781
        %1983 = vmatprep.subr.bf16.mxu0 %v1776
        %1984 = vmatpush2.bf16.msra.mxu0 %v1775
        %1985 = vmatprep.subr.bf16.mxu0 %v1770
        %1986 = vmatpush2.bf16.msra.mxu0 %v1769
        %1987 = vmatprep.subr.bf16.mxu0 %v1764
        %1988 = vmatpush2.bf16.msra.mxu0 %v1763
        %1989 = vmatprep.subr.bf16.mxu0 %v1758
        %1990 = vmatpush2.bf16.msra.mxu0 %v1757
        %1991 = vmatprep.subr.bf16.mxu0 %v1752
        %1992 = vmatpush2.bf16.msra.mxu0 %v1751
        %1993 = vmatprep.subr.bf16.mxu0 %v1746
        %1994 = vmatpush2.bf16.msra.mxu0 %v1745
        %1995 = vmatprep.subr.bf16.mxu0 %v1740
        %1996 = vmatpush2.bf16.msra.mxu0 %v1739
        %1997 = vmatprep.mubr.bf16.mxu0 %v1270
        %1998 = vmatmul.mubr.bf16.gmra.mxu0 %v1269
        %v1999 = vpop.f32.mrf.mxu0
        %v2000 = vadd.f32 %v1388, %v1999
        %v2001 = vpop.f32.mrf.mxu0
        %v2002 = vadd.f32 %v1392, %v2001
        %v2003 = vpop.f32.mrf.mxu0
        %v2004 = vadd.f32 %v1388, %v2003
        %v2005 = vpop.f32.mrf.mxu0
        %v2006 = vadd.f32 %v1392, %v2005
        %2007 = vdwg.mxu0
        %v2008 = vlaneseq
        %v2009 = vand.u32 %v2008, 127
        %vm2010 = vcmp.lt.s32.totalorder %v2009, 5
        %v2011 = vsel %vm2010, 0.0, -1e+30
        %v2012 = vpack.c.bf16 %v1914, %v1914
        %v2013 = vpack.c.bf16 %v1918, %v1918
        %v2014 = vpack.c.bf16 %v1957, %v1957
        %v2015 = vpack.c.bf16 %v1961, %v1961
        %v2016 = vpack.c.bf16 %v2000, %v2000
        %v2017 = vpack.c.bf16 %v2004, %v2004
        %vm2018 = vcmask 523264
        %v2020 = vsel %vm2018, %v2012, 0
        %v2023 = vsel %vm2018, %v2014, 0
        %2025 = vmatprep.subr.bf16.mxu0 0
        %2026 = vmatpush1.bf16.xpose.msra.mxu0 0
        %2027 = vmatprep.subr.bf16.mxu0 0
        %2028 = vmatpush1.bf16.xpose.msra.mxu0 0
        %2029 = vmatprep.subr.bf16.mxu0 0
        %2030 = vmatpush1.bf16.xpose.msra.mxu0 0
        %2031 = vmatprep.subr.bf16.mxu0 0
        %2032 = vmatpush1.bf16.xpose.msra.mxu0 0
        %2033 = vmatprep.subr.bf16.mxu0 0
        %2034 = vmatpush1.bf16.xpose.msra.mxu0 0
        %2035 = vmatprep.subr.bf16.mxu0 0
        %2036 = vmatpush1.bf16.xpose.msra.mxu0 0
        %2037 = vmatprep.subr.bf16.mxu0 0
        %2038 = vmatpush1.bf16.xpose.msra.mxu0 0
        %2039 = vmatprep.subr.bf16.mxu0 0
        %2040 = vmatpush1.bf16.xpose.msra.mxu0 %v2023
        %2041 = vmatprep.subr.bf16.mxu0 0
        %2042 = vmatpush2.bf16.xpose.msra.mxu0 0
        %2043 = vmatprep.subr.bf16.mxu0 0
        %2044 = vmatpush2.bf16.xpose.msra.mxu0 0
        %2045 = vmatprep.subr.bf16.mxu0 0
        %2046 = vmatpush2.bf16.xpose.msra.mxu0 0
        %2047 = vmatprep.subr.bf16.mxu0 0
        %2048 = vmatpush2.bf16.xpose.msra.mxu0 0
        %2049 = vmatprep.subr.bf16.mxu0 0
        %2050 = vmatpush2.bf16.xpose.msra.mxu0 0
        %2051 = vmatprep.subr.bf16.mxu0 0
        %2052 = vmatpush2.bf16.xpose.msra.mxu0 0
        %2053 = vmatprep.subr.bf16.mxu0 0
        %2054 = vmatpush2.bf16.xpose.msra.mxu0 0
        %2055 = vmatprep.subr.bf16.mxu0 0
        %2056 = vmatpush2.bf16.xpose.msra.mxu0 0
        %2057 = vmatprep.mubr.bf16.mxu0 0
        %2058 = vmatmul.mubr.bf16.gmra.mxu0 %v2020
        %v2059 = vpop.f32.mrf.mxu0
        %v2060 = vadd.f32 0.0, %v2059
        %v2061 = vpop.f32.mrf.mxu0
        %v2062 = vpop.f32.mrf.mxu0
        %v2063 = vpop.f32.mrf.mxu0
        %2064 = vdwg.mxu0
        %v2066 = vsel %vm2018, %v2013, 0
        %v2069 = vsel %vm2018, %v2015, 0
        %2071 = vmatprep.subr.bf16.mxu0 0
        %2072 = vmatpush1.bf16.xpose.msra.mxu0 0
        %2073 = vmatprep.subr.bf16.mxu0 0
        %2074 = vmatpush1.bf16.xpose.msra.mxu0 0
        %2075 = vmatprep.subr.bf16.mxu0 0
        %2076 = vmatpush1.bf16.xpose.msra.mxu0 0
        %2077 = vmatprep.subr.bf16.mxu0 0
        %2078 = vmatpush1.bf16.xpose.msra.mxu0 0
        %2079 = vmatprep.subr.bf16.mxu0 0
        %2080 = vmatpush1.bf16.xpose.msra.mxu0 0
        %2081 = vmatprep.subr.bf16.mxu0 0
        %2082 = vmatpush1.bf16.xpose.msra.mxu0 0
        %2083 = vmatprep.subr.bf16.mxu0 0
        %2084 = vmatpush1.bf16.xpose.msra.mxu0 0
        %2085 = vmatprep.subr.bf16.mxu0 0
        %2086 = vmatpush1.bf16.xpose.msra.mxu0 %v2069
        %2087 = vmatprep.subr.bf16.mxu0 0
        %2088 = vmatpush2.bf16.xpose.msra.mxu0 0
        %2089 = vmatprep.subr.bf16.mxu0 0
        %2090 = vmatpush2.bf16.xpose.msra.mxu0 0
        %2091 = vmatprep.subr.bf16.mxu0 0
        %2092 = vmatpush2.bf16.xpose.msra.mxu0 0
        %2093 = vmatprep.subr.bf16.mxu0 0
        %2094 = vmatpush2.bf16.xpose.msra.mxu0 0
        %2095 = vmatprep.subr.bf16.mxu0 0
        %2096 = vmatpush2.bf16.xpose.msra.mxu0 0
        %2097 = vmatprep.subr.bf16.mxu0 0
        %2098 = vmatpush2.bf16.xpose.msra.mxu0 0
        %2099 = vmatprep.subr.bf16.mxu0 0
        %2100 = vmatpush2.bf16.xpose.msra.mxu0 0
        %2101 = vmatprep.subr.bf16.mxu0 0
        %2102 = vmatpush2.bf16.xpose.msra.mxu0 0
        %2103 = vmatprep.mubr.bf16.mxu0 0
        %2104 = vmatmul.mubr.bf16.gmra.mxu0 %v2066
        %v2105 = vpop.f32.mrf.mxu0
        %v2106 = vadd.f32 0.0, %v2105
        %v2107 = vpop.f32.mrf.mxu0
        %v2108 = vpop.f32.mrf.mxu0
        %v2109 = vpop.f32.mrf.mxu0
        %2110 = vdwg.mxu0
        %v2111 = vmul.f32 %v2060, 0.125
        %v2112 = vmul.f32 %v2106, 0.125
        %v2113 = vadd.f32 %v2111, %v2011
        %v2114 = vadd.f32 %v2112, %v2011
        %vm2115 = vcmask 64512
        %v2116 = vsel %vm2115, %v2113, -inf
        %2117 = vmax.xlane.f32.xlu0 %v2116
        %v2118 = vpop.xlane.xlu0 %2117
        %v2119 = vsel %vm2115, %v2114, -inf
        %2120 = vmax.xlane.f32.xlu0 %v2119
        %v2121 = vpop.xlane.xlu0 %2120
        %v2122 = vsub.f32 %v2113, %v2118
        %v2123 = vsub.f32 %v2114, %v2121
        %v2124 = vmul.f32 %v2122, 1.442695
        %v2125 = vpow.pop %v2124
        %v2126 = vmul.f32 %v2123, 1.442695
        %v2127 = vpow.pop %v2126
        %v2128 = vsel %vm2115, %v2125, 0.0
        %2129 = vadd.xlane.f32.xlu0 %v2128
        %v2130 = vpop.xlane.xlu0 %2129
        %v2131 = vsel %vm2115, %v2127, 0.0
        %2132 = vadd.xlane.f32.xlu0 %v2131
        %v2133 = vpop.xlane.xlu0 %2132
        %v2134 = vrcp.pop %v2130
        %v2135 = vrcp.pop %v2133
        %v2136 = vmul.f32 %v2125, %v2134
        %v2137 = vmul.f32 %v2127, %v2135
        %v2138 = vpack.c.bf16 %v2136, %v2136
        %v2139 = vpack.c.bf16 %v2137, %v2137
        %v2141 = vsel %vm2115, %v2138, 0
        %vm2143 = vcmask 1043456
        %v2145 = vsel %vm2143, %v2016, 0
        %2147 = vmatprep.subr.bf16.mxu0 0
        %2148 = vmatpush1.bf16.msra.mxu0 0
        %2149 = vmatprep.subr.bf16.mxu0 0
        %2150 = vmatpush1.bf16.msra.mxu0 0
        %2151 = vmatprep.subr.bf16.mxu0 0
        %2152 = vmatpush1.bf16.msra.mxu0 0
        %2153 = vmatprep.subr.bf16.mxu0 0
        %2154 = vmatpush1.bf16.msra.mxu0 0
        %2155 = vmatprep.subr.bf16.mxu0 0
        %2156 = vmatpush1.bf16.msra.mxu0 0
        %2157 = vmatprep.subr.bf16.mxu0 0
        %2158 = vmatpush1.bf16.msra.mxu0 0
        %2159 = vmatprep.subr.bf16.mxu0 0
        %2160 = vmatpush1.bf16.msra.mxu0 0
        %2161 = vmatprep.subr.bf16.mxu0 0
        %2162 = vmatpush1.bf16.msra.mxu0 %v2145
        %2163 = vmatprep.subr.bf16.mxu0 0
        %2164 = vmatpush2.bf16.msra.mxu0 0
        %2165 = vmatprep.subr.bf16.mxu0 0
        %2166 = vmatpush2.bf16.msra.mxu0 0
        %2167 = vmatprep.subr.bf16.mxu0 0
        %2168 = vmatpush2.bf16.msra.mxu0 0
        %2169 = vmatprep.subr.bf16.mxu0 0
        %2170 = vmatpush2.bf16.msra.mxu0 0
        %2171 = vmatprep.subr.bf16.mxu0 0
        %2172 = vmatpush2.bf16.msra.mxu0 0
        %2173 = vmatprep.subr.bf16.mxu0 0
        %2174 = vmatpush2.bf16.msra.mxu0 0
        %2175 = vmatprep.subr.bf16.mxu0 0
        %2176 = vmatpush2.bf16.msra.mxu0 0
        %2177 = vmatprep.subr.bf16.mxu0 0
        %2178 = vmatpush2.bf16.msra.mxu0 0
        %2179 = vmatprep.mubr.bf16.mxu0 0
        %2180 = vmatmul.mubr.bf16.gmra.mxu0 %v2141
        %v2181 = vpop.f32.mrf.mxu0
        %v2182 = vadd.f32 0.0, %v2181
        %v2183 = vpop.f32.mrf.mxu0
        %v2184 = vpop.f32.mrf.mxu0
        %v2185 = vpop.f32.mrf.mxu0
        %2186 = vdwg.mxu0
        %v2188 = vsel %vm2115, %v2139, 0
        %v2191 = vsel %vm2143, %v2017, 0
        %2193 = vmatprep.subr.bf16.mxu0 0
        %2194 = vmatpush1.bf16.msra.mxu0 0
        %2195 = vmatprep.subr.bf16.mxu0 0
        %2196 = vmatpush1.bf16.msra.mxu0 0
        %2197 = vmatprep.subr.bf16.mxu0 0
        %2198 = vmatpush1.bf16.msra.mxu0 0
        %2199 = vmatprep.subr.bf16.mxu0 0
        %2200 = vmatpush1.bf16.msra.mxu0 0
        %2201 = vmatprep.subr.bf16.mxu0 0
        %2202 = vmatpush1.bf16.msra.mxu0 0
        %2203 = vmatprep.subr.bf16.mxu0 0
        %2204 = vmatpush1.bf16.msra.mxu0 0
        %2205 = vmatprep.subr.bf16.mxu0 0
        %2206 = vmatpush1.bf16.msra.mxu0 0
        %2207 = vmatprep.subr.bf16.mxu0 0
        %2208 = vmatpush1.bf16.msra.mxu0 %v2191
        %2209 = vmatprep.subr.bf16.mxu0 0
        %2210 = vmatpush2.bf16.msra.mxu0 0
        %2211 = vmatprep.subr.bf16.mxu0 0
        %2212 = vmatpush2.bf16.msra.mxu0 0
        %2213 = vmatprep.subr.bf16.mxu0 0
        %2214 = vmatpush2.bf16.msra.mxu0 0
        %2215 = vmatprep.subr.bf16.mxu0 0
        %2216 = vmatpush2.bf16.msra.mxu0 0
        %2217 = vmatprep.subr.bf16.mxu0 0
        %2218 = vmatpush2.bf16.msra.mxu0 0
        %2219 = vmatprep.subr.bf16.mxu0 0
        %2220 = vmatpush2.bf16.msra.mxu0 0
        %2221 = vmatprep.subr.bf16.mxu0 0
        %2222 = vmatpush2.bf16.msra.mxu0 0
        %2223 = vmatprep.subr.bf16.mxu0 0
        %2224 = vmatpush2.bf16.msra.mxu0 0
        %2225 = vmatprep.mubr.bf16.mxu0 0
        %2226 = vmatmul.mubr.bf16.gmra.mxu0 %v2188
        %v2227 = vpop.f32.mrf.mxu0
        %v2228 = vadd.f32 0.0, %v2227
        %v2229 = vpop.f32.mrf.mxu0
        %v2230 = vpop.f32.mrf.mxu0
        %v2231 = vpop.f32.mrf.mxu0
        %2232 = vdwg.mxu0
        %v2233 = vpack.c.bf16 %v2228, %v2182
        %v2234 = vld [vmem:[%s974] sm:$0xff]
        %v2235 = vld [vmem:[%s974 + $0x8] sm:$0xff]
        %v2236 = vld [vmem:[%s974 + $0x10] sm:$0xff]
        %v2237 = vld [vmem:[%s974 + $0x18] sm:$0xff]
        %v2238 = vld [vmem:[%s974 + $0x20] sm:$0xff]
        %v2239 = vld [vmem:[%s974 + $0x28] sm:$0xff]
        %v2240 = vld [vmem:[%s974 + $0x30] sm:$0xff]
        %v2241 = vld [vmem:[%s974 + $0x38] sm:$0xff]
        %2243 = vrot.lane.b32.xlu0 %v2012, 64
        %v2244 = vpop.permute.xlu0 %2243
        %2246 = vrot.lane.b32.xlu0 %v2014, 64
        %v2247 = vpop.permute.xlu0 %2246
        %v2249 = vsel %vm2018, %v2244, 0
        %v2252 = vsel %vm2018, %v2247, 0
        %2254 = vmatprep.subr.bf16.mxu0 0
        %2255 = vmatpush1.bf16.xpose.msra.mxu0 0
        %2256 = vmatprep.subr.bf16.mxu0 0
        %2257 = vmatpush1.bf16.xpose.msra.mxu0 0
        %2258 = vmatprep.subr.bf16.mxu0 0
        %2259 = vmatpush1.bf16.xpose.msra.mxu0 0
        %2260 = vmatprep.subr.bf16.mxu0 0
        %2261 = vmatpush1.bf16.xpose.msra.mxu0 0
        %2262 = vmatprep.subr.bf16.mxu0 0
        %2263 = vmatpush1.bf16.xpose.msra.mxu0 0
        %2264 = vmatprep.subr.bf16.mxu0 0
        %2265 = vmatpush1.bf16.xpose.msra.mxu0 0
        %2266 = vmatprep.subr.bf16.mxu0 0
        %2267 = vmatpush1.bf16.xpose.msra.mxu0 0
        %2268 = vmatprep.subr.bf16.mxu0 0
        %2269 = vmatpush1.bf16.xpose.msra.mxu0 %v2252
        %2270 = vmatprep.subr.bf16.mxu0 0
        %2271 = vmatpush2.bf16.xpose.msra.mxu0 0
        %2272 = vmatprep.subr.bf16.mxu0 0
        %2273 = vmatpush2.bf16.xpose.msra.mxu0 0
        %2274 = vmatprep.subr.bf16.mxu0 0
        %2275 = vmatpush2.bf16.xpose.msra.mxu0 0
        %2276 = vmatprep.subr.bf16.mxu0 0
        %2277 = vmatpush2.bf16.xpose.msra.mxu0 0
        %2278 = vmatprep.subr.bf16.mxu0 0
        %2279 = vmatpush2.bf16.xpose.msra.mxu0 0
        %2280 = vmatprep.subr.bf16.mxu0 0
        %2281 = vmatpush2.bf16.xpose.msra.mxu0 0
        %2282 = vmatprep.subr.bf16.mxu0 0
        %2283 = vmatpush2.bf16.xpose.msra.mxu0 0
        %2284 = vmatprep.subr.bf16.mxu0 0
        %2285 = vmatpush2.bf16.xpose.msra.mxu0 0
        %2286 = vmatprep.mubr.bf16.mxu0 0
        %2287 = vmatmul.mubr.bf16.gmra.mxu0 %v2249
        %v2288 = vpop.f32.mrf.mxu0
        %v2289 = vadd.f32 0.0, %v2288
        %v2290 = vpop.f32.mrf.mxu0
        %v2291 = vpop.f32.mrf.mxu0
        %v2292 = vpop.f32.mrf.mxu0
        %2293 = vdwg.mxu0
        %2295 = vrot.lane.b32.xlu0 %v2013, 64
        %v2296 = vpop.permute.xlu0 %2295
        %2298 = vrot.lane.b32.xlu0 %v2015, 64
        %v2299 = vpop.permute.xlu0 %2298
        %v2301 = vsel %vm2018, %v2296, 0
        %v2304 = vsel %vm2018, %v2299, 0
        %2306 = vmatprep.subr.bf16.mxu0 0
        %2307 = vmatpush1.bf16.xpose.msra.mxu0 0
        %2308 = vmatprep.subr.bf16.mxu0 0
        %2309 = vmatpush1.bf16.xpose.msra.mxu0 0
        %2310 = vmatprep.subr.bf16.mxu0 0
        %2311 = vmatpush1.bf16.xpose.msra.mxu0 0
        %2312 = vmatprep.subr.bf16.mxu0 0
        %2313 = vmatpush1.bf16.xpose.msra.mxu0 0
        %2314 = vmatprep.subr.bf16.mxu0 0
        %2315 = vmatpush1.bf16.xpose.msra.mxu0 0
        %2316 = vmatprep.subr.bf16.mxu0 0
        %2317 = vmatpush1.bf16.xpose.msra.mxu0 0
        %2318 = vmatprep.subr.bf16.mxu0 0
        %2319 = vmatpush1.bf16.xpose.msra.mxu0 0
        %2320 = vmatprep.subr.bf16.mxu0 0
        %2321 = vmatpush1.bf16.xpose.msra.mxu0 %v2304
        %2322 = vmatprep.subr.bf16.mxu0 0
        %2323 = vmatpush2.bf16.xpose.msra.mxu0 0
        %2324 = vmatprep.subr.bf16.mxu0 0
        %2325 = vmatpush2.bf16.xpose.msra.mxu0 0
        %2326 = vmatprep.subr.bf16.mxu0 0
        %2327 = vmatpush2.bf16.xpose.msra.mxu0 0
        %2328 = vmatprep.subr.bf16.mxu0 0
        %2329 = vmatpush2.bf16.xpose.msra.mxu0 0
        %2330 = vmatprep.subr.bf16.mxu0 0
        %2331 = vmatpush2.bf16.xpose.msra.mxu0 0
        %2332 = vmatprep.subr.bf16.mxu0 0
        %2333 = vmatpush2.bf16.xpose.msra.mxu0 0
        %2334 = vmatprep.subr.bf16.mxu0 0
        %2335 = vmatpush2.bf16.xpose.msra.mxu0 0
        %2336 = vmatprep.subr.bf16.mxu0 0
        %2337 = vmatpush2.bf16.xpose.msra.mxu0 0
        %2338 = vmatprep.mubr.bf16.mxu0 0
        %2339 = vmatmul.mubr.bf16.gmra.mxu0 %v2301
        %v2340 = vpop.f32.mrf.mxu0
        %v2341 = vadd.f32 0.0, %v2340
        %v2342 = vpop.f32.mrf.mxu0
        %v2343 = vpop.f32.mrf.mxu0
        %v2344 = vpop.f32.mrf.mxu0
        %2345 = vdwg.mxu0
        %v2346 = vmul.f32 %v2289, 0.125
        %v2347 = vmul.f32 %v2341, 0.125
        %v2348 = vadd.f32 %v2346, %v2011
        %v2349 = vadd.f32 %v2347, %v2011
        %v2350 = vsel %vm2115, %v2348, -inf
        %2351 = vmax.xlane.f32.xlu0 %v2350
        %v2352 = vpop.xlane.xlu0 %2351
        %v2353 = vsel %vm2115, %v2349, -inf
        %2354 = vmax.xlane.f32.xlu0 %v2353
        %v2355 = vpop.xlane.xlu0 %2354
        %v2356 = vsub.f32 %v2348, %v2352
        %v2357 = vsub.f32 %v2349, %v2355
        %v2358 = vmul.f32 %v2356, 1.442695
        %v2359 = vpow.pop %v2358
        %v2360 = vmul.f32 %v2357, 1.442695
        %v2361 = vpow.pop %v2360
        %v2362 = vsel %vm2115, %v2359, 0.0
        %2363 = vadd.xlane.f32.xlu0 %v2362
        %v2364 = vpop.xlane.xlu0 %2363
        %v2365 = vsel %vm2115, %v2361, 0.0
        %2366 = vadd.xlane.f32.xlu0 %v2365
        %v2367 = vpop.xlane.xlu0 %2366
        %v2368 = vrcp.pop %v2364
        %v2369 = vrcp.pop %v2367
        %v2370 = vmul.f32 %v2359, %v2368
        %v2371 = vmul.f32 %v2361, %v2369
        %v2372 = vpack.c.bf16 %v2370, %v2370
        %v2373 = vpack.c.bf16 %v2371, %v2371
        %2375 = vrot.lane.b32.xlu0 %v2016, 64
        %v2376 = vpop.permute.xlu0 %2375
        %v2378 = vsel %vm2115, %v2372, 0
        %v2381 = vsel %vm2143, %v2376, 0
        %2383 = vmatprep.subr.bf16.mxu0 0
        %2384 = vmatpush1.bf16.msra.mxu0 0
        %2385 = vmatprep.subr.bf16.mxu0 0
        %2386 = vmatpush1.bf16.msra.mxu0 0
        %2387 = vmatprep.subr.bf16.mxu0 0
        %2388 = vmatpush1.bf16.msra.mxu0 0
        %2389 = vmatprep.subr.bf16.mxu0 0
        %2390 = vmatpush1.bf16.msra.mxu0 0
        %2391 = vmatprep.subr.bf16.mxu0 0
        %2392 = vmatpush1.bf16.msra.mxu0 0
        %2393 = vmatprep.subr.bf16.mxu0 0
        %2394 = vmatpush1.bf16.msra.mxu0 0
        %2395 = vmatprep.subr.bf16.mxu0 0
        %2396 = vmatpush1.bf16.msra.mxu0 0
        %2397 = vmatprep.subr.bf16.mxu0 0
        %2398 = vmatpush1.bf16.msra.mxu0 %v2381
        %2399 = vmatprep.subr.bf16.mxu0 0
        %2400 = vmatpush2.bf16.msra.mxu0 0
        %2401 = vmatprep.subr.bf16.mxu0 0
        %2402 = vmatpush2.bf16.msra.mxu0 0
        %2403 = vmatprep.subr.bf16.mxu0 0
        %2404 = vmatpush2.bf16.msra.mxu0 0
        %2405 = vmatprep.subr.bf16.mxu0 0
        %2406 = vmatpush2.bf16.msra.mxu0 0
        %2407 = vmatprep.subr.bf16.mxu0 0
        %2408 = vmatpush2.bf16.msra.mxu0 0
        %2409 = vmatprep.subr.bf16.mxu0 0
        %2410 = vmatpush2.bf16.msra.mxu0 0
        %2411 = vmatprep.subr.bf16.mxu0 0
        %2412 = vmatpush2.bf16.msra.mxu0 0
        %2413 = vmatprep.subr.bf16.mxu0 0
        %2414 = vmatpush2.bf16.msra.mxu0 0
        %2415 = vmatprep.mubr.bf16.mxu0 0
        %2416 = vmatmul.mubr.bf16.gmra.mxu0 %v2378
        %v2417 = vpop.f32.mrf.mxu0
        %v2418 = vadd.f32 0.0, %v2417
        %v2419 = vpop.f32.mrf.mxu0
        %v2420 = vpop.f32.mrf.mxu0
        %v2421 = vpop.f32.mrf.mxu0
        %2422 = vdwg.mxu0
        %2424 = vrot.lane.b32.xlu0 %v2017, 64
        %v2425 = vpop.permute.xlu0 %2424
        %v2427 = vsel %vm2115, %v2373, 0
        %v2430 = vsel %vm2143, %v2425, 0
        %2432 = vmatprep.subr.bf16.mxu0 0
        %2433 = vmatpush1.bf16.msra.mxu0 0
        %2434 = vmatprep.subr.bf16.mxu0 0
        %2435 = vmatpush1.bf16.msra.mxu0 0
        %2436 = vmatprep.subr.bf16.mxu0 0
        %2437 = vmatpush1.bf16.msra.mxu0 0
        %2438 = vmatprep.subr.bf16.mxu0 0
        %2439 = vmatpush1.bf16.msra.mxu0 0
        %2440 = vmatprep.subr.bf16.mxu0 0
        %2441 = vmatpush1.bf16.msra.mxu0 0
        %2442 = vmatprep.subr.bf16.mxu0 0
        %2443 = vmatpush1.bf16.msra.mxu0 0
        %2444 = vmatprep.subr.bf16.mxu0 0
        %2445 = vmatpush1.bf16.msra.mxu0 0
        %2446 = vmatprep.subr.bf16.mxu0 0
        %2447 = vmatpush1.bf16.msra.mxu0 %v2430
        %2448 = vmatprep.subr.bf16.mxu0 0
        %2449 = vmatpush2.bf16.msra.mxu0 0
        %2450 = vmatprep.subr.bf16.mxu0 0
        %2451 = vmatpush2.bf16.msra.mxu0 0
        %2452 = vmatprep.subr.bf16.mxu0 0
        %2453 = vmatpush2.bf16.msra.mxu0 0
        %2454 = vmatprep.subr.bf16.mxu0 0
        %2455 = vmatpush2.bf16.msra.mxu0 0
        %2456 = vmatprep.subr.bf16.mxu0 0
        %2457 = vmatpush2.bf16.msra.mxu0 0
        %2458 = vmatprep.subr.bf16.mxu0 0
        %2459 = vmatpush2.bf16.msra.mxu0 0
        %2460 = vmatprep.subr.bf16.mxu0 0
        %2461 = vmatpush2.bf16.msra.mxu0 0
        %2462 = vmatprep.subr.bf16.mxu0 0
        %2463 = vmatpush2.bf16.msra.mxu0 0
        %2464 = vmatprep.mubr.bf16.mxu0 0
        %2465 = vmatmul.mubr.bf16.gmra.mxu0 %v2427
        %v2466 = vpop.f32.mrf.mxu0
        %v2467 = vadd.f32 0.0, %v2466
        %v2468 = vpop.f32.mrf.mxu0
        %v2469 = vpop.f32.mrf.mxu0
        %v2470 = vpop.f32.mrf.mxu0
        %2471 = vdwg.mxu0
        %v2472 = vpack.c.bf16 %v2467, %v2418
        %s2473 = scalar_lea.vmem %s974, 64 [#allocation9]
        %v2474 = vld [vmem:[%s2473] sm:$0xff]
        %v2475 = vld [vmem:[%s2473 + $0x8] sm:$0xff]
        %v2476 = vld [vmem:[%s2473 + $0x10] sm:$0xff]
        %v2477 = vld [vmem:[%s2473 + $0x18] sm:$0xff]
        %v2478 = vld [vmem:[%s2473 + $0x20] sm:$0xff]
        %v2479 = vld [vmem:[%s2473 + $0x28] sm:$0xff]
        %v2480 = vld [vmem:[%s2473 + $0x30] sm:$0xff]
        %v2481 = vld [vmem:[%s2473 + $0x38] sm:$0xff]
        %v2490 = vunpack.c.l.b16 %v2474
        %v2491 = vunpack.c.h.b16 %v2474
        %v2492 = vunpack.c.l.b16 %v2475
        %v2493 = vunpack.c.h.b16 %v2475
        %v2494 = vunpack.c.l.b16 %v2476
        %v2495 = vunpack.c.h.b16 %v2476
        %v2496 = vunpack.c.l.b16 %v2477
        %v2497 = vunpack.c.h.b16 %v2477
        %v2498 = vunpack.c.l.b16 %v2478
        %v2499 = vunpack.c.h.b16 %v2478
        %v2500 = vunpack.c.l.b16 %v2479
        %v2501 = vunpack.c.h.b16 %v2479
        %v2502 = vunpack.c.l.b16 %v2480
        %v2503 = vunpack.c.h.b16 %v2480
        %v2504 = vunpack.c.l.b16 %v2481
        %v2505 = vunpack.c.h.b16 %v2481
        %v2506 = vpack.c.b16 %v2492, %v2490
        %v2507 = vpack.c.b16 %v2493, %v2491
        %v2508 = vpack.c.b16 %v2496, %v2494
        %v2509 = vpack.c.b16 %v2497, %v2495
        %v2510 = vpack.c.b16 %v2500, %v2498
        %v2511 = vpack.c.b16 %v2501, %v2499
        %v2512 = vpack.c.b16 %v2504, %v2502
        %v2513 = vpack.c.b16 %v2505, %v2503
        %v2523 = vsel %vm2018, %v2472, 0
        %2525 = vmatprep.subr.bf16.mxu0 0
        %2526 = vmatpush1.bf16.msra.mxu0 0
        %2527 = vmatprep.subr.bf16.mxu0 0
        %2528 = vmatpush1.bf16.msra.mxu0 0
        %2529 = vmatprep.subr.bf16.mxu0 0
        %2530 = vmatpush1.bf16.msra.mxu0 0
        %2531 = vmatprep.subr.bf16.mxu0 0
        %2532 = vmatpush1.bf16.msra.mxu0 0
        %2533 = vmatprep.subr.bf16.mxu0 %v2513
        %2534 = vmatpush1.bf16.msra.mxu0 %v2512
        %2535 = vmatprep.subr.bf16.mxu0 %v2511
        %2536 = vmatpush1.bf16.msra.mxu0 %v2510
        %2537 = vmatprep.subr.bf16.mxu0 %v2509
        %2538 = vmatpush1.bf16.msra.mxu0 %v2508
        %2539 = vmatprep.subr.bf16.mxu0 %v2507
        %2540 = vmatpush1.bf16.msra.mxu0 %v2506
        %2541 = vmatprep.subr.bf16.mxu0 0
        %2542 = vmatpush2.bf16.msra.mxu0 0
        %2543 = vmatprep.subr.bf16.mxu0 0
        %2544 = vmatpush2.bf16.msra.mxu0 0
        %2545 = vmatprep.subr.bf16.mxu0 0
        %2546 = vmatpush2.bf16.msra.mxu0 0
        %2547 = vmatprep.subr.bf16.mxu0 0
        %2548 = vmatpush2.bf16.msra.mxu0 0
        %2549 = vmatprep.subr.bf16.mxu0 0
        %2550 = vmatpush2.bf16.msra.mxu0 0
        %2551 = vmatprep.subr.bf16.mxu0 0
        %2552 = vmatpush2.bf16.msra.mxu0 0
        %2553 = vmatprep.subr.bf16.mxu0 0
        %2554 = vmatpush2.bf16.msra.mxu0 0
        %2555 = vmatprep.subr.bf16.mxu0 0
        %2556 = vmatpush2.bf16.msra.mxu0 0
        %2557 = vmatprep.mubr.bf16.mxu0 0
        %2558 = vmatmul.mubr.bf16.gmra.mxu0 %v2523
        %v2559 = vpop.f32.mrf.mxu0
        %v2560 = vadd.f32 0.0, %v2559
        %v2561 = vpop.f32.mrf.mxu0
        %v2562 = vadd.f32 0.0, %v2561
        %v2563 = vpop.f32.mrf.mxu0
        %v2564 = vadd.f32 0.0, %v2563
        %v2565 = vpop.f32.mrf.mxu0
        %v2566 = vadd.f32 0.0, %v2565
        %2567 = vdwg.mxu0
        %v2576 = vunpack.c.l.b16 %v2234
        %v2577 = vunpack.c.h.b16 %v2234
        %v2578 = vunpack.c.l.b16 %v2235
        %v2579 = vunpack.c.h.b16 %v2235
        %v2580 = vunpack.c.l.b16 %v2236
        %v2581 = vunpack.c.h.b16 %v2236
        %v2582 = vunpack.c.l.b16 %v2237
        %v2583 = vunpack.c.h.b16 %v2237
        %v2584 = vunpack.c.l.b16 %v2238
        %v2585 = vunpack.c.h.b16 %v2238
        %v2586 = vunpack.c.l.b16 %v2239
        %v2587 = vunpack.c.h.b16 %v2239
        %v2588 = vunpack.c.l.b16 %v2240
        %v2589 = vunpack.c.h.b16 %v2240
        %v2590 = vunpack.c.l.b16 %v2241
        %v2591 = vunpack.c.h.b16 %v2241
        %v2592 = vpack.c.b16 %v2578, %v2576
        %v2593 = vpack.c.b16 %v2579, %v2577
        %v2594 = vpack.c.b16 %v2582, %v2580
        %v2595 = vpack.c.b16 %v2583, %v2581
        %v2596 = vpack.c.b16 %v2586, %v2584
        %v2597 = vpack.c.b16 %v2587, %v2585
        %v2598 = vpack.c.b16 %v2590, %v2588
        %v2599 = vpack.c.b16 %v2591, %v2589
        %v2609 = vsel %vm2018, %v2233, 0
        %2611 = vmatprep.subr.bf16.mxu0 0
        %2612 = vmatpush1.bf16.msra.mxu0 0
        %2613 = vmatprep.subr.bf16.mxu0 0
        %2614 = vmatpush1.bf16.msra.mxu0 0
        %2615 = vmatprep.subr.bf16.mxu0 0
        %2616 = vmatpush1.bf16.msra.mxu0 0
        %2617 = vmatprep.subr.bf16.mxu0 0
        %2618 = vmatpush1.bf16.msra.mxu0 0
        %2619 = vmatprep.subr.bf16.mxu0 %v2599
        %2620 = vmatpush1.bf16.msra.mxu0 %v2598
        %2621 = vmatprep.subr.bf16.mxu0 %v2597
        %2622 = vmatpush1.bf16.msra.mxu0 %v2596
        %2623 = vmatprep.subr.bf16.mxu0 %v2595
        %2624 = vmatpush1.bf16.msra.mxu0 %v2594
        %2625 = vmatprep.subr.bf16.mxu0 %v2593
        %2626 = vmatpush1.bf16.msra.mxu0 %v2592
        %2627 = vmatprep.subr.bf16.mxu0 0
        %2628 = vmatpush2.bf16.msra.mxu0 0
        %2629 = vmatprep.subr.bf16.mxu0 0
        %2630 = vmatpush2.bf16.msra.mxu0 0
        %2631 = vmatprep.subr.bf16.mxu0 0
        %2632 = vmatpush2.bf16.msra.mxu0 0
        %2633 = vmatprep.subr.bf16.mxu0 0
        %2634 = vmatpush2.bf16.msra.mxu0 0
        %2635 = vmatprep.subr.bf16.mxu0 0
        %2636 = vmatpush2.bf16.msra.mxu0 0
        %2637 = vmatprep.subr.bf16.mxu0 0
        %2638 = vmatpush2.bf16.msra.mxu0 0
        %2639 = vmatprep.subr.bf16.mxu0 0
        %2640 = vmatpush2.bf16.msra.mxu0 0
        %2641 = vmatprep.subr.bf16.mxu0 0
        %2642 = vmatpush2.bf16.msra.mxu0 0
        %2643 = vmatprep.mubr.bf16.mxu0 0
        %2644 = vmatmul.mubr.bf16.gmra.mxu0 %v2609
        %v2645 = vpop.f32.mrf.mxu0
        %v2646 = vadd.f32 %v2560, %v2645
        %v2647 = vpop.f32.mrf.mxu0
        %v2648 = vadd.f32 %v2562, %v2647
        %v2649 = vpop.f32.mrf.mxu0
        %v2650 = vadd.f32 %v2564, %v2649
        %v2651 = vpop.f32.mrf.mxu0
        %v2652 = vadd.f32 %v2566, %v2651
        %2653 = vdwg.mxu0
        %v2654 = vpack.c.bf16 %v1916, %v1916
        %v2655 = vpack.c.bf16 %v1920, %v1920
        %v2656 = vpack.c.bf16 %v1959, %v1959
        %v2657 = vpack.c.bf16 %v1963, %v1963
        %v2658 = vpack.c.bf16 %v2002, %v2002
        %v2659 = vpack.c.bf16 %v2006, %v2006
        %v2661 = vsel %vm2018, %v2654, 0
        %v2664 = vsel %vm2018, %v2656, 0
        %2666 = vmatprep.subr.bf16.mxu0 0
        %2667 = vmatpush1.bf16.xpose.msra.mxu0 0
        %2668 = vmatprep.subr.bf16.mxu0 0
        %2669 = vmatpush1.bf16.xpose.msra.mxu0 0
        %2670 = vmatprep.subr.bf16.mxu0 0
        %2671 = vmatpush1.bf16.xpose.msra.mxu0 0
        %2672 = vmatprep.subr.bf16.mxu0 0
        %2673 = vmatpush1.bf16.xpose.msra.mxu0 0
        %2674 = vmatprep.subr.bf16.mxu0 0
        %2675 = vmatpush1.bf16.xpose.msra.mxu0 0
        %2676 = vmatprep.subr.bf16.mxu0 0
        %2677 = vmatpush1.bf16.xpose.msra.mxu0 0
        %2678 = vmatprep.subr.bf16.mxu0 0
        %2679 = vmatpush1.bf16.xpose.msra.mxu0 0
        %2680 = vmatprep.subr.bf16.mxu0 0
        %2681 = vmatpush1.bf16.xpose.msra.mxu0 %v2664
        %2682 = vmatprep.subr.bf16.mxu0 0
        %2683 = vmatpush2.bf16.xpose.msra.mxu0 0
        %2684 = vmatprep.subr.bf16.mxu0 0
        %2685 = vmatpush2.bf16.xpose.msra.mxu0 0
        %2686 = vmatprep.subr.bf16.mxu0 0
        %2687 = vmatpush2.bf16.xpose.msra.mxu0 0
        %2688 = vmatprep.subr.bf16.mxu0 0
        %2689 = vmatpush2.bf16.xpose.msra.mxu0 0
        %2690 = vmatprep.subr.bf16.mxu0 0
        %2691 = vmatpush2.bf16.xpose.msra.mxu0 0
        %2692 = vmatprep.subr.bf16.mxu0 0
        %2693 = vmatpush2.bf16.xpose.msra.mxu0 0
        %2694 = vmatprep.subr.bf16.mxu0 0
        %2695 = vmatpush2.bf16.xpose.msra.mxu0 0
        %2696 = vmatprep.subr.bf16.mxu0 0
        %2697 = vmatpush2.bf16.xpose.msra.mxu0 0
        %2698 = vmatprep.mubr.bf16.mxu0 0
        %2699 = vmatmul.mubr.bf16.gmra.mxu0 %v2661
        %v2700 = vpop.f32.mrf.mxu0
        %v2701 = vadd.f32 0.0, %v2700
        %v2702 = vpop.f32.mrf.mxu0
        %v2703 = vpop.f32.mrf.mxu0
        %v2704 = vpop.f32.mrf.mxu0
        %2705 = vdwg.mxu0
        %v2707 = vsel %vm2018, %v2655, 0
        %v2710 = vsel %vm2018, %v2657, 0
        %2712 = vmatprep.subr.bf16.mxu0 0
        %2713 = vmatpush1.bf16.xpose.msra.mxu0 0
        %2714 = vmatprep.subr.bf16.mxu0 0
        %2715 = vmatpush1.bf16.xpose.msra.mxu0 0
        %2716 = vmatprep.subr.bf16.mxu0 0
        %2717 = vmatpush1.bf16.xpose.msra.mxu0 0
        %2718 = vmatprep.subr.bf16.mxu0 0
        %2719 = vmatpush1.bf16.xpose.msra.mxu0 0
        %2720 = vmatprep.subr.bf16.mxu0 0
        %2721 = vmatpush1.bf16.xpose.msra.mxu0 0
        %2722 = vmatprep.subr.bf16.mxu0 0
        %2723 = vmatpush1.bf16.xpose.msra.mxu0 0
        %2724 = vmatprep.subr.bf16.mxu0 0
        %2725 = vmatpush1.bf16.xpose.msra.mxu0 0
        %2726 = vmatprep.subr.bf16.mxu0 0
        %2727 = vmatpush1.bf16.xpose.msra.mxu0 %v2710
        %2728 = vmatprep.subr.bf16.mxu0 0
        %2729 = vmatpush2.bf16.xpose.msra.mxu0 0
        %2730 = vmatprep.subr.bf16.mxu0 0
        %2731 = vmatpush2.bf16.xpose.msra.mxu0 0
        %2732 = vmatprep.subr.bf16.mxu0 0
        %2733 = vmatpush2.bf16.xpose.msra.mxu0 0
        %2734 = vmatprep.subr.bf16.mxu0 0
        %2735 = vmatpush2.bf16.xpose.msra.mxu0 0
        %2736 = vmatprep.subr.bf16.mxu0 0
        %2737 = vmatpush2.bf16.xpose.msra.mxu0 0
        %2738 = vmatprep.subr.bf16.mxu0 0
        %2739 = vmatpush2.bf16.xpose.msra.mxu0 0
        %2740 = vmatprep.subr.bf16.mxu0 0
        %2741 = vmatpush2.bf16.xpose.msra.mxu0 0
        %2742 = vmatprep.subr.bf16.mxu0 0
        %2743 = vmatpush2.bf16.xpose.msra.mxu0 0
        %2744 = vmatprep.mubr.bf16.mxu0 0
        %2745 = vmatmul.mubr.bf16.gmra.mxu0 %v2707
        %v2746 = vpop.f32.mrf.mxu0
        %v2747 = vadd.f32 0.0, %v2746
        %v2748 = vpop.f32.mrf.mxu0
        %v2749 = vpop.f32.mrf.mxu0
        %v2750 = vpop.f32.mrf.mxu0
        %2751 = vdwg.mxu0
        %v2752 = vmul.f32 %v2701, 0.125
        %v2753 = vmul.f32 %v2747, 0.125
        %v2754 = vadd.f32 %v2752, %v2011
        %v2755 = vadd.f32 %v2753, %v2011
        %v2756 = vsel %vm2115, %v2754, -inf
        %2757 = vmax.xlane.f32.xlu0 %v2756
        %v2758 = vpop.xlane.xlu0 %2757
        %v2759 = vsel %vm2115, %v2755, -inf
        %2760 = vmax.xlane.f32.xlu0 %v2759
        %v2761 = vpop.xlane.xlu0 %2760
        %v2762 = vsub.f32 %v2754, %v2758
        %v2763 = vsub.f32 %v2755, %v2761
        %v2764 = vmul.f32 %v2762, 1.442695
        %v2765 = vpow.pop %v2764
        %v2766 = vmul.f32 %v2763, 1.442695
        %v2767 = vpow.pop %v2766
        %v2768 = vsel %vm2115, %v2765, 0.0
        %2769 = vadd.xlane.f32.xlu0 %v2768
        %v2770 = vpop.xlane.xlu0 %2769
        %v2771 = vsel %vm2115, %v2767, 0.0
        %2772 = vadd.xlane.f32.xlu0 %v2771
        %v2773 = vpop.xlane.xlu0 %2772
        %v2774 = vrcp.pop %v2770
        %v2775 = vrcp.pop %v2773
        %v2776 = vmul.f32 %v2765, %v2774
        %v2777 = vmul.f32 %v2767, %v2775
        %v2778 = vpack.c.bf16 %v2776, %v2776
        %v2779 = vpack.c.bf16 %v2777, %v2777
        %v2781 = vsel %vm2115, %v2778, 0
        %v2784 = vsel %vm2143, %v2658, 0
        %2786 = vmatprep.subr.bf16.mxu0 0
        %2787 = vmatpush1.bf16.msra.mxu0 0
        %2788 = vmatprep.subr.bf16.mxu0 0
        %2789 = vmatpush1.bf16.msra.mxu0 0
        %2790 = vmatprep.subr.bf16.mxu0 0
        %2791 = vmatpush1.bf16.msra.mxu0 0
        %2792 = vmatprep.subr.bf16.mxu0 0
        %2793 = vmatpush1.bf16.msra.mxu0 0
        %2794 = vmatprep.subr.bf16.mxu0 0
        %2795 = vmatpush1.bf16.msra.mxu0 0
        %2796 = vmatprep.subr.bf16.mxu0 0
        %2797 = vmatpush1.bf16.msra.mxu0 0
        %2798 = vmatprep.subr.bf16.mxu0 0
        %2799 = vmatpush1.bf16.msra.mxu0 0
        %2800 = vmatprep.subr.bf16.mxu0 0
        %2801 = vmatpush1.bf16.msra.mxu0 %v2784
        %2802 = vmatprep.subr.bf16.mxu0 0
        %2803 = vmatpush2.bf16.msra.mxu0 0
        %2804 = vmatprep.subr.bf16.mxu0 0
        %2805 = vmatpush2.bf16.msra.mxu0 0
        %2806 = vmatprep.subr.bf16.mxu0 0
        %2807 = vmatpush2.bf16.msra.mxu0 0
        %2808 = vmatprep.subr.bf16.mxu0 0
        %2809 = vmatpush2.bf16.msra.mxu0 0
        %2810 = vmatprep.subr.bf16.mxu0 0
        %2811 = vmatpush2.bf16.msra.mxu0 0
        %2812 = vmatprep.subr.bf16.mxu0 0
        %2813 = vmatpush2.bf16.msra.mxu0 0
        %2814 = vmatprep.subr.bf16.mxu0 0
        %2815 = vmatpush2.bf16.msra.mxu0 0
        %2816 = vmatprep.subr.bf16.mxu0 0
        %2817 = vmatpush2.bf16.msra.mxu0 0
        %2818 = vmatprep.mubr.bf16.mxu0 0
        %2819 = vmatmul.mubr.bf16.gmra.mxu0 %v2781
        %v2820 = vpop.f32.mrf.mxu0
        %v2821 = vadd.f32 0.0, %v2820
        %v2822 = vpop.f32.mrf.mxu0
        %v2823 = vpop.f32.mrf.mxu0
        %v2824 = vpop.f32.mrf.mxu0
        %2825 = vdwg.mxu0
        %v2827 = vsel %vm2115, %v2779, 0
        %v2830 = vsel %vm2143, %v2659, 0
        %2832 = vmatprep.subr.bf16.mxu0 0
        %2833 = vmatpush1.bf16.msra.mxu0 0
        %2834 = vmatprep.subr.bf16.mxu0 0
        %2835 = vmatpush1.bf16.msra.mxu0 0
        %2836 = vmatprep.subr.bf16.mxu0 0
        %2837 = vmatpush1.bf16.msra.mxu0 0
        %2838 = vmatprep.subr.bf16.mxu0 0
        %2839 = vmatpush1.bf16.msra.mxu0 0
        %2840 = vmatprep.subr.bf16.mxu0 0
        %2841 = vmatpush1.bf16.msra.mxu0 0
        %2842 = vmatprep.subr.bf16.mxu0 0
        %2843 = vmatpush1.bf16.msra.mxu0 0
        %2844 = vmatprep.subr.bf16.mxu0 0
        %2845 = vmatpush1.bf16.msra.mxu0 0
        %2846 = vmatprep.subr.bf16.mxu0 0
        %2847 = vmatpush1.bf16.msra.mxu0 %v2830
        %2848 = vmatprep.subr.bf16.mxu0 0
        %2849 = vmatpush2.bf16.msra.mxu0 0
        %2850 = vmatprep.subr.bf16.mxu0 0
        %2851 = vmatpush2.bf16.msra.mxu0 0
        %2852 = vmatprep.subr.bf16.mxu0 0
        %2853 = vmatpush2.bf16.msra.mxu0 0
        %2854 = vmatprep.subr.bf16.mxu0 0
        %2855 = vmatpush2.bf16.msra.mxu0 0
        %2856 = vmatprep.subr.bf16.mxu0 0
        %2857 = vmatpush2.bf16.msra.mxu0 0
        %2858 = vmatprep.subr.bf16.mxu0 0
        %2859 = vmatpush2.bf16.msra.mxu0 0
        %2860 = vmatprep.subr.bf16.mxu0 0
        %2861 = vmatpush2.bf16.msra.mxu0 0
        %2862 = vmatprep.subr.bf16.mxu0 0
        %2863 = vmatpush2.bf16.msra.mxu0 0
        %2864 = vmatprep.mubr.bf16.mxu0 0
        %2865 = vmatmul.mubr.bf16.gmra.mxu0 %v2827
        %v2866 = vpop.f32.mrf.mxu0
        %v2867 = vadd.f32 0.0, %v2866
        %v2868 = vpop.f32.mrf.mxu0
        %v2869 = vpop.f32.mrf.mxu0
        %v2870 = vpop.f32.mrf.mxu0
        %2871 = vdwg.mxu0
        %v2872 = vpack.c.bf16 %v2867, %v2821
        %s2873 = scalar_lea.vmem %s974, 128 [#allocation9]
        %v2874 = vld [vmem:[%s2873] sm:$0xff]
        %v2875 = vld [vmem:[%s2873 + $0x8] sm:$0xff]
        %v2876 = vld [vmem:[%s2873 + $0x10] sm:$0xff]
        %v2877 = vld [vmem:[%s2873 + $0x18] sm:$0xff]
        %v2878 = vld [vmem:[%s2873 + $0x20] sm:$0xff]
        %v2879 = vld [vmem:[%s2873 + $0x28] sm:$0xff]
        %v2880 = vld [vmem:[%s2873 + $0x30] sm:$0xff]
        %v2881 = vld [vmem:[%s2873 + $0x38] sm:$0xff]
        %v2890 = vunpack.c.l.b16 %v2874
        %v2891 = vunpack.c.h.b16 %v2874
        %v2892 = vunpack.c.l.b16 %v2875
        %v2893 = vunpack.c.h.b16 %v2875
        %v2894 = vunpack.c.l.b16 %v2876
        %v2895 = vunpack.c.h.b16 %v2876
        %v2896 = vunpack.c.l.b16 %v2877
        %v2897 = vunpack.c.h.b16 %v2877
        %v2898 = vunpack.c.l.b16 %v2878
        %v2899 = vunpack.c.h.b16 %v2878
        %v2900 = vunpack.c.l.b16 %v2879
        %v2901 = vunpack.c.h.b16 %v2879
        %v2902 = vunpack.c.l.b16 %v2880
        %v2903 = vunpack.c.h.b16 %v2880
        %v2904 = vunpack.c.l.b16 %v2881
        %v2905 = vunpack.c.h.b16 %v2881
        %v2906 = vpack.c.b16 %v2892, %v2890
        %v2907 = vpack.c.b16 %v2893, %v2891
        %v2908 = vpack.c.b16 %v2896, %v2894
        %v2909 = vpack.c.b16 %v2897, %v2895
        %v2910 = vpack.c.b16 %v2900, %v2898
        %v2911 = vpack.c.b16 %v2901, %v2899
        %v2912 = vpack.c.b16 %v2904, %v2902
        %v2913 = vpack.c.b16 %v2905, %v2903
        %v2923 = vsel %vm2018, %v2872, 0
        %2925 = vmatprep.subr.bf16.mxu0 0
        %2926 = vmatpush1.bf16.msra.mxu0 0
        %2927 = vmatprep.subr.bf16.mxu0 0
        %2928 = vmatpush1.bf16.msra.mxu0 0
        %2929 = vmatprep.subr.bf16.mxu0 0
        %2930 = vmatpush1.bf16.msra.mxu0 0
        %2931 = vmatprep.subr.bf16.mxu0 0
        %2932 = vmatpush1.bf16.msra.mxu0 0
        %2933 = vmatprep.subr.bf16.mxu0 %v2913
        %2934 = vmatpush1.bf16.msra.mxu0 %v2912
        %2935 = vmatprep.subr.bf16.mxu0 %v2911
        %2936 = vmatpush1.bf16.msra.mxu0 %v2910
        %2937 = vmatprep.subr.bf16.mxu0 %v2909
        %2938 = vmatpush1.bf16.msra.mxu0 %v2908
        %2939 = vmatprep.subr.bf16.mxu0 %v2907
        %2940 = vmatpush1.bf16.msra.mxu0 %v2906
        %2941 = vmatprep.subr.bf16.mxu0 0
        %2942 = vmatpush2.bf16.msra.mxu0 0
        %2943 = vmatprep.subr.bf16.mxu0 0
        %2944 = vmatpush2.bf16.msra.mxu0 0
        %2945 = vmatprep.subr.bf16.mxu0 0
        %2946 = vmatpush2.bf16.msra.mxu0 0
        %2947 = vmatprep.subr.bf16.mxu0 0
        %2948 = vmatpush2.bf16.msra.mxu0 0
        %2949 = vmatprep.subr.bf16.mxu0 0
        %2950 = vmatpush2.bf16.msra.mxu0 0
        %2951 = vmatprep.subr.bf16.mxu0 0
        %2952 = vmatpush2.bf16.msra.mxu0 0
        %2953 = vmatprep.subr.bf16.mxu0 0
        %2954 = vmatpush2.bf16.msra.mxu0 0
        %2955 = vmatprep.subr.bf16.mxu0 0
        %2956 = vmatpush2.bf16.msra.mxu0 0
        %2957 = vmatprep.mubr.bf16.mxu0 0
        %2958 = vmatmul.mubr.bf16.gmra.mxu0 %v2923
        %v2959 = vpop.f32.mrf.mxu0
        %v2960 = vadd.f32 0.0, %v2959
        %v2961 = vpop.f32.mrf.mxu0
        %v2962 = vadd.f32 0.0, %v2961
        %v2963 = vpop.f32.mrf.mxu0
        %v2964 = vadd.f32 0.0, %v2963
        %v2965 = vpop.f32.mrf.mxu0
        %v2966 = vadd.f32 0.0, %v2965
        %2967 = vdwg.mxu0
        %v2968 = vadd.f32 %v2646, %v2960
        %v2969 = vadd.f32 %v2648, %v2962
        %v2970 = vadd.f32 %v2650, %v2964
        %v2971 = vadd.f32 %v2652, %v2966
        %2973 = vrot.lane.b32.xlu0 %v2654, 64
        %v2974 = vpop.permute.xlu0 %2973
        %2976 = vrot.lane.b32.xlu0 %v2656, 64
        %v2977 = vpop.permute.xlu0 %2976
        %v2979 = vsel %vm2018, %v2974, 0
        %v2982 = vsel %vm2018, %v2977, 0
        %2984 = vmatprep.subr.bf16.mxu0 0
        %2985 = vmatpush1.bf16.xpose.msra.mxu0 0
        %2986 = vmatprep.subr.bf16.mxu0 0
        %2987 = vmatpush1.bf16.xpose.msra.mxu0 0
        %2988 = vmatprep.subr.bf16.mxu0 0
        %2989 = vmatpush1.bf16.xpose.msra.mxu0 0
        %2990 = vmatprep.subr.bf16.mxu0 0
        %2991 = vmatpush1.bf16.xpose.msra.mxu0 0
        %2992 = vmatprep.subr.bf16.mxu0 0
        %2993 = vmatpush1.bf16.xpose.msra.mxu0 0
        %2994 = vmatprep.subr.bf16.mxu0 0
        %2995 = vmatpush1.bf16.xpose.msra.mxu0 0
        %2996 = vmatprep.subr.bf16.mxu0 0
        %2997 = vmatpush1.bf16.xpose.msra.mxu0 0
        %2998 = vmatprep.subr.bf16.mxu0 0
        %2999 = vmatpush1.bf16.xpose.msra.mxu0 %v2982
        %3000 = vmatprep.subr.bf16.mxu0 0
        %3001 = vmatpush2.bf16.xpose.msra.mxu0 0
        %3002 = vmatprep.subr.bf16.mxu0 0
        %3003 = vmatpush2.bf16.xpose.msra.mxu0 0
        %3004 = vmatprep.subr.bf16.mxu0 0
        %3005 = vmatpush2.bf16.xpose.msra.mxu0 0
        %3006 = vmatprep.subr.bf16.mxu0 0
        %3007 = vmatpush2.bf16.xpose.msra.mxu0 0
        %3008 = vmatprep.subr.bf16.mxu0 0
        %3009 = vmatpush2.bf16.xpose.msra.mxu0 0
        %3010 = vmatprep.subr.bf16.mxu0 0
        %3011 = vmatpush2.bf16.xpose.msra.mxu0 0
        %3012 = vmatprep.subr.bf16.mxu0 0
        %3013 = vmatpush2.bf16.xpose.msra.mxu0 0
        %3014 = vmatprep.subr.bf16.mxu0 0
        %3015 = vmatpush2.bf16.xpose.msra.mxu0 0
        %3016 = vmatprep.mubr.bf16.mxu0 0
        %3017 = vmatmul.mubr.bf16.gmra.mxu0 %v2979
        %v3018 = vpop.f32.mrf.mxu0
        %v3019 = vadd.f32 0.0, %v3018
        %v3020 = vpop.f32.mrf.mxu0
        %v3021 = vpop.f32.mrf.mxu0
        %v3022 = vpop.f32.mrf.mxu0
        %3023 = vdwg.mxu0
        %3025 = vrot.lane.b32.xlu0 %v2655, 64
        %v3026 = vpop.permute.xlu0 %3025
        %3028 = vrot.lane.b32.xlu0 %v2657, 64
        %v3029 = vpop.permute.xlu0 %3028
        %v3031 = vsel %vm2018, %v3026, 0
        %v3034 = vsel %vm2018, %v3029, 0
        %3036 = vmatprep.subr.bf16.mxu0 0
        %3037 = vmatpush1.bf16.xpose.msra.mxu0 0
        %3038 = vmatprep.subr.bf16.mxu0 0
        %3039 = vmatpush1.bf16.xpose.msra.mxu0 0
        %3040 = vmatprep.subr.bf16.mxu0 0
        %3041 = vmatpush1.bf16.xpose.msra.mxu0 0
        %3042 = vmatprep.subr.bf16.mxu0 0
        %3043 = vmatpush1.bf16.xpose.msra.mxu0 0
        %3044 = vmatprep.subr.bf16.mxu0 0
        %3045 = vmatpush1.bf16.xpose.msra.mxu0 0
        %3046 = vmatprep.subr.bf16.mxu0 0
        %3047 = vmatpush1.bf16.xpose.msra.mxu0 0
        %3048 = vmatprep.subr.bf16.mxu0 0
        %3049 = vmatpush1.bf16.xpose.msra.mxu0 0
        %3050 = vmatprep.subr.bf16.mxu0 0
        %3051 = vmatpush1.bf16.xpose.msra.mxu0 %v3034
        %3052 = vmatprep.subr.bf16.mxu0 0
        %3053 = vmatpush2.bf16.xpose.msra.mxu0 0
        %3054 = vmatprep.subr.bf16.mxu0 0
        %3055 = vmatpush2.bf16.xpose.msra.mxu0 0
        %3056 = vmatprep.subr.bf16.mxu0 0
        %3057 = vmatpush2.bf16.xpose.msra.mxu0 0
        %3058 = vmatprep.subr.bf16.mxu0 0
        %3059 = vmatpush2.bf16.xpose.msra.mxu0 0
        %3060 = vmatprep.subr.bf16.mxu0 0
        %3061 = vmatpush2.bf16.xpose.msra.mxu0 0
        %3062 = vmatprep.subr.bf16.mxu0 0
        %3063 = vmatpush2.bf16.xpose.msra.mxu0 0
        %3064 = vmatprep.subr.bf16.mxu0 0
        %3065 = vmatpush2.bf16.xpose.msra.mxu0 0
        %3066 = vmatprep.subr.bf16.mxu0 0
        %3067 = vmatpush2.bf16.xpose.msra.mxu0 0
        %3068 = vmatprep.mubr.bf16.mxu0 0
        %3069 = vmatmul.mubr.bf16.gmra.mxu0 %v3031
        %v3070 = vpop.f32.mrf.mxu0
        %v3071 = vadd.f32 0.0, %v3070
        %v3072 = vpop.f32.mrf.mxu0
        %v3073 = vpop.f32.mrf.mxu0
        %v3074 = vpop.f32.mrf.mxu0
        %3075 = vdwg.mxu0
        %v3076 = vmul.f32 %v3019, 0.125
        %v3077 = vmul.f32 %v3071, 0.125
        %v3078 = vadd.f32 %v3076, %v2011
        %v3079 = vadd.f32 %v3077, %v2011
        %v3080 = vsel %vm2115, %v3078, -inf
        %3081 = vmax.xlane.f32.xlu0 %v3080
        %v3082 = vpop.xlane.xlu0 %3081
        %v3083 = vsel %vm2115, %v3079, -inf
        %3084 = vmax.xlane.f32.xlu0 %v3083
        %v3085 = vpop.xlane.xlu0 %3084
        %v3086 = vsub.f32 %v3078, %v3082
        %v3087 = vsub.f32 %v3079, %v3085
        %v3088 = vmul.f32 %v3086, 1.442695
        %v3089 = vpow.pop %v3088
        %v3090 = vmul.f32 %v3087, 1.442695
        %v3091 = vpow.pop %v3090
        %v3092 = vsel %vm2115, %v3089, 0.0
        %3093 = vadd.xlane.f32.xlu0 %v3092
        %v3094 = vpop.xlane.xlu0 %3093
        %v3095 = vsel %vm2115, %v3091, 0.0
        %3096 = vadd.xlane.f32.xlu0 %v3095
        %v3097 = vpop.xlane.xlu0 %3096
        %v3098 = vrcp.pop %v3094
        %v3099 = vrcp.pop %v3097
        %v3100 = vmul.f32 %v3089, %v3098
        %v3101 = vmul.f32 %v3091, %v3099
        %v3102 = vpack.c.bf16 %v3100, %v3100
        %v3103 = vpack.c.bf16 %v3101, %v3101
        %3105 = vrot.lane.b32.xlu0 %v2658, 64
        %v3106 = vpop.permute.xlu0 %3105
        %v3108 = vsel %vm2115, %v3102, 0
        %v3111 = vsel %vm2143, %v3106, 0
        %3113 = vmatprep.subr.bf16.mxu0 0
        %3114 = vmatpush1.bf16.msra.mxu0 0
        %3115 = vmatprep.subr.bf16.mxu0 0
        %3116 = vmatpush1.bf16.msra.mxu0 0
        %3117 = vmatprep.subr.bf16.mxu0 0
        %3118 = vmatpush1.bf16.msra.mxu0 0
        %3119 = vmatprep.subr.bf16.mxu0 0
        %3120 = vmatpush1.bf16.msra.mxu0 0
        %3121 = vmatprep.subr.bf16.mxu0 0
        %3122 = vmatpush1.bf16.msra.mxu0 0
        %3123 = vmatprep.subr.bf16.mxu0 0
        %3124 = vmatpush1.bf16.msra.mxu0 0
        %3125 = vmatprep.subr.bf16.mxu0 0
        %3126 = vmatpush1.bf16.msra.mxu0 0
        %3127 = vmatprep.subr.bf16.mxu0 0
        %3128 = vmatpush1.bf16.msra.mxu0 %v3111
        %3129 = vmatprep.subr.bf16.mxu0 0
        %3130 = vmatpush2.bf16.msra.mxu0 0
        %3131 = vmatprep.subr.bf16.mxu0 0
        %3132 = vmatpush2.bf16.msra.mxu0 0
        %3133 = vmatprep.subr.bf16.mxu0 0
        %3134 = vmatpush2.bf16.msra.mxu0 0
        %3135 = vmatprep.subr.bf16.mxu0 0
        %3136 = vmatpush2.bf16.msra.mxu0 0
        %3137 = vmatprep.subr.bf16.mxu0 0
        %3138 = vmatpush2.bf16.msra.mxu0 0
        %3139 = vmatprep.subr.bf16.mxu0 0
        %3140 = vmatpush2.bf16.msra.mxu0 0
        %3141 = vmatprep.subr.bf16.mxu0 0
        %3142 = vmatpush2.bf16.msra.mxu0 0
        %3143 = vmatprep.subr.bf16.mxu0 0
        %3144 = vmatpush2.bf16.msra.mxu0 0
        %3145 = vmatprep.mubr.bf16.mxu0 0
        %3146 = vmatmul.mubr.bf16.gmra.mxu0 %v3108
        %v3147 = vpop.f32.mrf.mxu0
        %v3148 = vadd.f32 0.0, %v3147
        %v3149 = vpop.f32.mrf.mxu0
        %v3150 = vpop.f32.mrf.mxu0
        %v3151 = vpop.f32.mrf.mxu0
        %3152 = vdwg.mxu0
        %3154 = vrot.lane.b32.xlu0 %v2659, 64
        %v3155 = vpop.permute.xlu0 %3154
        %v3157 = vsel %vm2115, %v3103, 0
        %v3160 = vsel %vm2143, %v3155, 0
        %3162 = vmatprep.subr.bf16.mxu0 0
        %3163 = vmatpush1.bf16.msra.mxu0 0
        %3164 = vmatprep.subr.bf16.mxu0 0
        %3165 = vmatpush1.bf16.msra.mxu0 0
        %3166 = vmatprep.subr.bf16.mxu0 0
        %3167 = vmatpush1.bf16.msra.mxu0 0
        %3168 = vmatprep.subr.bf16.mxu0 0
        %3169 = vmatpush1.bf16.msra.mxu0 0
        %3170 = vmatprep.subr.bf16.mxu0 0
        %3171 = vmatpush1.bf16.msra.mxu0 0
        %3172 = vmatprep.subr.bf16.mxu0 0
        %3173 = vmatpush1.bf16.msra.mxu0 0
        %3174 = vmatprep.subr.bf16.mxu0 0
        %3175 = vmatpush1.bf16.msra.mxu0 0
        %3176 = vmatprep.subr.bf16.mxu0 0
        %3177 = vmatpush1.bf16.msra.mxu0 %v3160
        %3178 = vmatprep.subr.bf16.mxu0 0
        %3179 = vmatpush2.bf16.msra.mxu0 0
        %3180 = vmatprep.subr.bf16.mxu0 0
        %3181 = vmatpush2.bf16.msra.mxu0 0
        %3182 = vmatprep.subr.bf16.mxu0 0
        %3183 = vmatpush2.bf16.msra.mxu0 0
        %3184 = vmatprep.subr.bf16.mxu0 0
        %3185 = vmatpush2.bf16.msra.mxu0 0
        %3186 = vmatprep.subr.bf16.mxu0 0
        %3187 = vmatpush2.bf16.msra.mxu0 0
        %3188 = vmatprep.subr.bf16.mxu0 0
        %3189 = vmatpush2.bf16.msra.mxu0 0
        %3190 = vmatprep.subr.bf16.mxu0 0
        %3191 = vmatpush2.bf16.msra.mxu0 0
        %3192 = vmatprep.subr.bf16.mxu0 0
        %3193 = vmatpush2.bf16.msra.mxu0 0
        %3194 = vmatprep.mubr.bf16.mxu0 0
        %3195 = vmatmul.mubr.bf16.gmra.mxu0 %v3157
        %v3196 = vpop.f32.mrf.mxu0
        %v3197 = vadd.f32 0.0, %v3196
        %v3198 = vpop.f32.mrf.mxu0
        %v3199 = vpop.f32.mrf.mxu0
        %v3200 = vpop.f32.mrf.mxu0
        %3201 = vdwg.mxu0
        %v3202 = vpack.c.bf16 %v3197, %v3148
        %s3203 = scalar_lea.vmem %s974, 192 [#allocation9]
        %v3204 = vld [vmem:[%s3203] sm:$0xff]
        %v3205 = vld [vmem:[%s3203 + $0x8] sm:$0xff]
        %v3206 = vld [vmem:[%s3203 + $0x10] sm:$0xff]
        %v3207 = vld [vmem:[%s3203 + $0x18] sm:$0xff]
        %v3208 = vld [vmem:[%s3203 + $0x20] sm:$0xff]
        %v3209 = vld [vmem:[%s3203 + $0x28] sm:$0xff]
        %v3210 = vld [vmem:[%s3203 + $0x30] sm:$0xff]
        %v3211 = vld [vmem:[%s3203 + $0x38] sm:$0xff]
        %v3220 = vunpack.c.l.b16 %v3204
        %v3221 = vunpack.c.h.b16 %v3204
        %v3222 = vunpack.c.l.b16 %v3205
        %v3223 = vunpack.c.h.b16 %v3205
        %v3224 = vunpack.c.l.b16 %v3206
        %v3225 = vunpack.c.h.b16 %v3206
        %v3226 = vunpack.c.l.b16 %v3207
        %v3227 = vunpack.c.h.b16 %v3207
        %v3228 = vunpack.c.l.b16 %v3208
        %v3229 = vunpack.c.h.b16 %v3208
        %v3230 = vunpack.c.l.b16 %v3209
        %v3231 = vunpack.c.h.b16 %v3209
        %v3232 = vunpack.c.l.b16 %v3210
        %v3233 = vunpack.c.h.b16 %v3210
        %v3234 = vunpack.c.l.b16 %v3211
        %v3235 = vunpack.c.h.b16 %v3211
        %v3236 = vpack.c.b16 %v3222, %v3220
        %v3237 = vpack.c.b16 %v3223, %v3221
        %v3238 = vpack.c.b16 %v3226, %v3224
        %v3239 = vpack.c.b16 %v3227, %v3225
        %v3240 = vpack.c.b16 %v3230, %v3228
        %v3241 = vpack.c.b16 %v3231, %v3229
        %v3242 = vpack.c.b16 %v3234, %v3232
        %v3243 = vpack.c.b16 %v3235, %v3233
        %v3253 = vsel %vm2018, %v3202, 0
        %3255 = vmatprep.subr.bf16.mxu0 0
        %3256 = vmatpush1.bf16.msra.mxu0 0
        %3257 = vmatprep.subr.bf16.mxu0 0
        %3258 = vmatpush1.bf16.msra.mxu0 0
        %3259 = vmatprep.subr.bf16.mxu0 0
        %3260 = vmatpush1.bf16.msra.mxu0 0
        %3261 = vmatprep.subr.bf16.mxu0 0
        %3262 = vmatpush1.bf16.msra.mxu0 0
        %3263 = vmatprep.subr.bf16.mxu0 %v3243
        %3264 = vmatpush1.bf16.msra.mxu0 %v3242
        %3265 = vmatprep.subr.bf16.mxu0 %v3241
        %3266 = vmatpush1.bf16.msra.mxu0 %v3240
        %3267 = vmatprep.subr.bf16.mxu0 %v3239
        %3268 = vmatpush1.bf16.msra.mxu0 %v3238
        %3269 = vmatprep.subr.bf16.mxu0 %v3237
        %3270 = vmatpush1.bf16.msra.mxu0 %v3236
        %3271 = vmatprep.subr.bf16.mxu0 0
        %3272 = vmatpush2.bf16.msra.mxu0 0
        %3273 = vmatprep.subr.bf16.mxu0 0
        %3274 = vmatpush2.bf16.msra.mxu0 0
        %3275 = vmatprep.subr.bf16.mxu0 0
        %3276 = vmatpush2.bf16.msra.mxu0 0
        %3277 = vmatprep.subr.bf16.mxu0 0
        %3278 = vmatpush2.bf16.msra.mxu0 0
        %3279 = vmatprep.subr.bf16.mxu0 0
        %3280 = vmatpush2.bf16.msra.mxu0 0
        %3281 = vmatprep.subr.bf16.mxu0 0
        %3282 = vmatpush2.bf16.msra.mxu0 0
        %3283 = vmatprep.subr.bf16.mxu0 0
        %3284 = vmatpush2.bf16.msra.mxu0 0
        %3285 = vmatprep.subr.bf16.mxu0 0
        %3286 = vmatpush2.bf16.msra.mxu0 0
        %3287 = vmatprep.mubr.bf16.mxu0 0
        %3288 = vmatmul.mubr.bf16.gmra.mxu0 %v3253
        %v3289 = vpop.f32.mrf.mxu0
        %v3290 = vadd.f32 0.0, %v3289
        %v3291 = vpop.f32.mrf.mxu0
        %v3292 = vadd.f32 0.0, %v3291
        %v3293 = vpop.f32.mrf.mxu0
        %v3294 = vadd.f32 0.0, %v3293
        %v3295 = vpop.f32.mrf.mxu0
        %v3296 = vadd.f32 0.0, %v3295
        %3297 = vdwg.mxu0
        %v3298 = vadd.f32 %v2968, %v3290
        %v3299 = vadd.f32 %v2969, %v3292
        %v3300 = vadd.f32 %v2970, %v3294
        %v3301 = vadd.f32 %v2971, %v3296
        %v3302 = vld [vmem:[%s1170] sm:$0x3]
        %v3304 = vlaneseq
        %v3305 = vshrl.u32 %v3304, 7
        %v3306 = vsub.s32 0, %v3305
        %v3307 = vrot.slane %v3302, %v3306
        %v3308 = vlaneseq
        %v3309 = vshrl.u32 %v3308, 7
        %v3310 = vsub.s32 1, %v3309
        %v3311 = vrot.slane %v3302, %v3310
        %v3314 = vadd.f32 %v3298, %v3307
        %v3315 = vadd.f32 %v3299, %v3311
        %v3316 = vadd.f32 %v3300, %v3307
        %v3317 = vadd.f32 %v3301, %v3311
        %v3318 = vadd.f32 %v1200, %v3314
        %v3319 = vadd.f32 %v1201, %v3315
        %v3320 = vadd.f32 %v1202, %v3316
        %v3321 = vadd.f32 %v1203, %v3317
        %v3322 = vld [vmem:[%s983] sm:$0x3]
        %v3323 = vld [vmem:[%s992] sm:$0x3]
        %v3324 = vadd.f32 %v3318, %v3319
        %3325 = vadd.xlane.f32.xlu0 %v3324
        %v3326 = vpop.xlane.xlu0 %3325
        %v3327 = vadd.f32 %v3320, %v3321
        %3328 = vadd.xlane.f32.xlu0 %v3327
        %v3329 = vpop.xlane.xlu0 %3328
        %v3330 = vmul.f32 %v3326, %v1212
        %v3331 = vmul.f32 %v3329, %v1212
        %v3332 = vsub.f32 %v3318, %v3330
        %v3333 = vsub.f32 %v3319, %v3330
        %v3334 = vsub.f32 %v3320, %v3331
        %v3335 = vsub.f32 %v3321, %v3331
        %v3336 = vmul.f32 %v3332, %v3332
        %v3337 = vmul.f32 %v3333, %v3333
        %v3338 = vmul.f32 %v3334, %v3334
        %v3339 = vmul.f32 %v3335, %v3335
        %v3340 = vadd.f32 %v3336, %v3337
        %3341 = vadd.xlane.f32.xlu0 %v3340
        %v3342 = vpop.xlane.xlu0 %3341
        %v3343 = vadd.f32 %v3338, %v3339
        %3344 = vadd.xlane.f32.xlu0 %v3343
        %v3345 = vpop.xlane.xlu0 %3344
        %v3346 = vmul.f32 %v3342, %v1212
        %v3347 = vmul.f32 %v3345, %v1212
        %v3348 = vadd.f32 %v3346, 1e-06
        %v3349 = vadd.f32 %v3347, 1e-06
        %v3350 = vrsqrt.pop %v3348
        %v3351 = vrsqrt.pop %v3349
        %v3352 = vmul.f32 %v3332, %v3350
        %v3353 = vmul.f32 %v3333, %v3350
        %v3354 = vmul.f32 %v3334, %v3351
        %v3355 = vmul.f32 %v3335, %v3351
        %v3357 = vlaneseq
        %v3358 = vshrl.u32 %v3357, 7
        %v3359 = vsub.s32 0, %v3358
        %v3360 = vrot.slane %v3322, %v3359
        %v3361 = vlaneseq
        %v3362 = vshrl.u32 %v3361, 7
        %v3363 = vsub.s32 1, %v3362
        %v3364 = vrot.slane %v3322, %v3363
        %v3367 = vmul.f32 %v3352, %v3360
        %v3368 = vmul.f32 %v3353, %v3364
        %v3369 = vmul.f32 %v3354, %v3360
        %v3370 = vmul.f32 %v3355, %v3364
        %v3372 = vlaneseq
        %v3373 = vshrl.u32 %v3372, 7
        %v3374 = vsub.s32 0, %v3373
        %v3375 = vrot.slane %v3323, %v3374
        %v3376 = vlaneseq
        %v3377 = vshrl.u32 %v3376, 7
        %v3378 = vsub.s32 1, %v3377
        %v3379 = vrot.slane %v3323, %v3378
        %v3382 = vadd.f32 %v3367, %v3375
        %v3383 = vadd.f32 %v3368, %v3379
        %v3384 = vadd.f32 %v3369, %v3375
        %v3385 = vadd.f32 %v3370, %v3379
        %v3386 = vpack.c.bf16 %v3384, %v3382
        %v3387 = vpack.c.bf16 %v3385, %v3383
        %v3388 = vld [vmem:[%s1175] sm:$0xff]
        %v3389 = vld [vmem:[%s1175 + $0x8] sm:$0xff]
        %v3390 = vld [vmem:[%s1175 + $0x10] sm:$0xff]
        %v3391 = vld [vmem:[%s1175 + $0x18] sm:$0xff]
        %v3392 = vld [vmem:[%s1175 + $0x20] sm:$0xff]
        %v3393 = vld [vmem:[%s1175 + $0x28] sm:$0xff]
        %v3394 = vld [vmem:[%s1175 + $0x30] sm:$0xff]
        %v3395 = vld [vmem:[%s1175 + $0x38] sm:$0xff]
        %v3396 = vld [vmem:[%s1175 + $0x40] sm:$0xff]
        %v3397 = vld [vmem:[%s1175 + $0x48] sm:$0xff]
        %v3398 = vld [vmem:[%s1175 + $0x50] sm:$0xff]
        %v3399 = vld [vmem:[%s1175 + $0x58] sm:$0xff]
        %v3400 = vld [vmem:[%s1175 + $0x60] sm:$0xff]
        %v3401 = vld [vmem:[%s1175 + $0x68] sm:$0xff]
        %v3402 = vld [vmem:[%s1175 + $0x70] sm:$0xff]
        %v3403 = vld [vmem:[%s1175 + $0x78] sm:$0xff]
        %v3404 = vld [vmem:[%s1175 + $0x80] sm:$0xff]
        %v3405 = vld [vmem:[%s1175 + $0x88] sm:$0xff]
        %v3406 = vld [vmem:[%s1175 + $0x90] sm:$0xff]
        %v3407 = vld [vmem:[%s1175 + $0x98] sm:$0xff]
        %v3408 = vld [vmem:[%s1175 + $0xa0] sm:$0xff]
        %v3409 = vld [vmem:[%s1175 + $0xa8] sm:$0xff]
        %v3410 = vld [vmem:[%s1175 + $0xb0] sm:$0xff]
        %v3411 = vld [vmem:[%s1175 + $0xb8] sm:$0xff]
        %v3412 = vld [vmem:[%s1175 + $0xc0] sm:$0xff]
        %v3413 = vld [vmem:[%s1175 + $0xc8] sm:$0xff]
        %v3414 = vld [vmem:[%s1175 + $0xd0] sm:$0xff]
        %v3415 = vld [vmem:[%s1175 + $0xd8] sm:$0xff]
        %v3416 = vld [vmem:[%s1175 + $0xe0] sm:$0xff]
        %v3417 = vld [vmem:[%s1175 + $0xe8] sm:$0xff]
        %v3418 = vld [vmem:[%s1175 + $0xf0] sm:$0xff]
        %v3419 = vld [vmem:[%s1175 + $0xf8] sm:$0xff]
        %v3420 = vld [vmem:[%s1175 + $0x100] sm:$0xff]
        %v3421 = vld [vmem:[%s1175 + $0x108] sm:$0xff]
        %v3422 = vld [vmem:[%s1175 + $0x110] sm:$0xff]
        %v3423 = vld [vmem:[%s1175 + $0x118] sm:$0xff]
        %v3424 = vld [vmem:[%s1175 + $0x120] sm:$0xff]
        %v3425 = vld [vmem:[%s1175 + $0x128] sm:$0xff]
        %v3426 = vld [vmem:[%s1175 + $0x130] sm:$0xff]
        %v3427 = vld [vmem:[%s1175 + $0x138] sm:$0xff]
        %v3428 = vld [vmem:[%s1175 + $0x140] sm:$0xff]
        %v3429 = vld [vmem:[%s1175 + $0x148] sm:$0xff]
        %v3430 = vld [vmem:[%s1175 + $0x150] sm:$0xff]
        %v3431 = vld [vmem:[%s1175 + $0x158] sm:$0xff]
        %v3432 = vld [vmem:[%s1175 + $0x160] sm:$0xff]
        %v3433 = vld [vmem:[%s1175 + $0x168] sm:$0xff]
        %v3434 = vld [vmem:[%s1175 + $0x170] sm:$0xff]
        %v3435 = vld [vmem:[%s1175 + $0x178] sm:$0xff]
        %v3436 = vld [vmem:[%s1175 + $0x180] sm:$0xff]
        %v3437 = vld [vmem:[%s1175 + $0x188] sm:$0xff]
        %v3438 = vld [vmem:[%s1175 + $0x190] sm:$0xff]
        %v3439 = vld [vmem:[%s1175 + $0x198] sm:$0xff]
        %v3440 = vld [vmem:[%s1175 + $0x1a0] sm:$0xff]
        %v3441 = vld [vmem:[%s1175 + $0x1a8] sm:$0xff]
        %v3442 = vld [vmem:[%s1175 + $0x1b0] sm:$0xff]
        %v3443 = vld [vmem:[%s1175 + $0x1b8] sm:$0xff]
        %v3444 = vld [vmem:[%s1175 + $0x1c0] sm:$0xff]
        %v3445 = vld [vmem:[%s1175 + $0x1c8] sm:$0xff]
        %v3446 = vld [vmem:[%s1175 + $0x1d0] sm:$0xff]
        %v3447 = vld [vmem:[%s1175 + $0x1d8] sm:$0xff]
        %v3448 = vld [vmem:[%s1175 + $0x1e0] sm:$0xff]
        %v3449 = vld [vmem:[%s1175 + $0x1e8] sm:$0xff]
        %v3450 = vld [vmem:[%s1175 + $0x1f0] sm:$0xff]
        %v3451 = vld [vmem:[%s1175 + $0x1f8] sm:$0xff]
        %v3452 = vld [vmem:[%s1175 + $0x200] sm:$0xff]
        %v3453 = vld [vmem:[%s1175 + $0x208] sm:$0xff]
        %v3454 = vld [vmem:[%s1175 + $0x210] sm:$0xff]
        %v3455 = vld [vmem:[%s1175 + $0x218] sm:$0xff]
        %v3456 = vld [vmem:[%s1175 + $0x220] sm:$0xff]
        %v3457 = vld [vmem:[%s1175 + $0x228] sm:$0xff]
        %v3458 = vld [vmem:[%s1175 + $0x230] sm:$0xff]
        %v3459 = vld [vmem:[%s1175 + $0x238] sm:$0xff]
        %v3460 = vld [vmem:[%s1175 + $0x240] sm:$0xff]
        %v3461 = vld [vmem:[%s1175 + $0x248] sm:$0xff]
        %v3462 = vld [vmem:[%s1175 + $0x250] sm:$0xff]
        %v3463 = vld [vmem:[%s1175 + $0x258] sm:$0xff]
        %v3464 = vld [vmem:[%s1175 + $0x260] sm:$0xff]
        %v3465 = vld [vmem:[%s1175 + $0x268] sm:$0xff]
        %v3466 = vld [vmem:[%s1175 + $0x270] sm:$0xff]
        %v3467 = vld [vmem:[%s1175 + $0x278] sm:$0xff]
        %v3468 = vld [vmem:[%s1175 + $0x280] sm:$0xff]
        %v3469 = vld [vmem:[%s1175 + $0x288] sm:$0xff]
        %v3470 = vld [vmem:[%s1175 + $0x290] sm:$0xff]
        %v3471 = vld [vmem:[%s1175 + $0x298] sm:$0xff]
        %v3472 = vld [vmem:[%s1175 + $0x2a0] sm:$0xff]
        %v3473 = vld [vmem:[%s1175 + $0x2a8] sm:$0xff]
        %v3474 = vld [vmem:[%s1175 + $0x2b0] sm:$0xff]
        %v3475 = vld [vmem:[%s1175 + $0x2b8] sm:$0xff]
        %v3476 = vld [vmem:[%s1175 + $0x2c0] sm:$0xff]
        %v3477 = vld [vmem:[%s1175 + $0x2c8] sm:$0xff]
        %v3478 = vld [vmem:[%s1175 + $0x2d0] sm:$0xff]
        %v3479 = vld [vmem:[%s1175 + $0x2d8] sm:$0xff]
        %v3480 = vld [vmem:[%s1175 + $0x2e0] sm:$0xff]
        %v3481 = vld [vmem:[%s1175 + $0x2e8] sm:$0xff]
        %v3482 = vld [vmem:[%s1175 + $0x2f0] sm:$0xff]
        %v3483 = vld [vmem:[%s1175 + $0x2f8] sm:$0xff]
        %v3484 = vld [vmem:[%s1175 + $0x300] sm:$0xff]
        %v3485 = vld [vmem:[%s1175 + $0x308] sm:$0xff]
        %v3486 = vld [vmem:[%s1175 + $0x310] sm:$0xff]
        %v3487 = vld [vmem:[%s1175 + $0x318] sm:$0xff]
        %v3488 = vld [vmem:[%s1175 + $0x320] sm:$0xff]
        %v3489 = vld [vmem:[%s1175 + $0x328] sm:$0xff]
        %v3490 = vld [vmem:[%s1175 + $0x330] sm:$0xff]
        %v3491 = vld [vmem:[%s1175 + $0x338] sm:$0xff]
        %v3492 = vld [vmem:[%s1175 + $0x340] sm:$0xff]
        %v3493 = vld [vmem:[%s1175 + $0x348] sm:$0xff]
        %v3494 = vld [vmem:[%s1175 + $0x350] sm:$0xff]
        %v3495 = vld [vmem:[%s1175 + $0x358] sm:$0xff]
        %v3496 = vld [vmem:[%s1175 + $0x360] sm:$0xff]
        %v3497 = vld [vmem:[%s1175 + $0x368] sm:$0xff]
        %v3498 = vld [vmem:[%s1175 + $0x370] sm:$0xff]
        %v3499 = vld [vmem:[%s1175 + $0x378] sm:$0xff]
        %v3500 = vld [vmem:[%s1175 + $0x380] sm:$0xff]
        %v3501 = vld [vmem:[%s1175 + $0x388] sm:$0xff]
        %v3502 = vld [vmem:[%s1175 + $0x390] sm:$0xff]
        %v3503 = vld [vmem:[%s1175 + $0x398] sm:$0xff]
        %v3504 = vld [vmem:[%s1175 + $0x3a0] sm:$0xff]
        %v3505 = vld [vmem:[%s1175 + $0x3a8] sm:$0xff]
        %v3506 = vld [vmem:[%s1175 + $0x3b0] sm:$0xff]
        %v3507 = vld [vmem:[%s1175 + $0x3b8] sm:$0xff]
        %v3508 = vld [vmem:[%s1175 + $0x3c0] sm:$0xff]
        %v3509 = vld [vmem:[%s1175 + $0x3c8] sm:$0xff]
        %v3510 = vld [vmem:[%s1175 + $0x3d0] sm:$0xff]
        %v3511 = vld [vmem:[%s1175 + $0x3d8] sm:$0xff]
        %v3512 = vld [vmem:[%s1175 + $0x3e0] sm:$0xff]
        %v3513 = vld [vmem:[%s1175 + $0x3e8] sm:$0xff]
        %v3514 = vld [vmem:[%s1175 + $0x3f0] sm:$0xff]
        %v3515 = vld [vmem:[%s1175 + $0x3f8] sm:$0xff]
        %v3516 = vld [vmem:[%s1179] sm:$0xff]
        %v3518 = vlaneseq
        %v3519 = vshrl.u32 %v3518, 7
        %v3520 = vsub.s32 0, %v3519
        %v3521 = vrot.slane %v3516, %v3520
        %v3522 = vlaneseq
        %v3523 = vshrl.u32 %v3522, 7
        %v3524 = vsub.s32 1, %v3523
        %v3525 = vrot.slane %v3516, %v3524
        %v3526 = vlaneseq
        %v3527 = vshrl.u32 %v3526, 7
        %v3528 = vsub.s32 2, %v3527
        %v3529 = vrot.slane %v3516, %v3528
        %v3530 = vlaneseq
        %v3531 = vshrl.u32 %v3530, 7
        %v3532 = vsub.s32 3, %v3531
        %v3533 = vrot.slane %v3516, %v3532
        %v3534 = vlaneseq
        %v3535 = vshrl.u32 %v3534, 7
        %v3536 = vsub.s32 4, %v3535
        %v3537 = vrot.slane %v3516, %v3536
        %v3538 = vlaneseq
        %v3539 = vshrl.u32 %v3538, 7
        %v3540 = vsub.s32 5, %v3539
        %v3541 = vrot.slane %v3516, %v3540
        %v3542 = vlaneseq
        %v3543 = vshrl.u32 %v3542, 7
        %v3544 = vsub.s32 6, %v3543
        %v3545 = vrot.slane %v3516, %v3544
        %v3546 = vlaneseq
        %v3547 = vshrl.u32 %v3546, 7
        %v3548 = vsub.s32 7, %v3547
        %v3549 = vrot.slane %v3516, %v3548
        %v3686 = vunpack.c.l.b16 %v3388
        %v3687 = vunpack.c.h.b16 %v3388
        %v3688 = vunpack.c.l.b16 %v3389
        %v3689 = vunpack.c.h.b16 %v3389
        %v3690 = vunpack.c.l.b16 %v3390
        %v3691 = vunpack.c.h.b16 %v3390
        %v3692 = vunpack.c.l.b16 %v3391
        %v3693 = vunpack.c.h.b16 %v3391
        %v3694 = vunpack.c.l.b16 %v3392
        %v3695 = vunpack.c.h.b16 %v3392
        %v3696 = vunpack.c.l.b16 %v3393
        %v3697 = vunpack.c.h.b16 %v3393
        %v3698 = vunpack.c.l.b16 %v3394
        %v3699 = vunpack.c.h.b16 %v3394
        %v3700 = vunpack.c.l.b16 %v3395
        %v3701 = vunpack.c.h.b16 %v3395
        %v3702 = vunpack.c.l.b16 %v3396
        %v3703 = vunpack.c.h.b16 %v3396
        %v3704 = vunpack.c.l.b16 %v3397
        %v3705 = vunpack.c.h.b16 %v3397
        %v3706 = vunpack.c.l.b16 %v3398
        %v3707 = vunpack.c.h.b16 %v3398
        %v3708 = vunpack.c.l.b16 %v3399
        %v3709 = vunpack.c.h.b16 %v3399
        %v3710 = vunpack.c.l.b16 %v3400
        %v3711 = vunpack.c.h.b16 %v3400
        %v3712 = vunpack.c.l.b16 %v3401
        %v3713 = vunpack.c.h.b16 %v3401
        %v3714 = vunpack.c.l.b16 %v3402
        %v3715 = vunpack.c.h.b16 %v3402
        %v3716 = vunpack.c.l.b16 %v3403
        %v3717 = vunpack.c.h.b16 %v3403
        %v3718 = vunpack.c.l.b16 %v3404
        %v3719 = vunpack.c.h.b16 %v3404
        %v3720 = vunpack.c.l.b16 %v3405
        %v3721 = vunpack.c.h.b16 %v3405
        %v3722 = vunpack.c.l.b16 %v3406
        %v3723 = vunpack.c.h.b16 %v3406
        %v3724 = vunpack.c.l.b16 %v3407
        %v3725 = vunpack.c.h.b16 %v3407
        %v3726 = vunpack.c.l.b16 %v3408
        %v3727 = vunpack.c.h.b16 %v3408
        %v3728 = vunpack.c.l.b16 %v3409
        %v3729 = vunpack.c.h.b16 %v3409
        %v3730 = vunpack.c.l.b16 %v3410
        %v3731 = vunpack.c.h.b16 %v3410
        %v3732 = vunpack.c.l.b16 %v3411
        %v3733 = vunpack.c.h.b16 %v3411
        %v3734 = vunpack.c.l.b16 %v3412
        %v3735 = vunpack.c.h.b16 %v3412
        %v3736 = vunpack.c.l.b16 %v3413
        %v3737 = vunpack.c.h.b16 %v3413
        %v3738 = vunpack.c.l.b16 %v3414
        %v3739 = vunpack.c.h.b16 %v3414
        %v3740 = vunpack.c.l.b16 %v3415
        %v3741 = vunpack.c.h.b16 %v3415
        %v3742 = vunpack.c.l.b16 %v3416
        %v3743 = vunpack.c.h.b16 %v3416
        %v3744 = vunpack.c.l.b16 %v3417
        %v3745 = vunpack.c.h.b16 %v3417
        %v3746 = vunpack.c.l.b16 %v3418
        %v3747 = vunpack.c.h.b16 %v3418
        %v3748 = vunpack.c.l.b16 %v3419
        %v3749 = vunpack.c.h.b16 %v3419
        %v3750 = vunpack.c.l.b16 %v3420
        %v3751 = vunpack.c.h.b16 %v3420
        %v3752 = vunpack.c.l.b16 %v3421
        %v3753 = vunpack.c.h.b16 %v3421
        %v3754 = vunpack.c.l.b16 %v3422
        %v3755 = vunpack.c.h.b16 %v3422
        %v3756 = vunpack.c.l.b16 %v3423
        %v3757 = vunpack.c.h.b16 %v3423
        %v3758 = vunpack.c.l.b16 %v3424
        %v3759 = vunpack.c.h.b16 %v3424
        %v3760 = vunpack.c.l.b16 %v3425
        %v3761 = vunpack.c.h.b16 %v3425
        %v3762 = vunpack.c.l.b16 %v3426
        %v3763 = vunpack.c.h.b16 %v3426
        %v3764 = vunpack.c.l.b16 %v3427
        %v3765 = vunpack.c.h.b16 %v3427
        %v3766 = vunpack.c.l.b16 %v3428
        %v3767 = vunpack.c.h.b16 %v3428
        %v3768 = vunpack.c.l.b16 %v3429
        %v3769 = vunpack.c.h.b16 %v3429
        %v3770 = vunpack.c.l.b16 %v3430
        %v3771 = vunpack.c.h.b16 %v3430
        %v3772 = vunpack.c.l.b16 %v3431
        %v3773 = vunpack.c.h.b16 %v3431
        %v3774 = vunpack.c.l.b16 %v3432
        %v3775 = vunpack.c.h.b16 %v3432
        %v3776 = vunpack.c.l.b16 %v3433
        %v3777 = vunpack.c.h.b16 %v3433
        %v3778 = vunpack.c.l.b16 %v3434
        %v3779 = vunpack.c.h.b16 %v3434
        %v3780 = vunpack.c.l.b16 %v3435
        %v3781 = vunpack.c.h.b16 %v3435
        %v3782 = vunpack.c.l.b16 %v3436
        %v3783 = vunpack.c.h.b16 %v3436
        %v3784 = vunpack.c.l.b16 %v3437
        %v3785 = vunpack.c.h.b16 %v3437
        %v3786 = vunpack.c.l.b16 %v3438
        %v3787 = vunpack.c.h.b16 %v3438
        %v3788 = vunpack.c.l.b16 %v3439
        %v3789 = vunpack.c.h.b16 %v3439
        %v3790 = vunpack.c.l.b16 %v3440
        %v3791 = vunpack.c.h.b16 %v3440
        %v3792 = vunpack.c.l.b16 %v3441
        %v3793 = vunpack.c.h.b16 %v3441
        %v3794 = vunpack.c.l.b16 %v3442
        %v3795 = vunpack.c.h.b16 %v3442
        %v3796 = vunpack.c.l.b16 %v3443
        %v3797 = vunpack.c.h.b16 %v3443
        %v3798 = vunpack.c.l.b16 %v3444
        %v3799 = vunpack.c.h.b16 %v3444
        %v3800 = vunpack.c.l.b16 %v3445
        %v3801 = vunpack.c.h.b16 %v3445
        %v3802 = vunpack.c.l.b16 %v3446
        %v3803 = vunpack.c.h.b16 %v3446
        %v3804 = vunpack.c.l.b16 %v3447
        %v3805 = vunpack.c.h.b16 %v3447
        %v3806 = vunpack.c.l.b16 %v3448
        %v3807 = vunpack.c.h.b16 %v3448
        %v3808 = vunpack.c.l.b16 %v3449
        %v3809 = vunpack.c.h.b16 %v3449
        %v3810 = vunpack.c.l.b16 %v3450
        %v3811 = vunpack.c.h.b16 %v3450
        %v3812 = vunpack.c.l.b16 %v3451
        %v3813 = vunpack.c.h.b16 %v3451
        %v3814 = vunpack.c.l.b16 %v3452
        %v3815 = vunpack.c.h.b16 %v3452
        %v3816 = vunpack.c.l.b16 %v3453
        %v3817 = vunpack.c.h.b16 %v3453
        %v3818 = vunpack.c.l.b16 %v3454
        %v3819 = vunpack.c.h.b16 %v3454
        %v3820 = vunpack.c.l.b16 %v3455
        %v3821 = vunpack.c.h.b16 %v3455
        %v3822 = vunpack.c.l.b16 %v3456
        %v3823 = vunpack.c.h.b16 %v3456
        %v3824 = vunpack.c.l.b16 %v3457
        %v3825 = vunpack.c.h.b16 %v3457
        %v3826 = vunpack.c.l.b16 %v3458
        %v3827 = vunpack.c.h.b16 %v3458
        %v3828 = vunpack.c.l.b16 %v3459
        %v3829 = vunpack.c.h.b16 %v3459
        %v3830 = vunpack.c.l.b16 %v3460
        %v3831 = vunpack.c.h.b16 %v3460
        %v3832 = vunpack.c.l.b16 %v3461
        %v3833 = vunpack.c.h.b16 %v3461
        %v3834 = vunpack.c.l.b16 %v3462
        %v3835 = vunpack.c.h.b16 %v3462
        %v3836 = vunpack.c.l.b16 %v3463
        %v3837 = vunpack.c.h.b16 %v3463
        %v3838 = vunpack.c.l.b16 %v3464
        %v3839 = vunpack.c.h.b16 %v3464
        %v3840 = vunpack.c.l.b16 %v3465
        %v3841 = vunpack.c.h.b16 %v3465
        %v3842 = vunpack.c.l.b16 %v3466
        %v3843 = vunpack.c.h.b16 %v3466
        %v3844 = vunpack.c.l.b16 %v3467
        %v3845 = vunpack.c.h.b16 %v3467
        %v3846 = vunpack.c.l.b16 %v3468
        %v3847 = vunpack.c.h.b16 %v3468
        %v3848 = vunpack.c.l.b16 %v3469
        %v3849 = vunpack.c.h.b16 %v3469
        %v3850 = vunpack.c.l.b16 %v3470
        %v3851 = vunpack.c.h.b16 %v3470
        %v3852 = vunpack.c.l.b16 %v3471
        %v3853 = vunpack.c.h.b16 %v3471
        %v3854 = vunpack.c.l.b16 %v3472
        %v3855 = vunpack.c.h.b16 %v3472
        %v3856 = vunpack.c.l.b16 %v3473
        %v3857 = vunpack.c.h.b16 %v3473
        %v3858 = vunpack.c.l.b16 %v3474
        %v3859 = vunpack.c.h.b16 %v3474
        %v3860 = vunpack.c.l.b16 %v3475
        %v3861 = vunpack.c.h.b16 %v3475
        %v3862 = vunpack.c.l.b16 %v3476
        %v3863 = vunpack.c.h.b16 %v3476
        %v3864 = vunpack.c.l.b16 %v3477
        %v3865 = vunpack.c.h.b16 %v3477
        %v3866 = vunpack.c.l.b16 %v3478
        %v3867 = vunpack.c.h.b16 %v3478
        %v3868 = vunpack.c.l.b16 %v3479
        %v3869 = vunpack.c.h.b16 %v3479
        %v3870 = vunpack.c.l.b16 %v3480
        %v3871 = vunpack.c.h.b16 %v3480
        %v3872 = vunpack.c.l.b16 %v3481
        %v3873 = vunpack.c.h.b16 %v3481
        %v3874 = vunpack.c.l.b16 %v3482
        %v3875 = vunpack.c.h.b16 %v3482
        %v3876 = vunpack.c.l.b16 %v3483
        %v3877 = vunpack.c.h.b16 %v3483
        %v3878 = vunpack.c.l.b16 %v3484
        %v3879 = vunpack.c.h.b16 %v3484
        %v3880 = vunpack.c.l.b16 %v3485
        %v3881 = vunpack.c.h.b16 %v3485
        %v3882 = vunpack.c.l.b16 %v3486
        %v3883 = vunpack.c.h.b16 %v3486
        %v3884 = vunpack.c.l.b16 %v3487
        %v3885 = vunpack.c.h.b16 %v3487
        %v3886 = vunpack.c.l.b16 %v3488
        %v3887 = vunpack.c.h.b16 %v3488
        %v3888 = vunpack.c.l.b16 %v3489
        %v3889 = vunpack.c.h.b16 %v3489
        %v3890 = vunpack.c.l.b16 %v3490
        %v3891 = vunpack.c.h.b16 %v3490
        %v3892 = vunpack.c.l.b16 %v3491
        %v3893 = vunpack.c.h.b16 %v3491
        %v3894 = vunpack.c.l.b16 %v3492
        %v3895 = vunpack.c.h.b16 %v3492
        %v3896 = vunpack.c.l.b16 %v3493
        %v3897 = vunpack.c.h.b16 %v3493
        %v3898 = vunpack.c.l.b16 %v3494
        %v3899 = vunpack.c.h.b16 %v3494
        %v3900 = vunpack.c.l.b16 %v3495
        %v3901 = vunpack.c.h.b16 %v3495
        %v3902 = vunpack.c.l.b16 %v3496
        %v3903 = vunpack.c.h.b16 %v3496
        %v3904 = vunpack.c.l.b16 %v3497
        %v3905 = vunpack.c.h.b16 %v3497
        %v3906 = vunpack.c.l.b16 %v3498
        %v3907 = vunpack.c.h.b16 %v3498
        %v3908 = vunpack.c.l.b16 %v3499
        %v3909 = vunpack.c.h.b16 %v3499
        %v3910 = vunpack.c.l.b16 %v3500
        %v3911 = vunpack.c.h.b16 %v3500
        %v3912 = vunpack.c.l.b16 %v3501
        %v3913 = vunpack.c.h.b16 %v3501
        %v3914 = vunpack.c.l.b16 %v3502
        %v3915 = vunpack.c.h.b16 %v3502
        %v3916 = vunpack.c.l.b16 %v3503
        %v3917 = vunpack.c.h.b16 %v3503
        %v3918 = vunpack.c.l.b16 %v3504
        %v3919 = vunpack.c.h.b16 %v3504
        %v3920 = vunpack.c.l.b16 %v3505
        %v3921 = vunpack.c.h.b16 %v3505
        %v3922 = vunpack.c.l.b16 %v3506
        %v3923 = vunpack.c.h.b16 %v3506
        %v3924 = vunpack.c.l.b16 %v3507
        %v3925 = vunpack.c.h.b16 %v3507
        %v3926 = vunpack.c.l.b16 %v3508
        %v3927 = vunpack.c.h.b16 %v3508
        %v3928 = vunpack.c.l.b16 %v3509
        %v3929 = vunpack.c.h.b16 %v3509
        %v3930 = vunpack.c.l.b16 %v3510
        %v3931 = vunpack.c.h.b16 %v3510
        %v3932 = vunpack.c.l.b16 %v3511
        %v3933 = vunpack.c.h.b16 %v3511
        %v3934 = vunpack.c.l.b16 %v3512
        %v3935 = vunpack.c.h.b16 %v3512
        %v3936 = vunpack.c.l.b16 %v3513
        %v3937 = vunpack.c.h.b16 %v3513
        %v3938 = vunpack.c.l.b16 %v3514
        %v3939 = vunpack.c.h.b16 %v3514
        %v3940 = vunpack.c.l.b16 %v3515
        %v3941 = vunpack.c.h.b16 %v3515
        %v3942 = vpack.c.b16 %v3694, %v3686
        %v3943 = vpack.c.b16 %v3695, %v3687
        %v3944 = vpack.c.b16 %v3696, %v3688
        %v3945 = vpack.c.b16 %v3697, %v3689
        %v3946 = vpack.c.b16 %v3698, %v3690
        %v3947 = vpack.c.b16 %v3699, %v3691
        %v3948 = vpack.c.b16 %v3700, %v3692
        %v3949 = vpack.c.b16 %v3701, %v3693
        %v3950 = vpack.c.b16 %v3710, %v3702
        %v3951 = vpack.c.b16 %v3711, %v3703
        %v3952 = vpack.c.b16 %v3712, %v3704
        %v3953 = vpack.c.b16 %v3713, %v3705
        %v3954 = vpack.c.b16 %v3714, %v3706
        %v3955 = vpack.c.b16 %v3715, %v3707
        %v3956 = vpack.c.b16 %v3716, %v3708
        %v3957 = vpack.c.b16 %v3717, %v3709
        %v3958 = vpack.c.b16 %v3726, %v3718
        %v3959 = vpack.c.b16 %v3727, %v3719
        %v3960 = vpack.c.b16 %v3728, %v3720
        %v3961 = vpack.c.b16 %v3729, %v3721
        %v3962 = vpack.c.b16 %v3730, %v3722
        %v3963 = vpack.c.b16 %v3731, %v3723
        %v3964 = vpack.c.b16 %v3732, %v3724
        %v3965 = vpack.c.b16 %v3733, %v3725
        %v3966 = vpack.c.b16 %v3742, %v3734
        %v3967 = vpack.c.b16 %v3743, %v3735
        %v3968 = vpack.c.b16 %v3744, %v3736
        %v3969 = vpack.c.b16 %v3745, %v3737
        %v3970 = vpack.c.b16 %v3746, %v3738
        %v3971 = vpack.c.b16 %v3747, %v3739
        %v3972 = vpack.c.b16 %v3748, %v3740
        %v3973 = vpack.c.b16 %v3749, %v3741
        %v3974 = vpack.c.b16 %v3758, %v3750
        %v3975 = vpack.c.b16 %v3759, %v3751
        %v3976 = vpack.c.b16 %v3760, %v3752
        %v3977 = vpack.c.b16 %v3761, %v3753
        %v3978 = vpack.c.b16 %v3762, %v3754
        %v3979 = vpack.c.b16 %v3763, %v3755
        %v3980 = vpack.c.b16 %v3764, %v3756
        %v3981 = vpack.c.b16 %v3765, %v3757
        %v3982 = vpack.c.b16 %v3774, %v3766
        %v3983 = vpack.c.b16 %v3775, %v3767
        %v3984 = vpack.c.b16 %v3776, %v3768
        %v3985 = vpack.c.b16 %v3777, %v3769
        %v3986 = vpack.c.b16 %v3778, %v3770
        %v3987 = vpack.c.b16 %v3779, %v3771
        %v3988 = vpack.c.b16 %v3780, %v3772
        %v3989 = vpack.c.b16 %v3781, %v3773
        %v3990 = vpack.c.b16 %v3790, %v3782
        %v3991 = vpack.c.b16 %v3791, %v3783
        %v3992 = vpack.c.b16 %v3792, %v3784
        %v3993 = vpack.c.b16 %v3793, %v3785
        %v3994 = vpack.c.b16 %v3794, %v3786
        %v3995 = vpack.c.b16 %v3795, %v3787
        %v3996 = vpack.c.b16 %v3796, %v3788
        %v3997 = vpack.c.b16 %v3797, %v3789
        %v3998 = vpack.c.b16 %v3806, %v3798
        %v3999 = vpack.c.b16 %v3807, %v3799
        %v4000 = vpack.c.b16 %v3808, %v3800
        %v4001 = vpack.c.b16 %v3809, %v3801
        %v4002 = vpack.c.b16 %v3810, %v3802
        %v4003 = vpack.c.b16 %v3811, %v3803
        %v4004 = vpack.c.b16 %v3812, %v3804
        %v4005 = vpack.c.b16 %v3813, %v3805
        %v4006 = vpack.c.b16 %v3822, %v3814
        %v4007 = vpack.c.b16 %v3823, %v3815
        %v4008 = vpack.c.b16 %v3824, %v3816
        %v4009 = vpack.c.b16 %v3825, %v3817
        %v4010 = vpack.c.b16 %v3826, %v3818
        %v4011 = vpack.c.b16 %v3827, %v3819
        %v4012 = vpack.c.b16 %v3828, %v3820
        %v4013 = vpack.c.b16 %v3829, %v3821
        %v4014 = vpack.c.b16 %v3838, %v3830
        %v4015 = vpack.c.b16 %v3839, %v3831
        %v4016 = vpack.c.b16 %v3840, %v3832
        %v4017 = vpack.c.b16 %v3841, %v3833
        %v4018 = vpack.c.b16 %v3842, %v3834
        %v4019 = vpack.c.b16 %v3843, %v3835
        %v4020 = vpack.c.b16 %v3844, %v3836
        %v4021 = vpack.c.b16 %v3845, %v3837
        %v4022 = vpack.c.b16 %v3854, %v3846
        %v4023 = vpack.c.b16 %v3855, %v3847
        %v4024 = vpack.c.b16 %v3856, %v3848
        %v4025 = vpack.c.b16 %v3857, %v3849
        %v4026 = vpack.c.b16 %v3858, %v3850
        %v4027 = vpack.c.b16 %v3859, %v3851
        %v4028 = vpack.c.b16 %v3860, %v3852
        %v4029 = vpack.c.b16 %v3861, %v3853
        %v4030 = vpack.c.b16 %v3870, %v3862
        %v4031 = vpack.c.b16 %v3871, %v3863
        %v4032 = vpack.c.b16 %v3872, %v3864
        %v4033 = vpack.c.b16 %v3873, %v3865
        %v4034 = vpack.c.b16 %v3874, %v3866
        %v4035 = vpack.c.b16 %v3875, %v3867
        %v4036 = vpack.c.b16 %v3876, %v3868
        %v4037 = vpack.c.b16 %v3877, %v3869
        %v4038 = vpack.c.b16 %v3886, %v3878
        %v4039 = vpack.c.b16 %v3887, %v3879
        %v4040 = vpack.c.b16 %v3888, %v3880
        %v4041 = vpack.c.b16 %v3889, %v3881
        %v4042 = vpack.c.b16 %v3890, %v3882
        %v4043 = vpack.c.b16 %v3891, %v3883
        %v4044 = vpack.c.b16 %v3892, %v3884
        %v4045 = vpack.c.b16 %v3893, %v3885
        %v4046 = vpack.c.b16 %v3902, %v3894
        %v4047 = vpack.c.b16 %v3903, %v3895
        %v4048 = vpack.c.b16 %v3904, %v3896
        %v4049 = vpack.c.b16 %v3905, %v3897
        %v4050 = vpack.c.b16 %v3906, %v3898
        %v4051 = vpack.c.b16 %v3907, %v3899
        %v4052 = vpack.c.b16 %v3908, %v3900
        %v4053 = vpack.c.b16 %v3909, %v3901
        %v4054 = vpack.c.b16 %v3918, %v3910
        %v4055 = vpack.c.b16 %v3919, %v3911
        %v4056 = vpack.c.b16 %v3920, %v3912
        %v4057 = vpack.c.b16 %v3921, %v3913
        %v4058 = vpack.c.b16 %v3922, %v3914
        %v4059 = vpack.c.b16 %v3923, %v3915
        %v4060 = vpack.c.b16 %v3924, %v3916
        %v4061 = vpack.c.b16 %v3925, %v3917
        %v4062 = vpack.c.b16 %v3934, %v3926
        %v4063 = vpack.c.b16 %v3935, %v3927
        %v4064 = vpack.c.b16 %v3936, %v3928
        %v4065 = vpack.c.b16 %v3937, %v3929
        %v4066 = vpack.c.b16 %v3938, %v3930
        %v4067 = vpack.c.b16 %v3939, %v3931
        %v4068 = vpack.c.b16 %v3940, %v3932
        %v4069 = vpack.c.b16 %v3941, %v3933
        %4198 = vmatprep.subr.bf16.mxu0 %v3999
        %4199 = vmatpush1.bf16.msra.mxu0 %v3998
        %4200 = vmatprep.subr.bf16.mxu0 %v3991
        %4201 = vmatpush1.bf16.msra.mxu0 %v3990
        %4202 = vmatprep.subr.bf16.mxu0 %v3983
        %4203 = vmatpush1.bf16.msra.mxu0 %v3982
        %4204 = vmatprep.subr.bf16.mxu0 %v3975
        %4205 = vmatpush1.bf16.msra.mxu0 %v3974
        %4206 = vmatprep.subr.bf16.mxu0 %v3967
        %4207 = vmatpush1.bf16.msra.mxu0 %v3966
        %4208 = vmatprep.subr.bf16.mxu0 %v3959
        %4209 = vmatpush1.bf16.msra.mxu0 %v3958
        %4210 = vmatprep.subr.bf16.mxu0 %v3951
        %4211 = vmatpush1.bf16.msra.mxu0 %v3950
        %4212 = vmatprep.subr.bf16.mxu0 %v3943
        %4213 = vmatpush1.bf16.msra.mxu0 %v3942
        %4214 = vmatprep.subr.bf16.mxu0 %v4063
        %4215 = vmatpush2.bf16.msra.mxu0 %v4062
        %4216 = vmatprep.subr.bf16.mxu0 %v4055
        %4217 = vmatpush2.bf16.msra.mxu0 %v4054
        %4218 = vmatprep.subr.bf16.mxu0 %v4047
        %4219 = vmatpush2.bf16.msra.mxu0 %v4046
        %4220 = vmatprep.subr.bf16.mxu0 %v4039
        %4221 = vmatpush2.bf16.msra.mxu0 %v4038
        %4222 = vmatprep.subr.bf16.mxu0 %v4031
        %4223 = vmatpush2.bf16.msra.mxu0 %v4030
        %4224 = vmatprep.subr.bf16.mxu0 %v4023
        %4225 = vmatpush2.bf16.msra.mxu0 %v4022
        %4226 = vmatprep.subr.bf16.mxu0 %v4015
        %4227 = vmatpush2.bf16.msra.mxu0 %v4014
        %4228 = vmatprep.subr.bf16.mxu0 %v4007
        %4229 = vmatpush2.bf16.msra.mxu0 %v4006
        %4230 = vmatprep.mubr.bf16.mxu0 %v3387
        %4231 = vmatmul.mubr.bf16.gmra.mxu0 %v3386
        %v4232 = vpop.f32.mrf.mxu0
        %v4233 = vadd.f32 %v3521, %v4232
        %v4234 = vpop.f32.mrf.mxu0
        %v4235 = vadd.f32 %v3525, %v4234
        %v4236 = vpop.f32.mrf.mxu0
        %v4237 = vadd.f32 %v3521, %v4236
        %v4238 = vpop.f32.mrf.mxu0
        %v4239 = vadd.f32 %v3525, %v4238
        %4240 = vdwg.mxu0
        %4241 = vmatprep.subr.bf16.mxu0 %v4001
        %4242 = vmatpush1.bf16.msra.mxu0 %v4000
        %4243 = vmatprep.subr.bf16.mxu0 %v3993
        %4244 = vmatpush1.bf16.msra.mxu0 %v3992
        %4245 = vmatprep.subr.bf16.mxu0 %v3985
        %4246 = vmatpush1.bf16.msra.mxu0 %v3984
        %4247 = vmatprep.subr.bf16.mxu0 %v3977
        %4248 = vmatpush1.bf16.msra.mxu0 %v3976
        %4249 = vmatprep.subr.bf16.mxu0 %v3969
        %4250 = vmatpush1.bf16.msra.mxu0 %v3968
        %4251 = vmatprep.subr.bf16.mxu0 %v3961
        %4252 = vmatpush1.bf16.msra.mxu0 %v3960
        %4253 = vmatprep.subr.bf16.mxu0 %v3953
        %4254 = vmatpush1.bf16.msra.mxu0 %v3952
        %4255 = vmatprep.subr.bf16.mxu0 %v3945
        %4256 = vmatpush1.bf16.msra.mxu0 %v3944
        %4257 = vmatprep.subr.bf16.mxu0 %v4065
        %4258 = vmatpush2.bf16.msra.mxu0 %v4064
        %4259 = vmatprep.subr.bf16.mxu0 %v4057
        %4260 = vmatpush2.bf16.msra.mxu0 %v4056
        %4261 = vmatprep.subr.bf16.mxu0 %v4049
        %4262 = vmatpush2.bf16.msra.mxu0 %v4048
        %4263 = vmatprep.subr.bf16.mxu0 %v4041
        %4264 = vmatpush2.bf16.msra.mxu0 %v4040
        %4265 = vmatprep.subr.bf16.mxu0 %v4033
        %4266 = vmatpush2.bf16.msra.mxu0 %v4032
        %4267 = vmatprep.subr.bf16.mxu0 %v4025
        %4268 = vmatpush2.bf16.msra.mxu0 %v4024
        %4269 = vmatprep.subr.bf16.mxu0 %v4017
        %4270 = vmatpush2.bf16.msra.mxu0 %v4016
        %4271 = vmatprep.subr.bf16.mxu0 %v4009
        %4272 = vmatpush2.bf16.msra.mxu0 %v4008
        %4273 = vmatprep.mubr.bf16.mxu0 %v3387
        %4274 = vmatmul.mubr.bf16.gmra.mxu0 %v3386
        %v4275 = vpop.f32.mrf.mxu0
        %v4276 = vadd.f32 %v3529, %v4275
        %v4277 = vpop.f32.mrf.mxu0
        %v4278 = vadd.f32 %v3533, %v4277
        %v4279 = vpop.f32.mrf.mxu0
        %v4280 = vadd.f32 %v3529, %v4279
        %v4281 = vpop.f32.mrf.mxu0
        %v4282 = vadd.f32 %v3533, %v4281
        %4283 = vdwg.mxu0
        %4284 = vmatprep.subr.bf16.mxu0 %v4003
        %4285 = vmatpush1.bf16.msra.mxu0 %v4002
        %4286 = vmatprep.subr.bf16.mxu0 %v3995
        %4287 = vmatpush1.bf16.msra.mxu0 %v3994
        %4288 = vmatprep.subr.bf16.mxu0 %v3987
        %4289 = vmatpush1.bf16.msra.mxu0 %v3986
        %4290 = vmatprep.subr.bf16.mxu0 %v3979
        %4291 = vmatpush1.bf16.msra.mxu0 %v3978
        %4292 = vmatprep.subr.bf16.mxu0 %v3971
        %4293 = vmatpush1.bf16.msra.mxu0 %v3970
        %4294 = vmatprep.subr.bf16.mxu0 %v3963
        %4295 = vmatpush1.bf16.msra.mxu0 %v3962
        %4296 = vmatprep.subr.bf16.mxu0 %v3955
        %4297 = vmatpush1.bf16.msra.mxu0 %v3954
        %4298 = vmatprep.subr.bf16.mxu0 %v3947
        %4299 = vmatpush1.bf16.msra.mxu0 %v3946
        %4300 = vmatprep.subr.bf16.mxu0 %v4067
        %4301 = vmatpush2.bf16.msra.mxu0 %v4066
        %4302 = vmatprep.subr.bf16.mxu0 %v4059
        %4303 = vmatpush2.bf16.msra.mxu0 %v4058
        %4304 = vmatprep.subr.bf16.mxu0 %v4051
        %4305 = vmatpush2.bf16.msra.mxu0 %v4050
        %4306 = vmatprep.subr.bf16.mxu0 %v4043
        %4307 = vmatpush2.bf16.msra.mxu0 %v4042
        %4308 = vmatprep.subr.bf16.mxu0 %v4035
        %4309 = vmatpush2.bf16.msra.mxu0 %v4034
        %4310 = vmatprep.subr.bf16.mxu0 %v4027
        %4311 = vmatpush2.bf16.msra.mxu0 %v4026
        %4312 = vmatprep.subr.bf16.mxu0 %v4019
        %4313 = vmatpush2.bf16.msra.mxu0 %v4018
        %4314 = vmatprep.subr.bf16.mxu0 %v4011
        %4315 = vmatpush2.bf16.msra.mxu0 %v4010
        %4316 = vmatprep.mubr.bf16.mxu0 %v3387
        %4317 = vmatmul.mubr.bf16.gmra.mxu0 %v3386
        %v4318 = vpop.f32.mrf.mxu0
        %v4319 = vadd.f32 %v3537, %v4318
        %v4320 = vpop.f32.mrf.mxu0
        %v4321 = vadd.f32 %v3541, %v4320
        %v4322 = vpop.f32.mrf.mxu0
        %v4323 = vadd.f32 %v3537, %v4322
        %v4324 = vpop.f32.mrf.mxu0
        %v4325 = vadd.f32 %v3541, %v4324
        %4326 = vdwg.mxu0
        %4327 = vmatprep.subr.bf16.mxu0 %v4005
        %4328 = vmatpush1.bf16.msra.mxu0 %v4004
        %4329 = vmatprep.subr.bf16.mxu0 %v3997
        %4330 = vmatpush1.bf16.msra.mxu0 %v3996
        %4331 = vmatprep.subr.bf16.mxu0 %v3989
        %4332 = vmatpush1.bf16.msra.mxu0 %v3988
        %4333 = vmatprep.subr.bf16.mxu0 %v3981
        %4334 = vmatpush1.bf16.msra.mxu0 %v3980
        %4335 = vmatprep.subr.bf16.mxu0 %v3973
        %4336 = vmatpush1.bf16.msra.mxu0 %v3972
        %4337 = vmatprep.subr.bf16.mxu0 %v3965
        %4338 = vmatpush1.bf16.msra.mxu0 %v3964
        %4339 = vmatprep.subr.bf16.mxu0 %v3957
        %4340 = vmatpush1.bf16.msra.mxu0 %v3956
        %4341 = vmatprep.subr.bf16.mxu0 %v3949
        %4342 = vmatpush1.bf16.msra.mxu0 %v3948
        %4343 = vmatprep.subr.bf16.mxu0 %v4069
        %4344 = vmatpush2.bf16.msra.mxu0 %v4068
        %4345 = vmatprep.subr.bf16.mxu0 %v4061
        %4346 = vmatpush2.bf16.msra.mxu0 %v4060
        %4347 = vmatprep.subr.bf16.mxu0 %v4053
        %4348 = vmatpush2.bf16.msra.mxu0 %v4052
        %4349 = vmatprep.subr.bf16.mxu0 %v4045
        %4350 = vmatpush2.bf16.msra.mxu0 %v4044
        %4351 = vmatprep.subr.bf16.mxu0 %v4037
        %4352 = vmatpush2.bf16.msra.mxu0 %v4036
        %4353 = vmatprep.subr.bf16.mxu0 %v4029
        %4354 = vmatpush2.bf16.msra.mxu0 %v4028
        %4355 = vmatprep.subr.bf16.mxu0 %v4021
        %4356 = vmatpush2.bf16.msra.mxu0 %v4020
        %4357 = vmatprep.subr.bf16.mxu0 %v4013
        %4358 = vmatpush2.bf16.msra.mxu0 %v4012
        %4359 = vmatprep.mubr.bf16.mxu0 %v3387
        %4360 = vmatmul.mubr.bf16.gmra.mxu0 %v3386
        %v4361 = vpop.f32.mrf.mxu0
        %v4362 = vadd.f32 %v3545, %v4361
        %v4363 = vpop.f32.mrf.mxu0
        %v4364 = vadd.f32 %v3549, %v4363
        %v4365 = vpop.f32.mrf.mxu0
        %v4366 = vadd.f32 %v3545, %v4365
        %v4367 = vpop.f32.mrf.mxu0
        %v4368 = vadd.f32 %v3549, %v4367
        %4369 = vdwg.mxu0
        %v4370 = vmul.f32 %v4233, 0.5
        %v4371 = vmul.f32 %v4235, 0.5
        %v4372 = vmul.f32 %v4276, 0.5
        %v4373 = vmul.f32 %v4278, 0.5
        %v4374 = vmul.f32 %v4319, 0.5
        %v4375 = vmul.f32 %v4321, 0.5
        %v4376 = vmul.f32 %v4362, 0.5
        %v4377 = vmul.f32 %v4364, 0.5
        %v4378 = vmul.f32 %v4237, 0.5
        %v4379 = vmul.f32 %v4239, 0.5
        %v4380 = vmul.f32 %v4280, 0.5
        %v4381 = vmul.f32 %v4282, 0.5
        %v4382 = vmul.f32 %v4323, 0.5
        %v4383 = vmul.f32 %v4325, 0.5
        %v4384 = vmul.f32 %v4366, 0.5
        %v4385 = vmul.f32 %v4368, 0.5
        %v4386 = vmul.f32 %v4233, 0.044715
        %v4387 = vmul.f32 %v4235, 0.044715
        %v4388 = vmul.f32 %v4276, 0.044715
        %v4389 = vmul.f32 %v4278, 0.044715
        %v4390 = vmul.f32 %v4319, 0.044715
        %v4391 = vmul.f32 %v4321, 0.044715
        %v4392 = vmul.f32 %v4362, 0.044715
        %v4393 = vmul.f32 %v4364, 0.044715
        %v4394 = vmul.f32 %v4237, 0.044715
        %v4395 = vmul.f32 %v4239, 0.044715
        %v4396 = vmul.f32 %v4280, 0.044715
        %v4397 = vmul.f32 %v4282, 0.044715
        %v4398 = vmul.f32 %v4323, 0.044715
        %v4399 = vmul.f32 %v4325, 0.044715
        %v4400 = vmul.f32 %v4366, 0.044715
        %v4401 = vmul.f32 %v4368, 0.044715
        %v4402 = vmul.f32 %v4386, %v4233
        %v4403 = vmul.f32 %v4387, %v4235
        %v4404 = vmul.f32 %v4388, %v4276
        %v4405 = vmul.f32 %v4389, %v4278
        %v4406 = vmul.f32 %v4390, %v4319
        %v4407 = vmul.f32 %v4391, %v4321
        %v4408 = vmul.f32 %v4392, %v4362
        %v4409 = vmul.f32 %v4393, %v4364
        %v4410 = vmul.f32 %v4394, %v4237
        %v4411 = vmul.f32 %v4395, %v4239
        %v4412 = vmul.f32 %v4396, %v4280
        %v4413 = vmul.f32 %v4397, %v4282
        %v4414 = vmul.f32 %v4398, %v4323
        %v4415 = vmul.f32 %v4399, %v4325
        %v4416 = vmul.f32 %v4400, %v4366
        %v4417 = vmul.f32 %v4401, %v4368
        %v4418 = vmul.f32 %v4402, %v4233
        %v4419 = vmul.f32 %v4403, %v4235
        %v4420 = vmul.f32 %v4404, %v4276
        %v4421 = vmul.f32 %v4405, %v4278
        %v4422 = vmul.f32 %v4406, %v4319
        %v4423 = vmul.f32 %v4407, %v4321
        %v4424 = vmul.f32 %v4408, %v4362
        %v4425 = vmul.f32 %v4409, %v4364
        %v4426 = vmul.f32 %v4410, %v4237
        %v4427 = vmul.f32 %v4411, %v4239
        %v4428 = vmul.f32 %v4412, %v4280
        %v4429 = vmul.f32 %v4413, %v4282
        %v4430 = vmul.f32 %v4414, %v4323
        %v4431 = vmul.f32 %v4415, %v4325
        %v4432 = vmul.f32 %v4416, %v4366
        %v4433 = vmul.f32 %v4417, %v4368
        %v4434 = vadd.f32 %v4233, %v4418
        %v4435 = vadd.f32 %v4235, %v4419
        %v4436 = vadd.f32 %v4276, %v4420
        %v4437 = vadd.f32 %v4278, %v4421
        %v4438 = vadd.f32 %v4319, %v4422
        %v4439 = vadd.f32 %v4321, %v4423
        %v4440 = vadd.f32 %v4362, %v4424
        %v4441 = vadd.f32 %v4364, %v4425
        %v4442 = vadd.f32 %v4237, %v4426
        %v4443 = vadd.f32 %v4239, %v4427
        %v4444 = vadd.f32 %v4280, %v4428
        %v4445 = vadd.f32 %v4282, %v4429
        %v4446 = vadd.f32 %v4323, %v4430
        %v4447 = vadd.f32 %v4325, %v4431
        %v4448 = vadd.f32 %v4366, %v4432
        %v4449 = vadd.f32 %v4368, %v4433
        %v4450 = vmul.f32 %v4434, 0.7978846
        %v4451 = vmul.f32 %v4435, 0.7978846
        %v4452 = vmul.f32 %v4436, 0.7978846
        %v4453 = vmul.f32 %v4437, 0.7978846
        %v4454 = vmul.f32 %v4438, 0.7978846
        %v4455 = vmul.f32 %v4439, 0.7978846
        %v4456 = vmul.f32 %v4440, 0.7978846
        %v4457 = vmul.f32 %v4441, 0.7978846
        %v4458 = vmul.f32 %v4442, 0.7978846
        %v4459 = vmul.f32 %v4443, 0.7978846
        %v4460 = vmul.f32 %v4444, 0.7978846
        %v4461 = vmul.f32 %v4445, 0.7978846
        %v4462 = vmul.f32 %v4446, 0.7978846
        %v4463 = vmul.f32 %v4447, 0.7978846
        %v4464 = vmul.f32 %v4448, 0.7978846
        %v4465 = vmul.f32 %v4449, 0.7978846
        %v4466 = vtanh.pop %v4450
        %v4467 = vtanh.pop %v4451
        %v4468 = vtanh.pop %v4452
        %v4469 = vtanh.pop %v4453
        %v4470 = vtanh.pop %v4454
        %v4471 = vtanh.pop %v4455
        %v4472 = vtanh.pop %v4456
        %v4473 = vtanh.pop %v4457
        %v4474 = vtanh.pop %v4458
        %v4475 = vtanh.pop %v4459
        %v4476 = vtanh.pop %v4460
        %v4477 = vtanh.pop %v4461
        %v4478 = vtanh.pop %v4462
        %v4479 = vtanh.pop %v4463
        %v4480 = vtanh.pop %v4464
        %v4481 = vtanh.pop %v4465
        %v4482 = vadd.f32 %v4466, 1.0
        %v4483 = vadd.f32 %v4467, 1.0
        %v4484 = vadd.f32 %v4468, 1.0
        %v4485 = vadd.f32 %v4469, 1.0
        %v4486 = vadd.f32 %v4470, 1.0
        %v4487 = vadd.f32 %v4471, 1.0
        %v4488 = vadd.f32 %v4472, 1.0
        %v4489 = vadd.f32 %v4473, 1.0
        %v4490 = vadd.f32 %v4474, 1.0
        %v4491 = vadd.f32 %v4475, 1.0
        %v4492 = vadd.f32 %v4476, 1.0
        %v4493 = vadd.f32 %v4477, 1.0
        %v4494 = vadd.f32 %v4478, 1.0
        %v4495 = vadd.f32 %v4479, 1.0
        %v4496 = vadd.f32 %v4480, 1.0
        %v4497 = vadd.f32 %v4481, 1.0
        %v4498 = vmul.f32 %v4370, %v4482
        %v4499 = vmul.f32 %v4371, %v4483
        %v4500 = vmul.f32 %v4372, %v4484
        %v4501 = vmul.f32 %v4373, %v4485
        %v4502 = vmul.f32 %v4374, %v4486
        %v4503 = vmul.f32 %v4375, %v4487
        %v4504 = vmul.f32 %v4376, %v4488
        %v4505 = vmul.f32 %v4377, %v4489
        %v4506 = vmul.f32 %v4378, %v4490
        %v4507 = vmul.f32 %v4379, %v4491
        %v4508 = vmul.f32 %v4380, %v4492
        %v4509 = vmul.f32 %v4381, %v4493
        %v4510 = vmul.f32 %v4382, %v4494
        %v4511 = vmul.f32 %v4383, %v4495
        %v4512 = vmul.f32 %v4384, %v4496
        %v4513 = vmul.f32 %v4385, %v4497
        %v4514 = vpack.c.bf16 %v4506, %v4498
        %v4515 = vpack.c.bf16 %v4507, %v4499
        %v4516 = vpack.c.bf16 %v4508, %v4500
        %v4517 = vpack.c.bf16 %v4509, %v4501
        %v4518 = vpack.c.bf16 %v4510, %v4502
        %v4519 = vpack.c.bf16 %v4511, %v4503
        %v4520 = vpack.c.bf16 %v4512, %v4504
        %v4521 = vpack.c.bf16 %v4513, %v4505
        %v4522 = vld [vmem:[%s1001] sm:$0xff]
        %v4523 = vld [vmem:[%s1001 + $0x8] sm:$0xff]
        %v4524 = vld [vmem:[%s1001 + $0x10] sm:$0xff]
        %v4525 = vld [vmem:[%s1001 + $0x18] sm:$0xff]
        %v4526 = vld [vmem:[%s1001 + $0x20] sm:$0xff]
        %v4527 = vld [vmem:[%s1001 + $0x28] sm:$0xff]
        %v4528 = vld [vmem:[%s1001 + $0x30] sm:$0xff]
        %v4529 = vld [vmem:[%s1001 + $0x38] sm:$0xff]
        %v4530 = vld [vmem:[%s1001 + $0x40] sm:$0xff]
        %v4531 = vld [vmem:[%s1001 + $0x48] sm:$0xff]
        %v4532 = vld [vmem:[%s1001 + $0x50] sm:$0xff]
        %v4533 = vld [vmem:[%s1001 + $0x58] sm:$0xff]
        %v4534 = vld [vmem:[%s1001 + $0x60] sm:$0xff]
        %v4535 = vld [vmem:[%s1001 + $0x68] sm:$0xff]
        %v4536 = vld [vmem:[%s1001 + $0x70] sm:$0xff]
        %v4537 = vld [vmem:[%s1001 + $0x78] sm:$0xff]
        %v4538 = vld [vmem:[%s1001 + $0x80] sm:$0xff]
        %v4539 = vld [vmem:[%s1001 + $0x88] sm:$0xff]
        %v4540 = vld [vmem:[%s1001 + $0x90] sm:$0xff]
        %v4541 = vld [vmem:[%s1001 + $0x98] sm:$0xff]
        %v4542 = vld [vmem:[%s1001 + $0xa0] sm:$0xff]
        %v4543 = vld [vmem:[%s1001 + $0xa8] sm:$0xff]
        %v4544 = vld [vmem:[%s1001 + $0xb0] sm:$0xff]
        %v4545 = vld [vmem:[%s1001 + $0xb8] sm:$0xff]
        %v4546 = vld [vmem:[%s1001 + $0xc0] sm:$0xff]
        %v4547 = vld [vmem:[%s1001 + $0xc8] sm:$0xff]
        %v4548 = vld [vmem:[%s1001 + $0xd0] sm:$0xff]
        %v4549 = vld [vmem:[%s1001 + $0xd8] sm:$0xff]
        %v4550 = vld [vmem:[%s1001 + $0xe0] sm:$0xff]
        %v4551 = vld [vmem:[%s1001 + $0xe8] sm:$0xff]
        %v4552 = vld [vmem:[%s1001 + $0xf0] sm:$0xff]
        %v4553 = vld [vmem:[%s1001 + $0xf8] sm:$0xff]
        %v4554 = vld [vmem:[%s1001 + $0x100] sm:$0xff]
        %v4555 = vld [vmem:[%s1001 + $0x108] sm:$0xff]
        %v4556 = vld [vmem:[%s1001 + $0x110] sm:$0xff]
        %v4557 = vld [vmem:[%s1001 + $0x118] sm:$0xff]
        %v4558 = vld [vmem:[%s1001 + $0x120] sm:$0xff]
        %v4559 = vld [vmem:[%s1001 + $0x128] sm:$0xff]
        %v4560 = vld [vmem:[%s1001 + $0x130] sm:$0xff]
        %v4561 = vld [vmem:[%s1001 + $0x138] sm:$0xff]
        %v4562 = vld [vmem:[%s1001 + $0x140] sm:$0xff]
        %v4563 = vld [vmem:[%s1001 + $0x148] sm:$0xff]
        %v4564 = vld [vmem:[%s1001 + $0x150] sm:$0xff]
        %v4565 = vld [vmem:[%s1001 + $0x158] sm:$0xff]
        %v4566 = vld [vmem:[%s1001 + $0x160] sm:$0xff]
        %v4567 = vld [vmem:[%s1001 + $0x168] sm:$0xff]
        %v4568 = vld [vmem:[%s1001 + $0x170] sm:$0xff]
        %v4569 = vld [vmem:[%s1001 + $0x178] sm:$0xff]
        %v4570 = vld [vmem:[%s1001 + $0x180] sm:$0xff]
        %v4571 = vld [vmem:[%s1001 + $0x188] sm:$0xff]
        %v4572 = vld [vmem:[%s1001 + $0x190] sm:$0xff]
        %v4573 = vld [vmem:[%s1001 + $0x198] sm:$0xff]
        %v4574 = vld [vmem:[%s1001 + $0x1a0] sm:$0xff]
        %v4575 = vld [vmem:[%s1001 + $0x1a8] sm:$0xff]
        %v4576 = vld [vmem:[%s1001 + $0x1b0] sm:$0xff]
        %v4577 = vld [vmem:[%s1001 + $0x1b8] sm:$0xff]
        %v4578 = vld [vmem:[%s1001 + $0x1c0] sm:$0xff]
        %v4579 = vld [vmem:[%s1001 + $0x1c8] sm:$0xff]
        %v4580 = vld [vmem:[%s1001 + $0x1d0] sm:$0xff]
        %v4581 = vld [vmem:[%s1001 + $0x1d8] sm:$0xff]
        %v4582 = vld [vmem:[%s1001 + $0x1e0] sm:$0xff]
        %v4583 = vld [vmem:[%s1001 + $0x1e8] sm:$0xff]
        %v4584 = vld [vmem:[%s1001 + $0x1f0] sm:$0xff]
        %v4585 = vld [vmem:[%s1001 + $0x1f8] sm:$0xff]
        %v4586 = vld [vmem:[%s1001 + $0x200] sm:$0xff]
        %v4587 = vld [vmem:[%s1001 + $0x208] sm:$0xff]
        %v4588 = vld [vmem:[%s1001 + $0x210] sm:$0xff]
        %v4589 = vld [vmem:[%s1001 + $0x218] sm:$0xff]
        %v4590 = vld [vmem:[%s1001 + $0x220] sm:$0xff]
        %v4591 = vld [vmem:[%s1001 + $0x228] sm:$0xff]
        %v4592 = vld [vmem:[%s1001 + $0x230] sm:$0xff]
        %v4593 = vld [vmem:[%s1001 + $0x238] sm:$0xff]
        %v4594 = vld [vmem:[%s1001 + $0x240] sm:$0xff]
        %v4595 = vld [vmem:[%s1001 + $0x248] sm:$0xff]
        %v4596 = vld [vmem:[%s1001 + $0x250] sm:$0xff]
        %v4597 = vld [vmem:[%s1001 + $0x258] sm:$0xff]
        %v4598 = vld [vmem:[%s1001 + $0x260] sm:$0xff]
        %v4599 = vld [vmem:[%s1001 + $0x268] sm:$0xff]
        %v4600 = vld [vmem:[%s1001 + $0x270] sm:$0xff]
        %v4601 = vld [vmem:[%s1001 + $0x278] sm:$0xff]
        %v4602 = vld [vmem:[%s1001 + $0x280] sm:$0xff]
        %v4603 = vld [vmem:[%s1001 + $0x288] sm:$0xff]
        %v4604 = vld [vmem:[%s1001 + $0x290] sm:$0xff]
        %v4605 = vld [vmem:[%s1001 + $0x298] sm:$0xff]
        %v4606 = vld [vmem:[%s1001 + $0x2a0] sm:$0xff]
        %v4607 = vld [vmem:[%s1001 + $0x2a8] sm:$0xff]
        %v4608 = vld [vmem:[%s1001 + $0x2b0] sm:$0xff]
        %v4609 = vld [vmem:[%s1001 + $0x2b8] sm:$0xff]
        %v4610 = vld [vmem:[%s1001 + $0x2c0] sm:$0xff]
        %v4611 = vld [vmem:[%s1001 + $0x2c8] sm:$0xff]
        %v4612 = vld [vmem:[%s1001 + $0x2d0] sm:$0xff]
        %v4613 = vld [vmem:[%s1001 + $0x2d8] sm:$0xff]
        %v4614 = vld [vmem:[%s1001 + $0x2e0] sm:$0xff]
        %v4615 = vld [vmem:[%s1001 + $0x2e8] sm:$0xff]
        %v4616 = vld [vmem:[%s1001 + $0x2f0] sm:$0xff]
        %v4617 = vld [vmem:[%s1001 + $0x2f8] sm:$0xff]
        %v4618 = vld [vmem:[%s1001 + $0x300] sm:$0xff]
        %v4619 = vld [vmem:[%s1001 + $0x308] sm:$0xff]
        %v4620 = vld [vmem:[%s1001 + $0x310] sm:$0xff]
        %v4621 = vld [vmem:[%s1001 + $0x318] sm:$0xff]
        %v4622 = vld [vmem:[%s1001 + $0x320] sm:$0xff]
        %v4623 = vld [vmem:[%s1001 + $0x328] sm:$0xff]
        %v4624 = vld [vmem:[%s1001 + $0x330] sm:$0xff]
        %v4625 = vld [vmem:[%s1001 + $0x338] sm:$0xff]
        %v4626 = vld [vmem:[%s1001 + $0x340] sm:$0xff]
        %v4627 = vld [vmem:[%s1001 + $0x348] sm:$0xff]
        %v4628 = vld [vmem:[%s1001 + $0x350] sm:$0xff]
        %v4629 = vld [vmem:[%s1001 + $0x358] sm:$0xff]
        %v4630 = vld [vmem:[%s1001 + $0x360] sm:$0xff]
        %v4631 = vld [vmem:[%s1001 + $0x368] sm:$0xff]
        %v4632 = vld [vmem:[%s1001 + $0x370] sm:$0xff]
        %v4633 = vld [vmem:[%s1001 + $0x378] sm:$0xff]
        %v4634 = vld [vmem:[%s1001 + $0x380] sm:$0xff]
        %v4635 = vld [vmem:[%s1001 + $0x388] sm:$0xff]
        %v4636 = vld [vmem:[%s1001 + $0x390] sm:$0xff]
        %v4637 = vld [vmem:[%s1001 + $0x398] sm:$0xff]
        %v4638 = vld [vmem:[%s1001 + $0x3a0] sm:$0xff]
        %v4639 = vld [vmem:[%s1001 + $0x3a8] sm:$0xff]
        %v4640 = vld [vmem:[%s1001 + $0x3b0] sm:$0xff]
        %v4641 = vld [vmem:[%s1001 + $0x3b8] sm:$0xff]
        %v4642 = vld [vmem:[%s1001 + $0x3c0] sm:$0xff]
        %v4643 = vld [vmem:[%s1001 + $0x3c8] sm:$0xff]
        %v4644 = vld [vmem:[%s1001 + $0x3d0] sm:$0xff]
        %v4645 = vld [vmem:[%s1001 + $0x3d8] sm:$0xff]
        %v4646 = vld [vmem:[%s1001 + $0x3e0] sm:$0xff]
        %v4647 = vld [vmem:[%s1001 + $0x3e8] sm:$0xff]
        %v4648 = vld [vmem:[%s1001 + $0x3f0] sm:$0xff]
        %v4649 = vld [vmem:[%s1001 + $0x3f8] sm:$0xff]
        %v4650 = vld [vmem:[%s1010] sm:$0x3]
        %v4652 = vlaneseq
        %v4653 = vshrl.u32 %v4652, 7
        %v4654 = vsub.s32 0, %v4653
        %v4655 = vrot.slane %v4650, %v4654
        %v4656 = vlaneseq
        %v4657 = vshrl.u32 %v4656, 7
        %v4658 = vsub.s32 1, %v4657
        %v4659 = vrot.slane %v4650, %v4658
        %v4790 = vunpack.c.l.b16 %v4522
        %v4791 = vunpack.c.h.b16 %v4522
        %v4792 = vunpack.c.l.b16 %v4523
        %v4793 = vunpack.c.h.b16 %v4523
        %v4794 = vunpack.c.l.b16 %v4524
        %v4795 = vunpack.c.h.b16 %v4524
        %v4796 = vunpack.c.l.b16 %v4525
        %v4797 = vunpack.c.h.b16 %v4525
        %v4798 = vunpack.c.l.b16 %v4526
        %v4799 = vunpack.c.h.b16 %v4526
        %v4800 = vunpack.c.l.b16 %v4527
        %v4801 = vunpack.c.h.b16 %v4527
        %v4802 = vunpack.c.l.b16 %v4528
        %v4803 = vunpack.c.h.b16 %v4528
        %v4804 = vunpack.c.l.b16 %v4529
        %v4805 = vunpack.c.h.b16 %v4529
        %v4806 = vunpack.c.l.b16 %v4530
        %v4807 = vunpack.c.h.b16 %v4530
        %v4808 = vunpack.c.l.b16 %v4531
        %v4809 = vunpack.c.h.b16 %v4531
        %v4810 = vunpack.c.l.b16 %v4532
        %v4811 = vunpack.c.h.b16 %v4532
        %v4812 = vunpack.c.l.b16 %v4533
        %v4813 = vunpack.c.h.b16 %v4533
        %v4814 = vunpack.c.l.b16 %v4534
        %v4815 = vunpack.c.h.b16 %v4534
        %v4816 = vunpack.c.l.b16 %v4535
        %v4817 = vunpack.c.h.b16 %v4535
        %v4818 = vunpack.c.l.b16 %v4536
        %v4819 = vunpack.c.h.b16 %v4536
        %v4820 = vunpack.c.l.b16 %v4537
        %v4821 = vunpack.c.h.b16 %v4537
        %v4822 = vunpack.c.l.b16 %v4538
        %v4823 = vunpack.c.h.b16 %v4538
        %v4824 = vunpack.c.l.b16 %v4539
        %v4825 = vunpack.c.h.b16 %v4539
        %v4826 = vunpack.c.l.b16 %v4540
        %v4827 = vunpack.c.h.b16 %v4540
        %v4828 = vunpack.c.l.b16 %v4541
        %v4829 = vunpack.c.h.b16 %v4541
        %v4830 = vunpack.c.l.b16 %v4542
        %v4831 = vunpack.c.h.b16 %v4542
        %v4832 = vunpack.c.l.b16 %v4543
        %v4833 = vunpack.c.h.b16 %v4543
        %v4834 = vunpack.c.l.b16 %v4544
        %v4835 = vunpack.c.h.b16 %v4544
        %v4836 = vunpack.c.l.b16 %v4545
        %v4837 = vunpack.c.h.b16 %v4545
        %v4838 = vunpack.c.l.b16 %v4546
        %v4839 = vunpack.c.h.b16 %v4546
        %v4840 = vunpack.c.l.b16 %v4547
        %v4841 = vunpack.c.h.b16 %v4547
        %v4842 = vunpack.c.l.b16 %v4548
        %v4843 = vunpack.c.h.b16 %v4548
        %v4844 = vunpack.c.l.b16 %v4549
        %v4845 = vunpack.c.h.b16 %v4549
        %v4846 = vunpack.c.l.b16 %v4550
        %v4847 = vunpack.c.h.b16 %v4550
        %v4848 = vunpack.c.l.b16 %v4551
        %v4849 = vunpack.c.h.b16 %v4551
        %v4850 = vunpack.c.l.b16 %v4552
        %v4851 = vunpack.c.h.b16 %v4552
        %v4852 = vunpack.c.l.b16 %v4553
        %v4853 = vunpack.c.h.b16 %v4553
        %v4854 = vunpack.c.l.b16 %v4554
        %v4855 = vunpack.c.h.b16 %v4554
        %v4856 = vunpack.c.l.b16 %v4555
        %v4857 = vunpack.c.h.b16 %v4555
        %v4858 = vunpack.c.l.b16 %v4556
        %v4859 = vunpack.c.h.b16 %v4556
        %v4860 = vunpack.c.l.b16 %v4557
        %v4861 = vunpack.c.h.b16 %v4557
        %v4862 = vunpack.c.l.b16 %v4558
        %v4863 = vunpack.c.h.b16 %v4558
        %v4864 = vunpack.c.l.b16 %v4559
        %v4865 = vunpack.c.h.b16 %v4559
        %v4866 = vunpack.c.l.b16 %v4560
        %v4867 = vunpack.c.h.b16 %v4560
        %v4868 = vunpack.c.l.b16 %v4561
        %v4869 = vunpack.c.h.b16 %v4561
        %v4870 = vunpack.c.l.b16 %v4562
        %v4871 = vunpack.c.h.b16 %v4562
        %v4872 = vunpack.c.l.b16 %v4563
        %v4873 = vunpack.c.h.b16 %v4563
        %v4874 = vunpack.c.l.b16 %v4564
        %v4875 = vunpack.c.h.b16 %v4564
        %v4876 = vunpack.c.l.b16 %v4565
        %v4877 = vunpack.c.h.b16 %v4565
        %v4878 = vunpack.c.l.b16 %v4566
        %v4879 = vunpack.c.h.b16 %v4566
        %v4880 = vunpack.c.l.b16 %v4567
        %v4881 = vunpack.c.h.b16 %v4567
        %v4882 = vunpack.c.l.b16 %v4568
        %v4883 = vunpack.c.h.b16 %v4568
        %v4884 = vunpack.c.l.b16 %v4569
        %v4885 = vunpack.c.h.b16 %v4569
        %v4886 = vunpack.c.l.b16 %v4570
        %v4887 = vunpack.c.h.b16 %v4570
        %v4888 = vunpack.c.l.b16 %v4571
        %v4889 = vunpack.c.h.b16 %v4571
        %v4890 = vunpack.c.l.b16 %v4572
        %v4891 = vunpack.c.h.b16 %v4572
        %v4892 = vunpack.c.l.b16 %v4573
        %v4893 = vunpack.c.h.b16 %v4573
        %v4894 = vunpack.c.l.b16 %v4574
        %v4895 = vunpack.c.h.b16 %v4574
        %v4896 = vunpack.c.l.b16 %v4575
        %v4897 = vunpack.c.h.b16 %v4575
        %v4898 = vunpack.c.l.b16 %v4576
        %v4899 = vunpack.c.h.b16 %v4576
        %v4900 = vunpack.c.l.b16 %v4577
        %v4901 = vunpack.c.h.b16 %v4577
        %v4902 = vunpack.c.l.b16 %v4578
        %v4903 = vunpack.c.h.b16 %v4578
        %v4904 = vunpack.c.l.b16 %v4579
        %v4905 = vunpack.c.h.b16 %v4579
        %v4906 = vunpack.c.l.b16 %v4580
        %v4907 = vunpack.c.h.b16 %v4580
        %v4908 = vunpack.c.l.b16 %v4581
        %v4909 = vunpack.c.h.b16 %v4581
        %v4910 = vunpack.c.l.b16 %v4582
        %v4911 = vunpack.c.h.b16 %v4582
        %v4912 = vunpack.c.l.b16 %v4583
        %v4913 = vunpack.c.h.b16 %v4583
        %v4914 = vunpack.c.l.b16 %v4584
        %v4915 = vunpack.c.h.b16 %v4584
        %v4916 = vunpack.c.l.b16 %v4585
        %v4917 = vunpack.c.h.b16 %v4585
        %v4918 = vunpack.c.l.b16 %v4586
        %v4919 = vunpack.c.h.b16 %v4586
        %v4920 = vunpack.c.l.b16 %v4587
        %v4921 = vunpack.c.h.b16 %v4587
        %v4922 = vunpack.c.l.b16 %v4588
        %v4923 = vunpack.c.h.b16 %v4588
        %v4924 = vunpack.c.l.b16 %v4589
        %v4925 = vunpack.c.h.b16 %v4589
        %v4926 = vunpack.c.l.b16 %v4590
        %v4927 = vunpack.c.h.b16 %v4590
        %v4928 = vunpack.c.l.b16 %v4591
        %v4929 = vunpack.c.h.b16 %v4591
        %v4930 = vunpack.c.l.b16 %v4592
        %v4931 = vunpack.c.h.b16 %v4592
        %v4932 = vunpack.c.l.b16 %v4593
        %v4933 = vunpack.c.h.b16 %v4593
        %v4934 = vunpack.c.l.b16 %v4594
        %v4935 = vunpack.c.h.b16 %v4594
        %v4936 = vunpack.c.l.b16 %v4595
        %v4937 = vunpack.c.h.b16 %v4595
        %v4938 = vunpack.c.l.b16 %v4596
        %v4939 = vunpack.c.h.b16 %v4596
        %v4940 = vunpack.c.l.b16 %v4597
        %v4941 = vunpack.c.h.b16 %v4597
        %v4942 = vunpack.c.l.b16 %v4598
        %v4943 = vunpack.c.h.b16 %v4598
        %v4944 = vunpack.c.l.b16 %v4599
        %v4945 = vunpack.c.h.b16 %v4599
        %v4946 = vunpack.c.l.b16 %v4600
        %v4947 = vunpack.c.h.b16 %v4600
        %v4948 = vunpack.c.l.b16 %v4601
        %v4949 = vunpack.c.h.b16 %v4601
        %v4950 = vunpack.c.l.b16 %v4602
        %v4951 = vunpack.c.h.b16 %v4602
        %v4952 = vunpack.c.l.b16 %v4603
        %v4953 = vunpack.c.h.b16 %v4603
        %v4954 = vunpack.c.l.b16 %v4604
        %v4955 = vunpack.c.h.b16 %v4604
        %v4956 = vunpack.c.l.b16 %v4605
        %v4957 = vunpack.c.h.b16 %v4605
        %v4958 = vunpack.c.l.b16 %v4606
        %v4959 = vunpack.c.h.b16 %v4606
        %v4960 = vunpack.c.l.b16 %v4607
        %v4961 = vunpack.c.h.b16 %v4607
        %v4962 = vunpack.c.l.b16 %v4608
        %v4963 = vunpack.c.h.b16 %v4608
        %v4964 = vunpack.c.l.b16 %v4609
        %v4965 = vunpack.c.h.b16 %v4609
        %v4966 = vunpack.c.l.b16 %v4610
        %v4967 = vunpack.c.h.b16 %v4610
        %v4968 = vunpack.c.l.b16 %v4611
        %v4969 = vunpack.c.h.b16 %v4611
        %v4970 = vunpack.c.l.b16 %v4612
        %v4971 = vunpack.c.h.b16 %v4612
        %v4972 = vunpack.c.l.b16 %v4613
        %v4973 = vunpack.c.h.b16 %v4613
        %v4974 = vunpack.c.l.b16 %v4614
        %v4975 = vunpack.c.h.b16 %v4614
        %v4976 = vunpack.c.l.b16 %v4615
        %v4977 = vunpack.c.h.b16 %v4615
        %v4978 = vunpack.c.l.b16 %v4616
        %v4979 = vunpack.c.h.b16 %v4616
        %v4980 = vunpack.c.l.b16 %v4617
        %v4981 = vunpack.c.h.b16 %v4617
        %v4982 = vunpack.c.l.b16 %v4618
        %v4983 = vunpack.c.h.b16 %v4618
        %v4984 = vunpack.c.l.b16 %v4619
        %v4985 = vunpack.c.h.b16 %v4619
        %v4986 = vunpack.c.l.b16 %v4620
        %v4987 = vunpack.c.h.b16 %v4620
        %v4988 = vunpack.c.l.b16 %v4621
        %v4989 = vunpack.c.h.b16 %v4621
        %v4990 = vunpack.c.l.b16 %v4622
        %v4991 = vunpack.c.h.b16 %v4622
        %v4992 = vunpack.c.l.b16 %v4623
        %v4993 = vunpack.c.h.b16 %v4623
        %v4994 = vunpack.c.l.b16 %v4624
        %v4995 = vunpack.c.h.b16 %v4624
        %v4996 = vunpack.c.l.b16 %v4625
        %v4997 = vunpack.c.h.b16 %v4625
        %v4998 = vunpack.c.l.b16 %v4626
        %v4999 = vunpack.c.h.b16 %v4626
        %v5000 = vunpack.c.l.b16 %v4627
        %v5001 = vunpack.c.h.b16 %v4627
        %v5002 = vunpack.c.l.b16 %v4628
        %v5003 = vunpack.c.h.b16 %v4628
        %v5004 = vunpack.c.l.b16 %v4629
        %v5005 = vunpack.c.h.b16 %v4629
        %v5006 = vunpack.c.l.b16 %v4630
        %v5007 = vunpack.c.h.b16 %v4630
        %v5008 = vunpack.c.l.b16 %v4631
        %v5009 = vunpack.c.h.b16 %v4631
        %v5010 = vunpack.c.l.b16 %v4632
        %v5011 = vunpack.c.h.b16 %v4632
        %v5012 = vunpack.c.l.b16 %v4633
        %v5013 = vunpack.c.h.b16 %v4633
        %v5014 = vunpack.c.l.b16 %v4634
        %v5015 = vunpack.c.h.b16 %v4634
        %v5016 = vunpack.c.l.b16 %v4635
        %v5017 = vunpack.c.h.b16 %v4635
        %v5018 = vunpack.c.l.b16 %v4636
        %v5019 = vunpack.c.h.b16 %v4636
        %v5020 = vunpack.c.l.b16 %v4637
        %v5021 = vunpack.c.h.b16 %v4637
        %v5022 = vunpack.c.l.b16 %v4638
        %v5023 = vunpack.c.h.b16 %v4638
        %v5024 = vunpack.c.l.b16 %v4639
        %v5025 = vunpack.c.h.b16 %v4639
        %v5026 = vunpack.c.l.b16 %v4640
        %v5027 = vunpack.c.h.b16 %v4640
        %v5028 = vunpack.c.l.b16 %v4641
        %v5029 = vunpack.c.h.b16 %v4641
        %v5030 = vunpack.c.l.b16 %v4642
        %v5031 = vunpack.c.h.b16 %v4642
        %v5032 = vunpack.c.l.b16 %v4643
        %v5033 = vunpack.c.h.b16 %v4643
        %v5034 = vunpack.c.l.b16 %v4644
        %v5035 = vunpack.c.h.b16 %v4644
        %v5036 = vunpack.c.l.b16 %v4645
        %v5037 = vunpack.c.h.b16 %v4645
        %v5038 = vunpack.c.l.b16 %v4646
        %v5039 = vunpack.c.h.b16 %v4646
        %v5040 = vunpack.c.l.b16 %v4647
        %v5041 = vunpack.c.h.b16 %v4647
        %v5042 = vunpack.c.l.b16 %v4648
        %v5043 = vunpack.c.h.b16 %v4648
        %v5044 = vunpack.c.l.b16 %v4649
        %v5045 = vunpack.c.h.b16 %v4649
        %v5046 = vpack.c.b16 %v4792, %v4790
        %v5047 = vpack.c.b16 %v4793, %v4791
        %v5048 = vpack.c.b16 %v4796, %v4794
        %v5049 = vpack.c.b16 %v4797, %v4795
        %v5050 = vpack.c.b16 %v4800, %v4798
        %v5051 = vpack.c.b16 %v4801, %v4799
        %v5052 = vpack.c.b16 %v4804, %v4802
        %v5053 = vpack.c.b16 %v4805, %v4803
        %v5054 = vpack.c.b16 %v4808, %v4806
        %v5055 = vpack.c.b16 %v4809, %v4807
        %v5056 = vpack.c.b16 %v4812, %v4810
        %v5057 = vpack.c.b16 %v4813, %v4811
        %v5058 = vpack.c.b16 %v4816, %v4814
        %v5059 = vpack.c.b16 %v4817, %v4815
        %v5060 = vpack.c.b16 %v4820, %v4818
        %v5061 = vpack.c.b16 %v4821, %v4819
        %v5062 = vpack.c.b16 %v4824, %v4822
        %v5063 = vpack.c.b16 %v4825, %v4823
        %v5064 = vpack.c.b16 %v4828, %v4826
        %v5065 = vpack.c.b16 %v4829, %v4827
        %v5066 = vpack.c.b16 %v4832, %v4830
        %v5067 = vpack.c.b16 %v4833, %v4831
        %v5068 = vpack.c.b16 %v4836, %v4834
        %v5069 = vpack.c.b16 %v4837, %v4835
        %v5070 = vpack.c.b16 %v4840, %v4838
        %v5071 = vpack.c.b16 %v4841, %v4839
        %v5072 = vpack.c.b16 %v4844, %v4842
        %v5073 = vpack.c.b16 %v4845, %v4843
        %v5074 = vpack.c.b16 %v4848, %v4846
        %v5075 = vpack.c.b16 %v4849, %v4847
        %v5076 = vpack.c.b16 %v4852, %v4850
        %v5077 = vpack.c.b16 %v4853, %v4851
        %v5078 = vpack.c.b16 %v4856, %v4854
        %v5079 = vpack.c.b16 %v4857, %v4855
        %v5080 = vpack.c.b16 %v4860, %v4858
        %v5081 = vpack.c.b16 %v4861, %v4859
        %v5082 = vpack.c.b16 %v4864, %v4862
        %v5083 = vpack.c.b16 %v4865, %v4863
        %v5084 = vpack.c.b16 %v4868, %v4866
        %v5085 = vpack.c.b16 %v4869, %v4867
        %v5086 = vpack.c.b16 %v4872, %v4870
        %v5087 = vpack.c.b16 %v4873, %v4871
        %v5088 = vpack.c.b16 %v4876, %v4874
        %v5089 = vpack.c.b16 %v4877, %v4875
        %v5090 = vpack.c.b16 %v4880, %v4878
        %v5091 = vpack.c.b16 %v4881, %v4879
        %v5092 = vpack.c.b16 %v4884, %v4882
        %v5093 = vpack.c.b16 %v4885, %v4883
        %v5094 = vpack.c.b16 %v4888, %v4886
        %v5095 = vpack.c.b16 %v4889, %v4887
        %v5096 = vpack.c.b16 %v4892, %v4890
        %v5097 = vpack.c.b16 %v4893, %v4891
        %v5098 = vpack.c.b16 %v4896, %v4894
        %v5099 = vpack.c.b16 %v4897, %v4895
        %v5100 = vpack.c.b16 %v4900, %v4898
        %v5101 = vpack.c.b16 %v4901, %v4899
        %v5102 = vpack.c.b16 %v4904, %v4902
        %v5103 = vpack.c.b16 %v4905, %v4903
        %v5104 = vpack.c.b16 %v4908, %v4906
        %v5105 = vpack.c.b16 %v4909, %v4907
        %v5106 = vpack.c.b16 %v4912, %v4910
        %v5107 = vpack.c.b16 %v4913, %v4911
        %v5108 = vpack.c.b16 %v4916, %v4914
        %v5109 = vpack.c.b16 %v4917, %v4915
        %v5110 = vpack.c.b16 %v4920, %v4918
        %v5111 = vpack.c.b16 %v4921, %v4919
        %v5112 = vpack.c.b16 %v4924, %v4922
        %v5113 = vpack.c.b16 %v4925, %v4923
        %v5114 = vpack.c.b16 %v4928, %v4926
        %v5115 = vpack.c.b16 %v4929, %v4927
        %v5116 = vpack.c.b16 %v4932, %v4930
        %v5117 = vpack.c.b16 %v4933, %v4931
        %v5118 = vpack.c.b16 %v4936, %v4934
        %v5119 = vpack.c.b16 %v4937, %v4935
        %v5120 = vpack.c.b16 %v4940, %v4938
        %v5121 = vpack.c.b16 %v4941, %v4939
        %v5122 = vpack.c.b16 %v4944, %v4942
        %v5123 = vpack.c.b16 %v4945, %v4943
        %v5124 = vpack.c.b16 %v4948, %v4946
        %v5125 = vpack.c.b16 %v4949, %v4947
        %v5126 = vpack.c.b16 %v4952, %v4950
        %v5127 = vpack.c.b16 %v4953, %v4951
        %v5128 = vpack.c.b16 %v4956, %v4954
        %v5129 = vpack.c.b16 %v4957, %v4955
        %v5130 = vpack.c.b16 %v4960, %v4958
        %v5131 = vpack.c.b16 %v4961, %v4959
        %v5132 = vpack.c.b16 %v4964, %v4962
        %v5133 = vpack.c.b16 %v4965, %v4963
        %v5134 = vpack.c.b16 %v4968, %v4966
        %v5135 = vpack.c.b16 %v4969, %v4967
        %v5136 = vpack.c.b16 %v4972, %v4970
        %v5137 = vpack.c.b16 %v4973, %v4971
        %v5138 = vpack.c.b16 %v4976, %v4974
        %v5139 = vpack.c.b16 %v4977, %v4975
        %v5140 = vpack.c.b16 %v4980, %v4978
        %v5141 = vpack.c.b16 %v4981, %v4979
        %v5142 = vpack.c.b16 %v4984, %v4982
        %v5143 = vpack.c.b16 %v4985, %v4983
        %v5144 = vpack.c.b16 %v4988, %v4986
        %v5145 = vpack.c.b16 %v4989, %v4987
        %v5146 = vpack.c.b16 %v4992, %v4990
        %v5147 = vpack.c.b16 %v4993, %v4991
        %v5148 = vpack.c.b16 %v4996, %v4994
        %v5149 = vpack.c.b16 %v4997, %v4995
        %v5150 = vpack.c.b16 %v5000, %v4998
        %v5151 = vpack.c.b16 %v5001, %v4999
        %v5152 = vpack.c.b16 %v5004, %v5002
        %v5153 = vpack.c.b16 %v5005, %v5003
        %v5154 = vpack.c.b16 %v5008, %v5006
        %v5155 = vpack.c.b16 %v5009, %v5007
        %v5156 = vpack.c.b16 %v5012, %v5010
        %v5157 = vpack.c.b16 %v5013, %v5011
        %v5158 = vpack.c.b16 %v5016, %v5014
        %v5159 = vpack.c.b16 %v5017, %v5015
        %v5160 = vpack.c.b16 %v5020, %v5018
        %v5161 = vpack.c.b16 %v5021, %v5019
        %v5162 = vpack.c.b16 %v5024, %v5022
        %v5163 = vpack.c.b16 %v5025, %v5023
        %v5164 = vpack.c.b16 %v5028, %v5026
        %v5165 = vpack.c.b16 %v5029, %v5027
        %v5166 = vpack.c.b16 %v5032, %v5030
        %v5167 = vpack.c.b16 %v5033, %v5031
        %v5168 = vpack.c.b16 %v5036, %v5034
        %v5169 = vpack.c.b16 %v5037, %v5035
        %v5170 = vpack.c.b16 %v5040, %v5038
        %v5171 = vpack.c.b16 %v5041, %v5039
        %v5172 = vpack.c.b16 %v5044, %v5042
        %v5173 = vpack.c.b16 %v5045, %v5043
        %5302 = vmatprep.subr.bf16.mxu0 %v5061
        %5303 = vmatpush1.bf16.msra.mxu0 %v5060
        %5304 = vmatprep.subr.bf16.mxu0 %v5059
        %5305 = vmatpush1.bf16.msra.mxu0 %v5058
        %5306 = vmatprep.subr.bf16.mxu0 %v5057
        %5307 = vmatpush1.bf16.msra.mxu0 %v5056
        %5308 = vmatprep.subr.bf16.mxu0 %v5055
        %5309 = vmatpush1.bf16.msra.mxu0 %v5054
        %5310 = vmatprep.subr.bf16.mxu0 %v5053
        %5311 = vmatpush1.bf16.msra.mxu0 %v5052
        %5312 = vmatprep.subr.bf16.mxu0 %v5051
        %5313 = vmatpush1.bf16.msra.mxu0 %v5050
        %5314 = vmatprep.subr.bf16.mxu0 %v5049
        %5315 = vmatpush1.bf16.msra.mxu0 %v5048
        %5316 = vmatprep.subr.bf16.mxu0 %v5047
        %5317 = vmatpush1.bf16.msra.mxu0 %v5046
        %5318 = vmatprep.subr.bf16.mxu0 %v5077
        %5319 = vmatpush2.bf16.msra.mxu0 %v5076
        %5320 = vmatprep.subr.bf16.mxu0 %v5075
        %5321 = vmatpush2.bf16.msra.mxu0 %v5074
        %5322 = vmatprep.subr.bf16.mxu0 %v5073
        %5323 = vmatpush2.bf16.msra.mxu0 %v5072
        %5324 = vmatprep.subr.bf16.mxu0 %v5071
        %5325 = vmatpush2.bf16.msra.mxu0 %v5070
        %5326 = vmatprep.subr.bf16.mxu0 %v5069
        %5327 = vmatpush2.bf16.msra.mxu0 %v5068
        %5328 = vmatprep.subr.bf16.mxu0 %v5067
        %5329 = vmatpush2.bf16.msra.mxu0 %v5066
        %5330 = vmatprep.subr.bf16.mxu0 %v5065
        %5331 = vmatpush2.bf16.msra.mxu0 %v5064
        %5332 = vmatprep.subr.bf16.mxu0 %v5063
        %5333 = vmatpush2.bf16.msra.mxu0 %v5062
        %5334 = vmatprep.mubr.bf16.mxu0 %v4515
        %5335 = vmatmul.mubr.bf16.gmra.mxu0 %v4514
        %v5336 = vpop.f32.mrf.mxu0
        %v5337 = vadd.f32 %v4655, %v5336
        %v5338 = vpop.f32.mrf.mxu0
        %v5339 = vadd.f32 %v4659, %v5338
        %v5340 = vpop.f32.mrf.mxu0
        %v5341 = vadd.f32 %v4655, %v5340
        %v5342 = vpop.f32.mrf.mxu0
        %v5343 = vadd.f32 %v4659, %v5342
        %5344 = vdwg.mxu0
        %5345 = vmatprep.subr.bf16.mxu0 %v5093
        %5346 = vmatpush1.bf16.msra.mxu0 %v5092
        %5347 = vmatprep.subr.bf16.mxu0 %v5091
        %5348 = vmatpush1.bf16.msra.mxu0 %v5090
        %5349 = vmatprep.subr.bf16.mxu0 %v5089
        %5350 = vmatpush1.bf16.msra.mxu0 %v5088
        %5351 = vmatprep.subr.bf16.mxu0 %v5087
        %5352 = vmatpush1.bf16.msra.mxu0 %v5086
        %5353 = vmatprep.subr.bf16.mxu0 %v5085
        %5354 = vmatpush1.bf16.msra.mxu0 %v5084
        %5355 = vmatprep.subr.bf16.mxu0 %v5083
        %5356 = vmatpush1.bf16.msra.mxu0 %v5082
        %5357 = vmatprep.subr.bf16.mxu0 %v5081
        %5358 = vmatpush1.bf16.msra.mxu0 %v5080
        %5359 = vmatprep.subr.bf16.mxu0 %v5079
        %5360 = vmatpush1.bf16.msra.mxu0 %v5078
        %5361 = vmatprep.subr.bf16.mxu0 %v5109
        %5362 = vmatpush2.bf16.msra.mxu0 %v5108
        %5363 = vmatprep.subr.bf16.mxu0 %v5107
        %5364 = vmatpush2.bf16.msra.mxu0 %v5106
        %5365 = vmatprep.subr.bf16.mxu0 %v5105
        %5366 = vmatpush2.bf16.msra.mxu0 %v5104
        %5367 = vmatprep.subr.bf16.mxu0 %v5103
        %5368 = vmatpush2.bf16.msra.mxu0 %v5102
        %5369 = vmatprep.subr.bf16.mxu0 %v5101
        %5370 = vmatpush2.bf16.msra.mxu0 %v5100
        %5371 = vmatprep.subr.bf16.mxu0 %v5099
        %5372 = vmatpush2.bf16.msra.mxu0 %v5098
        %5373 = vmatprep.subr.bf16.mxu0 %v5097
        %5374 = vmatpush2.bf16.msra.mxu0 %v5096
        %5375 = vmatprep.subr.bf16.mxu0 %v5095
        %5376 = vmatpush2.bf16.msra.mxu0 %v5094
        %5377 = vmatprep.mubr.bf16.mxu0 %v4517
        %5378 = vmatmul.mubr.bf16.gmra.mxu0 %v4516
        %v5379 = vpop.f32.mrf.mxu0
        %v5380 = vadd.f32 %v5337, %v5379
        %v5381 = vpop.f32.mrf.mxu0
        %v5382 = vadd.f32 %v5339, %v5381
        %v5383 = vpop.f32.mrf.mxu0
        %v5384 = vadd.f32 %v5341, %v5383
        %v5385 = vpop.f32.mrf.mxu0
        %v5386 = vadd.f32 %v5343, %v5385
        %5387 = vdwg.mxu0
        %5388 = vmatprep.subr.bf16.mxu0 %v5125
        %5389 = vmatpush1.bf16.msra.mxu0 %v5124
        %5390 = vmatprep.subr.bf16.mxu0 %v5123
        %5391 = vmatpush1.bf16.msra.mxu0 %v5122
        %5392 = vmatprep.subr.bf16.mxu0 %v5121
        %5393 = vmatpush1.bf16.msra.mxu0 %v5120
        %5394 = vmatprep.subr.bf16.mxu0 %v5119
        %5395 = vmatpush1.bf16.msra.mxu0 %v5118
        %5396 = vmatprep.subr.bf16.mxu0 %v5117
        %5397 = vmatpush1.bf16.msra.mxu0 %v5116
        %5398 = vmatprep.subr.bf16.mxu0 %v5115
        %5399 = vmatpush1.bf16.msra.mxu0 %v5114
        %5400 = vmatprep.subr.bf16.mxu0 %v5113
        %5401 = vmatpush1.bf16.msra.mxu0 %v5112
        %5402 = vmatprep.subr.bf16.mxu0 %v5111
        %5403 = vmatpush1.bf16.msra.mxu0 %v5110
        %5404 = vmatprep.subr.bf16.mxu0 %v5141
        %5405 = vmatpush2.bf16.msra.mxu0 %v5140
        %5406 = vmatprep.subr.bf16.mxu0 %v5139
        %5407 = vmatpush2.bf16.msra.mxu0 %v5138
        %5408 = vmatprep.subr.bf16.mxu0 %v5137
        %5409 = vmatpush2.bf16.msra.mxu0 %v5136
        %5410 = vmatprep.subr.bf16.mxu0 %v5135
        %5411 = vmatpush2.bf16.msra.mxu0 %v5134
        %5412 = vmatprep.subr.bf16.mxu0 %v5133
        %5413 = vmatpush2.bf16.msra.mxu0 %v5132
        %5414 = vmatprep.subr.bf16.mxu0 %v5131
        %5415 = vmatpush2.bf16.msra.mxu0 %v5130
        %5416 = vmatprep.subr.bf16.mxu0 %v5129
        %5417 = vmatpush2.bf16.msra.mxu0 %v5128
        %5418 = vmatprep.subr.bf16.mxu0 %v5127
        %5419 = vmatpush2.bf16.msra.mxu0 %v5126
        %5420 = vmatprep.mubr.bf16.mxu0 %v4519
        %5421 = vmatmul.mubr.bf16.gmra.mxu0 %v4518
        %v5422 = vpop.f32.mrf.mxu0
        %v5423 = vadd.f32 %v5380, %v5422
        %v5424 = vpop.f32.mrf.mxu0
        %v5425 = vadd.f32 %v5382, %v5424
        %v5426 = vpop.f32.mrf.mxu0
        %v5427 = vadd.f32 %v5384, %v5426
        %v5428 = vpop.f32.mrf.mxu0
        %v5429 = vadd.f32 %v5386, %v5428
        %5430 = vdwg.mxu0
        %5431 = vmatprep.subr.bf16.mxu0 %v5157
        %5432 = vmatpush1.bf16.msra.mxu0 %v5156
        %5433 = vmatprep.subr.bf16.mxu0 %v5155
        %5434 = vmatpush1.bf16.msra.mxu0 %v5154
        %5435 = vmatprep.subr.bf16.mxu0 %v5153
        %5436 = vmatpush1.bf16.msra.mxu0 %v5152
        %5437 = vmatprep.subr.bf16.mxu0 %v5151
        %5438 = vmatpush1.bf16.msra.mxu0 %v5150
        %5439 = vmatprep.subr.bf16.mxu0 %v5149
        %5440 = vmatpush1.bf16.msra.mxu0 %v5148
        %5441 = vmatprep.subr.bf16.mxu0 %v5147
        %5442 = vmatpush1.bf16.msra.mxu0 %v5146
        %5443 = vmatprep.subr.bf16.mxu0 %v5145
        %5444 = vmatpush1.bf16.msra.mxu0 %v5144
        %5445 = vmatprep.subr.bf16.mxu0 %v5143
        %5446 = vmatpush1.bf16.msra.mxu0 %v5142
        %5447 = vmatprep.subr.bf16.mxu0 %v5173
        %5448 = vmatpush2.bf16.msra.mxu0 %v5172
        %5449 = vmatprep.subr.bf16.mxu0 %v5171
        %5450 = vmatpush2.bf16.msra.mxu0 %v5170
        %5451 = vmatprep.subr.bf16.mxu0 %v5169
        %5452 = vmatpush2.bf16.msra.mxu0 %v5168
        %5453 = vmatprep.subr.bf16.mxu0 %v5167
        %5454 = vmatpush2.bf16.msra.mxu0 %v5166
        %5455 = vmatprep.subr.bf16.mxu0 %v5165
        %5456 = vmatpush2.bf16.msra.mxu0 %v5164
        %5457 = vmatprep.subr.bf16.mxu0 %v5163
        %5458 = vmatpush2.bf16.msra.mxu0 %v5162
        %5459 = vmatprep.subr.bf16.mxu0 %v5161
        %5460 = vmatpush2.bf16.msra.mxu0 %v5160
        %5461 = vmatprep.subr.bf16.mxu0 %v5159
        %5462 = vmatpush2.bf16.msra.mxu0 %v5158
        %5463 = vmatprep.mubr.bf16.mxu0 %v4521
        %5464 = vmatmul.mubr.bf16.gmra.mxu0 %v4520
        %v5465 = vpop.f32.mrf.mxu0
        %v5466 = vadd.f32 %v5423, %v5465
        %v5467 = vpop.f32.mrf.mxu0
        %v5468 = vadd.f32 %v5425, %v5467
        %v5469 = vpop.f32.mrf.mxu0
        %v5470 = vadd.f32 %v5427, %v5469
        %v5471 = vpop.f32.mrf.mxu0
        %v5472 = vadd.f32 %v5429, %v5471
        %5473 = vdwg.mxu0
        %v5474 = vadd.f32 %v3318, %v5466
        %v5475 = vadd.f32 %v3319, %v5468
        %v5476 = vadd.f32 %v3320, %v5470
        %v5477 = vadd.f32 %v3321, %v5472
        %5478 = vst [vmem:[#allocation2] sm:$0xff] %v5474
        %5479 = vst [vmem:[#allocation2 + $0x8] sm:$0xff] %v5475
        %5480 = vst [vmem:[#allocation2 + $0x10] sm:$0xff] %v5476
        %5481 = vst [vmem:[#allocation2 + $0x18] sm:$0xff] %v5477
        %p5482 = scmp.eq.s32.totalorder %s60, 1
        // Predicated region
        $region161: #{vision_transformer_forward.3} parent=99 // pred_check
          %p5483 = pneg %p5482
        $region162: #{vision_transformer_forward.3} parent=99 // pred_check_branch
          %5485 = sbr.rel (%p5483) target = $region164
        $region163: #{vision_transformer_forward.3} parent=99 // pred_region
          %v5486 = vld [vmem:[#allocation2] sm:$0xff]
          %v5487 = vld [vmem:[#allocation2 + $0x8] sm:$0xff]
          %v5488 = vld [vmem:[#allocation2 + $0x10] sm:$0xff]
          %v5489 = vld [vmem:[#allocation2 + $0x18] sm:$0xff]
          %v5490 = vld [vmem:[#allocation17] sm:$0x3]
          %v5491 = vld [vmem:[#allocation18] sm:$0x3]
          %v5492 = vadd.f32 %v5486, %v5487
          %5493 = vadd.xlane.f32.xlu0 %v5492
          %v5494 = vpop.xlane.xlu0 %5493
          %v5495 = vadd.f32 %v5488, %v5489
          %5496 = vadd.xlane.f32.xlu0 %v5495
          %v5497 = vpop.xlane.xlu0 %5496
          %v5498 = vmul.f32 %v5494, %v1212
          %v5499 = vmul.f32 %v5497, %v1212
          %v5500 = vsub.f32 %v5486, %v5498
          %v5501 = vsub.f32 %v5487, %v5498
          %v5502 = vsub.f32 %v5488, %v5499
          %v5503 = vsub.f32 %v5489, %v5499
          %v5504 = vmul.f32 %v5500, %v5500
          %v5505 = vmul.f32 %v5501, %v5501
          %v5506 = vmul.f32 %v5502, %v5502
          %v5507 = vmul.f32 %v5503, %v5503
          %v5508 = vadd.f32 %v5504, %v5505
          %5509 = vadd.xlane.f32.xlu0 %v5508
          %v5510 = vpop.xlane.xlu0 %5509
          %v5511 = vadd.f32 %v5506, %v5507
          %5512 = vadd.xlane.f32.xlu0 %v5511
          %v5513 = vpop.xlane.xlu0 %5512
          %v5514 = vmul.f32 %v5510, %v1212
          %v5515 = vmul.f32 %v5513, %v1212
          %v5516 = vadd.f32 %v5514, 1e-06
          %v5517 = vadd.f32 %v5515, 1e-06
          %v5518 = vrsqrt.pop %v5516
          %v5519 = vrsqrt.pop %v5517
          %v5520 = vmul.f32 %v5500, %v5518
          %v5521 = vmul.f32 %v5501, %v5518
          %v5522 = vmul.f32 %v5502, %v5519
          %v5523 = vmul.f32 %v5503, %v5519
          %v5525 = vlaneseq
          %v5526 = vshrl.u32 %v5525, 7
          %v5527 = vsub.s32 0, %v5526
          %v5528 = vrot.slane %v5490, %v5527
          %v5529 = vlaneseq
          %v5530 = vshrl.u32 %v5529, 7
          %v5531 = vsub.s32 1, %v5530
          %v5532 = vrot.slane %v5490, %v5531
          %v5535 = vmul.f32 %v5520, %v5528
          %v5536 = vmul.f32 %v5521, %v5532
          %v5537 = vmul.f32 %v5522, %v5528
          %v5538 = vmul.f32 %v5523, %v5532
          %v5540 = vlaneseq
          %v5541 = vshrl.u32 %v5540, 7
          %v5542 = vsub.s32 0, %v5541
          %v5543 = vrot.slane %v5491, %v5542
          %v5544 = vlaneseq
          %v5545 = vshrl.u32 %v5544, 7
          %v5546 = vsub.s32 1, %v5545
          %v5547 = vrot.slane %v5491, %v5546
          %v5550 = vadd.f32 %v5535, %v5543
          %v5551 = vadd.f32 %v5536, %v5547
          %v5552 = vadd.f32 %v5537, %v5543
          %v5553 = vadd.f32 %v5538, %v5547
          %5554 = vst [vmem:[%s1185] sm:$0xff] %v5550
          %5555 = vst [vmem:[%s1185 + $0x8] sm:$0xff] %v5551
          %5556 = vst [vmem:[%s1185 + $0x10] sm:$0xff] %v5552
          %5557 = vst [vmem:[%s1185 + $0x18] sm:$0xff] %v5553
          %v5562 = vcombine.low %v5550, %v5551
          %v5564 = vunpack.c.l.s4 1983009808
          %v5565 = vunpack.c.0.s8 %v5564
          %v5566 = vlaneseq
          %v5567 = vshrl.u32 %v5566, 7
          %v5568 = vsub.s32 %v5565, %v5567
          %v5569 = vrot.slane %v5562, %v5568
          %v5570 = vcombine.low %v5552, %v5553
          %v5572 = vunpack.c.l.s4 1983009808
          %v5573 = vunpack.c.0.s8 %v5572
          %v5574 = vlaneseq
          %v5575 = vshrl.u32 %v5574, 7
          %v5576 = vsub.s32 %v5573, %v5575
          %v5577 = vrot.slane %v5570, %v5576
          %vm5578 = vcmask 1044484
          %v5579 = vsel %vm5578, %v5569, %v5569
          %vm5580 = vcmask 1046534
          %v5581 = vsel %vm5580, %v5569, %v5579
          %v5582 = vrot.slane %v5577, 7
          %vm5583 = vcmask 1041409
          %v5584 = vsel %vm5583, %v5582, %v5581
          %vm5585 = vcmask 1043459
          %v5586 = vsel %vm5585, %v5582, %v5584
          %vm5587 = vcmask 1045509
          %v5588 = vsel %vm5587, %v5582, %v5586
          %vm5589 = vcmask 1047559
          %v5590 = vsel %vm5589, %v5582, %v5588
          %5592 = vst [vmem:[#allocation26] sm:$0xf] %v5590
          %v5593 = vld [vmem:[#allocation24] sm:$0x3]
          %v5594 = vadd.f32 %v5593, 1e-05
          %v5595 = vrsqrt.pop %v5594
          %v5596 = vld [vmem:[#allocation23] sm:$0x3]
          %v5598 = vlaneseq
          %v5599 = vshrl.u32 %v5598, 7
          %v5600 = vsub.s32 0, %v5599
          %v5601 = vrot.slane %v5596, %v5600
          %v5602 = vlaneseq
          %v5603 = vshrl.u32 %v5602, 7
          %v5604 = vsub.s32 1, %v5603
          %v5605 = vrot.slane %v5596, %v5604
          %v5608 = vsub.f32 %v5550, %v5601
          %v5609 = vsub.f32 %v5551, %v5605
          %v5610 = vsub.f32 %v5552, %v5601
          %v5611 = vsub.f32 %v5553, %v5605
          %v5613 = vlaneseq
          %v5614 = vshrl.u32 %v5613, 7
          %v5615 = vsub.s32 0, %v5614
          %v5616 = vrot.slane %v5595, %v5615
          %v5617 = vlaneseq
          %v5618 = vshrl.u32 %v5617, 7
          %v5619 = vsub.s32 1, %v5618
          %v5620 = vrot.slane %v5595, %v5619
          %v5623 = vmul.f32 %v5608, %v5616
          %v5624 = vmul.f32 %v5609, %v5620
          %v5625 = vmul.f32 %v5610, %v5616
          %v5626 = vmul.f32 %v5611, %v5620
          %v5627 = vld [vmem:[#allocation20] sm:$0x3]
          %v5629 = vlaneseq
          %v5630 = vshrl.u32 %v5629, 7
          %v5631 = vsub.s32 0, %v5630
          %v5632 = vrot.slane %v5627, %v5631
          %v5633 = vlaneseq
          %v5634 = vshrl.u32 %v5633, 7
          %v5635 = vsub.s32 1, %v5634
          %v5636 = vrot.slane %v5627, %v5635
          %v5639 = vmul.f32 %v5623, %v5632
          %v5640 = vmul.f32 %v5624, %v5636
          %v5641 = vmul.f32 %v5625, %v5632
          %v5642 = vmul.f32 %v5626, %v5636
          %v5643 = vld [vmem:[#allocation21] sm:$0x3]
          %v5645 = vlaneseq
          %v5646 = vshrl.u32 %v5645, 7
          %v5647 = vsub.s32 0, %v5646
          %v5648 = vrot.slane %v5643, %v5647
          %v5649 = vlaneseq
          %v5650 = vshrl.u32 %v5649, 7
          %v5651 = vsub.s32 1, %v5650
          %v5652 = vrot.slane %v5643, %v5651
          %v5655 = vadd.f32 %v5639, %v5648
          %v5656 = vadd.f32 %v5640, %v5652
          %v5657 = vadd.f32 %v5641, %v5648
          %v5658 = vadd.f32 %v5642, %v5652
          %v5663 = vcombine.low %v5655, %v5656
          %v5665 = vunpack.c.l.s4 1983009808
          %v5666 = vunpack.c.0.s8 %v5665
          %v5667 = vlaneseq
          %v5668 = vshrl.u32 %v5667, 7
          %v5669 = vsub.s32 %v5666, %v5668
          %v5670 = vrot.slane %v5663, %v5669
          %v5671 = vcombine.low %v5657, %v5658
          %v5673 = vunpack.c.l.s4 1983009808
          %v5674 = vunpack.c.0.s8 %v5673
          %v5675 = vlaneseq
          %v5676 = vshrl.u32 %v5675, 7
          %v5677 = vsub.s32 %v5674, %v5676
          %v5678 = vrot.slane %v5671, %v5677
          %v5679 = vsel %vm5578, %v5670, %v5670
          %v5680 = vsel %vm5580, %v5670, %v5679
          %v5681 = vrot.slane %v5678, 7
          %v5682 = vsel %vm5583, %v5681, %v5680
          %v5683 = vsel %vm5585, %v5681, %v5682
          %v5684 = vsel %vm5587, %v5681, %v5683
          %v5685 = vsel %vm5589, %v5681, %v5684
          %5687 = vst [vmem:[#allocation27] sm:$0xf] %v5685
          %v5688 = vpack.c.bf16 %v5655, %v5655
          %v5689 = vpack.c.bf16 %v5656, %v5656
          %v5690 = vpack.c.bf16 %v5657, %v5657
          %v5691 = vpack.c.bf16 %v5658, %v5658
          %v5692 = vld [vmem:[%s19] sm:$0xf]
          %v5693 = vld [vmem:[%s19 + $0x4] sm:$0xf]
          %v5694 = vld [vmem:[%s19 + $0x8] sm:$0xf]
          %v5695 = vld [vmem:[%s19 + $0xc] sm:$0xf]
          %v5696 = vld [vmem:[%s19 + $0x10] sm:$0xf]
          %v5697 = vld [vmem:[%s19 + $0x14] sm:$0xf]
          %v5698 = vld [vmem:[%s19 + $0x18] sm:$0xf]
          %v5699 = vld [vmem:[%s19 + $0x1c] sm:$0xf]
          %v5700 = vld [vmem:[%s19 + $0x20] sm:$0xf]
          %v5701 = vld [vmem:[%s19 + $0x24] sm:$0xf]
          %v5702 = vld [vmem:[%s19 + $0x28] sm:$0xf]
          %v5703 = vld [vmem:[%s19 + $0x2c] sm:$0xf]
          %v5704 = vld [vmem:[%s19 + $0x30] sm:$0xf]
          %v5705 = vld [vmem:[%s19 + $0x34] sm:$0xf]
          %v5706 = vld [vmem:[%s19 + $0x38] sm:$0xf]
          %v5707 = vld [vmem:[%s19 + $0x3c] sm:$0xf]
          %v5708 = vld [vmem:[%s19 + $0x40] sm:$0xf]
          %v5709 = vld [vmem:[%s19 + $0x44] sm:$0xf]
          %v5710 = vld [vmem:[%s19 + $0x48] sm:$0xf]
          %v5711 = vld [vmem:[%s19 + $0x4c] sm:$0xf]
          %v5712 = vld [vmem:[%s19 + $0x50] sm:$0xf]
          %v5713 = vld [vmem:[%s19 + $0x54] sm:$0xf]
          %v5714 = vld [vmem:[%s19 + $0x58] sm:$0xf]
          %v5715 = vld [vmem:[%s19 + $0x5c] sm:$0xf]
          %v5716 = vld [vmem:[%s19 + $0x60] sm:$0xf]
          %v5717 = vld [vmem:[%s19 + $0x64] sm:$0xf]
          %v5718 = vld [vmem:[%s19 + $0x68] sm:$0xf]
          %v5719 = vld [vmem:[%s19 + $0x6c] sm:$0xf]
          %v5720 = vld [vmem:[%s19 + $0x70] sm:$0xf]
          %v5721 = vld [vmem:[%s19 + $0x74] sm:$0xf]
          %v5722 = vld [vmem:[%s19 + $0x78] sm:$0xf]
          %v5723 = vld [vmem:[%s19 + $0x7c] sm:$0xf]
          %v5728 = vunpack.c.l.b16 %v5688
          %v5729 = vunpack.c.l.b16 %v5689
          %v5730 = vunpack.c.l.b16 %v5690
          %v5731 = vunpack.c.l.b16 %v5691
          %v5732 = vrot.slane %v5730, 7
          %v5733 = vsel %vm5583, %v5732, %v5728
          %v5734 = vrot.slane %v5731, 7
          %v5735 = vsel %vm5583, %v5734, %v5729
          %v5736 = vpack.c.b16 %v5733, %v5733
          %v5737 = vpack.c.b16 %v5735, %v5735
          %v5772 = vunpack.c.l.b16 %v5692
          %v5773 = vunpack.c.l.b16 %v5693
          %v5774 = vunpack.c.l.b16 %v5694
          %v5775 = vunpack.c.l.b16 %v5695
          %v5776 = vunpack.c.l.b16 %v5696
          %v5777 = vunpack.c.l.b16 %v5697
          %v5778 = vunpack.c.l.b16 %v5698
          %v5779 = vunpack.c.l.b16 %v5699
          %v5780 = vunpack.c.l.b16 %v5700
          %v5781 = vunpack.c.l.b16 %v5701
          %v5782 = vunpack.c.l.b16 %v5702
          %v5783 = vunpack.c.l.b16 %v5703
          %v5784 = vunpack.c.l.b16 %v5704
          %v5785 = vunpack.c.l.b16 %v5705
          %v5786 = vunpack.c.l.b16 %v5706
          %v5787 = vunpack.c.l.b16 %v5707
          %v5788 = vunpack.c.l.b16 %v5708
          %v5789 = vunpack.c.l.b16 %v5709
          %v5790 = vunpack.c.l.b16 %v5710
          %v5791 = vunpack.c.l.b16 %v5711
          %v5792 = vunpack.c.l.b16 %v5712
          %v5793 = vunpack.c.l.b16 %v5713
          %v5794 = vunpack.c.l.b16 %v5714
          %v5795 = vunpack.c.l.b16 %v5715
          %v5796 = vunpack.c.l.b16 %v5716
          %v5797 = vunpack.c.l.b16 %v5717
          %v5798 = vunpack.c.l.b16 %v5718
          %v5799 = vunpack.c.l.b16 %v5719
          %v5800 = vunpack.c.l.b16 %v5720
          %v5801 = vunpack.c.l.b16 %v5721
          %v5802 = vunpack.c.l.b16 %v5722
          %v5803 = vunpack.c.l.b16 %v5723
          %v5804 = vpack.c.b16 %v5773, %v5772
          %v5805 = vpack.c.b16 %v5775, %v5774
          %v5806 = vpack.c.b16 %v5777, %v5776
          %v5807 = vpack.c.b16 %v5779, %v5778
          %v5808 = vpack.c.b16 %v5781, %v5780
          %v5809 = vpack.c.b16 %v5783, %v5782
          %v5810 = vpack.c.b16 %v5785, %v5784
          %v5811 = vpack.c.b16 %v5787, %v5786
          %v5812 = vpack.c.b16 %v5789, %v5788
          %v5813 = vpack.c.b16 %v5791, %v5790
          %v5814 = vpack.c.b16 %v5793, %v5792
          %v5815 = vpack.c.b16 %v5795, %v5794
          %v5816 = vpack.c.b16 %v5797, %v5796
          %v5817 = vpack.c.b16 %v5799, %v5798
          %v5818 = vpack.c.b16 %v5801, %v5800
          %v5819 = vpack.c.b16 %v5803, %v5802
          %5836 = vmatprep.subr.bf16.mxu0 0
          %5837 = vmatpush1.bf16.msra.mxu0 %v5811
          %5838 = vmatprep.subr.bf16.mxu0 0
          %5839 = vmatpush1.bf16.msra.mxu0 %v5810
          %5840 = vmatprep.subr.bf16.mxu0 0
          %5841 = vmatpush1.bf16.msra.mxu0 %v5809
          %5842 = vmatprep.subr.bf16.mxu0 0
          %5843 = vmatpush1.bf16.msra.mxu0 %v5808
          %5844 = vmatprep.subr.bf16.mxu0 0
          %5845 = vmatpush1.bf16.msra.mxu0 %v5807
          %5846 = vmatprep.subr.bf16.mxu0 0
          %5847 = vmatpush1.bf16.msra.mxu0 %v5806
          %5848 = vmatprep.subr.bf16.mxu0 0
          %5849 = vmatpush1.bf16.msra.mxu0 %v5805
          %5850 = vmatprep.subr.bf16.mxu0 0
          %5851 = vmatpush1.bf16.msra.mxu0 %v5804
          %5852 = vmatprep.subr.bf16.mxu0 0
          %5853 = vmatpush2.bf16.msra.mxu0 %v5819
          %5854 = vmatprep.subr.bf16.mxu0 0
          %5855 = vmatpush2.bf16.msra.mxu0 %v5818
          %5856 = vmatprep.subr.bf16.mxu0 0
          %5857 = vmatpush2.bf16.msra.mxu0 %v5817
          %5858 = vmatprep.subr.bf16.mxu0 0
          %5859 = vmatpush2.bf16.msra.mxu0 %v5816
          %5860 = vmatprep.subr.bf16.mxu0 0
          %5861 = vmatpush2.bf16.msra.mxu0 %v5815
          %5862 = vmatprep.subr.bf16.mxu0 0
          %5863 = vmatpush2.bf16.msra.mxu0 %v5814
          %5864 = vmatprep.subr.bf16.mxu0 0
          %5865 = vmatpush2.bf16.msra.mxu0 %v5813
          %5866 = vmatprep.subr.bf16.mxu0 0
          %5867 = vmatpush2.bf16.msra.mxu0 %v5812
          %5868 = vmatprep.mubr.bf16.mxu0 %v5737
          %5869 = vmatmul.mubr.bf16.gmra.mxu0 %v5736
          %v5870 = vpop.f32.mrf.mxu0
          %v5871 = vadd.f32 0.0, %v5870
          %v5872 = vpop.f32.mrf.mxu0
          %v5873 = vpop.f32.mrf.mxu0
          %v5874 = vpop.f32.mrf.mxu0
          %5875 = vdwg.mxu0
          %5876 = vst [vmem:[#allocation29] sm:$0x3] %v5871
        $region164: #{vision_transformer_forward.3} parent=99 // pred_fallthru
          _
        %s5877 = smul.u32 2, %s59
        %p5878 = scmp.lt.s32.totalorder %s5877, 1
        %s5879 = scalar_select %p5878, %s5877, 1
        %s5880 = smul.addr %s5879, 2
        %s5881 = smul.addr %s5880, 8
        %s5882 = scalar_lea.vmem %s20, %s5881
        // Predicated region
        $region165: #{vision_transformer_forward.3} parent=99 // pred_check
          %p5883 = pneg %p570
        $region166: #{vision_transformer_forward.3} parent=99 // pred_check_branch
          %5885 = sbr.rel (%p5883) target = $region168
        $region167: #{vision_transformer_forward.3} parent=99 // pred_region
          %s5886 = smul.u32 2, %s59
        $region168: #{vision_transformer_forward.3} parent=99 // pred_fallthru
          _
        // Predicated region
        $region169: #{vision_transformer_forward.3} parent=99 // pred_check
          %p5887 = pneg %p596
        $region170: #{vision_transformer_forward.3} parent=99 // pred_check_branch
          %5889 = sbr.rel (%p5887) target = $region172
        $region171: #{vision_transformer_forward.3} parent=99 // pred_region
          %s5891 = ssub.s32 64, 64
          %5892 = vsyncadd [#allocation5], %s5891
          %s5893 = smul.addr %s59, 2
          %s5894 = smul.addr %s5893, 32
          %s5895 = scalar_lea.hbm %s21, %s5894
          %s5897 = sshll.u32 [#allocation26], 4
          %s5898 = int_to_ptr.vmem [resolvable:$true] %s5897
          %5900 = dma.vmem_to_hbm [thread:$0]  %s5898, 64, %s5895, [#allocation5]
        $region172: #{vision_transformer_forward.3} parent=99 // pred_fallthru
          _
        // Predicated region
        $region173: #{vision_transformer_forward.3} parent=99 // pred_check
          %p5901 = pneg %p622
        $region174: #{vision_transformer_forward.3} parent=99 // pred_check_branch
          %5903 = sbr.rel (%p5901) target = $region176
        $region175: #{vision_transformer_forward.3} parent=99 // pred_region
          %s5905 = ssub.s32 64, 64
          %5906 = vsyncadd [#allocation28], %s5905
          %s5907 = smul.addr %s59, 2
          %s5908 = smul.addr %s5907, 32
          %s5909 = scalar_lea.hbm %s22, %s5908
          %s5911 = sshll.u32 [#allocation27], 4
          %s5912 = int_to_ptr.vmem [resolvable:$true] %s5911
          %5914 = dma.vmem_to_hbm [thread:$0]  %s5912, 64, %s5909, [#allocation28]
        $region176: #{vision_transformer_forward.3} parent=99 // pred_fallthru
          _
        // Predicated region
        $region177: #{vision_transformer_forward.3} parent=99 // pred_check
          %p5915 = pneg %p648
        $region178: #{vision_transformer_forward.3} parent=99 // pred_check_branch
          %5917 = sbr.rel (%p5915) target = $region180
        $region179: #{vision_transformer_forward.3} parent=99 // pred_region
          %s5919 = ssub.s32 32, 32
          %5920 = vsyncadd [#allocation28], %s5919
          %s5921 = smul.addr %s59, 32
          %s5922 = scalar_lea.hbm %s23, %s5921
          %s5924 = sshll.u32 [#allocation29], 4
          %s5925 = int_to_ptr.vmem [resolvable:$true] %s5924
          %5927 = dma.vmem_to_hbm [thread:$0]  %s5925, 32, %s5922, [#allocation28]
        $region180: #{vision_transformer_forward.3} parent=99 // pred_fallthru
          _
        // Predicated region
        $region181: #{vision_transformer_forward.3} parent=99 // pred_check
          %p5928 = pneg %p570
        $region182: #{vision_transformer_forward.3} parent=99 // pred_check_branch
          %5930 = sbr.rel (%p5928) target = $region184
        $region183: #{vision_transformer_forward.3} parent=99 // pred_region
          %s5931 = smul.u32 2, %s59
          %p5932 = scmp.lt.s32.totalorder %s5931, 1
          %s5933 = scalar_select %p5932, %s5931, 1
          %s5934 = smul.addr %s5933, 2
          %s5935 = smul.addr %s5934, 8
          %s5936 = scalar_lea.vmem %s20, %s5935
        $region184: #{vision_transformer_forward.3} parent=99 // pred_fallthru
          _
        // Predicated region
        $region185: #{vision_transformer_forward.3} parent=99 // pred_check
          %p5937 = pneg %p596
        $region186: #{vision_transformer_forward.3} parent=99 // pred_check_branch
          %5939 = sbr.rel (%p5937) target = $region188
        $region187: #{vision_transformer_forward.3} parent=99 // pred_region
          %5940 = dma.done [#allocation5], 64
        $region188: #{vision_transformer_forward.3} parent=99 // pred_fallthru
          _
        // Predicated region
        $region189: #{vision_transformer_forward.3} parent=99 // pred_check
          %p5941 = pneg %p622
        $region190: #{vision_transformer_forward.3} parent=99 // pred_check_branch
          %5943 = sbr.rel (%p5941) target = $region192
        $region191: #{vision_transformer_forward.3} parent=99 // pred_region
          %5944 = dma.done [#allocation28], 64
        $region192: #{vision_transformer_forward.3} parent=99 // pred_fallthru
          _
        // Predicated region
        $region193: #{vision_transformer_forward.3} parent=99 // pred_check
          %p5945 = pneg %p648
        $region194: #{vision_transformer_forward.3} parent=99 // pred_check_branch
          %5947 = sbr.rel (%p5945) target = $region196
        $region195: #{vision_transformer_forward.3} parent=99 // pred_region
          %5948 = dma.done [#allocation28], 32
        $region196: #{vision_transformer_forward.3} parent=99 // pred_fallthru
          _
      $region100: #{vision_transformer_forward.3} parent=5 // pred_fallthru
        _
      %p5949 = scmp.le.s32.totalorder 2, %s50
      // Predicated region
      $region197: #{vision_transformer_forward.3} parent=5 // pred_check
        %p5950 = pneg %p5949
      $region198: #{vision_transformer_forward.3} parent=5 // pred_check_branch
        %5952 = sbr.rel (%p5950) target = $region200
      $region199: #{vision_transformer_forward.3} parent=5 // pred_region
        %s5953 = ssub.s32 %s50, 2
      $region200: #{vision_transformer_forward.3} parent=5 // pred_fallthru
        _
    $region6: #{vision_transformer_forward.3} parent=1 // loop_footer
      %s54 = sadd.s32 1, %s50
    $region7: #{vision_transformer_forward.3} parent=1 // loop_footer_branch
      %49 = sbr.rel target = $region3
    $region8: #{vision_transformer_forward.3} parent=1 // loop_exit
      _
    %5954 = vsyncpa [#allocation4], 1
    %s5955 = scalar_lea.sflag [#allocation4], 1
    %5956 = vsyncpa %s5955, 1
    %5957 = vsyncpa [#allocation7], 1
    %s5958 = scalar_lea.sflag [#allocation7], 1
    %5959 = vsyncpa %s5958, 1
    %5960 = vsyncpa [#allocation10], 1
    %s5961 = scalar_lea.sflag [#allocation10], 1
    %5962 = vsyncpa %s5961, 1
    %5963 = vsyncpa [#allocation13], 1
    %s5964 = scalar_lea.sflag [#allocation13], 1
    %5965 = vsyncpa %s5964, 1
    %5966 = vsyncpa [#allocation16], 1
    %s5967 = scalar_lea.sflag [#allocation16], 1
    %5968 = vsyncpa %s5967, 1
    %5969 = vsyncpa [#allocation19], 1
    %5970 = vsyncpa [#allocation22], 1
    %5971 = vsyncpa [#allocation25], 1
    %5972 = vsyncpa [#allocation5], 1
    %s5973 = scalar_lea.sflag [#allocation5], 1
    %5974 = vsyncpa %s5973, 1
    %5975 = vsyncpa [#allocation28], 1

</llo_original>
